<compile_context>
chip_gen: v5e
topology: v5e:2x2
jax: 0.10.0
libtpu: 0.0.40
codegen_flags: <defaults>
</compile_context>

<pallas_src>
import numpy as np

import jax
import jax.numpy as jnp
from jax import lax
from jax.experimental import pallas as pl
from jax.experimental.pallas import tpu as pltpu

_VMEM = pl.BlockSpec(memory_space=pltpu.MemorySpace.VMEM)

_C = 32            # residual-block channel count
_HW = 6            # residual-block spatial size (6x6 after the 3/2 maxpool)
_WIDE = _HW * _C   # 192 useful lanes = (spatial-column x, channel c)
_PAD = 256         # lane / K extent padded to 2 full vregs (lanes 192..255 = 0)


# ----------------------------- Pallas kernels ------------------------------ #

def _gemm_bias_kernel(a_ref, w_ref, b_ref, o_ref):
    """block1: (M,147)bf16 @ (147,32)bf16 + bias, f32 accumulation."""
    o_ref[...] = jnp.dot(a_ref[...], w_ref[...],
                         preferred_element_type=jnp.float32) + b_ref[...]


def _wide_residual_block(pad_ref, x2, nb, m1_ref, g1_ref, b1_ref,
                         m2_ref, g2_ref, b2_ref, fold_ref, expand_ref):
    """Fused residual block in the wide layout (rows = y, lanes = (x, c)).

    pad_ref: (nb, 8, 256) f32 VMEM scratch; caller already zeroed it and wrote
             the block input into rows 1..6 (rows 0/7 and lanes 192..255 stay
             zero and provide the conv's spatial zero padding).
    x2:      (nb*6, 256) f32 residual/skip input.
    Returns  (nb*6, 256) f32 = relu(x + bn2relu(conv2(bn1relu(conv1(x))))).
    """
    cnt = float(nb * _HW * _HW)   # N*H*W elements per channel for batch stats

    def conv(m_ref):
        # One bf16 cast of the whole padded activation, shared by the 3 taps.
        lhs = pad_ref[...].astype(jnp.bfloat16).reshape(nb * 8, _PAD)
        f0 = jnp.dot(lhs, m_ref[0, :, :],
                     preferred_element_type=jnp.float32).reshape(nb, 8, _PAD)
        f1 = jnp.dot(lhs, m_ref[1, :, :],
                     preferred_element_type=jnp.float32).reshape(nb, 8, _PAD)
        f2 = jnp.dot(lhs, m_ref[2, :, :],
                     preferred_element_type=jnp.float32).reshape(nb, 8, _PAD)
        # out row y = tap0 @ row y  +  tap1 @ row y+1  +  tap2 @ row y+2
        acc = f0[:, 0:_HW, :] + f1[:, 1:_HW + 1, :] + f2[:, 2:_HW + 2, :]
        return acc.reshape(nb * _HW, _PAD)

    def bn_relu(acc, g_ref, b_ref):
        s = jnp.sum(acc, axis=0, keepdims=True)                   # (1, 256)
        q = jnp.sum(acc * acc, axis=0, keepdims=True)
        mean = jnp.dot(s, fold_ref[...],
                       preferred_element_type=jnp.float32) / cnt  # (1, 32)
        ex2 = jnp.dot(q, fold_ref[...],
                      preferred_element_type=jnp.float32) / cnt
        var = ex2 - mean * mean                                   # biased (train)
        scale = g_ref[...] * lax.rsqrt(var + 1e-5)                # (1, 32)
        shift = b_ref[...] - mean * scale
        scale_w = jnp.dot(scale, expand_ref[...],
                          preferred_element_type=jnp.float32)     # (1, 256)
        shift_w = jnp.dot(shift, expand_ref[...],
                          preferred_element_type=jnp.float32)
        return jnp.maximum(acc * scale_w + shift_w, 0.0)          # (nb*6, 256)

    h = bn_relu(conv(m1_ref), g1_ref, b1_ref)                     # conv1/bn1/relu
    pad_ref[:, 1:1 + _HW, :] = h.reshape(nb, _HW, _PAD)           # re-pad (lanes
    h = bn_relu(conv(m2_ref), g2_ref, b2_ref)                     # 192+ of h == 0)
    return jnp.maximum(x2 + h, 0.0)                               # skip-add + relu


def _rb1_kernel(pwin_ref, m1_ref, g1_ref, b1_ref, m2_ref, g2_ref, b2_ref,
                fold_ref, expand_ref, o_ref, pad_ref):
    """MaxPool2d(3,2) + residual_block(32,32) #1, fused and batched."""
    nb = o_ref.shape[0]
    pad_ref[...] = jnp.zeros(pad_ref.shape, jnp.float32)
    x = pwin_ref[0]
    for t in range(1, 9):
        x = jnp.maximum(x, pwin_ref[t])            # maxpool over the 9 taps
    pad_ref[:, 1:1 + _HW, :] = x
    out = _wide_residual_block(pad_ref, x.reshape(nb * _HW, _PAD), nb,
                               m1_ref, g1_ref, b1_ref, m2_ref, g2_ref, b2_ref,
                               fold_ref, expand_ref)
    o_ref[...] = out.reshape(nb, _HW, _PAD)


def _rb2_head_kernel(x_ref, m1_ref, g1_ref, b1_ref, m2_ref, g2_ref, b2_ref,
                     fold_ref, expand_ref,
                     ga_ref, gb_ref, fc1b_ref, fc2w_ref, fc2b_ref,
                     fc3w_ref, fc3b_ref, fc4w_ref, fc4b_ref,
                     prob_ref, logit_ref, pad_ref):
    """residual_block #2 + AvgPool2d(3) + flatten + classifier1..4 + softmax."""
    nb = x_ref.shape[0]
    pad_ref[...] = jnp.zeros(pad_ref.shape, jnp.float32)
    x = x_ref[...]                                 # (nb, 6, 256)
    pad_ref[:, 1:1 + _HW, :] = x
    out = _wide_residual_block(pad_ref, x.reshape(nb * _HW, _PAD), nb,
                               m1_ref, g1_ref, b1_ref, m2_ref, g2_ref, b2_ref,
                               fold_ref, expand_ref)
    out = out.reshape(nb, _HW, _PAD)
    # AvgPool2d(3) + PyTorch (C,H,W) flatten + classifier1 are folded into the
    # host-built ga/gb matrices; only the top/bottom 3-row sums are needed.
    top = jnp.sum(out[:, 0:3, :], axis=1)          # (nb, 256)
    bot = jnp.sum(out[:, 3:6, :], axis=1)
    h = (jnp.dot(top.astype(jnp.bfloat16), ga_ref[...],
                 preferred_element_type=jnp.float32)
         + jnp.dot(bot.astype(jnp.bfloat16), gb_ref[...],
                   preferred_element_type=jnp.float32)
         + fc1b_ref[...])                                            # (nb, 64)
    h = jnp.dot(h.astype(jnp.bfloat16), fc2w_ref[...],
                preferred_element_type=jnp.float32) + fc2b_ref[...]  # (nb, 16)
    h = jnp.dot(h.astype(jnp.bfloat16), fc3w_ref[...],
                preferred_element_type=jnp.float32) + fc3b_ref[...]  # (nb, 2)
    lg = jnp.dot(h.astype(jnp.bfloat16), fc4w_ref[...],
                 preferred_element_type=jnp.float32) + fc4b_ref[...] # (nb, 2)
    m = jnp.max(lg, axis=1, keepdims=True)
    e = jnp.exp(lg - m)
    prob_ref[...] = e / jnp.sum(e, axis=1, keepdims=True)
    logit_ref[...] = lg


# ----------------------------- kernel wrappers ------------------------------ #

def block1_conv(cols_bf16, w_bf16, bias_f32):
    m = cols_bf16.shape[0]
    n = w_bf16.shape[1]
    return pl.pallas_call(
        _gemm_bias_kernel,
        out_shape=jax.ShapeDtypeStruct((m, n), jnp.float32),
        in_specs=[_VMEM, _VMEM, _VMEM],
        out_specs=_VMEM,
    )(cols_bf16, w_bf16, bias_f32)


def rb1_maxpool_block(pwin, rb, fold, expand):
    _, nb, hh, wide = pwin.shape
    assert (hh, wide) == (_HW, _PAD)
    return pl.pallas_call(
        _rb1_kernel,
        out_shape=jax.ShapeDtypeStruct((nb, _HW, _PAD), jnp.float32),
        in_specs=[_VMEM] * 9,
        out_specs=_VMEM,
        scratch_shapes=[pltpu.VMEM((nb, 8, _PAD), jnp.float32)],
    )(pwin, rb["m1"], rb["g1"], rb["b1"], rb["m2"], rb["g2"], rb["b2"],
      fold, expand)


def rb2_head(x, rb, kp):
    nb = x.shape[0]
    return pl.pallas_call(
        _rb2_head_kernel,
        out_shape=(jax.ShapeDtypeStruct((nb, 2), jnp.float32),
                   jax.ShapeDtypeStruct((nb, 2), jnp.float32)),
        in_specs=[_VMEM] * 18,
        out_specs=(_VMEM, _VMEM),
        scratch_shapes=[pltpu.VMEM((nb, 8, _PAD), jnp.float32)],
    )(x, rb["m1"], rb["g1"], rb["b1"], rb["m2"], rb["g2"], rb["b2"],
      kp["fold"], kp["expand"], kp["ga"], kp["gb"], kp["fc1_b"],
      kp["fc2_w"], kp["fc2_b"], kp["fc3_w"], kp["fc3_b"],
      kp["fc4_w"], kp["fc4_b"])


# --------------------------- host-side glue / prep -------------------------- #

def im2col(x, kh, kw, stride, pad):
    # x: (N, H, W, C) NHWC. Used only for the 7x7 stride-2 stem conv.
    if pad > 0:
        x = jnp.pad(x, ((0, 0), (pad, pad), (pad, pad), (0, 0)))
    n, h, w, c = x.shape
    oh = (h - kh) // stride + 1
    ow = (w - kw) // stride + 1
    cols = []
    for i in range(kh):
        for j in range(kw):
            cols.append(x[:, i:i + stride * (oh - 1) + 1:stride,
                          j:j + stride * (ow - 1) + 1:stride, :])
    patches = jnp.stack(cols, axis=3)                 # (N, oh, ow, kh*kw, C)
    return patches.reshape(n * oh * ow, kh * kw * c), (n, oh, ow)


def _conv3x3_to_wide(w):
    """PyTorch (co, ci, 3, 3) -> (3, 256, 256) banded block matrices (bf16)."""
    w = np.asarray(w, np.float32)
    wt = np.transpose(w, (2, 3, 1, 0))                # (ky, kx, ci, co)
    m = np.zeros((3, _PAD, _PAD), np.float32)
    for ky in range(3):
        for x in range(_HW):
            for kx in range(3):
                xp = x + kx - 1                       # padded input column
                if xp < 0:
                    continue                          # left zero padding
                # xp == 6 lands on rows 192..223 which multiply the zero lanes
                # of the padded activation -> right zero padding for free.
                m[ky, xp * _C:(xp + 1) * _C, x * _C:(x + 1) * _C] = wt[ky, kx]
    return jnp.asarray(m, jnp.bfloat16)


def _fc1_to_wide(fc1_w):
    """Fold AvgPool2d(3) + (C,H,W) flatten into classifier1's weight.

    fc1_w: (128, 64) with row index f = c*4 + oy*2 + ox (PyTorch flatten).
    Returns (256, 64) matrices for feature rows 0..2 (ga) and 3..5 (gb).
    """
    w = np.asarray(fc1_w, np.float32)
    g = np.zeros((2, _PAD, w.shape[1]), np.float32)
    for oy in range(2):
        for x in range(_HW):
            ox = x // 3
            for c in range(_C):
                g[oy, x * _C + c, :] = w[c * 4 + oy * 2 + ox, :] / 9.0
    return jnp.asarray(g[0], jnp.bfloat16), jnp.asarray(g[1], jnp.bfloat16)


def _rb_prepare(p):
    return dict(
        m1=_conv3x3_to_wide(p["conv1_w"]),
        g1=jnp.asarray(p["bn1_g"], jnp.float32).reshape(1, _C),
        b1=jnp.asarray(p["bn1_b"], jnp.float32).reshape(1, _C),
        m2=_conv3x3_to_wide(p["conv2_w"]),
        g2=jnp.asarray(p["bn2_g"], jnp.float32).reshape(1, _C),
        b2=jnp.asarray(p["bn2_b"], jnp.float32).reshape(1, _C),
    )


def prepare_kernel_params(params):
    """Convert PyTorch-layout parameters to the kernel-ready format (host, once)."""
    eye = np.eye(_C, dtype=np.float32)
    fold = np.zeros((_PAD, _C), np.float32)           # (256, 32): lane -> channel
    fold[:_WIDE, :] = np.tile(eye, (_HW, 1))
    expand = np.zeros((_C, _PAD), np.float32)         # (32, 256): channel -> lane
    expand[:, :_WIDE] = np.tile(eye, (1, _HW))
    w1 = np.asarray(params["block1_w"], np.float32)   # (32, Cin, 7, 7)
    w1_mat = np.transpose(w1, (2, 3, 1, 0)).reshape(7 * 7 * w1.shape[1], 32)
    ga, gb = _fc1_to_wide(params["fc1_w"])
    return dict(
        block1_w=jnp.asarray(w1_mat, jnp.bfloat16),
        block1_b=jnp.asarray(params["block1_b"], jnp.float32).reshape(1, 32),
        rb1=_rb_prepare(params["rb1"]),
        rb2=_rb_prepare(params["rb2"]),
        fold=jnp.asarray(fold), expand=jnp.asarray(expand), ga=ga, gb=gb,
        fc1_b=jnp.asarray(params["fc1_b"], jnp.float32).reshape(1, -1),
        fc2_w=jnp.asarray(params["fc2_w"], jnp.bfloat16),
        fc2_b=jnp.asarray(params["fc2_b"], jnp.float32).reshape(1, -1),
        fc3_w=jnp.asarray(params["fc3_w"], jnp.bfloat16),
        fc3_b=jnp.asarray(params["fc3_b"], jnp.float32).reshape(1, -1),
        fc4_w=jnp.asarray(params["fc4_w"], jnp.bfloat16),
        fc4_b=jnp.asarray(params["fc4_b"], jnp.float32).reshape(1, -1),
    )


def resnet_forward(x_nchw, kp):
    nb = x_nchw.shape[0]
    assert x_nchw.shape[2:] == (32, 32)   # classifier1 = Linear(32*2*2, 64)
    x = jnp.transpose(x_nchw, (0, 2, 3, 1))                    # NCHW -> NHWC
    # block1: Conv2d(in, 32, 7, stride=2), no padding, bias=True
    cols, (n, oh, ow) = im2col(x, 7, 7, 2, 0)                  # (N*13*13, 147)
    conv1 = block1_conv(cols.astype(jnp.bfloat16),
                        kp["block1_w"], kp["block1_b"])        # (N*169, 32) f32
    fmap = conv1.reshape(nb, oh, ow, 32)                       # (N, 13, 13, 32)
    # MaxPool2d(3, 2) windows in the lane-dense wide layout, padded to 256 lanes
    wins = []
    for i in range(3):
        for j in range(3):
            wins.append(fmap[:, i:i + 11:2, j:j + 11:2, :].reshape(nb, _HW, _WIDE))
    pwin = jnp.stack(wins, axis=0)                             # (9, N, 6, 192)
    pwin = jnp.pad(pwin, ((0, 0), (0, 0), (0, 0), (0, _PAD - _WIDE)))
    # fused maxpool + residual block 1
    y = rb1_maxpool_block(pwin, kp["rb1"], kp["fold"], kp["expand"])
    # fused residual block 2 + avgpool + flatten + fc1..fc4 + softmax
    probs, logits = rb2_head(y, kp["rb2"], kp)
    return probs, logits


# ------------------------- deterministic parameters ------------------------- #

def init_params(key, in_channel=3, num_classes=2):
    assert num_classes == 2   # classifier4 is Linear(2, 2) in the PyTorch spec
    keys = iter(jax.random.split(key, 32))

    def nrm(shape, scale=0.1):
        return (scale * jax.random.normal(next(keys), shape)).astype(jnp.float32)

    def rb(cin, cout):
        return dict(
            conv1_w=nrm((cout, cin, 3, 3)),
            bn1_g=jnp.ones((cout,), jnp.float32),
            bn1_b=jnp.zeros((cout,), jnp.float32),
            conv2_w=nrm((cout, cout, 3, 3)),
            bn2_g=jnp.ones((cout,), jnp.float32),
            bn2_b=jnp.zeros((cout,), jnp.float32),
        )

    return dict(
        block1_w=nrm((32, in_channel, 7, 7)),
        block1_b=nrm((32,)),
        rb1=rb(32, 32),
        rb2=rb(32, 32),
        fc1_w=nrm((32 * 2 * 2, 64)), fc1_b=nrm((64,)),
        fc2_w=nrm((64, 16)), fc2_b=nrm((16,)),
        fc3_w=nrm((16, num_classes)), fc3_b=nrm((num_classes,)),
        fc4_w=nrm((2, 2)), fc4_b=nrm((2,)),
    )


if __name__ == "__main__":
    key = jax.random.PRNGKey(0)
    pkey, xkey = jax.random.split(key)
    params = init_params(pkey, in_channel=3, num_classes=2)
    kparams = prepare_kernel_params(params)      # host-side, done once
    # 32x32 input -> conv7/2 -> 13 -> maxpool3/2 -> 6 -> residuals -> 6 -> avgpool3 -> 2
    x = jax.random.normal(xkey, (2, 3, 32, 32), jnp.float32)
    fwd = jax.jit(resnet_forward)
    probs, logits = fwd(x, kparams)
    jax.block_until_ready((probs, logits))
    assert probs.shape == (2, 2) and logits.shape == (2, 2)
    assert bool(jnp.all(jnp.isfinite(probs))) and bool(jnp.all(jnp.isfinite(logits)))
    assert bool(jnp.all(jnp.abs(jnp.sum(probs, axis=1) - 1.0) < 1e-3))
    print("KERNEL_OK")
</pallas_src>

<mosaic_0001>
module attributes {stable_mosaic.version = 11 : i64} {
  func.func @_gemm_bias_kernel(%arg0: memref<338x147xbf16, #tpu.memory_space<vmem>>, %arg1: memref<147x32xbf16, #tpu.memory_space<vmem>>, %arg2: memref<1x32xf32, #tpu.memory_space<vmem>>, %arg3: memref<338x32xf32, #tpu.memory_space<vmem>>) attributes {dimension_semantics = [], scalar_prefetch = 0 : i64, scratch_operands = 0 : i64, tpu.core_type = #tpu.core_type<tc>} {
    %c0 = arith.constant 0 : index
    %c0_0 = arith.constant 0 : index
    %0 = vector.load %arg0[%c0, %c0_0] : memref<338x147xbf16, #tpu.memory_space<vmem>>, vector<338x147xbf16>
    %c0_1 = arith.constant 0 : index
    %c0_2 = arith.constant 0 : index
    %1 = vector.load %arg1[%c0_1, %c0_2] : memref<147x32xbf16, #tpu.memory_space<vmem>>, vector<147x32xbf16>
    %cst = arith.constant dense<0.000000e+00> : vector<338x32xf32>
    %2 = tpu.matmul %0, %1, %cst {dimension_numbers = #tpu.dot_dimension_numbers<[1], [0], [0], [1], [0, 0, 1, 1], [], []>} : vector<338x147xbf16>, vector<147x32xbf16>, vector<338x32xf32> -> vector<338x32xf32>
    %c0_3 = arith.constant 0 : index
    %c0_4 = arith.constant 0 : index
    %3 = vector.load %arg2[%c0_3, %c0_4] : memref<1x32xf32, #tpu.memory_space<vmem>>, vector<1x32xf32>
    %4 = vector.broadcast %3 : vector<1x32xf32> to vector<338x32xf32>
    %5 = arith.addf %2, %4 : vector<338x32xf32>
    %c0_5 = arith.constant 0 : index
    %c0_6 = arith.constant 0 : index
    %6 = vector.load %arg3[%c0_5, %c0_6] : memref<338x32xf32, #tpu.memory_space<vmem>>, vector<338x32xf32>
    tpu.vector_store %arg3[%c0_5, %c0_6], %5 {strides = array<i32>} : memref<338x32xf32, #tpu.memory_space<vmem>>, vector<338x32xf32>,
    return
  }
}

module attributes {stable_mosaic.version = 11 : i64} {
  func.func @_rb1_kernel(%arg0: memref<9x2x6x256xf32, #tpu.memory_space<vmem>>, %arg1: memref<3x256x256xbf16, #tpu.memory_space<vmem>>, %arg2: memref<1x32xf32, #tpu.memory_space<vmem>>, %arg3: memref<1x32xf32, #tpu.memory_space<vmem>>, %arg4: memref<3x256x256xbf16, #tpu.memory_space<vmem>>, %arg5: memref<1x32xf32, #tpu.memory_space<vmem>>, %arg6: memref<1x32xf32, #tpu.memory_space<vmem>>, %arg7: memref<256x32xf32, #tpu.memory_space<vmem>>, %arg8: memref<32x256xf32, #tpu.memory_space<vmem>>, %arg9: memref<2x6x256xf32, #tpu.memory_space<vmem>>, %arg10: memref<2x8x256xf32, #tpu.memory_space<vmem>>) attributes {dimension_semantics = [], scalar_prefetch = 0 : i64, scratch_operands = 1 : i64, tpu.core_type = #tpu.core_type<tc>} {
    %cst = arith.constant 0.000000e+00 : f32
    %0 = vector.broadcast %cst : f32 to vector<2x8x256xf32>
    %c0 = arith.constant 0 : index
    %c0_0 = arith.constant 0 : index
    %c0_1 = arith.constant 0 : index
    %1 = vector.load %arg10[%c0, %c0_0, %c0_1] : memref<2x8x256xf32, #tpu.memory_space<vmem>>, vector<2x8x256xf32>
    tpu.vector_store %arg10[%c0, %c0_0, %c0_1], %0 {strides = array<i32>} : memref<2x8x256xf32, #tpu.memory_space<vmem>>, vector<2x8x256xf32>,
    %c0_2 = arith.constant 0 : index
    %c0_3 = arith.constant 0 : index
    %c0_4 = arith.constant 0 : index
    %c0_5 = arith.constant 0 : index
    %2 = vector.load %arg0[%c0_2, %c0_3, %c0_4, %c0_5] : memref<9x2x6x256xf32, #tpu.memory_space<vmem>>, vector<1x2x6x256xf32>
    %3 = vector.shape_cast %2 : vector<1x2x6x256xf32> to vector<2x6x256xf32>
    %c1 = arith.constant 1 : index
    %c0_6 = arith.constant 0 : index
    %c0_7 = arith.constant 0 : index
    %c0_8 = arith.constant 0 : index
    %4 = vector.load %arg0[%c1, %c0_6, %c0_7, %c0_8] : memref<9x2x6x256xf32, #tpu.memory_space<vmem>>, vector<1x2x6x256xf32>
    %5 = vector.shape_cast %4 : vector<1x2x6x256xf32> to vector<2x6x256xf32>
    %6 = arith.maximumf %3, %5 : vector<2x6x256xf32>
    %c2 = arith.constant 2 : index
    %c0_9 = arith.constant 0 : index
    %c0_10 = arith.constant 0 : index
    %c0_11 = arith.constant 0 : index
    %7 = vector.load %arg0[%c2, %c0_9, %c0_10, %c0_11] : memref<9x2x6x256xf32, #tpu.memory_space<vmem>>, vector<1x2x6x256xf32>
    %8 = vector.shape_cast %7 : vector<1x2x6x256xf32> to vector<2x6x256xf32>
    %9 = arith.maximumf %6, %8 : vector<2x6x256xf32>
    %c3 = arith.constant 3 : index
    %c0_12 = arith.constant 0 : index
    %c0_13 = arith.constant 0 : index
    %c0_14 = arith.constant 0 : index
    %10 = vector.load %arg0[%c3, %c0_12, %c0_13, %c0_14] : memref<9x2x6x256xf32, #tpu.memory_space<vmem>>, vector<1x2x6x256xf32>
    %11 = vector.shape_cast %10 : vector<1x2x6x256xf32> to vector<2x6x256xf32>
    %12 = arith.maximumf %9, %11 : vector<2x6x256xf32>
    %c4 = arith.constant 4 : index
    %c0_15 = arith.constant 0 : index
    %c0_16 = arith.constant 0 : index
    %c0_17 = arith.constant 0 : index
    %13 = vector.load %arg0[%c4, %c0_15, %c0_16, %c0_17] : memref<9x2x6x256xf32, #tpu.memory_space<vmem>>, vector<1x2x6x256xf32>
    %14 = vector.shape_cast %13 : vector<1x2x6x256xf32> to vector<2x6x256xf32>
    %15 = arith.maximumf %12, %14 : vector<2x6x256xf32>
    %c5 = arith.constant 5 : index
    %c0_18 = arith.constant 0 : index
    %c0_19 = arith.constant 0 : index
    %c0_20 = arith.constant 0 : index
    %16 = vector.load %arg0[%c5, %c0_18, %c0_19, %c0_20] : memref<9x2x6x256xf32, #tpu.memory_space<vmem>>, vector<1x2x6x256xf32>
    %17 = vector.shape_cast %16 : vector<1x2x6x256xf32> to vector<2x6x256xf32>
    %18 = arith.maximumf %15, %17 : vector<2x6x256xf32>
    %c6 = arith.constant 6 : index
    %c0_21 = arith.constant 0 : index
    %c0_22 = arith.constant 0 : index
    %c0_23 = arith.constant 0 : index
    %19 = vector.load %arg0[%c6, %c0_21, %c0_22, %c0_23] : memref<9x2x6x256xf32, #tpu.memory_space<vmem>>, vector<1x2x6x256xf32>
    %20 = vector.shape_cast %19 : vector<1x2x6x256xf32> to vector<2x6x256xf32>
    %21 = arith.maximumf %18, %20 : vector<2x6x256xf32>
    %c7 = arith.constant 7 : index
    %c0_24 = arith.constant 0 : index
    %c0_25 = arith.constant 0 : index
    %c0_26 = arith.constant 0 : index
    %22 = vector.load %arg0[%c7, %c0_24, %c0_25, %c0_26] : memref<9x2x6x256xf32, #tpu.memory_space<vmem>>, vector<1x2x6x256xf32>
    %23 = vector.shape_cast %22 : vector<1x2x6x256xf32> to vector<2x6x256xf32>
    %24 = arith.maximumf %21, %23 : vector<2x6x256xf32>
    %c8 = arith.constant 8 : index
    %c0_27 = arith.constant 0 : index
    %c0_28 = arith.constant 0 : index
    %c0_29 = arith.constant 0 : index
    %25 = vector.load %arg0[%c8, %c0_27, %c0_28, %c0_29] : memref<9x2x6x256xf32, #tpu.memory_space<vmem>>, vector<1x2x6x256xf32>
    %26 = vector.shape_cast %25 : vector<1x2x6x256xf32> to vector<2x6x256xf32>
    %27 = arith.maximumf %24, %26 : vector<2x6x256xf32>
    %c0_30 = arith.constant 0 : index
    %c1_31 = arith.constant 1 : index
    %c0_32 = arith.constant 0 : index
    %28 = vector.load %arg10[%c0_30, %c1_31, %c0_32] : memref<2x8x256xf32, #tpu.memory_space<vmem>>, vector<2x6x256xf32>
    tpu.vector_store %arg10[%c0_30, %c1_31, %c0_32], %27 {strides = array<i32>} : memref<2x8x256xf32, #tpu.memory_space<vmem>>, vector<2x6x256xf32>,
    %29 = vector.shape_cast %27 : vector<2x6x256xf32> to vector<12x256xf32>
    %c0_33 = arith.constant 0 : index
    %c0_34 = arith.constant 0 : index
    %c0_35 = arith.constant 0 : index
    %30 = vector.load %arg10[%c0_33, %c0_34, %c0_35] : memref<2x8x256xf32, #tpu.memory_space<vmem>>, vector<2x8x256xf32>
    %31 = arith.truncf %30 : vector<2x8x256xf32> to vector<2x8x256xbf16>
    %32 = vector.shape_cast %31 : vector<2x8x256xbf16> to vector<16x256xbf16>
    %c0_36 = arith.constant 0 : index
    %c0_37 = arith.constant 0 : index
    %c0_38 = arith.constant 0 : index
    %33 = vector.load %arg1[%c0_36, %c0_37, %c0_38] : memref<3x256x256xbf16, #tpu.memory_space<vmem>>, vector<1x256x256xbf16>
    %34 = vector.shape_cast %33 : vector<1x256x256xbf16> to vector<256x256xbf16>
    %cst_39 = arith.constant dense<0.000000e+00> : vector<16x256xf32>
    %35 = tpu.matmul %32, %34, %cst_39 {dimension_numbers = #tpu.dot_dimension_numbers<[1], [0], [0], [1], [0, 0, 1, 1], [], []>} : vector<16x256xbf16>, vector<256x256xbf16>, vector<16x256xf32> -> vector<16x256xf32>
    %36 = vector.shape_cast %35 : vector<16x256xf32> to vector<2x8x256xf32>
    %c1_40 = arith.constant 1 : index
    %c0_41 = arith.constant 0 : index
    %c0_42 = arith.constant 0 : index
    %37 = vector.load %arg1[%c1_40, %c0_41, %c0_42] : memref<3x256x256xbf16, #tpu.memory_space<vmem>>, vector<1x256x256xbf16>
    %38 = vector.shape_cast %37 : vector<1x256x256xbf16> to vector<256x256xbf16>
    %cst_43 = arith.constant dense<0.000000e+00> : vector<16x256xf32>
    %39 = tpu.matmul %32, %38, %cst_43 {dimension_numbers = #tpu.dot_dimension_numbers<[1], [0], [0], [1], [0, 0, 1, 1], [], []>} : vector<16x256xbf16>, vector<256x256xbf16>, vector<16x256xf32> -> vector<16x256xf32>
    %40 = vector.shape_cast %39 : vector<16x256xf32> to vector<2x8x256xf32>
    %c2_44 = arith.constant 2 : index
    %c0_45 = arith.constant 0 : index
    %c0_46 = arith.constant 0 : index
    %41 = vector.load %arg1[%c2_44, %c0_45, %c0_46] : memref<3x256x256xbf16, #tpu.memory_space<vmem>>, vector<1x256x256xbf16>
    %42 = vector.shape_cast %41 : vector<1x256x256xbf16> to vector<256x256xbf16>
    %cst_47 = arith.constant dense<0.000000e+00> : vector<16x256xf32>
    %43 = tpu.matmul %32, %42, %cst_47 {dimension_numbers = #tpu.dot_dimension_numbers<[1], [0], [0], [1], [0, 0, 1, 1], [], []>} : vector<16x256xbf16>, vector<256x256xbf16>, vector<16x256xf32> -> vector<16x256xf32>
    %44 = vector.shape_cast %43 : vector<16x256xf32> to vector<2x8x256xf32>
    %45 = vector.extract_strided_slice %36 {offsets = [0, 0, 0], sizes = [2, 6, 256], strides = [1, 1, 1]} : vector<2x8x256xf32> to vector<2x6x256xf32>
    %46 = vector.extract_strided_slice %40 {offsets = [0, 1, 0], sizes = [2, 6, 256], strides = [1, 1, 1]} : vector<2x8x256xf32> to vector<2x6x256xf32>
    %47 = arith.addf %45, %46 : vector<2x6x256xf32>
    %48 = vector.extract_strided_slice %44 {offsets = [0, 2, 0], sizes = [2, 6, 256], strides = [1, 1, 1]} : vector<2x8x256xf32> to vector<2x6x256xf32>
    %49 = arith.addf %47, %48 : vector<2x6x256xf32>
    %50 = vector.shape_cast %49 : vector<2x6x256xf32> to vector<12x256xf32>
    %cst_48 = arith.constant dense<0.000000e+00> : vector<256xf32>
    %51 = vector.multi_reduction <add>, %50, %cst_48 [0] : vector<12x256xf32> to vector<256xf32>
    %52 = vector.shape_cast %51 : vector<256xf32> to vector<1x256xf32>
    %53 = arith.mulf %50, %50 : vector<12x256xf32>
    %cst_49 = arith.constant dense<0.000000e+00> : vector<256xf32>
    %54 = vector.multi_reduction <add>, %53, %cst_49 [0] : vector<12x256xf32> to vector<256xf32>
    %55 = vector.shape_cast %54 : vector<256xf32> to vector<1x256xf32>
    %c0_50 = arith.constant 0 : index
    %c0_51 = arith.constant 0 : index
    %56 = vector.load %arg7[%c0_50, %c0_51] : memref<256x32xf32, #tpu.memory_space<vmem>>, vector<256x32xf32>
    %cst_52 = arith.constant dense<0.000000e+00> : vector<1x32xf32>
    %57 = tpu.matmul %52, %56, %cst_52 {dimension_numbers = #tpu.dot_dimension_numbers<[1], [0], [0], [1], [0, 0, 1, 1], [], []>} : vector<1x256xf32>, vector<256x32xf32>, vector<1x32xf32> -> vector<1x32xf32>
    %cst_53 = arith.constant 7.200000e+01 : f32
    %58 = vector.broadcast %cst_53 : f32 to vector<1x32xf32>
    %59 = arith.divf %57, %58 : vector<1x32xf32>
    %c0_54 = arith.constant 0 : index
    %c0_55 = arith.constant 0 : index
    %60 = vector.load %arg7[%c0_54, %c0_55] : memref<256x32xf32, #tpu.memory_space<vmem>>, vector<256x32xf32>
    %cst_56 = arith.constant dense<0.000000e+00> : vector<1x32xf32>
    %61 = tpu.matmul %55, %60, %cst_56 {dimension_numbers = #tpu.dot_dimension_numbers<[1], [0], [0], [1], [0, 0, 1, 1], [], []>} : vector<1x256xf32>, vector<256x32xf32>, vector<1x32xf32> -> vector<1x32xf32>
    %cst_57 = arith.constant 7.200000e+01 : f32
    %62 = vector.broadcast %cst_57 : f32 to vector<1x32xf32>
    %63 = arith.divf %61, %62 : vector<1x32xf32>
    %64 = arith.mulf %59, %59 : vector<1x32xf32>
    %65 = arith.subf %63, %64 : vector<1x32xf32>
    %c0_58 = arith.constant 0 : index
    %c0_59 = arith.constant 0 : index
    %66 = vector.load %arg2[%c0_58, %c0_59] : memref<1x32xf32, #tpu.memory_space<vmem>>, vector<1x32xf32>
    %cst_60 = arith.constant 9.99999974E-6 : f32
    %67 = vector.broadcast %cst_60 : f32 to vector<1x32xf32>
    %68 = arith.addf %65, %67 : vector<1x32xf32>
    %69 = math.rsqrt %68 : vector<1x32xf32>
    %70 = arith.mulf %66, %69 : vector<1x32xf32>
    %c0_61 = arith.constant 0 : index
    %c0_62 = arith.constant 0 : index
    %71 = vector.load %arg3[%c0_61, %c0_62] : memref<1x32xf32, #tpu.memory_space<vmem>>, vector<1x32xf32>
    %72 = arith.mulf %59, %70 : vector<1x32xf32>
    %73 = arith.subf %71, %72 : vector<1x32xf32>
    %c0_63 = arith.constant 0 : index
    %c0_64 = arith.constant 0 : index
    %74 = vector.load %arg8[%c0_63, %c0_64] : memref<32x256xf32, #tpu.memory_space<vmem>>, vector<32x256xf32>
    %cst_65 = arith.constant dense<0.000000e+00> : vector<1x256xf32>
    %75 = tpu.matmul %70, %74, %cst_65 {dimension_numbers = #tpu.dot_dimension_numbers<[1], [0], [0], [1], [0, 0, 1, 1], [], []>} : vector<1x32xf32>, vector<32x256xf32>, vector<1x256xf32> -> vector<1x256xf32>
    %c0_66 = arith.constant 0 : index
    %c0_67 = arith.constant 0 : index
    %76 = vector.load %arg8[%c0_66, %c0_67] : memref<32x256xf32, #tpu.memory_space<vmem>>, vector<32x256xf32>
    %cst_68 = arith.constant dense<0.000000e+00> : vector<1x256xf32>
    %77 = tpu.matmul %73, %76, %cst_68 {dimension_numbers = #tpu.dot_dimension_numbers<[1], [0], [0], [1], [0, 0, 1, 1], [], []>} : vector<1x32xf32>, vector<32x256xf32>, vector<1x256xf32> -> vector<1x256xf32>
    %78 = vector.broadcast %75 : vector<1x256xf32> to vector<12x256xf32>
    %79 = arith.mulf %50, %78 : vector<12x256xf32>
    %80 = vector.broadcast %77 : vector<1x256xf32> to vector<12x256xf32>
    %81 = arith.addf %79, %80 : vector<12x256xf32>
    %cst_69 = arith.constant 0.000000e+00 : f32
    %82 = vector.broadcast %cst_69 : f32 to vector<12x256xf32>
    %83 = arith.maximumf %81, %82 : vector<12x256xf32>
    %84 = vector.shape_cast %83 : vector<12x256xf32> to vector<2x6x256xf32>
    %c0_70 = arith.constant 0 : index
    %c1_71 = arith.constant 1 : index
    %c0_72 = arith.constant 0 : index
    %85 = vector.load %arg10[%c0_70, %c1_71, %c0_72] : memref<2x8x256xf32, #tpu.memory_space<vmem>>, vector<2x6x256xf32>
    tpu.vector_store %arg10[%c0_70, %c1_71, %c0_72], %84 {strides = array<i32>} : memref<2x8x256xf32, #tpu.memory_space<vmem>>, vector<2x6x256xf32>,
    %c0_73 = arith.constant 0 : index
    %c0_74 = arith.constant 0 : index
    %c0_75 = arith.constant 0 : index
    %86 = vector.load %arg10[%c0_73, %c0_74, %c0_75] : memref<2x8x256xf32, #tpu.memory_space<vmem>>, vector<2x8x256xf32>
    %87 = arith.truncf %86 : vector<2x8x256xf32> to vector<2x8x256xbf16>
    %88 = vector.shape_cast %87 : vector<2x8x256xbf16> to vector<16x256xbf16>
    %c0_76 = arith.constant 0 : index
    %c0_77 = arith.constant 0 : index
    %c0_78 = arith.constant 0 : index
    %89 = vector.load %arg4[%c0_76, %c0_77, %c0_78] : memref<3x256x256xbf16, #tpu.memory_space<vmem>>, vector<1x256x256xbf16>
    %90 = vector.shape_cast %89 : vector<1x256x256xbf16> to vector<256x256xbf16>
    %cst_79 = arith.constant dense<0.000000e+00> : vector<16x256xf32>
    %91 = tpu.matmul %88, %90, %cst_79 {dimension_numbers = #tpu.dot_dimension_numbers<[1], [0], [0], [1], [0, 0, 1, 1], [], []>} : vector<16x256xbf16>, vector<256x256xbf16>, vector<16x256xf32> -> vector<16x256xf32>
    %92 = vector.shape_cast %91 : vector<16x256xf32> to vector<2x8x256xf32>
    %c1_80 = arith.constant 1 : index
    %c0_81 = arith.constant 0 : index
    %c0_82 = arith.constant 0 : index
    %93 = vector.load %arg4[%c1_80, %c0_81, %c0_82] : memref<3x256x256xbf16, #tpu.memory_space<vmem>>, vector<1x256x256xbf16>
    %94 = vector.shape_cast %93 : vector<1x256x256xbf16> to vector<256x256xbf16>
    %cst_83 = arith.constant dense<0.000000e+00> : vector<16x256xf32>
    %95 = tpu.matmul %88, %94, %cst_83 {dimension_numbers = #tpu.dot_dimension_numbers<[1], [0], [0], [1], [0, 0, 1, 1], [], []>} : vector<16x256xbf16>, vector<256x256xbf16>, vector<16x256xf32> -> vector<16x256xf32>
    %96 = vector.shape_cast %95 : vector<16x256xf32> to vector<2x8x256xf32>
    %c2_84 = arith.constant 2 : index
    %c0_85 = arith.constant 0 : index
    %c0_86 = arith.constant 0 : index
    %97 = vector.load %arg4[%c2_84, %c0_85, %c0_86] : memref<3x256x256xbf16, #tpu.memory_space<vmem>>, vector<1x256x256xbf16>
    %98 = vector.shape_cast %97 : vector<1x256x256xbf16> to vector<256x256xbf16>
    %cst_87 = arith.constant dense<0.000000e+00> : vector<16x256xf32>
    %99 = tpu.matmul %88, %98, %cst_87 {dimension_numbers = #tpu.dot_dimension_numbers<[1], [0], [0], [1], [0, 0, 1, 1], [], []>} : vector<16x256xbf16>, vector<256x256xbf16>, vector<16x256xf32> -> vector<16x256xf32>
    %100 = vector.shape_cast %99 : vector<16x256xf32> to vector<2x8x256xf32>
    %101 = vector.extract_strided_slice %92 {offsets = [0, 0, 0], sizes = [2, 6, 256], strides = [1, 1, 1]} : vector<2x8x256xf32> to vector<2x6x256xf32>
    %102 = vector.extract_strided_slice %96 {offsets = [0, 1, 0], sizes = [2, 6, 256], strides = [1, 1, 1]} : vector<2x8x256xf32> to vector<2x6x256xf32>
    %103 = arith.addf %101, %102 : vector<2x6x256xf32>
    %104 = vector.extract_strided_slice %100 {offsets = [0, 2, 0], sizes = [2, 6, 256], strides = [1, 1, 1]} : vector<2x8x256xf32> to vector<2x6x256xf32>
    %105 = arith.addf %103, %104 : vector<2x6x256xf32>
    %106 = vector.shape_cast %105 : vector<2x6x256xf32> to vector<12x256xf32>
    %cst_88 = arith.constant dense<0.000000e+00> : vector<256xf32>
    %107 = vector.multi_reduction <add>, %106, %cst_88 [0] : vector<12x256xf32> to vector<256xf32>
    %108 = vector.shape_cast %107 : vector<256xf32> to vector<1x256xf32>
    %109 = arith.mulf %106, %106 : vector<12x256xf32>
    %cst_89 = arith.constant dense<0.000000e+00> : vector<256xf32>
    %110 = vector.multi_reduction <add>, %109, %cst_89 [0] : vector<12x256xf32> to vector<256xf32>
    %111 = vector.shape_cast %110 : vector<256xf32> to vector<1x256xf32>
    %c0_90 = arith.constant 0 : index
    %c0_91 = arith.constant 0 : index
    %112 = vector.load %arg7[%c0_90, %c0_91] : memref<256x32xf32, #tpu.memory_space<vmem>>, vector<256x32xf32>
    %cst_92 = arith.constant dense<0.000000e+00> : vector<1x32xf32>
    %113 = tpu.matmul %108, %112, %cst_92 {dimension_numbers = #tpu.dot_dimension_numbers<[1], [0], [0], [1], [0, 0, 1, 1], [], []>} : vector<1x256xf32>, vector<256x32xf32>, vector<1x32xf32> -> vector<1x32xf32>
    %cst_93 = arith.constant 7.200000e+01 : f32
    %114 = vector.broadcast %cst_93 : f32 to vector<1x32xf32>
    %115 = arith.divf %113, %114 : vector<1x32xf32>
    %c0_94 = arith.constant 0 : index
    %c0_95 = arith.constant 0 : index
    %116 = vector.load %arg7[%c0_94, %c0_95] : memref<256x32xf32, #tpu.memory_space<vmem>>, vector<256x32xf32>
    %cst_96 = arith.constant dense<0.000000e+00> : vector<1x32xf32>
    %117 = tpu.matmul %111, %116, %cst_96 {dimension_numbers = #tpu.dot_dimension_numbers<[1], [0], [0], [1], [0, 0, 1, 1], [], []>} : vector<1x256xf32>, vector<256x32xf32>, vector<1x32xf32> -> vector<1x32xf32>
    %cst_97 = arith.constant 7.200000e+01 : f32
    %118 = vector.broadcast %cst_97 : f32 to vector<1x32xf32>
    %119 = arith.divf %117, %118 : vector<1x32xf32>
    %120 = arith.mulf %115, %115 : vector<1x32xf32>
    %121 = arith.subf %119, %120 : vector<1x32xf32>
    %c0_98 = arith.constant 0 : index
    %c0_99 = arith.constant 0 : index
    %122 = vector.load %arg5[%c0_98, %c0_99] : memref<1x32xf32, #tpu.memory_space<vmem>>, vector<1x32xf32>
    %cst_100 = arith.constant 9.99999974E-6 : f32
    %123 = vector.broadcast %cst_100 : f32 to vector<1x32xf32>
    %124 = arith.addf %121, %123 : vector<1x32xf32>
    %125 = math.rsqrt %124 : vector<1x32xf32>
    %126 = arith.mulf %122, %125 : vector<1x32xf32>
    %c0_101 = arith.constant 0 : index
    %c0_102 = arith.constant 0 : index
    %127 = vector.load %arg6[%c0_101, %c0_102] : memref<1x32xf32, #tpu.memory_space<vmem>>, vector<1x32xf32>
    %128 = arith.mulf %115, %126 : vector<1x32xf32>
    %129 = arith.subf %127, %128 : vector<1x32xf32>
    %c0_103 = arith.constant 0 : index
    %c0_104 = arith.constant 0 : index
    %130 = vector.load %arg8[%c0_103, %c0_104] : memref<32x256xf32, #tpu.memory_space<vmem>>, vector<32x256xf32>
    %cst_105 = arith.constant dense<0.000000e+00> : vector<1x256xf32>
    %131 = tpu.matmul %126, %130, %cst_105 {dimension_numbers = #tpu.dot_dimension_numbers<[1], [0], [0], [1], [0, 0, 1, 1], [], []>} : vector<1x32xf32>, vector<32x256xf32>, vector<1x256xf32> -> vector<1x256xf32>
    %c0_106 = arith.constant 0 : index
    %c0_107 = arith.constant 0 : index
    %132 = vector.load %arg8[%c0_106, %c0_107] : memref<32x256xf32, #tpu.memory_space<vmem>>, vector<32x256xf32>
    %cst_108 = arith.constant dense<0.000000e+00> : vector<1x256xf32>
    %133 = tpu.matmul %129, %132, %cst_108 {dimension_numbers = #tpu.dot_dimension_numbers<[1], [0], [0], [1], [0, 0, 1, 1], [], []>} : vector<1x32xf32>, vector<32x256xf32>, vector<1x256xf32> -> vector<1x256xf32>
    %134 = vector.broadcast %131 : vector<1x256xf32> to vector<12x256xf32>
    %135 = arith.mulf %106, %134 : vector<12x256xf32>
    %136 = vector.broadcast %133 : vector<1x256xf32> to vector<12x256xf32>
    %137 = arith.addf %135, %136 : vector<12x256xf32>
    %cst_109 = arith.constant 0.000000e+00 : f32
    %138 = vector.broadcast %cst_109 : f32 to vector<12x256xf32>
    %139 = arith.maximumf %137, %138 : vector<12x256xf32>
    %140 = arith.addf %29, %139 : vector<12x256xf32>
    %cst_110 = arith.constant 0.000000e+00 : f32
    %141 = vector.broadcast %cst_110 : f32 to vector<12x256xf32>
    %142 = arith.maximumf %140, %141 : vector<12x256xf32>
    %143 = vector.shape_cast %142 : vector<12x256xf32> to vector<2x6x256xf32>
    %c0_111 = arith.constant 0 : index
    %c0_112 = arith.constant 0 : index
    %c0_113 = arith.constant 0 : index
    %144 = vector.load %arg9[%c0_111, %c0_112, %c0_113] : memref<2x6x256xf32, #tpu.memory_space<vmem>>, vector<2x6x256xf32>
    tpu.vector_store %arg9[%c0_111, %c0_112, %c0_113], %143 {strides = array<i32>} : memref<2x6x256xf32, #tpu.memory_space<vmem>>, vector<2x6x256xf32>,
    return
  }
}

module attributes {stable_mosaic.version = 11 : i64} {
  func.func @_rb2_head_kernel(%arg0: memref<2x6x256xf32, #tpu.memory_space<vmem>>, %arg1: memref<3x256x256xbf16, #tpu.memory_space<vmem>>, %arg2: memref<1x32xf32, #tpu.memory_space<vmem>>, %arg3: memref<1x32xf32, #tpu.memory_space<vmem>>, %arg4: memref<3x256x256xbf16, #tpu.memory_space<vmem>>, %arg5: memref<1x32xf32, #tpu.memory_space<vmem>>, %arg6: memref<1x32xf32, #tpu.memory_space<vmem>>, %arg7: memref<256x32xf32, #tpu.memory_space<vmem>>, %arg8: memref<32x256xf32, #tpu.memory_space<vmem>>, %arg9: memref<256x64xbf16, #tpu.memory_space<vmem>>, %arg10: memref<256x64xbf16, #tpu.memory_space<vmem>>, %arg11: memref<1x64xf32, #tpu.memory_space<vmem>>, %arg12: memref<64x16xbf16, #tpu.memory_space<vmem>>, %arg13: memref<1x16xf32, #tpu.memory_space<vmem>>, %arg14: memref<16x2xbf16, #tpu.memory_space<vmem>>, %arg15: memref<1x2xf32, #tpu.memory_space<vmem>>, %arg16: memref<2x2xbf16, #tpu.memory_space<vmem>>, %arg17: memref<1x2xf32, #tpu.memory_space<vmem>>, %arg18: memref<2x2xf32, #tpu.memory_space<vmem>>, %arg19: memref<2x2xf32, #tpu.memory_space<vmem>>, %arg20: memref<2x8x256xf32, #tpu.memory_space<vmem>>) attributes {dimension_semantics = [], scalar_prefetch = 0 : i64, scratch_operands = 1 : i64, tpu.core_type = #tpu.core_type<tc>} {
    %cst = arith.constant 0.000000e+00 : f32
    %0 = vector.broadcast %cst : f32 to vector<2x8x256xf32>
    %c0 = arith.constant 0 : index
    %c0_0 = arith.constant 0 : index
    %c0_1 = arith.constant 0 : index
    %1 = vector.load %arg20[%c0, %c0_0, %c0_1] : memref<2x8x256xf32, #tpu.memory_space<vmem>>, vector<2x8x256xf32>
    tpu.vector_store %arg20[%c0, %c0_0, %c0_1], %0 {strides = array<i32>} : memref<2x8x256xf32, #tpu.memory_space<vmem>>, vector<2x8x256xf32>,
    %c0_2 = arith.constant 0 : index
    %c0_3 = arith.constant 0 : index
    %c0_4 = arith.constant 0 : index
    %2 = vector.load %arg0[%c0_2, %c0_3, %c0_4] : memref<2x6x256xf32, #tpu.memory_space<vmem>>, vector<2x6x256xf32>
    %c0_5 = arith.constant 0 : index
    %c1 = arith.constant 1 : index
    %c0_6 = arith.constant 0 : index
    %3 = vector.load %arg20[%c0_5, %c1, %c0_6] : memref<2x8x256xf32, #tpu.memory_space<vmem>>, vector<2x6x256xf32>
    tpu.vector_store %arg20[%c0_5, %c1, %c0_6], %2 {strides = array<i32>} : memref<2x8x256xf32, #tpu.memory_space<vmem>>, vector<2x6x256xf32>,
    %4 = vector.shape_cast %2 : vector<2x6x256xf32> to vector<12x256xf32>
    %c0_7 = arith.constant 0 : index
    %c0_8 = arith.constant 0 : index
    %c0_9 = arith.constant 0 : index
    %5 = vector.load %arg20[%c0_7, %c0_8, %c0_9] : memref<2x8x256xf32, #tpu.memory_space<vmem>>, vector<2x8x256xf32>
    %6 = arith.truncf %5 : vector<2x8x256xf32> to vector<2x8x256xbf16>
    %7 = vector.shape_cast %6 : vector<2x8x256xbf16> to vector<16x256xbf16>
    %c0_10 = arith.constant 0 : index
    %c0_11 = arith.constant 0 : index
    %c0_12 = arith.constant 0 : index
    %8 = vector.load %arg1[%c0_10, %c0_11, %c0_12] : memref<3x256x256xbf16, #tpu.memory_space<vmem>>, vector<1x256x256xbf16>
    %9 = vector.shape_cast %8 : vector<1x256x256xbf16> to vector<256x256xbf16>
    %cst_13 = arith.constant dense<0.000000e+00> : vector<16x256xf32>
    %10 = tpu.matmul %7, %9, %cst_13 {dimension_numbers = #tpu.dot_dimension_numbers<[1], [0], [0], [1], [0, 0, 1, 1], [], []>} : vector<16x256xbf16>, vector<256x256xbf16>, vector<16x256xf32> -> vector<16x256xf32>
    %11 = vector.shape_cast %10 : vector<16x256xf32> to vector<2x8x256xf32>
    %c1_14 = arith.constant 1 : index
    %c0_15 = arith.constant 0 : index
    %c0_16 = arith.constant 0 : index
    %12 = vector.load %arg1[%c1_14, %c0_15, %c0_16] : memref<3x256x256xbf16, #tpu.memory_space<vmem>>, vector<1x256x256xbf16>
    %13 = vector.shape_cast %12 : vector<1x256x256xbf16> to vector<256x256xbf16>
    %cst_17 = arith.constant dense<0.000000e+00> : vector<16x256xf32>
    %14 = tpu.matmul %7, %13, %cst_17 {dimension_numbers = #tpu.dot_dimension_numbers<[1], [0], [0], [1], [0, 0, 1, 1], [], []>} : vector<16x256xbf16>, vector<256x256xbf16>, vector<16x256xf32> -> vector<16x256xf32>
    %15 = vector.shape_cast %14 : vector<16x256xf32> to vector<2x8x256xf32>
    %c2 = arith.constant 2 : index
    %c0_18 = arith.constant 0 : index
    %c0_19 = arith.constant 0 : index
    %16 = vector.load %arg1[%c2, %c0_18, %c0_19] : memref<3x256x256xbf16, #tpu.memory_space<vmem>>, vector<1x256x256xbf16>
    %17 = vector.shape_cast %16 : vector<1x256x256xbf16> to vector<256x256xbf16>
    %cst_20 = arith.constant dense<0.000000e+00> : vector<16x256xf32>
    %18 = tpu.matmul %7, %17, %cst_20 {dimension_numbers = #tpu.dot_dimension_numbers<[1], [0], [0], [1], [0, 0, 1, 1], [], []>} : vector<16x256xbf16>, vector<256x256xbf16>, vector<16x256xf32> -> vector<16x256xf32>
    %19 = vector.shape_cast %18 : vector<16x256xf32> to vector<2x8x256xf32>
    %20 = vector.extract_strided_slice %11 {offsets = [0, 0, 0], sizes = [2, 6, 256], strides = [1, 1, 1]} : vector<2x8x256xf32> to vector<2x6x256xf32>
    %21 = vector.extract_strided_slice %15 {offsets = [0, 1, 0], sizes = [2, 6, 256], strides = [1, 1, 1]} : vector<2x8x256xf32> to vector<2x6x256xf32>
    %22 = arith.addf %20, %21 : vector<2x6x256xf32>
    %23 = vector.extract_strided_slice %19 {offsets = [0, 2, 0], sizes = [2, 6, 256], strides = [1, 1, 1]} : vector<2x8x256xf32> to vector<2x6x256xf32>
    %24 = arith.addf %22, %23 : vector<2x6x256xf32>
    %25 = vector.shape_cast %24 : vector<2x6x256xf32> to vector<12x256xf32>
    %cst_21 = arith.constant dense<0.000000e+00> : vector<256xf32>
    %26 = vector.multi_reduction <add>, %25, %cst_21 [0] : vector<12x256xf32> to vector<256xf32>
    %27 = vector.shape_cast %26 : vector<256xf32> to vector<1x256xf32>
    %28 = arith.mulf %25, %25 : vector<12x256xf32>
    %cst_22 = arith.constant dense<0.000000e+00> : vector<256xf32>
    %29 = vector.multi_reduction <add>, %28, %cst_22 [0] : vector<12x256xf32> to vector<256xf32>
    %30 = vector.shape_cast %29 : vector<256xf32> to vector<1x256xf32>
    %c0_23 = arith.constant 0 : index
    %c0_24 = arith.constant 0 : index
    %31 = vector.load %arg7[%c0_23, %c0_24] : memref<256x32xf32, #tpu.memory_space<vmem>>, vector<256x32xf32>
    %cst_25 = arith.constant dense<0.000000e+00> : vector<1x32xf32>
    %32 = tpu.matmul %27, %31, %cst_25 {dimension_numbers = #tpu.dot_dimension_numbers<[1], [0], [0], [1], [0, 0, 1, 1], [], []>} : vector<1x256xf32>, vector<256x32xf32>, vector<1x32xf32> -> vector<1x32xf32>
    %cst_26 = arith.constant 7.200000e+01 : f32
    %33 = vector.broadcast %cst_26 : f32 to vector<1x32xf32>
    %34 = arith.divf %32, %33 : vector<1x32xf32>
    %c0_27 = arith.constant 0 : index
    %c0_28 = arith.constant 0 : index
    %35 = vector.load %arg7[%c0_27, %c0_28] : memref<256x32xf32, #tpu.memory_space<vmem>>, vector<256x32xf32>
    %cst_29 = arith.constant dense<0.000000e+00> : vector<1x32xf32>
    %36 = tpu.matmul %30, %35, %cst_29 {dimension_numbers = #tpu.dot_dimension_numbers<[1], [0], [0], [1], [0, 0, 1, 1], [], []>} : vector<1x256xf32>, vector<256x32xf32>, vector<1x32xf32> -> vector<1x32xf32>
    %cst_30 = arith.constant 7.200000e+01 : f32
    %37 = vector.broadcast %cst_30 : f32 to vector<1x32xf32>
    %38 = arith.divf %36, %37 : vector<1x32xf32>
    %39 = arith.mulf %34, %34 : vector<1x32xf32>
    %40 = arith.subf %38, %39 : vector<1x32xf32>
    %c0_31 = arith.constant 0 : index
    %c0_32 = arith.constant 0 : index
    %41 = vector.load %arg2[%c0_31, %c0_32] : memref<1x32xf32, #tpu.memory_space<vmem>>, vector<1x32xf32>
    %cst_33 = arith.constant 9.99999974E-6 : f32
    %42 = vector.broadcast %cst_33 : f32 to vector<1x32xf32>
    %43 = arith.addf %40, %42 : vector<1x32xf32>
    %44 = math.rsqrt %43 : vector<1x32xf32>
    %45 = arith.mulf %41, %44 : vector<1x32xf32>
    %c0_34 = arith.constant 0 : index
    %c0_35 = arith.constant 0 : index
    %46 = vector.load %arg3[%c0_34, %c0_35] : memref<1x32xf32, #tpu.memory_space<vmem>>, vector<1x32xf32>
    %47 = arith.mulf %34, %45 : vector<1x32xf32>
    %48 = arith.subf %46, %47 : vector<1x32xf32>
    %c0_36 = arith.constant 0 : index
    %c0_37 = arith.constant 0 : index
    %49 = vector.load %arg8[%c0_36, %c0_37] : memref<32x256xf32, #tpu.memory_space<vmem>>, vector<32x256xf32>
    %cst_38 = arith.constant dense<0.000000e+00> : vector<1x256xf32>
    %50 = tpu.matmul %45, %49, %cst_38 {dimension_numbers = #tpu.dot_dimension_numbers<[1], [0], [0], [1], [0, 0, 1, 1], [], []>} : vector<1x32xf32>, vector<32x256xf32>, vector<1x256xf32> -> vector<1x256xf32>
    %c0_39 = arith.constant 0 : index
    %c0_40 = arith.constant 0 : index
    %51 = vector.load %arg8[%c0_39, %c0_40] : memref<32x256xf32, #tpu.memory_space<vmem>>, vector<32x256xf32>
    %cst_41 = arith.constant dense<0.000000e+00> : vector<1x256xf32>
    %52 = tpu.matmul %48, %51, %cst_41 {dimension_numbers = #tpu.dot_dimension_numbers<[1], [0], [0], [1], [0, 0, 1, 1], [], []>} : vector<1x32xf32>, vector<32x256xf32>, vector<1x256xf32> -> vector<1x256xf32>
    %53 = vector.broadcast %50 : vector<1x256xf32> to vector<12x256xf32>
    %54 = arith.mulf %25, %53 : vector<12x256xf32>
    %55 = vector.broadcast %52 : vector<1x256xf32> to vector<12x256xf32>
    %56 = arith.addf %54, %55 : vector<12x256xf32>
    %cst_42 = arith.constant 0.000000e+00 : f32
    %57 = vector.broadcast %cst_42 : f32 to vector<12x256xf32>
    %58 = arith.maximumf %56, %57 : vector<12x256xf32>
    %59 = vector.shape_cast %58 : vector<12x256xf32> to vector<2x6x256xf32>
    %c0_43 = arith.constant 0 : index
    %c1_44 = arith.constant 1 : index
    %c0_45 = arith.constant 0 : index
    %60 = vector.load %arg20[%c0_43, %c1_44, %c0_45] : memref<2x8x256xf32, #tpu.memory_space<vmem>>, vector<2x6x256xf32>
    tpu.vector_store %arg20[%c0_43, %c1_44, %c0_45], %59 {strides = array<i32>} : memref<2x8x256xf32, #tpu.memory_space<vmem>>, vector<2x6x256xf32>,
    %c0_46 = arith.constant 0 : index
    %c0_47 = arith.constant 0 : index
    %c0_48 = arith.constant 0 : index
    %61 = vector.load %arg20[%c0_46, %c0_47, %c0_48] : memref<2x8x256xf32, #tpu.memory_space<vmem>>, vector<2x8x256xf32>
    %62 = arith.truncf %61 : vector<2x8x256xf32> to vector<2x8x256xbf16>
    %63 = vector.shape_cast %62 : vector<2x8x256xbf16> to vector<16x256xbf16>
    %c0_49 = arith.constant 0 : index
    %c0_50 = arith.constant 0 : index
    %c0_51 = arith.constant 0 : index
    %64 = vector.load %arg4[%c0_49, %c0_50, %c0_51] : memref<3x256x256xbf16, #tpu.memory_space<vmem>>, vector<1x256x256xbf16>
    %65 = vector.shape_cast %64 : vector<1x256x256xbf16> to vector<256x256xbf16>
    %cst_52 = arith.constant dense<0.000000e+00> : vector<16x256xf32>
    %66 = tpu.matmul %63, %65, %cst_52 {dimension_numbers = #tpu.dot_dimension_numbers<[1], [0], [0], [1], [0, 0, 1, 1], [], []>} : vector<16x256xbf16>, vector<256x256xbf16>, vector<16x256xf32> -> vector<16x256xf32>
    %67 = vector.shape_cast %66 : vector<16x256xf32> to vector<2x8x256xf32>
    %c1_53 = arith.constant 1 : index
    %c0_54 = arith.constant 0 : index
    %c0_55 = arith.constant 0 : index
    %68 = vector.load %arg4[%c1_53, %c0_54, %c0_55] : memref<3x256x256xbf16, #tpu.memory_space<vmem>>, vector<1x256x256xbf16>
    %69 = vector.shape_cast %68 : vector<1x256x256xbf16> to vector<256x256xbf16>
    %cst_56 = arith.constant dense<0.000000e+00> : vector<16x256xf32>
    %70 = tpu.matmul %63, %69, %cst_56 {dimension_numbers = #tpu.dot_dimension_numbers<[1], [0], [0], [1], [0, 0, 1, 1], [], []>} : vector<16x256xbf16>, vector<256x256xbf16>, vector<16x256xf32> -> vector<16x256xf32>
    %71 = vector.shape_cast %70 : vector<16x256xf32> to vector<2x8x256xf32>
    %c2_57 = arith.constant 2 : index
    %c0_58 = arith.constant 0 : index
    %c0_59 = arith.constant 0 : index
    %72 = vector.load %arg4[%c2_57, %c0_58, %c0_59] : memref<3x256x256xbf16, #tpu.memory_space<vmem>>, vector<1x256x256xbf16>
    %73 = vector.shape_cast %72 : vector<1x256x256xbf16> to vector<256x256xbf16>
    %cst_60 = arith.constant dense<0.000000e+00> : vector<16x256xf32>
    %74 = tpu.matmul %63, %73, %cst_60 {dimension_numbers = #tpu.dot_dimension_numbers<[1], [0], [0], [1], [0, 0, 1, 1], [], []>} : vector<16x256xbf16>, vector<256x256xbf16>, vector<16x256xf32> -> vector<16x256xf32>
    %75 = vector.shape_cast %74 : vector<16x256xf32> to vector<2x8x256xf32>
    %76 = vector.extract_strided_slice %67 {offsets = [0, 0, 0], sizes = [2, 6, 256], strides = [1, 1, 1]} : vector<2x8x256xf32> to vector<2x6x256xf32>
    %77 = vector.extract_strided_slice %71 {offsets = [0, 1, 0], sizes = [2, 6, 256], strides = [1, 1, 1]} : vector<2x8x256xf32> to vector<2x6x256xf32>
    %78 = arith.addf %76, %77 : vector<2x6x256xf32>
    %79 = vector.extract_strided_slice %75 {offsets = [0, 2, 0], sizes = [2, 6, 256], strides = [1, 1, 1]} : vector<2x8x256xf32> to vector<2x6x256xf32>
    %80 = arith.addf %78, %79 : vector<2x6x256xf32>
    %81 = vector.shape_cast %80 : vector<2x6x256xf32> to vector<12x256xf32>
    %cst_61 = arith.constant dense<0.000000e+00> : vector<256xf32>
    %82 = vector.multi_reduction <add>, %81, %cst_61 [0] : vector<12x256xf32> to vector<256xf32>
    %83 = vector.shape_cast %82 : vector<256xf32> to vector<1x256xf32>
    %84 = arith.mulf %81, %81 : vector<12x256xf32>
    %cst_62 = arith.constant dense<0.000000e+00> : vector<256xf32>
    %85 = vector.multi_reduction <add>, %84, %cst_62 [0] : vector<12x256xf32> to vector<256xf32>
    %86 = vector.shape_cast %85 : vector<256xf32> to vector<1x256xf32>
    %c0_63 = arith.constant 0 : index
    %c0_64 = arith.constant 0 : index
    %87 = vector.load %arg7[%c0_63, %c0_64] : memref<256x32xf32, #tpu.memory_space<vmem>>, vector<256x32xf32>
    %cst_65 = arith.constant dense<0.000000e+00> : vector<1x32xf32>
    %88 = tpu.matmul %83, %87, %cst_65 {dimension_numbers = #tpu.dot_dimension_numbers<[1], [0], [0], [1], [0, 0, 1, 1], [], []>} : vector<1x256xf32>, vector<256x32xf32>, vector<1x32xf32> -> vector<1x32xf32>
    %cst_66 = arith.constant 7.200000e+01 : f32
    %89 = vector.broadcast %cst_66 : f32 to vector<1x32xf32>
    %90 = arith.divf %88, %89 : vector<1x32xf32>
    %c0_67 = arith.constant 0 : index
    %c0_68 = arith.constant 0 : index
    %91 = vector.load %arg7[%c0_67, %c0_68] : memref<256x32xf32, #tpu.memory_space<vmem>>, vector<256x32xf32>
    %cst_69 = arith.constant dense<0.000000e+00> : vector<1x32xf32>
    %92 = tpu.matmul %86, %91, %cst_69 {dimension_numbers = #tpu.dot_dimension_numbers<[1], [0], [0], [1], [0, 0, 1, 1], [], []>} : vector<1x256xf32>, vector<256x32xf32>, vector<1x32xf32> -> vector<1x32xf32>
    %cst_70 = arith.constant 7.200000e+01 : f32
    %93 = vector.broadcast %cst_70 : f32 to vector<1x32xf32>
    %94 = arith.divf %92, %93 : vector<1x32xf32>
    %95 = arith.mulf %90, %90 : vector<1x32xf32>
    %96 = arith.subf %94, %95 : vector<1x32xf32>
    %c0_71 = arith.constant 0 : index
    %c0_72 = arith.constant 0 : index
    %97 = vector.load %arg5[%c0_71, %c0_72] : memref<1x32xf32, #tpu.memory_space<vmem>>, vector<1x32xf32>
    %cst_73 = arith.constant 9.99999974E-6 : f32
    %98 = vector.broadcast %cst_73 : f32 to vector<1x32xf32>
    %99 = arith.addf %96, %98 : vector<1x32xf32>
    %100 = math.rsqrt %99 : vector<1x32xf32>
    %101 = arith.mulf %97, %100 : vector<1x32xf32>
    %c0_74 = arith.constant 0 : index
    %c0_75 = arith.constant 0 : index
    %102 = vector.load %arg6[%c0_74, %c0_75] : memref<1x32xf32, #tpu.memory_space<vmem>>, vector<1x32xf32>
    %103 = arith.mulf %90, %101 : vector<1x32xf32>
    %104 = arith.subf %102, %103 : vector<1x32xf32>
    %c0_76 = arith.constant 0 : index
    %c0_77 = arith.constant 0 : index
    %105 = vector.load %arg8[%c0_76, %c0_77] : memref<32x256xf32, #tpu.memory_space<vmem>>, vector<32x256xf32>
    %cst_78 = arith.constant dense<0.000000e+00> : vector<1x256xf32>
    %106 = tpu.matmul %101, %105, %cst_78 {dimension_numbers = #tpu.dot_dimension_numbers<[1], [0], [0], [1], [0, 0, 1, 1], [], []>} : vector<1x32xf32>, vector<32x256xf32>, vector<1x256xf32> -> vector<1x256xf32>
    %c0_79 = arith.constant 0 : index
    %c0_80 = arith.constant 0 : index
    %107 = vector.load %arg8[%c0_79, %c0_80] : memref<32x256xf32, #tpu.memory_space<vmem>>, vector<32x256xf32>
    %cst_81 = arith.constant dense<0.000000e+00> : vector<1x256xf32>
    %108 = tpu.matmul %104, %107, %cst_81 {dimension_numbers = #tpu.dot_dimension_numbers<[1], [0], [0], [1], [0, 0, 1, 1], [], []>} : vector<1x32xf32>, vector<32x256xf32>, vector<1x256xf32> -> vector<1x256xf32>
    %109 = vector.broadcast %106 : vector<1x256xf32> to vector<12x256xf32>
    %110 = arith.mulf %81, %109 : vector<12x256xf32>
    %111 = vector.broadcast %108 : vector<1x256xf32> to vector<12x256xf32>
    %112 = arith.addf %110, %111 : vector<12x256xf32>
    %cst_82 = arith.constant 0.000000e+00 : f32
    %113 = vector.broadcast %cst_82 : f32 to vector<12x256xf32>
    %114 = arith.maximumf %112, %113 : vector<12x256xf32>
    %115 = arith.addf %4, %114 : vector<12x256xf32>
    %cst_83 = arith.constant 0.000000e+00 : f32
    %116 = vector.broadcast %cst_83 : f32 to vector<12x256xf32>
    %117 = arith.maximumf %115, %116 : vector<12x256xf32>
    %118 = vector.shape_cast %117 : vector<12x256xf32> to vector<2x6x256xf32>
    %119 = vector.extract_strided_slice %118 {offsets = [0, 0, 0], sizes = [2, 3, 256], strides = [1, 1, 1]} : vector<2x6x256xf32> to vector<2x3x256xf32>
    %cst_84 = arith.constant dense<0.000000e+00> : vector<2x256xf32>
    %120 = vector.multi_reduction <add>, %119, %cst_84 [1] : vector<2x3x256xf32> to vector<2x256xf32>
    %121 = vector.extract_strided_slice %118 {offsets = [0, 3, 0], sizes = [2, 3, 256], strides = [1, 1, 1]} : vector<2x6x256xf32> to vector<2x3x256xf32>
    %cst_85 = arith.constant dense<0.000000e+00> : vector<2x256xf32>
    %122 = vector.multi_reduction <add>, %121, %cst_85 [1] : vector<2x3x256xf32> to vector<2x256xf32>
    %123 = arith.truncf %120 : vector<2x256xf32> to vector<2x256xbf16>
    %c0_86 = arith.constant 0 : index
    %c0_87 = arith.constant 0 : index
    %124 = vector.load %arg9[%c0_86, %c0_87] : memref<256x64xbf16, #tpu.memory_space<vmem>>, vector<256x64xbf16>
    %cst_88 = arith.constant dense<0.000000e+00> : vector<2x64xf32>
    %125 = tpu.matmul %123, %124, %cst_88 {dimension_numbers = #tpu.dot_dimension_numbers<[1], [0], [0], [1], [0, 0, 1, 1], [], []>} : vector<2x256xbf16>, vector<256x64xbf16>, vector<2x64xf32> -> vector<2x64xf32>
    %126 = arith.truncf %122 : vector<2x256xf32> to vector<2x256xbf16>
    %c0_89 = arith.constant 0 : index
    %c0_90 = arith.constant 0 : index
    %127 = vector.load %arg10[%c0_89, %c0_90] : memref<256x64xbf16, #tpu.memory_space<vmem>>, vector<256x64xbf16>
    %cst_91 = arith.constant dense<0.000000e+00> : vector<2x64xf32>
    %128 = tpu.matmul %126, %127, %cst_91 {dimension_numbers = #tpu.dot_dimension_numbers<[1], [0], [0], [1], [0, 0, 1, 1], [], []>} : vector<2x256xbf16>, vector<256x64xbf16>, vector<2x64xf32> -> vector<2x64xf32>
    %129 = arith.addf %125, %128 : vector<2x64xf32>
    %c0_92 = arith.constant 0 : index
    %c0_93 = arith.constant 0 : index
    %130 = vector.load %arg11[%c0_92, %c0_93] : memref<1x64xf32, #tpu.memory_space<vmem>>, vector<1x64xf32>
    %131 = vector.broadcast %130 : vector<1x64xf32> to vector<2x64xf32>
    %132 = arith.addf %129, %131 : vector<2x64xf32>
    %133 = arith.truncf %132 : vector<2x64xf32> to vector<2x64xbf16>
    %c0_94 = arith.constant 0 : index
    %c0_95 = arith.constant 0 : index
    %134 = vector.load %arg12[%c0_94, %c0_95] : memref<64x16xbf16, #tpu.memory_space<vmem>>, vector<64x16xbf16>
    %cst_96 = arith.constant dense<0.000000e+00> : vector<2x16xf32>
    %135 = tpu.matmul %133, %134, %cst_96 {dimension_numbers = #tpu.dot_dimension_numbers<[1], [0], [0], [1], [0, 0, 1, 1], [], []>} : vector<2x64xbf16>, vector<64x16xbf16>, vector<2x16xf32> -> vector<2x16xf32>
    %c0_97 = arith.constant 0 : index
    %c0_98 = arith.constant 0 : index
    %136 = vector.load %arg13[%c0_97, %c0_98] : memref<1x16xf32, #tpu.memory_space<vmem>>, vector<1x16xf32>
    %137 = vector.broadcast %136 : vector<1x16xf32> to vector<2x16xf32>
    %138 = arith.addf %135, %137 : vector<2x16xf32>
    %139 = arith.truncf %138 : vector<2x16xf32> to vector<2x16xbf16>
    %c0_99 = arith.constant 0 : index
    %c0_100 = arith.constant 0 : index
    %140 = vector.load %arg14[%c0_99, %c0_100] : memref<16x2xbf16, #tpu.memory_space<vmem>>, vector<16x2xbf16>
    %cst_101 = arith.constant dense<0.000000e+00> : vector<2x2xf32>
    %141 = tpu.matmul %139, %140, %cst_101 {dimension_numbers = #tpu.dot_dimension_numbers<[1], [0], [0], [1], [0, 0, 1, 1], [], []>} : vector<2x16xbf16>, vector<16x2xbf16>, vector<2x2xf32> -> vector<2x2xf32>
    %c0_102 = arith.constant 0 : index
    %c0_103 = arith.constant 0 : index
    %142 = vector.load %arg15[%c0_102, %c0_103] : memref<1x2xf32, #tpu.memory_space<vmem>>, vector<1x2xf32>
    %143 = vector.broadcast %142 : vector<1x2xf32> to vector<2x2xf32>
    %144 = arith.addf %141, %143 : vector<2x2xf32>
    %145 = arith.truncf %144 : vector<2x2xf32> to vector<2x2xbf16>
    %c0_104 = arith.constant 0 : index
    %c0_105 = arith.constant 0 : index
    %146 = vector.load %arg16[%c0_104, %c0_105] : memref<2x2xbf16, #tpu.memory_space<vmem>>, vector<2x2xbf16>
    %cst_106 = arith.constant dense<0.000000e+00> : vector<2x2xf32>
    %147 = tpu.matmul %145, %146, %cst_106 {dimension_numbers = #tpu.dot_dimension_numbers<[1], [0], [0], [1], [0, 0, 1, 1], [], []>} : vector<2x2xbf16>, vector<2x2xbf16>, vector<2x2xf32> -> vector<2x2xf32>
    %c0_107 = arith.constant 0 : index
    %c0_108 = arith.constant 0 : index
    %148 = vector.load %arg17[%c0_107, %c0_108] : memref<1x2xf32, #tpu.memory_space<vmem>>, vector<1x2xf32>
    %149 = vector.broadcast %148 : vector<1x2xf32> to vector<2x2xf32>
    %150 = arith.addf %147, %149 : vector<2x2xf32>
    %cst_109 = arith.constant dense<0xFF800000> : vector<2xf32>
    %151 = vector.multi_reduction <maximumf>, %150, %cst_109 [1] : vector<2x2xf32> to vector<2xf32>
    %152 = vector.shape_cast %151 : vector<2xf32> to vector<2x1xf32>
    %153 = vector.broadcast %152 : vector<2x1xf32> to vector<2x2xf32>
    %154 = arith.subf %150, %153 : vector<2x2xf32>
    %155 = math.exp %154 : vector<2x2xf32>
    %cst_110 = arith.constant dense<0.000000e+00> : vector<2xf32>
    %156 = vector.multi_reduction <add>, %155, %cst_110 [1] : vector<2x2xf32> to vector<2xf32>
    %157 = vector.shape_cast %156 : vector<2xf32> to vector<2x1xf32>
    %158 = vector.broadcast %157 : vector<2x1xf32> to vector<2x2xf32>
    %159 = arith.divf %155, %158 : vector<2x2xf32>
    %c0_111 = arith.constant 0 : index
    %c0_112 = arith.constant 0 : index
    %160 = vector.load %arg18[%c0_111, %c0_112] : memref<2x2xf32, #tpu.memory_space<vmem>>, vector<2x2xf32>
    tpu.vector_store %arg18[%c0_111, %c0_112], %159 {strides = array<i32>} : memref<2x2xf32, #tpu.memory_space<vmem>>, vector<2x2xf32>,
    %c0_113 = arith.constant 0 : index
    %c0_114 = arith.constant 0 : index
    %161 = vector.load %arg19[%c0_113, %c0_114] : memref<2x2xf32, #tpu.memory_space<vmem>>, vector<2x2xf32>
    tpu.vector_store %arg19[%c0_113, %c0_114], %150 {strides = array<i32>} : memref<2x2xf32, #tpu.memory_space<vmem>>, vector<2x2xf32>,
    return
  }
}

</mosaic_0001>

<llo_original>
// kernel: resnet_forward.3
$region0: #{resnet_forward.3}
  #allocation0 [shape = 'u32[]', space=smem, size = 0x4, offset = 0x4, fixed_abs, tag = 'smem constant byte address 0x4 - core index']
  #allocation1 [shape = 'u32[72,128]{1,0:T(1,128)}', space=vmem, size = 0x9000, scoped, tag = 'internal scratch']
  %s0 = inlined_call_operand.vmem [shape: bf16[338,147], index: 0, kind: input, shape index: {}]
  %s1 = inlined_call_operand.vmem [shape: bf16[147,32], index: 1, kind: input, shape index: {}]
  %s2 = inlined_call_operand.vmem [shape: f32[1,32], index: 2, kind: input, shape index: {}]
  %s3 = inlined_call_operand.vmem [shape: f32[338,32], index: 3, kind: output, shape index: {}]
  %s4 = sld [smem:[#allocation0]]
  $region22: #{resnet_forward.3} parent=0
    _
  %s6 = ssub.s32 1, %s4
  %s7 = scalar_select 0, %s6, %s4
  // Predicated region
  $region2: #{resnet_forward.3} parent=0 // pred_check
    _
  $region3: #{resnet_forward.3} parent=0 // pred_check_branch
    %9 = sbr.rel (0) target = $region5
  $region4: #{resnet_forward.3} parent=0 // pred_region
    _
  $region5: #{resnet_forward.3} parent=0 // pred_fallthru
    _
  // Predicated region
  $region6: #{resnet_forward.3} parent=0 // pred_check
    _
  $region7: #{resnet_forward.3} parent=0 // pred_check_branch
    %11 = sbr.rel (0) target = $region9
  $region8: #{resnet_forward.3} parent=0 // pred_region
    _
  $region9: #{resnet_forward.3} parent=0 // pred_fallthru
    _
  // Predicated region
  $region10: #{resnet_forward.3} parent=0 // pred_check
    _
  $region11: #{resnet_forward.3} parent=0 // pred_check_branch
    %13 = sbr.rel (0) target = $region13
  $region12: #{resnet_forward.3} parent=0 // pred_region
    _
  $region13: #{resnet_forward.3} parent=0 // pred_fallthru
    _
  %v15 = vld [vmem:[%s0] sm:$0xff]
  %v16 = vld [vmem:[%s0 + $0x8] sm:$0xff]
  %v17 = vld [vmem:[%s0 + $0x10] sm:$0xff]
  %v18 = vld [vmem:[%s0 + $0x18] sm:$0xff]
  %v19 = vld [vmem:[%s0 + $0x20] sm:$0xff]
  %v20 = vld [vmem:[%s0 + $0x28] sm:$0xff]
  %v21 = vld [vmem:[%s0 + $0x30] sm:$0xff]
  %v22 = vld [vmem:[%s0 + $0x38] sm:$0xff]
  %v23 = vld [vmem:[%s0 + $0x40] sm:$0xff]
  %v24 = vld [vmem:[%s0 + $0x48] sm:$0xff]
  %v25 = vld [vmem:[%s0 + $0x50] sm:$0xff]
  %v26 = vld [vmem:[%s0 + $0x58] sm:$0xff]
  %v27 = vld [vmem:[%s0 + $0x60] sm:$0xff]
  %v28 = vld [vmem:[%s0 + $0x68] sm:$0xff]
  %v29 = vld [vmem:[%s0 + $0x70] sm:$0xff]
  %v30 = vld [vmem:[%s0 + $0x78] sm:$0xff]
  %v31 = vld [vmem:[%s0 + $0x80] sm:$0xff]
  %v32 = vld [vmem:[%s0 + $0x88] sm:$0xff]
  %v33 = vld [vmem:[%s0 + $0x90] sm:$0xff]
  %v34 = vld [vmem:[%s0 + $0x98] sm:$0xff]
  %v35 = vld [vmem:[%s0 + $0xa0] sm:$0xff]
  %v36 = vld [vmem:[%s0 + $0xa8] sm:$0xff]
  %v37 = vld [vmem:[%s0 + $0xb0] sm:$0xff]
  %v38 = vld [vmem:[%s0 + $0xb8] sm:$0xff]
  %v39 = vld [vmem:[%s0 + $0xc0] sm:$0xff]
  %v40 = vld [vmem:[%s0 + $0xc8] sm:$0xff]
  %v41 = vld [vmem:[%s0 + $0xd0] sm:$0xff]
  %v42 = vld [vmem:[%s0 + $0xd8] sm:$0xff]
  %v43 = vld [vmem:[%s0 + $0xe0] sm:$0xff]
  %v44 = vld [vmem:[%s0 + $0xe8] sm:$0xff]
  %v45 = vld [vmem:[%s0 + $0xf0] sm:$0xff]
  %v46 = vld [vmem:[%s0 + $0xf8] sm:$0xff]
  %v47 = vld [vmem:[%s0 + $0x100] sm:$0xff]
  %v48 = vld [vmem:[%s0 + $0x108] sm:$0xff]
  %v49 = vld [vmem:[%s0 + $0x110] sm:$0xff]
  %v50 = vld [vmem:[%s0 + $0x118] sm:$0xff]
  %v51 = vld [vmem:[%s0 + $0x120] sm:$0xff]
  %v52 = vld [vmem:[%s0 + $0x128] sm:$0xff]
  %v53 = vld [vmem:[%s0 + $0x130] sm:$0xff]
  %v54 = vld [vmem:[%s0 + $0x138] sm:$0xff]
  %v55 = vld [vmem:[%s0 + $0x140] sm:$0xff]
  %v56 = vld [vmem:[%s0 + $0x148] sm:$0xff]
  %v57 = vld [vmem:[%s0 + $0x150] sm:$0x11]
  %v58 = vld [vmem:[%s1] sm:$0xf]
  %v59 = vld [vmem:[%s1 + $0x4] sm:$0xf]
  %v60 = vld [vmem:[%s1 + $0x8] sm:$0xf]
  %v61 = vld [vmem:[%s1 + $0xc] sm:$0xf]
  %v62 = vld [vmem:[%s1 + $0x10] sm:$0xf]
  %v63 = vld [vmem:[%s1 + $0x14] sm:$0xf]
  %v64 = vld [vmem:[%s1 + $0x18] sm:$0xf]
  %v65 = vld [vmem:[%s1 + $0x1c] sm:$0xf]
  %v66 = vld [vmem:[%s1 + $0x20] sm:$0xf]
  %v67 = vld [vmem:[%s1 + $0x24] sm:$0xf]
  %v68 = vld [vmem:[%s1 + $0x28] sm:$0xf]
  %v69 = vld [vmem:[%s1 + $0x2c] sm:$0xf]
  %v70 = vld [vmem:[%s1 + $0x30] sm:$0xf]
  %v71 = vld [vmem:[%s1 + $0x34] sm:$0xf]
  %v72 = vld [vmem:[%s1 + $0x38] sm:$0xf]
  %v73 = vld [vmem:[%s1 + $0x3c] sm:$0xf]
  %v74 = vld [vmem:[%s1 + $0x40] sm:$0xf]
  %v75 = vld [vmem:[%s1 + $0x44] sm:$0xf]
  %v76 = vld [vmem:[%s1 + $0x48] sm:$0x3]
  %v77 = vld [vmem:[%s2] sm:$0x1]
  %v79 = vperm.slane %v77, 0
  %v124 = vunpack.c.l.b16 %v15
  %v125 = vunpack.c.h.b16 %v15
  %v126 = vunpack.c.l.b16 %v16
  %v127 = vunpack.c.h.b16 %v16
  %v128 = vunpack.c.l.b16 %v17
  %v129 = vunpack.c.h.b16 %v17
  %v130 = vunpack.c.l.b16 %v18
  %v131 = vunpack.c.h.b16 %v18
  %v132 = vunpack.c.l.b16 %v19
  %v133 = vunpack.c.h.b16 %v19
  %v134 = vunpack.c.l.b16 %v20
  %v135 = vunpack.c.h.b16 %v20
  %v136 = vunpack.c.l.b16 %v21
  %v137 = vunpack.c.h.b16 %v21
  %v138 = vunpack.c.l.b16 %v22
  %v139 = vunpack.c.h.b16 %v22
  %v140 = vunpack.c.l.b16 %v23
  %v141 = vunpack.c.h.b16 %v23
  %v142 = vunpack.c.l.b16 %v24
  %v143 = vunpack.c.h.b16 %v24
  %v144 = vunpack.c.l.b16 %v25
  %v145 = vunpack.c.h.b16 %v25
  %v146 = vunpack.c.l.b16 %v26
  %v147 = vunpack.c.h.b16 %v26
  %v148 = vunpack.c.l.b16 %v27
  %v149 = vunpack.c.h.b16 %v27
  %v150 = vunpack.c.l.b16 %v28
  %v151 = vunpack.c.h.b16 %v28
  %v152 = vunpack.c.l.b16 %v29
  %v153 = vunpack.c.h.b16 %v29
  %v154 = vunpack.c.l.b16 %v30
  %v155 = vunpack.c.h.b16 %v30
  %v156 = vunpack.c.l.b16 %v31
  %v157 = vunpack.c.h.b16 %v31
  %v158 = vunpack.c.l.b16 %v32
  %v159 = vunpack.c.h.b16 %v32
  %v160 = vunpack.c.l.b16 %v33
  %v161 = vunpack.c.h.b16 %v33
  %v162 = vunpack.c.l.b16 %v34
  %v163 = vunpack.c.h.b16 %v34
  %v164 = vunpack.c.l.b16 %v35
  %v165 = vunpack.c.h.b16 %v35
  %v166 = vunpack.c.l.b16 %v36
  %v167 = vunpack.c.h.b16 %v36
  %v168 = vunpack.c.l.b16 %v37
  %v169 = vunpack.c.h.b16 %v37
  %v170 = vunpack.c.l.b16 %v38
  %v171 = vunpack.c.h.b16 %v38
  %v172 = vunpack.c.l.b16 %v39
  %v173 = vunpack.c.h.b16 %v39
  %v174 = vunpack.c.l.b16 %v40
  %v175 = vunpack.c.h.b16 %v40
  %v176 = vunpack.c.l.b16 %v41
  %v177 = vunpack.c.h.b16 %v41
  %v178 = vunpack.c.l.b16 %v42
  %v179 = vunpack.c.h.b16 %v42
  %v180 = vunpack.c.l.b16 %v43
  %v181 = vunpack.c.h.b16 %v43
  %v182 = vunpack.c.l.b16 %v44
  %v183 = vunpack.c.h.b16 %v44
  %v184 = vunpack.c.l.b16 %v45
  %v185 = vunpack.c.h.b16 %v45
  %v186 = vunpack.c.l.b16 %v46
  %v187 = vunpack.c.h.b16 %v46
  %v188 = vunpack.c.l.b16 %v47
  %v189 = vunpack.c.h.b16 %v47
  %v190 = vunpack.c.l.b16 %v48
  %v191 = vunpack.c.h.b16 %v48
  %v192 = vunpack.c.l.b16 %v49
  %v193 = vunpack.c.h.b16 %v49
  %v194 = vunpack.c.l.b16 %v50
  %v195 = vunpack.c.h.b16 %v50
  %v196 = vunpack.c.l.b16 %v51
  %v197 = vunpack.c.h.b16 %v51
  %v198 = vunpack.c.l.b16 %v52
  %v199 = vunpack.c.h.b16 %v52
  %v200 = vunpack.c.l.b16 %v53
  %v201 = vunpack.c.h.b16 %v53
  %v202 = vunpack.c.l.b16 %v54
  %v203 = vunpack.c.h.b16 %v54
  %v204 = vunpack.c.l.b16 %v55
  %v205 = vunpack.c.h.b16 %v55
  %v206 = vunpack.c.l.b16 %v56
  %v207 = vunpack.c.h.b16 %v56
  %v208 = vunpack.c.l.b16 %v57
  %v209 = vunpack.c.h.b16 %v57
  %v210 = vpack.c.b16 %v126, %v124
  %v211 = vpack.c.b16 %v127, %v125
  %v212 = vpack.c.b16 %v130, %v128
  %v213 = vpack.c.b16 %v131, %v129
  %v214 = vpack.c.b16 %v134, %v132
  %v215 = vpack.c.b16 %v135, %v133
  %v216 = vpack.c.b16 %v138, %v136
  %v217 = vpack.c.b16 %v139, %v137
  %v218 = vpack.c.b16 %v142, %v140
  %v219 = vpack.c.b16 %v143, %v141
  %v220 = vpack.c.b16 %v146, %v144
  %v221 = vpack.c.b16 %v147, %v145
  %v222 = vpack.c.b16 %v150, %v148
  %v223 = vpack.c.b16 %v151, %v149
  %v224 = vpack.c.b16 %v154, %v152
  %v225 = vpack.c.b16 %v155, %v153
  %v226 = vpack.c.b16 %v158, %v156
  %v227 = vpack.c.b16 %v159, %v157
  %v228 = vpack.c.b16 %v162, %v160
  %v229 = vpack.c.b16 %v163, %v161
  %v230 = vpack.c.b16 %v166, %v164
  %v231 = vpack.c.b16 %v167, %v165
  %v232 = vpack.c.b16 %v170, %v168
  %v233 = vpack.c.b16 %v171, %v169
  %v234 = vpack.c.b16 %v174, %v172
  %v235 = vpack.c.b16 %v175, %v173
  %v236 = vpack.c.b16 %v178, %v176
  %v237 = vpack.c.b16 %v179, %v177
  %v238 = vpack.c.b16 %v182, %v180
  %v239 = vpack.c.b16 %v183, %v181
  %v240 = vpack.c.b16 %v186, %v184
  %v241 = vpack.c.b16 %v187, %v185
  %v242 = vpack.c.b16 %v190, %v188
  %v243 = vpack.c.b16 %v191, %v189
  %v244 = vpack.c.b16 %v194, %v192
  %v245 = vpack.c.b16 %v195, %v193
  %v246 = vpack.c.b16 %v198, %v196
  %v247 = vpack.c.b16 %v199, %v197
  %v248 = vpack.c.b16 %v202, %v200
  %v249 = vpack.c.b16 %v203, %v201
  %v250 = vpack.c.b16 %v206, %v204
  %v251 = vpack.c.b16 %v207, %v205
  %v252 = vpack.c.b16 %v208, %v208
  %v253 = vpack.c.b16 %v209, %v209
  %v295 = vunpack.c.l.b16 %v58
  %v296 = vunpack.c.l.b16 %v59
  %v297 = vunpack.c.l.b16 %v60
  %v298 = vunpack.c.l.b16 %v61
  %v299 = vunpack.c.l.b16 %v62
  %v300 = vunpack.c.l.b16 %v63
  %v301 = vunpack.c.l.b16 %v64
  %v302 = vunpack.c.l.b16 %v65
  %v303 = vunpack.c.l.b16 %v66
  %v304 = vunpack.c.l.b16 %v67
  %v305 = vunpack.c.l.b16 %v68
  %v306 = vunpack.c.l.b16 %v69
  %v307 = vunpack.c.l.b16 %v70
  %v308 = vunpack.c.l.b16 %v71
  %v309 = vunpack.c.l.b16 %v72
  %v310 = vunpack.c.l.b16 %v73
  %v311 = vunpack.c.l.b16 %v74
  %v312 = vunpack.c.l.b16 %v75
  %v313 = vunpack.c.l.b16 %v76
  %v314 = vpack.c.b16 %v296, %v295
  %v315 = vpack.c.b16 %v298, %v297
  %v316 = vpack.c.b16 %v300, %v299
  %v317 = vpack.c.b16 %v302, %v301
  %v318 = vpack.c.b16 %v304, %v303
  %v319 = vpack.c.b16 %v306, %v305
  %v320 = vpack.c.b16 %v308, %v307
  %v321 = vpack.c.b16 %v310, %v309
  %v322 = vpack.c.b16 %v312, %v311
  %v323 = vpack.c.b16 %v313, %v313
  %vm333 = vcmask 154624
  %v335 = vsel %vm333, %v211, 0
  %v338 = vsel %vm333, %v213, 0
  %v341 = vsel %vm333, %v215, 0
  %v344 = vsel %vm333, %v217, 0
  %v347 = vsel %vm333, %v219, 0
  %v350 = vsel %vm333, %v221, 0
  %v353 = vsel %vm333, %v223, 0
  %v356 = vsel %vm333, %v225, 0
  %v359 = vsel %vm333, %v227, 0
  %v362 = vsel %vm333, %v229, 0
  %v365 = vsel %vm333, %v231, 0
  %v368 = vsel %vm333, %v233, 0
  %v371 = vsel %vm333, %v235, 0
  %v374 = vsel %vm333, %v237, 0
  %v377 = vsel %vm333, %v239, 0
  %v380 = vsel %vm333, %v241, 0
  %v383 = vsel %vm333, %v243, 0
  %v386 = vsel %vm333, %v245, 0
  %v389 = vsel %vm333, %v247, 0
  %v392 = vsel %vm333, %v249, 0
  %v395 = vsel %vm333, %v251, 0
  %v398 = vsel %vm333, %v253, 0
  %vm400 = vcmask 1040384
  %vm401 = vcmask 1041408
  %v402 = vsel %vm400, 4294967295, 65535
  %v403 = vsel %vm401, %v402, 0
  %v405 = vand.u32 %v323, %v403
  %407 = vmatpush.bf16.msra.mxu0 %v321
  %408 = vmatpush.bf16.msra.mxu0 %v320
  %409 = vmatpush.bf16.msra.mxu0 %v319
  %410 = vmatpush.bf16.msra.mxu0 %v318
  %411 = vmatpush.bf16.msra.mxu0 %v317
  %412 = vmatpush.bf16.msra.mxu0 %v316
  %413 = vmatpush.bf16.msra.mxu0 %v315
  %414 = vmatpush.bf16.msra.mxu0 %v314
  %415 = vmatmul.bf16.gmra.mxu0 %v210
  %v416 = vpop.f32.mrf.mxu0
  %v417 = vadd.f32 %v79, %v416
  %v418 = vpop.f32.mrf.mxu0
  %v419 = vadd.f32 %v79, %v418
  %420 = vmatmul.bf16.gmra.mxu0 %v212
  %v421 = vpop.f32.mrf.mxu0
  %v422 = vadd.f32 %v79, %v421
  %v423 = vpop.f32.mrf.mxu0
  %v424 = vadd.f32 %v79, %v423
  %425 = vmatmul.bf16.gmra.mxu0 %v214
  %v426 = vpop.f32.mrf.mxu0
  %v427 = vadd.f32 %v79, %v426
  %v428 = vpop.f32.mrf.mxu0
  %v429 = vadd.f32 %v79, %v428
  %430 = vmatmul.bf16.gmra.mxu0 %v216
  %v431 = vpop.f32.mrf.mxu0
  %v432 = vadd.f32 %v79, %v431
  %v433 = vpop.f32.mrf.mxu0
  %v434 = vadd.f32 %v79, %v433
  %435 = vmatmul.bf16.gmra.mxu0 %v218
  %v436 = vpop.f32.mrf.mxu0
  %v437 = vadd.f32 %v79, %v436
  %v438 = vpop.f32.mrf.mxu0
  %v439 = vadd.f32 %v79, %v438
  %440 = vmatmul.bf16.gmra.mxu0 %v220
  %v441 = vpop.f32.mrf.mxu0
  %v442 = vadd.f32 %v79, %v441
  %v443 = vpop.f32.mrf.mxu0
  %v444 = vadd.f32 %v79, %v443
  %445 = vmatmul.bf16.gmra.mxu0 %v222
  %v446 = vpop.f32.mrf.mxu0
  %v447 = vadd.f32 %v79, %v446
  %v448 = vpop.f32.mrf.mxu0
  %v449 = vadd.f32 %v79, %v448
  %450 = vmatmul.bf16.gmra.mxu0 %v224
  %v451 = vpop.f32.mrf.mxu0
  %v452 = vadd.f32 %v79, %v451
  %v453 = vpop.f32.mrf.mxu0
  %v454 = vadd.f32 %v79, %v453
  %455 = vmatmul.bf16.gmra.mxu0 %v226
  %v456 = vpop.f32.mrf.mxu0
  %v457 = vadd.f32 %v79, %v456
  %v458 = vpop.f32.mrf.mxu0
  %v459 = vadd.f32 %v79, %v458
  %460 = vmatmul.bf16.gmra.mxu0 %v228
  %v461 = vpop.f32.mrf.mxu0
  %v462 = vadd.f32 %v79, %v461
  %v463 = vpop.f32.mrf.mxu0
  %v464 = vadd.f32 %v79, %v463
  %465 = vmatmul.bf16.gmra.mxu0 %v230
  %v466 = vpop.f32.mrf.mxu0
  %v467 = vadd.f32 %v79, %v466
  %v468 = vpop.f32.mrf.mxu0
  %v469 = vadd.f32 %v79, %v468
  %470 = vmatmul.bf16.gmra.mxu0 %v232
  %v471 = vpop.f32.mrf.mxu0
  %v472 = vadd.f32 %v79, %v471
  %v473 = vpop.f32.mrf.mxu0
  %v474 = vadd.f32 %v79, %v473
  %475 = vmatmul.bf16.gmra.mxu0 %v234
  %v476 = vpop.f32.mrf.mxu0
  %v477 = vadd.f32 %v79, %v476
  %v478 = vpop.f32.mrf.mxu0
  %v479 = vadd.f32 %v79, %v478
  %480 = vmatmul.bf16.gmra.mxu0 %v236
  %v481 = vpop.f32.mrf.mxu0
  %v482 = vadd.f32 %v79, %v481
  %v483 = vpop.f32.mrf.mxu0
  %v484 = vadd.f32 %v79, %v483
  %485 = vmatmul.bf16.gmra.mxu0 %v238
  %v486 = vpop.f32.mrf.mxu0
  %v487 = vadd.f32 %v79, %v486
  %v488 = vpop.f32.mrf.mxu0
  %v489 = vadd.f32 %v79, %v488
  %490 = vmatmul.bf16.gmra.mxu0 %v240
  %v491 = vpop.f32.mrf.mxu0
  %v492 = vadd.f32 %v79, %v491
  %v493 = vpop.f32.mrf.mxu0
  %v494 = vadd.f32 %v79, %v493
  %495 = vmatmul.bf16.gmra.mxu0 %v242
  %v496 = vpop.f32.mrf.mxu0
  %v497 = vadd.f32 %v79, %v496
  %v498 = vpop.f32.mrf.mxu0
  %v499 = vadd.f32 %v79, %v498
  %500 = vmatmul.bf16.gmra.mxu0 %v244
  %v501 = vpop.f32.mrf.mxu0
  %v502 = vadd.f32 %v79, %v501
  %v503 = vpop.f32.mrf.mxu0
  %v504 = vadd.f32 %v79, %v503
  %505 = vmatmul.bf16.gmra.mxu0 %v246
  %v506 = vpop.f32.mrf.mxu0
  %v507 = vadd.f32 %v79, %v506
  %v508 = vpop.f32.mrf.mxu0
  %v509 = vadd.f32 %v79, %v508
  %510 = vmatmul.bf16.gmra.mxu0 %v248
  %v511 = vpop.f32.mrf.mxu0
  %v512 = vadd.f32 %v79, %v511
  %v513 = vpop.f32.mrf.mxu0
  %v514 = vadd.f32 %v79, %v513
  %515 = vmatmul.bf16.gmra.mxu0 %v250
  %v516 = vpop.f32.mrf.mxu0
  %v517 = vadd.f32 %v79, %v516
  %v518 = vpop.f32.mrf.mxu0
  %v519 = vadd.f32 %v79, %v518
  %520 = vmatmul.bf16.gmra.mxu0 %v252
  %v521 = vpop.f32.mrf.mxu0
  %v522 = vadd.f32 %v79, %v521
  %v523 = vpop.f32.mrf.mxu0
  %524 = vdwg.mxu0
  %525 = vmatpush.bf16.msra.mxu0 0
  %526 = vmatpush.bf16.msra.mxu0 0
  %527 = vmatpush.bf16.msra.mxu0 0
  %528 = vmatpush.bf16.msra.mxu0 0
  %529 = vmatpush.bf16.msra.mxu0 0
  %530 = vmatpush.bf16.msra.mxu0 0
  %531 = vmatpush.bf16.msra.mxu0 %v405
  %532 = vmatpush.bf16.msra.mxu0 %v322
  %533 = vmatmul.bf16.gmra.mxu0 %v335
  %v534 = vpop.f32.mrf.mxu0
  %v535 = vadd.f32 %v417, %v534
  %v536 = vpop.f32.mrf.mxu0
  %v537 = vadd.f32 %v419, %v536
  %538 = vmatmul.bf16.gmra.mxu0 %v338
  %v539 = vpop.f32.mrf.mxu0
  %v540 = vadd.f32 %v422, %v539
  %v541 = vpop.f32.mrf.mxu0
  %v542 = vadd.f32 %v424, %v541
  %543 = vmatmul.bf16.gmra.mxu0 %v341
  %v544 = vpop.f32.mrf.mxu0
  %v545 = vadd.f32 %v427, %v544
  %v546 = vpop.f32.mrf.mxu0
  %v547 = vadd.f32 %v429, %v546
  %548 = vmatmul.bf16.gmra.mxu0 %v344
  %v549 = vpop.f32.mrf.mxu0
  %v550 = vadd.f32 %v432, %v549
  %v551 = vpop.f32.mrf.mxu0
  %v552 = vadd.f32 %v434, %v551
  %553 = vmatmul.bf16.gmra.mxu0 %v347
  %v554 = vpop.f32.mrf.mxu0
  %v555 = vadd.f32 %v437, %v554
  %v556 = vpop.f32.mrf.mxu0
  %v557 = vadd.f32 %v439, %v556
  %558 = vmatmul.bf16.gmra.mxu0 %v350
  %v559 = vpop.f32.mrf.mxu0
  %v560 = vadd.f32 %v442, %v559
  %v561 = vpop.f32.mrf.mxu0
  %v562 = vadd.f32 %v444, %v561
  %563 = vmatmul.bf16.gmra.mxu0 %v353
  %v564 = vpop.f32.mrf.mxu0
  %v565 = vadd.f32 %v447, %v564
  %v566 = vpop.f32.mrf.mxu0
  %v567 = vadd.f32 %v449, %v566
  %568 = vmatmul.bf16.gmra.mxu0 %v356
  %v569 = vpop.f32.mrf.mxu0
  %v570 = vadd.f32 %v452, %v569
  %v571 = vpop.f32.mrf.mxu0
  %v572 = vadd.f32 %v454, %v571
  %573 = vmatmul.bf16.gmra.mxu0 %v359
  %v574 = vpop.f32.mrf.mxu0
  %v575 = vadd.f32 %v457, %v574
  %v576 = vpop.f32.mrf.mxu0
  %v577 = vadd.f32 %v459, %v576
  %578 = vmatmul.bf16.gmra.mxu0 %v362
  %v579 = vpop.f32.mrf.mxu0
  %v580 = vadd.f32 %v462, %v579
  %v581 = vpop.f32.mrf.mxu0
  %v582 = vadd.f32 %v464, %v581
  %583 = vmatmul.bf16.gmra.mxu0 %v365
  %v584 = vpop.f32.mrf.mxu0
  %v585 = vadd.f32 %v467, %v584
  %v586 = vpop.f32.mrf.mxu0
  %v587 = vadd.f32 %v469, %v586
  %588 = vmatmul.bf16.gmra.mxu0 %v368
  %v589 = vpop.f32.mrf.mxu0
  %v590 = vadd.f32 %v472, %v589
  %v591 = vpop.f32.mrf.mxu0
  %v592 = vadd.f32 %v474, %v591
  %593 = vmatmul.bf16.gmra.mxu0 %v371
  %v594 = vpop.f32.mrf.mxu0
  %v595 = vadd.f32 %v477, %v594
  %v596 = vpop.f32.mrf.mxu0
  %v597 = vadd.f32 %v479, %v596
  %598 = vmatmul.bf16.gmra.mxu0 %v374
  %v599 = vpop.f32.mrf.mxu0
  %v600 = vadd.f32 %v482, %v599
  %v601 = vpop.f32.mrf.mxu0
  %v602 = vadd.f32 %v484, %v601
  %603 = vmatmul.bf16.gmra.mxu0 %v377
  %v604 = vpop.f32.mrf.mxu0
  %v605 = vadd.f32 %v487, %v604
  %v606 = vpop.f32.mrf.mxu0
  %v607 = vadd.f32 %v489, %v606
  %608 = vmatmul.bf16.gmra.mxu0 %v380
  %v609 = vpop.f32.mrf.mxu0
  %v610 = vadd.f32 %v492, %v609
  %v611 = vpop.f32.mrf.mxu0
  %v612 = vadd.f32 %v494, %v611
  %613 = vmatmul.bf16.gmra.mxu0 %v383
  %v614 = vpop.f32.mrf.mxu0
  %v615 = vadd.f32 %v497, %v614
  %v616 = vpop.f32.mrf.mxu0
  %v617 = vadd.f32 %v499, %v616
  %618 = vmatmul.bf16.gmra.mxu0 %v386
  %v619 = vpop.f32.mrf.mxu0
  %v620 = vadd.f32 %v502, %v619
  %v621 = vpop.f32.mrf.mxu0
  %v622 = vadd.f32 %v504, %v621
  %623 = vmatmul.bf16.gmra.mxu0 %v389
  %v624 = vpop.f32.mrf.mxu0
  %v625 = vadd.f32 %v507, %v624
  %v626 = vpop.f32.mrf.mxu0
  %v627 = vadd.f32 %v509, %v626
  %628 = vmatmul.bf16.gmra.mxu0 %v392
  %v629 = vpop.f32.mrf.mxu0
  %v630 = vadd.f32 %v512, %v629
  %v631 = vpop.f32.mrf.mxu0
  %v632 = vadd.f32 %v514, %v631
  %633 = vmatmul.bf16.gmra.mxu0 %v395
  %v634 = vpop.f32.mrf.mxu0
  %v635 = vadd.f32 %v517, %v634
  %v636 = vpop.f32.mrf.mxu0
  %v637 = vadd.f32 %v519, %v636
  %638 = vmatmul.bf16.gmra.mxu0 %v398
  %v639 = vpop.f32.mrf.mxu0
  %v640 = vadd.f32 %v522, %v639
  %v641 = vpop.f32.mrf.mxu0
  %642 = vdwg.mxu0
  %vm643 = vcmask 261120
  %644 = vst.msk [vmem:[%s3] sm:$0xff] %vm643, %v535
  %645 = vst.msk [vmem:[%s3 + $0x8] sm:$0xff] %vm643, %v537
  %646 = vst.msk [vmem:[%s3 + $0x10] sm:$0xff] %vm643, %v540
  %647 = vst.msk [vmem:[%s3 + $0x18] sm:$0xff] %vm643, %v542
  %648 = vst.msk [vmem:[%s3 + $0x20] sm:$0xff] %vm643, %v545
  %649 = vst.msk [vmem:[%s3 + $0x28] sm:$0xff] %vm643, %v547
  %650 = vst.msk [vmem:[%s3 + $0x30] sm:$0xff] %vm643, %v550
  %651 = vst.msk [vmem:[%s3 + $0x38] sm:$0xff] %vm643, %v552
  %652 = vst.msk [vmem:[%s3 + $0x40] sm:$0xff] %vm643, %v555
  %653 = vst.msk [vmem:[%s3 + $0x48] sm:$0xff] %vm643, %v557
  %654 = vst.msk [vmem:[%s3 + $0x50] sm:$0xff] %vm643, %v560
  %655 = vst.msk [vmem:[%s3 + $0x58] sm:$0xff] %vm643, %v562
  %656 = vst.msk [vmem:[%s3 + $0x60] sm:$0xff] %vm643, %v565
  %657 = vst.msk [vmem:[%s3 + $0x68] sm:$0xff] %vm643, %v567
  %658 = vst.msk [vmem:[%s3 + $0x70] sm:$0xff] %vm643, %v570
  %659 = vst.msk [vmem:[%s3 + $0x78] sm:$0xff] %vm643, %v572
  %660 = vst.msk [vmem:[%s3 + $0x80] sm:$0xff] %vm643, %v575
  %661 = vst.msk [vmem:[%s3 + $0x88] sm:$0xff] %vm643, %v577
  %662 = vst.msk [vmem:[%s3 + $0x90] sm:$0xff] %vm643, %v580
  %663 = vst.msk [vmem:[%s3 + $0x98] sm:$0xff] %vm643, %v582
  %664 = vst.msk [vmem:[%s3 + $0xa0] sm:$0xff] %vm643, %v585
  %665 = vst.msk [vmem:[%s3 + $0xa8] sm:$0xff] %vm643, %v587
  %666 = vst.msk [vmem:[%s3 + $0xb0] sm:$0xff] %vm643, %v590
  %667 = vst.msk [vmem:[%s3 + $0xb8] sm:$0xff] %vm643, %v592
  %668 = vst.msk [vmem:[%s3 + $0xc0] sm:$0xff] %vm643, %v595
  %669 = vst.msk [vmem:[%s3 + $0xc8] sm:$0xff] %vm643, %v597
  %670 = vst.msk [vmem:[%s3 + $0xd0] sm:$0xff] %vm643, %v600
  %671 = vst.msk [vmem:[%s3 + $0xd8] sm:$0xff] %vm643, %v602
  %672 = vst.msk [vmem:[%s3 + $0xe0] sm:$0xff] %vm643, %v605
  %673 = vst.msk [vmem:[%s3 + $0xe8] sm:$0xff] %vm643, %v607
  %674 = vst.msk [vmem:[%s3 + $0xf0] sm:$0xff] %vm643, %v610
  %675 = vst.msk [vmem:[%s3 + $0xf8] sm:$0xff] %vm643, %v612
  %676 = vst.msk [vmem:[%s3 + $0x100] sm:$0xff] %vm643, %v615
  %677 = vst.msk [vmem:[%s3 + $0x108] sm:$0xff] %vm643, %v617
  %678 = vst.msk [vmem:[%s3 + $0x110] sm:$0xff] %vm643, %v620
  %679 = vst.msk [vmem:[%s3 + $0x118] sm:$0xff] %vm643, %v622
  %680 = vst.msk [vmem:[%s3 + $0x120] sm:$0xff] %vm643, %v625
  %681 = vst.msk [vmem:[%s3 + $0x128] sm:$0xff] %vm643, %v627
  %682 = vst.msk [vmem:[%s3 + $0x130] sm:$0xff] %vm643, %v630
  %683 = vst.msk [vmem:[%s3 + $0x138] sm:$0xff] %vm643, %v632
  %684 = vst.msk [vmem:[%s3 + $0x140] sm:$0xff] %vm643, %v635
  %685 = vst.msk [vmem:[%s3 + $0x148] sm:$0xff] %vm643, %v637
  %vm686 = vcmask 254976
  %687 = vst.msk [vmem:[%s3 + $0x150] sm:$0x3] %vm686, %v640
  // Predicated region
  $region14: #{resnet_forward.3} parent=0 // pred_check
    _
  $region15: #{resnet_forward.3} parent=0 // pred_check_branch
    %689 = sbr.rel (0) target = $region17
  $region16: #{resnet_forward.3} parent=0 // pred_region
    _
  $region17: #{resnet_forward.3} parent=0 // pred_fallthru
    _
  // Predicated region
  $region18: #{resnet_forward.3} parent=0 // pred_check
    _
  $region19: #{resnet_forward.3} parent=0 // pred_check_branch
    %691 = sbr.rel (0) target = $region21
  $region20: #{resnet_forward.3} parent=0 // pred_region
    _
  $region21: #{resnet_forward.3} parent=0 // pred_fallthru
    _

// kernel: resnet_forward.4
$region0: #{resnet_forward.4}
  #allocation0 [shape = 'u32[]', space=smem, size = 0x4, offset = 0x4, fixed_abs, tag = 'smem constant byte address 0x4 - core index']
  #allocation1 [shape = 'u32[72,128]{1,0:T(1,128)}', space=vmem, size = 0x9000, scoped, tag = 'internal scratch']
  #allocation2 [shape = 'f32[2,8,256]{2,1,0:T(8,128)}', space=vmem, size = 0x4000, scoped, tag = 'scratch operand']
  %s0 = inlined_call_operand.vmem [shape: f32[9,2,6,256], index: 0, kind: input, shape index: {}]
  %s1 = inlined_call_operand.vmem [shape: bf16[3,256,256], index: 1, kind: input, shape index: {}]
  %s2 = inlined_call_operand.vmem [shape: f32[1,32], index: 2, kind: input, shape index: {}]
  %s3 = inlined_call_operand.vmem [shape: f32[1,32], index: 3, kind: input, shape index: {}]
  %s4 = inlined_call_operand.vmem [shape: bf16[3,256,256], index: 4, kind: input, shape index: {}]
  %s5 = inlined_call_operand.vmem [shape: f32[1,32], index: 5, kind: input, shape index: {}]
  %s6 = inlined_call_operand.vmem [shape: f32[1,32], index: 6, kind: input, shape index: {}]
  %s7 = inlined_call_operand.vmem [shape: f32[256,32], index: 7, kind: input, shape index: {}]
  %s8 = inlined_call_operand.vmem [shape: f32[32,256], index: 8, kind: input, shape index: {}]
  %s9 = inlined_call_operand.vmem [shape: f32[2,6,256], index: 9, kind: output, shape index: {}]
  %s10 = sld [smem:[#allocation0]]
  $region46: #{resnet_forward.4} parent=0
    _
  %s12 = ssub.s32 1, %s10
  %s13 = scalar_select 0, %s12, %s10
  // Predicated region
  $region2: #{resnet_forward.4} parent=0 // pred_check
    _
  $region3: #{resnet_forward.4} parent=0 // pred_check_branch
    %15 = sbr.rel (0) target = $region5
  $region4: #{resnet_forward.4} parent=0 // pred_region
    _
  $region5: #{resnet_forward.4} parent=0 // pred_fallthru
    _
  // Predicated region
  $region6: #{resnet_forward.4} parent=0 // pred_check
    _
  $region7: #{resnet_forward.4} parent=0 // pred_check_branch
    %17 = sbr.rel (0) target = $region9
  $region8: #{resnet_forward.4} parent=0 // pred_region
    _
  $region9: #{resnet_forward.4} parent=0 // pred_fallthru
    _
  // Predicated region
  $region10: #{resnet_forward.4} parent=0 // pred_check
    _
  $region11: #{resnet_forward.4} parent=0 // pred_check_branch
    %19 = sbr.rel (0) target = $region13
  $region12: #{resnet_forward.4} parent=0 // pred_region
    _
  $region13: #{resnet_forward.4} parent=0 // pred_fallthru
    _
  // Predicated region
  $region14: #{resnet_forward.4} parent=0 // pred_check
    _
  $region15: #{resnet_forward.4} parent=0 // pred_check_branch
    %21 = sbr.rel (0) target = $region17
  $region16: #{resnet_forward.4} parent=0 // pred_region
    _
  $region17: #{resnet_forward.4} parent=0 // pred_fallthru
    _
  // Predicated region
  $region18: #{resnet_forward.4} parent=0 // pred_check
    _
  $region19: #{resnet_forward.4} parent=0 // pred_check_branch
    %23 = sbr.rel (0) target = $region21
  $region20: #{resnet_forward.4} parent=0 // pred_region
    _
  $region21: #{resnet_forward.4} parent=0 // pred_fallthru
    _
  // Predicated region
  $region22: #{resnet_forward.4} parent=0 // pred_check
    _
  $region23: #{resnet_forward.4} parent=0 // pred_check_branch
    %25 = sbr.rel (0) target = $region25
  $region24: #{resnet_forward.4} parent=0 // pred_region
    _
  $region25: #{resnet_forward.4} parent=0 // pred_fallthru
    _
  // Predicated region
  $region26: #{resnet_forward.4} parent=0 // pred_check
    _
  $region27: #{resnet_forward.4} parent=0 // pred_check_branch
    %27 = sbr.rel (0) target = $region29
  $region28: #{resnet_forward.4} parent=0 // pred_region
    _
  $region29: #{resnet_forward.4} parent=0 // pred_fallthru
    _
  // Predicated region
  $region30: #{resnet_forward.4} parent=0 // pred_check
    _
  $region31: #{resnet_forward.4} parent=0 // pred_check_branch
    %29 = sbr.rel (0) target = $region33
  $region32: #{resnet_forward.4} parent=0 // pred_region
    _
  $region33: #{resnet_forward.4} parent=0 // pred_fallthru
    _
  // Predicated region
  $region34: #{resnet_forward.4} parent=0 // pred_check
    _
  $region35: #{resnet_forward.4} parent=0 // pred_check_branch
    %31 = sbr.rel (0) target = $region37
  $region36: #{resnet_forward.4} parent=0 // pred_region
    _
  $region37: #{resnet_forward.4} parent=0 // pred_fallthru
    _
  %32 = vst [vmem:[#allocation2] sm:$0xff] 0.0
  %33 = vst [vmem:[#allocation2 + $0x8] sm:$0xff] 0.0
  %34 = vst [vmem:[#allocation2 + $0x10] sm:$0xff] 0.0
  %35 = vst [vmem:[#allocation2 + $0x18] sm:$0xff] 0.0
  %v36 = vld [vmem:[%s0] sm:$0x3f]
  %v37 = vld [vmem:[%s0 + $0x8] sm:$0x3f]
  %v38 = vld [vmem:[%s0 + $0x10] sm:$0x3f]
  %v39 = vld [vmem:[%s0 + $0x18] sm:$0x3f]
  %s40 = scalar_lea.vmem %s0, 32
  %v41 = vld [vmem:[%s40] sm:$0x3f]
  %v42 = vld [vmem:[%s40 + $0x8] sm:$0x3f]
  %v43 = vld [vmem:[%s40 + $0x10] sm:$0x3f]
  %v44 = vld [vmem:[%s40 + $0x18] sm:$0x3f]
  %v45 = vmax.f32 %v36, %v41
  %v46 = vmax.f32 %v37, %v42
  %v47 = vmax.f32 %v38, %v43
  %v48 = vmax.f32 %v39, %v44
  %s49 = scalar_lea.vmem %s0, 64
  %v50 = vld [vmem:[%s49] sm:$0x3f]
  %v51 = vld [vmem:[%s49 + $0x8] sm:$0x3f]
  %v52 = vld [vmem:[%s49 + $0x10] sm:$0x3f]
  %v53 = vld [vmem:[%s49 + $0x18] sm:$0x3f]
  %v54 = vmax.f32 %v45, %v50
  %v55 = vmax.f32 %v46, %v51
  %v56 = vmax.f32 %v47, %v52
  %v57 = vmax.f32 %v48, %v53
  %s58 = scalar_lea.vmem %s0, 96
  %v59 = vld [vmem:[%s58] sm:$0x3f]
  %v60 = vld [vmem:[%s58 + $0x8] sm:$0x3f]
  %v61 = vld [vmem:[%s58 + $0x10] sm:$0x3f]
  %v62 = vld [vmem:[%s58 + $0x18] sm:$0x3f]
  %v63 = vmax.f32 %v54, %v59
  %v64 = vmax.f32 %v55, %v60
  %v65 = vmax.f32 %v56, %v61
  %v66 = vmax.f32 %v57, %v62
  %s67 = scalar_lea.vmem %s0, 128
  %v68 = vld [vmem:[%s67] sm:$0x3f]
  %v69 = vld [vmem:[%s67 + $0x8] sm:$0x3f]
  %v70 = vld [vmem:[%s67 + $0x10] sm:$0x3f]
  %v71 = vld [vmem:[%s67 + $0x18] sm:$0x3f]
  %v72 = vmax.f32 %v63, %v68
  %v73 = vmax.f32 %v64, %v69
  %v74 = vmax.f32 %v65, %v70
  %v75 = vmax.f32 %v66, %v71
  %s76 = scalar_lea.vmem %s0, 160
  %v77 = vld [vmem:[%s76] sm:$0x3f]
  %v78 = vld [vmem:[%s76 + $0x8] sm:$0x3f]
  %v79 = vld [vmem:[%s76 + $0x10] sm:$0x3f]
  %v80 = vld [vmem:[%s76 + $0x18] sm:$0x3f]
  %v81 = vmax.f32 %v72, %v77
  %v82 = vmax.f32 %v73, %v78
  %v83 = vmax.f32 %v74, %v79
  %v84 = vmax.f32 %v75, %v80
  %s85 = scalar_lea.vmem %s0, 192
  %v86 = vld [vmem:[%s85] sm:$0x3f]
  %v87 = vld [vmem:[%s85 + $0x8] sm:$0x3f]
  %v88 = vld [vmem:[%s85 + $0x10] sm:$0x3f]
  %v89 = vld [vmem:[%s85 + $0x18] sm:$0x3f]
  %v90 = vmax.f32 %v81, %v86
  %v91 = vmax.f32 %v82, %v87
  %v92 = vmax.f32 %v83, %v88
  %v93 = vmax.f32 %v84, %v89
  %s94 = scalar_lea.vmem %s0, 224
  %v95 = vld [vmem:[%s94] sm:$0x3f]
  %v96 = vld [vmem:[%s94 + $0x8] sm:$0x3f]
  %v97 = vld [vmem:[%s94 + $0x10] sm:$0x3f]
  %v98 = vld [vmem:[%s94 + $0x18] sm:$0x3f]
  %v99 = vmax.f32 %v90, %v95
  %v100 = vmax.f32 %v91, %v96
  %v101 = vmax.f32 %v92, %v97
  %v102 = vmax.f32 %v93, %v98
  %s103 = scalar_lea.vmem %s0, 256
  %v104 = vld [vmem:[%s103] sm:$0x3f]
  %v105 = vld [vmem:[%s103 + $0x8] sm:$0x3f]
  %v106 = vld [vmem:[%s103 + $0x10] sm:$0x3f]
  %v107 = vld [vmem:[%s103 + $0x18] sm:$0x3f]
  %v108 = vmax.f32 %v99, %v104
  %v109 = vmax.f32 %v100, %v105
  %v110 = vmax.f32 %v101, %v106
  %v111 = vmax.f32 %v102, %v107
  %v116 = vrot.slane %v108, 7
  %v117 = vrot.slane %v109, 7
  %v118 = vrot.slane %v110, 7
  %v119 = vrot.slane %v111, 7
  %124 = vst [vmem:[#allocation2] sm:$0x7e] %v116
  %125 = vst [vmem:[#allocation2 + $0x8] sm:$0x7e] %v117
  %126 = vst [vmem:[#allocation2 + $0x10] sm:$0x7e] %v118
  %127 = vst [vmem:[#allocation2 + $0x18] sm:$0x7e] %v119
  %v128 = vrot.slane %v109, 6
  %v129 = vrot.slane %v111, 6
  %vm130 = vcmask 1041408
  %v131 = vsel %vm130, %v108, %v128
  %vm132 = vcmask 1043458
  %v133 = vsel %vm132, %v108, %v128
  %v134 = vrot.slane %v133, 2
  %vm135 = vcmask 1045508
  %v136 = vsel %vm135, %v108, %v128
  %v137 = vrot.slane %v136, 4
  %v138 = vsel %vm130, %v110, %v129
  %v139 = vsel %vm132, %v110, %v129
  %v140 = vrot.slane %v139, 2
  %v141 = vsel %vm135, %v110, %v129
  %v142 = vrot.slane %v141, 4
  %v149 = vld [vmem:[#allocation2] sm:$0xff]
  %v150 = vld [vmem:[#allocation2 + $0x8] sm:$0xff]
  %v151 = vld [vmem:[#allocation2 + $0x10] sm:$0xff]
  %v152 = vld [vmem:[#allocation2 + $0x18] sm:$0xff]
  %v153 = vpack.c.bf16 %v150, %v149
  %v154 = vpack.c.bf16 %v152, %v151
  %v155 = vld [vmem:[%s1] sm:$0xff]
  %v156 = vld [vmem:[%s1 + $0x8] sm:$0xff]
  %v157 = vld [vmem:[%s1 + $0x10] sm:$0xff]
  %v158 = vld [vmem:[%s1 + $0x18] sm:$0xff]
  %v159 = vld [vmem:[%s1 + $0x20] sm:$0xff]
  %v160 = vld [vmem:[%s1 + $0x28] sm:$0xff]
  %v161 = vld [vmem:[%s1 + $0x30] sm:$0xff]
  %v162 = vld [vmem:[%s1 + $0x38] sm:$0xff]
  %v163 = vld [vmem:[%s1 + $0x40] sm:$0xff]
  %v164 = vld [vmem:[%s1 + $0x48] sm:$0xff]
  %v165 = vld [vmem:[%s1 + $0x50] sm:$0xff]
  %v166 = vld [vmem:[%s1 + $0x58] sm:$0xff]
  %v167 = vld [vmem:[%s1 + $0x60] sm:$0xff]
  %v168 = vld [vmem:[%s1 + $0x68] sm:$0xff]
  %v169 = vld [vmem:[%s1 + $0x70] sm:$0xff]
  %v170 = vld [vmem:[%s1 + $0x78] sm:$0xff]
  %v171 = vld [vmem:[%s1 + $0x80] sm:$0xff]
  %v172 = vld [vmem:[%s1 + $0x88] sm:$0xff]
  %v173 = vld [vmem:[%s1 + $0x90] sm:$0xff]
  %v174 = vld [vmem:[%s1 + $0x98] sm:$0xff]
  %v175 = vld [vmem:[%s1 + $0xa0] sm:$0xff]
  %v176 = vld [vmem:[%s1 + $0xa8] sm:$0xff]
  %v177 = vld [vmem:[%s1 + $0xb0] sm:$0xff]
  %v178 = vld [vmem:[%s1 + $0xb8] sm:$0xff]
  %v179 = vld [vmem:[%s1 + $0xc0] sm:$0xff]
  %v180 = vld [vmem:[%s1 + $0xc8] sm:$0xff]
  %v181 = vld [vmem:[%s1 + $0xd0] sm:$0xff]
  %v182 = vld [vmem:[%s1 + $0xd8] sm:$0xff]
  %v183 = vld [vmem:[%s1 + $0xe0] sm:$0xff]
  %v184 = vld [vmem:[%s1 + $0xe8] sm:$0xff]
  %v185 = vld [vmem:[%s1 + $0xf0] sm:$0xff]
  %v186 = vld [vmem:[%s1 + $0xf8] sm:$0xff]
  %v189 = vunpack.c.l.b16 %v153
  %v190 = vunpack.c.h.b16 %v153
  %v191 = vunpack.c.l.b16 %v154
  %v192 = vunpack.c.h.b16 %v154
  %v193 = vpack.c.b16 %v191, %v189
  %v194 = vpack.c.b16 %v192, %v190
  %v229 = vunpack.c.l.b16 %v155
  %v230 = vunpack.c.h.b16 %v155
  %v231 = vunpack.c.l.b16 %v156
  %v232 = vunpack.c.h.b16 %v156
  %v233 = vunpack.c.l.b16 %v157
  %v234 = vunpack.c.h.b16 %v157
  %v235 = vunpack.c.l.b16 %v158
  %v236 = vunpack.c.h.b16 %v158
  %v237 = vunpack.c.l.b16 %v159
  %v238 = vunpack.c.h.b16 %v159
  %v239 = vunpack.c.l.b16 %v160
  %v240 = vunpack.c.h.b16 %v160
  %v241 = vunpack.c.l.b16 %v161
  %v242 = vunpack.c.h.b16 %v161
  %v243 = vunpack.c.l.b16 %v162
  %v244 = vunpack.c.h.b16 %v162
  %v245 = vunpack.c.l.b16 %v163
  %v246 = vunpack.c.h.b16 %v163
  %v247 = vunpack.c.l.b16 %v164
  %v248 = vunpack.c.h.b16 %v164
  %v249 = vunpack.c.l.b16 %v165
  %v250 = vunpack.c.h.b16 %v165
  %v251 = vunpack.c.l.b16 %v166
  %v252 = vunpack.c.h.b16 %v166
  %v253 = vunpack.c.l.b16 %v167
  %v254 = vunpack.c.h.b16 %v167
  %v255 = vunpack.c.l.b16 %v168
  %v256 = vunpack.c.h.b16 %v168
  %v257 = vunpack.c.l.b16 %v169
  %v258 = vunpack.c.h.b16 %v169
  %v259 = vunpack.c.l.b16 %v170
  %v260 = vunpack.c.h.b16 %v170
  %v261 = vunpack.c.l.b16 %v171
  %v262 = vunpack.c.h.b16 %v171
  %v263 = vunpack.c.l.b16 %v172
  %v264 = vunpack.c.h.b16 %v172
  %v265 = vunpack.c.l.b16 %v173
  %v266 = vunpack.c.h.b16 %v173
  %v267 = vunpack.c.l.b16 %v174
  %v268 = vunpack.c.h.b16 %v174
  %v269 = vunpack.c.l.b16 %v175
  %v270 = vunpack.c.h.b16 %v175
  %v271 = vunpack.c.l.b16 %v176
  %v272 = vunpack.c.h.b16 %v176
  %v273 = vunpack.c.l.b16 %v177
  %v274 = vunpack.c.h.b16 %v177
  %v275 = vunpack.c.l.b16 %v178
  %v276 = vunpack.c.h.b16 %v178
  %v277 = vunpack.c.l.b16 %v179
  %v278 = vunpack.c.h.b16 %v179
  %v279 = vunpack.c.l.b16 %v180
  %v280 = vunpack.c.h.b16 %v180
  %v281 = vunpack.c.l.b16 %v181
  %v282 = vunpack.c.h.b16 %v181
  %v283 = vunpack.c.l.b16 %v182
  %v284 = vunpack.c.h.b16 %v182
  %v285 = vunpack.c.l.b16 %v183
  %v286 = vunpack.c.h.b16 %v183
  %v287 = vunpack.c.l.b16 %v184
  %v288 = vunpack.c.h.b16 %v184
  %v289 = vunpack.c.l.b16 %v185
  %v290 = vunpack.c.h.b16 %v185
  %v291 = vunpack.c.l.b16 %v186
  %v292 = vunpack.c.h.b16 %v186
  %v293 = vpack.c.b16 %v231, %v229
  %v294 = vpack.c.b16 %v232, %v230
  %v295 = vpack.c.b16 %v235, %v233
  %v296 = vpack.c.b16 %v236, %v234
  %v297 = vpack.c.b16 %v239, %v237
  %v298 = vpack.c.b16 %v240, %v238
  %v299 = vpack.c.b16 %v243, %v241
  %v300 = vpack.c.b16 %v244, %v242
  %v301 = vpack.c.b16 %v247, %v245
  %v302 = vpack.c.b16 %v248, %v246
  %v303 = vpack.c.b16 %v251, %v249
  %v304 = vpack.c.b16 %v252, %v250
  %v305 = vpack.c.b16 %v255, %v253
  %v306 = vpack.c.b16 %v256, %v254
  %v307 = vpack.c.b16 %v259, %v257
  %v308 = vpack.c.b16 %v260, %v258
  %v309 = vpack.c.b16 %v263, %v261
  %v310 = vpack.c.b16 %v264, %v262
  %v311 = vpack.c.b16 %v267, %v265
  %v312 = vpack.c.b16 %v268, %v266
  %v313 = vpack.c.b16 %v271, %v269
  %v314 = vpack.c.b16 %v272, %v270
  %v315 = vpack.c.b16 %v275, %v273
  %v316 = vpack.c.b16 %v276, %v274
  %v317 = vpack.c.b16 %v279, %v277
  %v318 = vpack.c.b16 %v280, %v278
  %v319 = vpack.c.b16 %v283, %v281
  %v320 = vpack.c.b16 %v284, %v282
  %v321 = vpack.c.b16 %v287, %v285
  %v322 = vpack.c.b16 %v288, %v286
  %v323 = vpack.c.b16 %v291, %v289
  %v324 = vpack.c.b16 %v292, %v290
  %357 = vmatpush.bf16.msra.mxu0 %v307
  %358 = vmatpush.bf16.msra.mxu0 %v305
  %359 = vmatpush.bf16.msra.mxu0 %v303
  %360 = vmatpush.bf16.msra.mxu0 %v301
  %361 = vmatpush.bf16.msra.mxu0 %v299
  %362 = vmatpush.bf16.msra.mxu0 %v297
  %363 = vmatpush.bf16.msra.mxu0 %v295
  %364 = vmatpush.bf16.msra.mxu0 %v293
  %365 = vmatmul.bf16.gmra.mxu0 %v193
  %v366 = vpop.f32.mrf.mxu0
  %v367 = vadd.f32 0.0, %v366
  %v368 = vpop.f32.mrf.mxu0
  %v369 = vadd.f32 0.0, %v368
  %370 = vdwg.mxu0
  %371 = vmatpush.bf16.msra.mxu0 %v323
  %372 = vmatpush.bf16.msra.mxu0 %v321
  %373 = vmatpush.bf16.msra.mxu0 %v319
  %374 = vmatpush.bf16.msra.mxu0 %v317
  %375 = vmatpush.bf16.msra.mxu0 %v315
  %376 = vmatpush.bf16.msra.mxu0 %v313
  %377 = vmatpush.bf16.msra.mxu0 %v311
  %378 = vmatpush.bf16.msra.mxu0 %v309
  %379 = vmatmul.bf16.gmra.mxu0 %v194
  %v380 = vpop.f32.mrf.mxu0
  %v381 = vadd.f32 %v367, %v380
  %v382 = vpop.f32.mrf.mxu0
  %v383 = vadd.f32 %v369, %v382
  %384 = vdwg.mxu0
  %385 = vmatpush.bf16.msra.mxu0 %v308
  %386 = vmatpush.bf16.msra.mxu0 %v306
  %387 = vmatpush.bf16.msra.mxu0 %v304
  %388 = vmatpush.bf16.msra.mxu0 %v302
  %389 = vmatpush.bf16.msra.mxu0 %v300
  %390 = vmatpush.bf16.msra.mxu0 %v298
  %391 = vmatpush.bf16.msra.mxu0 %v296
  %392 = vmatpush.bf16.msra.mxu0 %v294
  %393 = vmatmul.bf16.gmra.mxu0 %v193
  %v394 = vpop.f32.mrf.mxu0
  %v395 = vadd.f32 0.0, %v394
  %v396 = vpop.f32.mrf.mxu0
  %v397 = vadd.f32 0.0, %v396
  %398 = vdwg.mxu0
  %399 = vmatpush.bf16.msra.mxu0 %v324
  %400 = vmatpush.bf16.msra.mxu0 %v322
  %401 = vmatpush.bf16.msra.mxu0 %v320
  %402 = vmatpush.bf16.msra.mxu0 %v318
  %403 = vmatpush.bf16.msra.mxu0 %v316
  %404 = vmatpush.bf16.msra.mxu0 %v314
  %405 = vmatpush.bf16.msra.mxu0 %v312
  %406 = vmatpush.bf16.msra.mxu0 %v310
  %407 = vmatmul.bf16.gmra.mxu0 %v194
  %v408 = vpop.f32.mrf.mxu0
  %v409 = vadd.f32 %v395, %v408
  %v410 = vpop.f32.mrf.mxu0
  %v411 = vadd.f32 %v397, %v410
  %412 = vdwg.mxu0
  %s413 = scalar_lea.vmem %s1, 256
  %v414 = vld [vmem:[%s413] sm:$0xff]
  %v415 = vld [vmem:[%s413 + $0x8] sm:$0xff]
  %v416 = vld [vmem:[%s413 + $0x10] sm:$0xff]
  %v417 = vld [vmem:[%s413 + $0x18] sm:$0xff]
  %v418 = vld [vmem:[%s413 + $0x20] sm:$0xff]
  %v419 = vld [vmem:[%s413 + $0x28] sm:$0xff]
  %v420 = vld [vmem:[%s413 + $0x30] sm:$0xff]
  %v421 = vld [vmem:[%s413 + $0x38] sm:$0xff]
  %v422 = vld [vmem:[%s413 + $0x40] sm:$0xff]
  %v423 = vld [vmem:[%s413 + $0x48] sm:$0xff]
  %v424 = vld [vmem:[%s413 + $0x50] sm:$0xff]
  %v425 = vld [vmem:[%s413 + $0x58] sm:$0xff]
  %v426 = vld [vmem:[%s413 + $0x60] sm:$0xff]
  %v427 = vld [vmem:[%s413 + $0x68] sm:$0xff]
  %v428 = vld [vmem:[%s413 + $0x70] sm:$0xff]
  %v429 = vld [vmem:[%s413 + $0x78] sm:$0xff]
  %v430 = vld [vmem:[%s413 + $0x80] sm:$0xff]
  %v431 = vld [vmem:[%s413 + $0x88] sm:$0xff]
  %v432 = vld [vmem:[%s413 + $0x90] sm:$0xff]
  %v433 = vld [vmem:[%s413 + $0x98] sm:$0xff]
  %v434 = vld [vmem:[%s413 + $0xa0] sm:$0xff]
  %v435 = vld [vmem:[%s413 + $0xa8] sm:$0xff]
  %v436 = vld [vmem:[%s413 + $0xb0] sm:$0xff]
  %v437 = vld [vmem:[%s413 + $0xb8] sm:$0xff]
  %v438 = vld [vmem:[%s413 + $0xc0] sm:$0xff]
  %v439 = vld [vmem:[%s413 + $0xc8] sm:$0xff]
  %v440 = vld [vmem:[%s413 + $0xd0] sm:$0xff]
  %v441 = vld [vmem:[%s413 + $0xd8] sm:$0xff]
  %v442 = vld [vmem:[%s413 + $0xe0] sm:$0xff]
  %v443 = vld [vmem:[%s413 + $0xe8] sm:$0xff]
  %v444 = vld [vmem:[%s413 + $0xf0] sm:$0xff]
  %v445 = vld [vmem:[%s413 + $0xf8] sm:$0xff]
  %v478 = vunpack.c.l.b16 %v414
  %v479 = vunpack.c.h.b16 %v414
  %v480 = vunpack.c.l.b16 %v415
  %v481 = vunpack.c.h.b16 %v415
  %v482 = vunpack.c.l.b16 %v416
  %v483 = vunpack.c.h.b16 %v416
  %v484 = vunpack.c.l.b16 %v417
  %v485 = vunpack.c.h.b16 %v417
  %v486 = vunpack.c.l.b16 %v418
  %v487 = vunpack.c.h.b16 %v418
  %v488 = vunpack.c.l.b16 %v419
  %v489 = vunpack.c.h.b16 %v419
  %v490 = vunpack.c.l.b16 %v420
  %v491 = vunpack.c.h.b16 %v420
  %v492 = vunpack.c.l.b16 %v421
  %v493 = vunpack.c.h.b16 %v421
  %v494 = vunpack.c.l.b16 %v422
  %v495 = vunpack.c.h.b16 %v422
  %v496 = vunpack.c.l.b16 %v423
  %v497 = vunpack.c.h.b16 %v423
  %v498 = vunpack.c.l.b16 %v424
  %v499 = vunpack.c.h.b16 %v424
  %v500 = vunpack.c.l.b16 %v425
  %v501 = vunpack.c.h.b16 %v425
  %v502 = vunpack.c.l.b16 %v426
  %v503 = vunpack.c.h.b16 %v426
  %v504 = vunpack.c.l.b16 %v427
  %v505 = vunpack.c.h.b16 %v427
  %v506 = vunpack.c.l.b16 %v428
  %v507 = vunpack.c.h.b16 %v428
  %v508 = vunpack.c.l.b16 %v429
  %v509 = vunpack.c.h.b16 %v429
  %v510 = vunpack.c.l.b16 %v430
  %v511 = vunpack.c.h.b16 %v430
  %v512 = vunpack.c.l.b16 %v431
  %v513 = vunpack.c.h.b16 %v431
  %v514 = vunpack.c.l.b16 %v432
  %v515 = vunpack.c.h.b16 %v432
  %v516 = vunpack.c.l.b16 %v433
  %v517 = vunpack.c.h.b16 %v433
  %v518 = vunpack.c.l.b16 %v434
  %v519 = vunpack.c.h.b16 %v434
  %v520 = vunpack.c.l.b16 %v435
  %v521 = vunpack.c.h.b16 %v435
  %v522 = vunpack.c.l.b16 %v436
  %v523 = vunpack.c.h.b16 %v436
  %v524 = vunpack.c.l.b16 %v437
  %v525 = vunpack.c.h.b16 %v437
  %v526 = vunpack.c.l.b16 %v438
  %v527 = vunpack.c.h.b16 %v438
  %v528 = vunpack.c.l.b16 %v439
  %v529 = vunpack.c.h.b16 %v439
  %v530 = vunpack.c.l.b16 %v440
  %v531 = vunpack.c.h.b16 %v440
  %v532 = vunpack.c.l.b16 %v441
  %v533 = vunpack.c.h.b16 %v441
  %v534 = vunpack.c.l.b16 %v442
  %v535 = vunpack.c.h.b16 %v442
  %v536 = vunpack.c.l.b16 %v443
  %v537 = vunpack.c.h.b16 %v443
  %v538 = vunpack.c.l.b16 %v444
  %v539 = vunpack.c.h.b16 %v444
  %v540 = vunpack.c.l.b16 %v445
  %v541 = vunpack.c.h.b16 %v445
  %v542 = vpack.c.b16 %v480, %v478
  %v543 = vpack.c.b16 %v481, %v479
  %v544 = vpack.c.b16 %v484, %v482
  %v545 = vpack.c.b16 %v485, %v483
  %v546 = vpack.c.b16 %v488, %v486
  %v547 = vpack.c.b16 %v489, %v487
  %v548 = vpack.c.b16 %v492, %v490
  %v549 = vpack.c.b16 %v493, %v491
  %v550 = vpack.c.b16 %v496, %v494
  %v551 = vpack.c.b16 %v497, %v495
  %v552 = vpack.c.b16 %v500, %v498
  %v553 = vpack.c.b16 %v501, %v499
  %v554 = vpack.c.b16 %v504, %v502
  %v555 = vpack.c.b16 %v505, %v503
  %v556 = vpack.c.b16 %v508, %v506
  %v557 = vpack.c.b16 %v509, %v507
  %v558 = vpack.c.b16 %v512, %v510
  %v559 = vpack.c.b16 %v513, %v511
  %v560 = vpack.c.b16 %v516, %v514
  %v561 = vpack.c.b16 %v517, %v515
  %v562 = vpack.c.b16 %v520, %v518
  %v563 = vpack.c.b16 %v521, %v519
  %v564 = vpack.c.b16 %v524, %v522
  %v565 = vpack.c.b16 %v525, %v523
  %v566 = vpack.c.b16 %v528, %v526
  %v567 = vpack.c.b16 %v529, %v527
  %v568 = vpack.c.b16 %v532, %v530
  %v569 = vpack.c.b16 %v533, %v531
  %v570 = vpack.c.b16 %v536, %v534
  %v571 = vpack.c.b16 %v537, %v535
  %v572 = vpack.c.b16 %v540, %v538
  %v573 = vpack.c.b16 %v541, %v539
  %606 = vmatpush.bf16.msra.mxu0 %v556
  %607 = vmatpush.bf16.msra.mxu0 %v554
  %608 = vmatpush.bf16.msra.mxu0 %v552
  %609 = vmatpush.bf16.msra.mxu0 %v550
  %610 = vmatpush.bf16.msra.mxu0 %v548
  %611 = vmatpush.bf16.msra.mxu0 %v546
  %612 = vmatpush.bf16.msra.mxu0 %v544
  %613 = vmatpush.bf16.msra.mxu0 %v542
  %614 = vmatmul.bf16.gmra.mxu0 %v193
  %v615 = vpop.f32.mrf.mxu0
  %v616 = vadd.f32 0.0, %v615
  %v617 = vpop.f32.mrf.mxu0
  %v618 = vadd.f32 0.0, %v617
  %619 = vdwg.mxu0
  %620 = vmatpush.bf16.msra.mxu0 %v572
  %621 = vmatpush.bf16.msra.mxu0 %v570
  %622 = vmatpush.bf16.msra.mxu0 %v568
  %623 = vmatpush.bf16.msra.mxu0 %v566
  %624 = vmatpush.bf16.msra.mxu0 %v564
  %625 = vmatpush.bf16.msra.mxu0 %v562
  %626 = vmatpush.bf16.msra.mxu0 %v560
  %627 = vmatpush.bf16.msra.mxu0 %v558
  %628 = vmatmul.bf16.gmra.mxu0 %v194
  %v629 = vpop.f32.mrf.mxu0
  %v630 = vadd.f32 %v616, %v629
  %v631 = vpop.f32.mrf.mxu0
  %v632 = vadd.f32 %v618, %v631
  %633 = vdwg.mxu0
  %634 = vmatpush.bf16.msra.mxu0 %v557
  %635 = vmatpush.bf16.msra.mxu0 %v555
  %636 = vmatpush.bf16.msra.mxu0 %v553
  %637 = vmatpush.bf16.msra.mxu0 %v551
  %638 = vmatpush.bf16.msra.mxu0 %v549
  %639 = vmatpush.bf16.msra.mxu0 %v547
  %640 = vmatpush.bf16.msra.mxu0 %v545
  %641 = vmatpush.bf16.msra.mxu0 %v543
  %642 = vmatmul.bf16.gmra.mxu0 %v193
  %v643 = vpop.f32.mrf.mxu0
  %v644 = vadd.f32 0.0, %v643
  %v645 = vpop.f32.mrf.mxu0
  %v646 = vadd.f32 0.0, %v645
  %647 = vdwg.mxu0
  %648 = vmatpush.bf16.msra.mxu0 %v573
  %649 = vmatpush.bf16.msra.mxu0 %v571
  %650 = vmatpush.bf16.msra.mxu0 %v569
  %651 = vmatpush.bf16.msra.mxu0 %v567
  %652 = vmatpush.bf16.msra.mxu0 %v565
  %653 = vmatpush.bf16.msra.mxu0 %v563
  %654 = vmatpush.bf16.msra.mxu0 %v561
  %655 = vmatpush.bf16.msra.mxu0 %v559
  %656 = vmatmul.bf16.gmra.mxu0 %v194
  %v657 = vpop.f32.mrf.mxu0
  %v658 = vadd.f32 %v644, %v657
  %v659 = vpop.f32.mrf.mxu0
  %v660 = vadd.f32 %v646, %v659
  %661 = vdwg.mxu0
  %s662 = scalar_lea.vmem %s1, 512
  %v663 = vld [vmem:[%s662] sm:$0xff]
  %v664 = vld [vmem:[%s662 + $0x8] sm:$0xff]
  %v665 = vld [vmem:[%s662 + $0x10] sm:$0xff]
  %v666 = vld [vmem:[%s662 + $0x18] sm:$0xff]
  %v667 = vld [vmem:[%s662 + $0x20] sm:$0xff]
  %v668 = vld [vmem:[%s662 + $0x28] sm:$0xff]
  %v669 = vld [vmem:[%s662 + $0x30] sm:$0xff]
  %v670 = vld [vmem:[%s662 + $0x38] sm:$0xff]
  %v671 = vld [vmem:[%s662 + $0x40] sm:$0xff]
  %v672 = vld [vmem:[%s662 + $0x48] sm:$0xff]
  %v673 = vld [vmem:[%s662 + $0x50] sm:$0xff]
  %v674 = vld [vmem:[%s662 + $0x58] sm:$0xff]
  %v675 = vld [vmem:[%s662 + $0x60] sm:$0xff]
  %v676 = vld [vmem:[%s662 + $0x68] sm:$0xff]
  %v677 = vld [vmem:[%s662 + $0x70] sm:$0xff]
  %v678 = vld [vmem:[%s662 + $0x78] sm:$0xff]
  %v679 = vld [vmem:[%s662 + $0x80] sm:$0xff]
  %v680 = vld [vmem:[%s662 + $0x88] sm:$0xff]
  %v681 = vld [vmem:[%s662 + $0x90] sm:$0xff]
  %v682 = vld [vmem:[%s662 + $0x98] sm:$0xff]
  %v683 = vld [vmem:[%s662 + $0xa0] sm:$0xff]
  %v684 = vld [vmem:[%s662 + $0xa8] sm:$0xff]
  %v685 = vld [vmem:[%s662 + $0xb0] sm:$0xff]
  %v686 = vld [vmem:[%s662 + $0xb8] sm:$0xff]
  %v687 = vld [vmem:[%s662 + $0xc0] sm:$0xff]
  %v688 = vld [vmem:[%s662 + $0xc8] sm:$0xff]
  %v689 = vld [vmem:[%s662 + $0xd0] sm:$0xff]
  %v690 = vld [vmem:[%s662 + $0xd8] sm:$0xff]
  %v691 = vld [vmem:[%s662 + $0xe0] sm:$0xff]
  %v692 = vld [vmem:[%s662 + $0xe8] sm:$0xff]
  %v693 = vld [vmem:[%s662 + $0xf0] sm:$0xff]
  %v694 = vld [vmem:[%s662 + $0xf8] sm:$0xff]
  %v727 = vunpack.c.l.b16 %v663
  %v728 = vunpack.c.h.b16 %v663
  %v729 = vunpack.c.l.b16 %v664
  %v730 = vunpack.c.h.b16 %v664
  %v731 = vunpack.c.l.b16 %v665
  %v732 = vunpack.c.h.b16 %v665
  %v733 = vunpack.c.l.b16 %v666
  %v734 = vunpack.c.h.b16 %v666
  %v735 = vunpack.c.l.b16 %v667
  %v736 = vunpack.c.h.b16 %v667
  %v737 = vunpack.c.l.b16 %v668
  %v738 = vunpack.c.h.b16 %v668
  %v739 = vunpack.c.l.b16 %v669
  %v740 = vunpack.c.h.b16 %v669
  %v741 = vunpack.c.l.b16 %v670
  %v742 = vunpack.c.h.b16 %v670
  %v743 = vunpack.c.l.b16 %v671
  %v744 = vunpack.c.h.b16 %v671
  %v745 = vunpack.c.l.b16 %v672
  %v746 = vunpack.c.h.b16 %v672
  %v747 = vunpack.c.l.b16 %v673
  %v748 = vunpack.c.h.b16 %v673
  %v749 = vunpack.c.l.b16 %v674
  %v750 = vunpack.c.h.b16 %v674
  %v751 = vunpack.c.l.b16 %v675
  %v752 = vunpack.c.h.b16 %v675
  %v753 = vunpack.c.l.b16 %v676
  %v754 = vunpack.c.h.b16 %v676
  %v755 = vunpack.c.l.b16 %v677
  %v756 = vunpack.c.h.b16 %v677
  %v757 = vunpack.c.l.b16 %v678
  %v758 = vunpack.c.h.b16 %v678
  %v759 = vunpack.c.l.b16 %v679
  %v760 = vunpack.c.h.b16 %v679
  %v761 = vunpack.c.l.b16 %v680
  %v762 = vunpack.c.h.b16 %v680
  %v763 = vunpack.c.l.b16 %v681
  %v764 = vunpack.c.h.b16 %v681
  %v765 = vunpack.c.l.b16 %v682
  %v766 = vunpack.c.h.b16 %v682
  %v767 = vunpack.c.l.b16 %v683
  %v768 = vunpack.c.h.b16 %v683
  %v769 = vunpack.c.l.b16 %v684
  %v770 = vunpack.c.h.b16 %v684
  %v771 = vunpack.c.l.b16 %v685
  %v772 = vunpack.c.h.b16 %v685
  %v773 = vunpack.c.l.b16 %v686
  %v774 = vunpack.c.h.b16 %v686
  %v775 = vunpack.c.l.b16 %v687
  %v776 = vunpack.c.h.b16 %v687
  %v777 = vunpack.c.l.b16 %v688
  %v778 = vunpack.c.h.b16 %v688
  %v779 = vunpack.c.l.b16 %v689
  %v780 = vunpack.c.h.b16 %v689
  %v781 = vunpack.c.l.b16 %v690
  %v782 = vunpack.c.h.b16 %v690
  %v783 = vunpack.c.l.b16 %v691
  %v784 = vunpack.c.h.b16 %v691
  %v785 = vunpack.c.l.b16 %v692
  %v786 = vunpack.c.h.b16 %v692
  %v787 = vunpack.c.l.b16 %v693
  %v788 = vunpack.c.h.b16 %v693
  %v789 = vunpack.c.l.b16 %v694
  %v790 = vunpack.c.h.b16 %v694
  %v791 = vpack.c.b16 %v729, %v727
  %v792 = vpack.c.b16 %v730, %v728
  %v793 = vpack.c.b16 %v733, %v731
  %v794 = vpack.c.b16 %v734, %v732
  %v795 = vpack.c.b16 %v737, %v735
  %v796 = vpack.c.b16 %v738, %v736
  %v797 = vpack.c.b16 %v741, %v739
  %v798 = vpack.c.b16 %v742, %v740
  %v799 = vpack.c.b16 %v745, %v743
  %v800 = vpack.c.b16 %v746, %v744
  %v801 = vpack.c.b16 %v749, %v747
  %v802 = vpack.c.b16 %v750, %v748
  %v803 = vpack.c.b16 %v753, %v751
  %v804 = vpack.c.b16 %v754, %v752
  %v805 = vpack.c.b16 %v757, %v755
  %v806 = vpack.c.b16 %v758, %v756
  %v807 = vpack.c.b16 %v761, %v759
  %v808 = vpack.c.b16 %v762, %v760
  %v809 = vpack.c.b16 %v765, %v763
  %v810 = vpack.c.b16 %v766, %v764
  %v811 = vpack.c.b16 %v769, %v767
  %v812 = vpack.c.b16 %v770, %v768
  %v813 = vpack.c.b16 %v773, %v771
  %v814 = vpack.c.b16 %v774, %v772
  %v815 = vpack.c.b16 %v777, %v775
  %v816 = vpack.c.b16 %v778, %v776
  %v817 = vpack.c.b16 %v781, %v779
  %v818 = vpack.c.b16 %v782, %v780
  %v819 = vpack.c.b16 %v785, %v783
  %v820 = vpack.c.b16 %v786, %v784
  %v821 = vpack.c.b16 %v789, %v787
  %v822 = vpack.c.b16 %v790, %v788
  %855 = vmatpush.bf16.msra.mxu0 %v805
  %856 = vmatpush.bf16.msra.mxu0 %v803
  %857 = vmatpush.bf16.msra.mxu0 %v801
  %858 = vmatpush.bf16.msra.mxu0 %v799
  %859 = vmatpush.bf16.msra.mxu0 %v797
  %860 = vmatpush.bf16.msra.mxu0 %v795
  %861 = vmatpush.bf16.msra.mxu0 %v793
  %862 = vmatpush.bf16.msra.mxu0 %v791
  %863 = vmatmul.bf16.gmra.mxu0 %v193
  %v864 = vpop.f32.mrf.mxu0
  %v865 = vadd.f32 0.0, %v864
  %v866 = vpop.f32.mrf.mxu0
  %v867 = vadd.f32 0.0, %v866
  %868 = vdwg.mxu0
  %869 = vmatpush.bf16.msra.mxu0 %v821
  %870 = vmatpush.bf16.msra.mxu0 %v819
  %871 = vmatpush.bf16.msra.mxu0 %v817
  %872 = vmatpush.bf16.msra.mxu0 %v815
  %873 = vmatpush.bf16.msra.mxu0 %v813
  %874 = vmatpush.bf16.msra.mxu0 %v811
  %875 = vmatpush.bf16.msra.mxu0 %v809
  %876 = vmatpush.bf16.msra.mxu0 %v807
  %877 = vmatmul.bf16.gmra.mxu0 %v194
  %v878 = vpop.f32.mrf.mxu0
  %v879 = vadd.f32 %v865, %v878
  %v880 = vpop.f32.mrf.mxu0
  %v881 = vadd.f32 %v867, %v880
  %882 = vdwg.mxu0
  %883 = vmatpush.bf16.msra.mxu0 %v806
  %884 = vmatpush.bf16.msra.mxu0 %v804
  %885 = vmatpush.bf16.msra.mxu0 %v802
  %886 = vmatpush.bf16.msra.mxu0 %v800
  %887 = vmatpush.bf16.msra.mxu0 %v798
  %888 = vmatpush.bf16.msra.mxu0 %v796
  %889 = vmatpush.bf16.msra.mxu0 %v794
  %890 = vmatpush.bf16.msra.mxu0 %v792
  %891 = vmatmul.bf16.gmra.mxu0 %v193
  %v892 = vpop.f32.mrf.mxu0
  %v893 = vadd.f32 0.0, %v892
  %v894 = vpop.f32.mrf.mxu0
  %v895 = vadd.f32 0.0, %v894
  %896 = vdwg.mxu0
  %897 = vmatpush.bf16.msra.mxu0 %v822
  %898 = vmatpush.bf16.msra.mxu0 %v820
  %899 = vmatpush.bf16.msra.mxu0 %v818
  %900 = vmatpush.bf16.msra.mxu0 %v816
  %901 = vmatpush.bf16.msra.mxu0 %v814
  %902 = vmatpush.bf16.msra.mxu0 %v812
  %903 = vmatpush.bf16.msra.mxu0 %v810
  %904 = vmatpush.bf16.msra.mxu0 %v808
  %905 = vmatmul.bf16.gmra.mxu0 %v194
  %v906 = vpop.f32.mrf.mxu0
  %v907 = vadd.f32 %v893, %v906
  %v908 = vpop.f32.mrf.mxu0
  %v909 = vadd.f32 %v895, %v908
  %910 = vdwg.mxu0
  %v915 = vrot.slane %v630, 1
  %v916 = vrot.slane %v658, 1
  %v917 = vrot.slane %v632, 1
  %v918 = vrot.slane %v660, 1
  %v923 = vadd.f32 %v381, %v915
  %v924 = vadd.f32 %v409, %v916
  %v925 = vadd.f32 %v383, %v917
  %v926 = vadd.f32 %v411, %v918
  %v931 = vrot.slane %v879, 2
  %v932 = vrot.slane %v907, 2
  %v933 = vrot.slane %v881, 2
  %v934 = vrot.slane %v909, 2
  %v939 = vadd.f32 %v923, %v931
  %v940 = vadd.f32 %v924, %v932
  %v941 = vadd.f32 %v925, %v933
  %v942 = vadd.f32 %v926, %v934
  %v947 = vrot.slane %v940, 6
  %v948 = vrot.slane %v942, 6
  %v949 = vsel %vm130, %v939, %v947
  %v950 = vsel %vm132, %v939, %v947
  %v951 = vrot.slane %v950, 2
  %v952 = vsel %vm135, %v939, %v947
  %v953 = vrot.slane %v952, 4
  %v954 = vsel %vm130, %v941, %v948
  %v955 = vsel %vm132, %v941, %v948
  %v956 = vrot.slane %v955, 2
  %v957 = vsel %vm135, %v941, %v948
  %v958 = vrot.slane %v957, 4
  %965 = vst [vmem:[#allocation1] ss:$4 sm:$0xff] %v949
  %s966 = scalar_lea.vmem [#allocation1], 1
  %967 = vst [vmem:[%s966] ss:$4 sm:$0xff] %v951
  %s968 = scalar_lea.vmem [#allocation1], 2
  %969 = vst [vmem:[%s968] ss:$4 sm:$0xff] %v953
  %s970 = scalar_lea.vmem [#allocation1], 3
  %971 = vst [vmem:[%s970] ss:$4 sm:$0xff] %v954
  %s972 = scalar_lea.vmem [#allocation1], 32
  %973 = vst [vmem:[%s972] ss:$4 sm:$0xff] %v956
  %s974 = scalar_lea.vmem [#allocation1], 33
  %975 = vst [vmem:[%s974] ss:$4 sm:$0xff] %v958
  %v976 = vld.sshfl [vmem:[#allocation1] sm:$0xff pattern:$0x73625140]
  %v977 = vld.sshfl [vmem:[#allocation1 + $0x8] sm:$0xff pattern:$0x73625140]
  %v978 = vld.sshfl [vmem:[#allocation1 + $0x20] sm:$0xff pattern:$0x73625140]
  %v979 = vld.sshfl [vmem:[#allocation1 + $0x28] sm:$0xff pattern:$0x73625140]
  %vm984 = vcmask 1043456
  %v985 = vsel %vm984, %v978, 0.0
  %v986 = vadd.f32 %v976, %v985
  %v987 = vrot.slane %v986, 4
  %v988 = vadd.f32 %v986, %v987
  %v989 = vrot.slane %v988, 2
  %v990 = vadd.f32 %v988, %v989
  %v991 = vrot.slane %v990, 1
  %v992 = vadd.f32 %v990, %v991
  %v993 = vsel %vm984, %v979, 0.0
  %v994 = vadd.f32 %v977, %v993
  %v995 = vrot.slane %v994, 4
  %v996 = vadd.f32 %v994, %v995
  %v997 = vrot.slane %v996, 2
  %v998 = vadd.f32 %v996, %v997
  %v999 = vrot.slane %v998, 1
  %v1000 = vadd.f32 %v998, %v999
  %v1001 = vmul.f32 %v949, %v949
  %v1002 = vmul.f32 %v951, %v951
  %v1003 = vmul.f32 %v953, %v953
  %v1004 = vmul.f32 %v954, %v954
  %v1005 = vmul.f32 %v956, %v956
  %v1006 = vmul.f32 %v958, %v958
  %1013 = vst [vmem:[#allocation1] ss:$4 sm:$0xff] %v1001
  %s1014 = scalar_lea.vmem [#allocation1], 1
  %1015 = vst [vmem:[%s1014] ss:$4 sm:$0xff] %v1002
  %s1016 = scalar_lea.vmem [#allocation1], 2
  %1017 = vst [vmem:[%s1016] ss:$4 sm:$0xff] %v1003
  %s1018 = scalar_lea.vmem [#allocation1], 3
  %1019 = vst [vmem:[%s1018] ss:$4 sm:$0xff] %v1004
  %s1020 = scalar_lea.vmem [#allocation1], 32
  %1021 = vst [vmem:[%s1020] ss:$4 sm:$0xff] %v1005
  %s1022 = scalar_lea.vmem [#allocation1], 33
  %1023 = vst [vmem:[%s1022] ss:$4 sm:$0xff] %v1006
  %v1024 = vld.sshfl [vmem:[#allocation1] sm:$0xff pattern:$0x73625140]
  %v1025 = vld.sshfl [vmem:[#allocation1 + $0x8] sm:$0xff pattern:$0x73625140]
  %v1026 = vld.sshfl [vmem:[#allocation1 + $0x20] sm:$0xff pattern:$0x73625140]
  %v1027 = vld.sshfl [vmem:[#allocation1 + $0x28] sm:$0xff pattern:$0x73625140]
  %v1032 = vsel %vm984, %v1026, 0.0
  %v1033 = vadd.f32 %v1024, %v1032
  %v1034 = vrot.slane %v1033, 4
  %v1035 = vadd.f32 %v1033, %v1034
  %v1036 = vrot.slane %v1035, 2
  %v1037 = vadd.f32 %v1035, %v1036
  %v1038 = vrot.slane %v1037, 1
  %v1039 = vadd.f32 %v1037, %v1038
  %v1040 = vsel %vm984, %v1027, 0.0
  %v1041 = vadd.f32 %v1025, %v1040
  %v1042 = vrot.slane %v1041, 4
  %v1043 = vadd.f32 %v1041, %v1042
  %v1044 = vrot.slane %v1043, 2
  %v1045 = vadd.f32 %v1043, %v1044
  %v1046 = vrot.slane %v1045, 1
  %v1047 = vadd.f32 %v1045, %v1046
  %v1048 = vld [vmem:[%s7] sm:$0xff]
  %v1049 = vld [vmem:[%s7 + $0x8] sm:$0xff]
  %v1050 = vld [vmem:[%s7 + $0x10] sm:$0xff]
  %v1051 = vld [vmem:[%s7 + $0x18] sm:$0xff]
  %v1052 = vld [vmem:[%s7 + $0x20] sm:$0xff]
  %v1053 = vld [vmem:[%s7 + $0x28] sm:$0xff]
  %v1054 = vld [vmem:[%s7 + $0x30] sm:$0xff]
  %v1055 = vld [vmem:[%s7 + $0x38] sm:$0xff]
  %v1056 = vld [vmem:[%s7 + $0x40] sm:$0xff]
  %v1057 = vld [vmem:[%s7 + $0x48] sm:$0xff]
  %v1058 = vld [vmem:[%s7 + $0x50] sm:$0xff]
  %v1059 = vld [vmem:[%s7 + $0x58] sm:$0xff]
  %v1060 = vld [vmem:[%s7 + $0x60] sm:$0xff]
  %v1061 = vld [vmem:[%s7 + $0x68] sm:$0xff]
  %v1062 = vld [vmem:[%s7 + $0x70] sm:$0xff]
  %v1063 = vld [vmem:[%s7 + $0x78] sm:$0xff]
  %v1064 = vld [vmem:[%s7 + $0x80] sm:$0xff]
  %v1065 = vld [vmem:[%s7 + $0x88] sm:$0xff]
  %v1066 = vld [vmem:[%s7 + $0x90] sm:$0xff]
  %v1067 = vld [vmem:[%s7 + $0x98] sm:$0xff]
  %v1068 = vld [vmem:[%s7 + $0xa0] sm:$0xff]
  %v1069 = vld [vmem:[%s7 + $0xa8] sm:$0xff]
  %v1070 = vld [vmem:[%s7 + $0xb0] sm:$0xff]
  %v1071 = vld [vmem:[%s7 + $0xb8] sm:$0xff]
  %v1072 = vld [vmem:[%s7 + $0xc0] sm:$0xff]
  %v1073 = vld [vmem:[%s7 + $0xc8] sm:$0xff]
  %v1074 = vld [vmem:[%s7 + $0xd0] sm:$0xff]
  %v1075 = vld [vmem:[%s7 + $0xd8] sm:$0xff]
  %v1076 = vld [vmem:[%s7 + $0xe0] sm:$0xff]
  %v1077 = vld [vmem:[%s7 + $0xe8] sm:$0xff]
  %v1078 = vld [vmem:[%s7 + $0xf0] sm:$0xff]
  %v1079 = vld [vmem:[%s7 + $0xf8] sm:$0xff]
  %1080 = vmatpush.msra.mxu0 %v1063
  %1081 = vmatpush.msra.mxu0 %v1062
  %1082 = vmatpush.msra.mxu0 %v1061
  %1083 = vmatpush.msra.mxu0 %v1060
  %1084 = vmatpush.msra.mxu0 %v1059
  %1085 = vmatpush.msra.mxu0 %v1058
  %1086 = vmatpush.msra.mxu0 %v1057
  %1087 = vmatpush.msra.mxu0 %v1056
  %1088 = vmatpush.msra.mxu0 %v1055
  %1089 = vmatpush.msra.mxu0 %v1054
  %1090 = vmatpush.msra.mxu0 %v1053
  %1091 = vmatpush.msra.mxu0 %v1052
  %1092 = vmatpush.msra.mxu0 %v1051
  %1093 = vmatpush.msra.mxu0 %v1050
  %1094 = vmatpush.msra.mxu0 %v1049
  %1095 = vmatpush.msra.mxu0 %v1048
  %1096 = vmatmul.f32.gmra.mxu0 %v992
  %v1097 = vpop.f32.mrf.mxu0
  %v1098 = vadd.f32 0.0, %v1097
  %1099 = vdwg.mxu0
  %1100 = vmatpush.msra.mxu0 %v1079
  %1101 = vmatpush.msra.mxu0 %v1078
  %1102 = vmatpush.msra.mxu0 %v1077
  %1103 = vmatpush.msra.mxu0 %v1076
  %1104 = vmatpush.msra.mxu0 %v1075
  %1105 = vmatpush.msra.mxu0 %v1074
  %1106 = vmatpush.msra.mxu0 %v1073
  %1107 = vmatpush.msra.mxu0 %v1072
  %1108 = vmatpush.msra.mxu0 %v1071
  %1109 = vmatpush.msra.mxu0 %v1070
  %1110 = vmatpush.msra.mxu0 %v1069
  %1111 = vmatpush.msra.mxu0 %v1068
  %1112 = vmatpush.msra.mxu0 %v1067
  %1113 = vmatpush.msra.mxu0 %v1066
  %1114 = vmatpush.msra.mxu0 %v1065
  %1115 = vmatpush.msra.mxu0 %v1064
  %1116 = vmatmul.f32.gmra.mxu0 %v1000
  %v1117 = vpop.f32.mrf.mxu0
  %v1118 = vadd.f32 %v1098, %v1117
  %1119 = vdwg.mxu0
  %v1120 = vrcp.pop 72.0
  %v1121 = vmul.f32 72.0, %v1120
  %v1122 = vsub.f32 1.0, %v1121
  %v1123 = vmul.f32 %v1120, %v1122
  %v1124 = vadd.f32 %v1120, %v1123
  %vm1125 = vweird.f32 %v1120
  %v1126 = vsel %vm1125, %v1120, %v1124
  %v1127 = vmul.f32 %v1118, %v1126
  %1128 = vmatpush.msra.mxu0 %v1063
  %1129 = vmatpush.msra.mxu0 %v1062
  %1130 = vmatpush.msra.mxu0 %v1061
  %1131 = vmatpush.msra.mxu0 %v1060
  %1132 = vmatpush.msra.mxu0 %v1059
  %1133 = vmatpush.msra.mxu0 %v1058
  %1134 = vmatpush.msra.mxu0 %v1057
  %1135 = vmatpush.msra.mxu0 %v1056
  %1136 = vmatpush.msra.mxu0 %v1055
  %1137 = vmatpush.msra.mxu0 %v1054
  %1138 = vmatpush.msra.mxu0 %v1053
  %1139 = vmatpush.msra.mxu0 %v1052
  %1140 = vmatpush.msra.mxu0 %v1051
  %1141 = vmatpush.msra.mxu0 %v1050
  %1142 = vmatpush.msra.mxu0 %v1049
  %1143 = vmatpush.msra.mxu0 %v1048
  %1144 = vmatmul.f32.gmra.mxu0 %v1039
  %v1145 = vpop.f32.mrf.mxu0
  %v1146 = vadd.f32 0.0, %v1145
  %1147 = vdwg.mxu0
  %1148 = vmatpush.msra.mxu0 %v1079
  %1149 = vmatpush.msra.mxu0 %v1078
  %1150 = vmatpush.msra.mxu0 %v1077
  %1151 = vmatpush.msra.mxu0 %v1076
  %1152 = vmatpush.msra.mxu0 %v1075
  %1153 = vmatpush.msra.mxu0 %v1074
  %1154 = vmatpush.msra.mxu0 %v1073
  %1155 = vmatpush.msra.mxu0 %v1072
  %1156 = vmatpush.msra.mxu0 %v1071
  %1157 = vmatpush.msra.mxu0 %v1070
  %1158 = vmatpush.msra.mxu0 %v1069
  %1159 = vmatpush.msra.mxu0 %v1068
  %1160 = vmatpush.msra.mxu0 %v1067
  %1161 = vmatpush.msra.mxu0 %v1066
  %1162 = vmatpush.msra.mxu0 %v1065
  %1163 = vmatpush.msra.mxu0 %v1064
  %1164 = vmatmul.f32.gmra.mxu0 %v1047
  %v1165 = vpop.f32.mrf.mxu0
  %v1166 = vadd.f32 %v1146, %v1165
  %1167 = vdwg.mxu0
  %v1168 = vmul.f32 %v1166, %v1126
  %v1169 = vmul.f32 %v1127, %v1127
  %v1170 = vsub.f32 %v1168, %v1169
  %v1171 = vld [vmem:[%s2] sm:$0x1]
  %v1172 = vadd.f32 %v1170, 1e-05
  %v1173 = vrsqrt.pop %v1172
  %v1174 = vmul.f32 %v1173, %v1172
  %v1175 = vmul.f32 %v1174, %v1173
  %v1176 = vmul.f32 0.5, %v1175
  %v1177 = vsub.f32 1.5, %v1176
  %v1178 = vmul.f32 %v1173, %v1177
  %vm1179 = vweird.f32 %v1172
  %vm1180 = vweird.f32 %v1173
  %vm1181 = vmor %vm1179, %vm1180
  %v1182 = vsel %vm1181, %v1173, %v1178
  %v1183 = vmul.f32 %v1171, %v1182
  %v1184 = vld [vmem:[%s3] sm:$0x1]
  %v1185 = vmul.f32 %v1127, %v1183
  %v1186 = vsub.f32 %v1184, %v1185
  %v1187 = vld [vmem:[%s8] sm:$0xff]
  %v1188 = vld [vmem:[%s8 + $0x8] sm:$0xff]
  %v1189 = vld [vmem:[%s8 + $0x10] sm:$0xff]
  %v1190 = vld [vmem:[%s8 + $0x18] sm:$0xff]
  %v1191 = vld [vmem:[%s8 + $0x20] sm:$0xff]
  %v1192 = vld [vmem:[%s8 + $0x28] sm:$0xff]
  %v1193 = vld [vmem:[%s8 + $0x30] sm:$0xff]
  %v1194 = vld [vmem:[%s8 + $0x38] sm:$0xff]
  %vm1195 = vcmask 261120
  %v1197 = vsel %vm1195, %v1183, 0
  %1199 = vmatpush.msra.mxu0 0.0
  %1200 = vmatpush.msra.mxu0 0.0
  %1201 = vmatpush.msra.mxu0 0.0
  %1202 = vmatpush.msra.mxu0 0.0
  %1203 = vmatpush.msra.mxu0 0.0
  %1204 = vmatpush.msra.mxu0 0.0
  %1205 = vmatpush.msra.mxu0 0.0
  %1206 = vmatpush.msra.mxu0 0.0
  %1207 = vmatpush.msra.mxu0 0.0
  %1208 = vmatpush.msra.mxu0 0.0
  %1209 = vmatpush.msra.mxu0 0.0
  %1210 = vmatpush.msra.mxu0 0.0
  %1211 = vmatpush.msra.mxu0 %v1193
  %1212 = vmatpush.msra.mxu0 %v1191
  %1213 = vmatpush.msra.mxu0 %v1189
  %1214 = vmatpush.msra.mxu0 %v1187
  %1215 = vmatmul.f32.gmra.mxu0 %v1197
  %v1216 = vpop.f32.mrf.mxu0
  %v1217 = vadd.f32 0.0, %v1216
  %1218 = vdwg.mxu0
  %1219 = vmatpush.msra.mxu0 0.0
  %1220 = vmatpush.msra.mxu0 0.0
  %1221 = vmatpush.msra.mxu0 0.0
  %1222 = vmatpush.msra.mxu0 0.0
  %1223 = vmatpush.msra.mxu0 0.0
  %1224 = vmatpush.msra.mxu0 0.0
  %1225 = vmatpush.msra.mxu0 0.0
  %1226 = vmatpush.msra.mxu0 0.0
  %1227 = vmatpush.msra.mxu0 0.0
  %1228 = vmatpush.msra.mxu0 0.0
  %1229 = vmatpush.msra.mxu0 0.0
  %1230 = vmatpush.msra.mxu0 0.0
  %1231 = vmatpush.msra.mxu0 %v1194
  %1232 = vmatpush.msra.mxu0 %v1192
  %1233 = vmatpush.msra.mxu0 %v1190
  %1234 = vmatpush.msra.mxu0 %v1188
  %1235 = vmatmul.f32.gmra.mxu0 %v1197
  %v1236 = vpop.f32.mrf.mxu0
  %v1237 = vadd.f32 0.0, %v1236
  %1238 = vdwg.mxu0
  %v1240 = vsel %vm1195, %v1186, 0
  %1242 = vmatpush.msra.mxu0 0.0
  %1243 = vmatpush.msra.mxu0 0.0
  %1244 = vmatpush.msra.mxu0 0.0
  %1245 = vmatpush.msra.mxu0 0.0
  %1246 = vmatpush.msra.mxu0 0.0
  %1247 = vmatpush.msra.mxu0 0.0
  %1248 = vmatpush.msra.mxu0 0.0
  %1249 = vmatpush.msra.mxu0 0.0
  %1250 = vmatpush.msra.mxu0 0.0
  %1251 = vmatpush.msra.mxu0 0.0
  %1252 = vmatpush.msra.mxu0 0.0
  %1253 = vmatpush.msra.mxu0 0.0
  %1254 = vmatpush.msra.mxu0 %v1193
  %1255 = vmatpush.msra.mxu0 %v1191
  %1256 = vmatpush.msra.mxu0 %v1189
  %1257 = vmatpush.msra.mxu0 %v1187
  %1258 = vmatmul.f32.gmra.mxu0 %v1240
  %v1259 = vpop.f32.mrf.mxu0
  %v1260 = vadd.f32 0.0, %v1259
  %1261 = vdwg.mxu0
  %1262 = vmatpush.msra.mxu0 0.0
  %1263 = vmatpush.msra.mxu0 0.0
  %1264 = vmatpush.msra.mxu0 0.0
  %1265 = vmatpush.msra.mxu0 0.0
  %1266 = vmatpush.msra.mxu0 0.0
  %1267 = vmatpush.msra.mxu0 0.0
  %1268 = vmatpush.msra.mxu0 0.0
  %1269 = vmatpush.msra.mxu0 0.0
  %1270 = vmatpush.msra.mxu0 0.0
  %1271 = vmatpush.msra.mxu0 0.0
  %1272 = vmatpush.msra.mxu0 0.0
  %1273 = vmatpush.msra.mxu0 0.0
  %1274 = vmatpush.msra.mxu0 %v1194
  %1275 = vmatpush.msra.mxu0 %v1192
  %1276 = vmatpush.msra.mxu0 %v1190
  %1277 = vmatpush.msra.mxu0 %v1188
  %1278 = vmatmul.f32.gmra.mxu0 %v1240
  %v1279 = vpop.f32.mrf.mxu0
  %v1280 = vadd.f32 0.0, %v1279
  %1281 = vdwg.mxu0
  %v1282 = vperm.slane %v1217, 0
  %v1283 = vperm.slane %v1237, 0
  %v1286 = vrot.slane %v1283, 6
  %v1287 = vsel %vm130, %v1282, %v1286
  %v1288 = vsel %vm132, %v1282, %v1286
  %v1289 = vrot.slane %v1288, 2
  %v1290 = vsel %vm135, %v1282, %v1286
  %v1291 = vrot.slane %v1290, 4
  %vm1292 = vcmask 1045504
  %v1293 = vsel %vm1292, %v1286, %v1282
  %v1294 = vrot.slane %v1293, 6
  %v1299 = vmul.f32 %v949, %v1287
  %v1300 = vmul.f32 %v951, %v1289
  %v1301 = vmul.f32 %v953, %v1291
  %v1302 = vmul.f32 %v954, %v1294
  %v1303 = vmul.f32 %v956, %v1287
  %v1304 = vmul.f32 %v958, %v1289
  %v1305 = vperm.slane %v1260, 0
  %v1306 = vperm.slane %v1280, 0
  %v1309 = vrot.slane %v1306, 6
  %v1310 = vsel %vm130, %v1305, %v1309
  %v1311 = vsel %vm132, %v1305, %v1309
  %v1312 = vrot.slane %v1311, 2
  %v1313 = vsel %vm135, %v1305, %v1309
  %v1314 = vrot.slane %v1313, 4
  %v1315 = vsel %vm1292, %v1309, %v1305
  %v1316 = vrot.slane %v1315, 6
  %v1321 = vadd.f32 %v1299, %v1310
  %v1322 = vadd.f32 %v1300, %v1312
  %v1323 = vadd.f32 %v1301, %v1314
  %v1324 = vadd.f32 %v1302, %v1316
  %v1325 = vadd.f32 %v1303, %v1310
  %v1326 = vadd.f32 %v1304, %v1312
  %v1327 = vmax.f32 %v1321, 0.0
  %v1328 = vmax.f32 %v1322, 0.0
  %v1329 = vmax.f32 %v1323, 0.0
  %v1330 = vmax.f32 %v1324, 0.0
  %v1331 = vmax.f32 %v1325, 0.0
  %v1332 = vmax.f32 %v1326, 0.0
  %1339 = vst [vmem:[#allocation1] ss:$4 sm:$0xff] %v1327
  %s1340 = scalar_lea.vmem [#allocation1], 1
  %1341 = vst [vmem:[%s1340] ss:$4 sm:$0xff] %v1328
  %s1342 = scalar_lea.vmem [#allocation1], 2
  %1343 = vst [vmem:[%s1342] ss:$4 sm:$0xff] %v1329
  %v1344 = vld.sshfl [vmem:[#allocation1] sm:$0xff pattern:$0x73625140]
  %v1345 = vld.sshfl [vmem:[#allocation1 + $0x8] sm:$0xff pattern:$0x73625140]
  %s1346 = scalar_lea.vmem [#allocation1], 32
  %1347 = vst [vmem:[%s1346] ss:$4 sm:$0xff] %v1330
  %s1348 = scalar_lea.vmem [#allocation1], 33
  %1349 = vst [vmem:[%s1348] ss:$4 sm:$0xff] %v1331
  %s1350 = scalar_lea.vmem [#allocation1], 34
  %1351 = vst [vmem:[%s1350] ss:$4 sm:$0xff] %v1332
  %v1352 = vld.sshfl [vmem:[#allocation1 + $0x20] sm:$0xff pattern:$0x73625140]
  %v1353 = vld.sshfl [vmem:[#allocation1 + $0x28] sm:$0xff pattern:$0x73625140]
  %v1354 = vrot.slane %v1344, 7
  %v1355 = vrot.slane %v1345, 7
  %v1356 = vrot.slane %v1352, 7
  %v1357 = vrot.slane %v1353, 7
  %1362 = vst [vmem:[#allocation2] sm:$0x7e] %v1354
  %1363 = vst [vmem:[#allocation2 + $0x8] sm:$0x7e] %v1355
  %1364 = vst [vmem:[#allocation2 + $0x10] sm:$0x7e] %v1356
  %1365 = vst [vmem:[#allocation2 + $0x18] sm:$0x7e] %v1357
  %v1366 = vld [vmem:[#allocation2] sm:$0xff]
  %v1367 = vld [vmem:[#allocation2 + $0x8] sm:$0xff]
  %v1368 = vld [vmem:[#allocation2 + $0x10] sm:$0xff]
  %v1369 = vld [vmem:[#allocation2 + $0x18] sm:$0xff]
  %v1370 = vpack.c.bf16 %v1367, %v1366
  %v1371 = vpack.c.bf16 %v1369, %v1368
  %v1372 = vld [vmem:[%s4] sm:$0xff]
  %v1373 = vld [vmem:[%s4 + $0x8] sm:$0xff]
  %v1374 = vld [vmem:[%s4 + $0x10] sm:$0xff]
  %v1375 = vld [vmem:[%s4 + $0x18] sm:$0xff]
  %v1376 = vld [vmem:[%s4 + $0x20] sm:$0xff]
  %v1377 = vld [vmem:[%s4 + $0x28] sm:$0xff]
  %v1378 = vld [vmem:[%s4 + $0x30] sm:$0xff]
  %v1379 = vld [vmem:[%s4 + $0x38] sm:$0xff]
  %v1380 = vld [vmem:[%s4 + $0x40] sm:$0xff]
  %v1381 = vld [vmem:[%s4 + $0x48] sm:$0xff]
  %v1382 = vld [vmem:[%s4 + $0x50] sm:$0xff]
  %v1383 = vld [vmem:[%s4 + $0x58] sm:$0xff]
  %v1384 = vld [vmem:[%s4 + $0x60] sm:$0xff]
  %v1385 = vld [vmem:[%s4 + $0x68] sm:$0xff]
  %v1386 = vld [vmem:[%s4 + $0x70] sm:$0xff]
  %v1387 = vld [vmem:[%s4 + $0x78] sm:$0xff]
  %v1388 = vld [vmem:[%s4 + $0x80] sm:$0xff]
  %v1389 = vld [vmem:[%s4 + $0x88] sm:$0xff]
  %v1390 = vld [vmem:[%s4 + $0x90] sm:$0xff]
  %v1391 = vld [vmem:[%s4 + $0x98] sm:$0xff]
  %v1392 = vld [vmem:[%s4 + $0xa0] sm:$0xff]
  %v1393 = vld [vmem:[%s4 + $0xa8] sm:$0xff]
  %v1394 = vld [vmem:[%s4 + $0xb0] sm:$0xff]
  %v1395 = vld [vmem:[%s4 + $0xb8] sm:$0xff]
  %v1396 = vld [vmem:[%s4 + $0xc0] sm:$0xff]
  %v1397 = vld [vmem:[%s4 + $0xc8] sm:$0xff]
  %v1398 = vld [vmem:[%s4 + $0xd0] sm:$0xff]
  %v1399 = vld [vmem:[%s4 + $0xd8] sm:$0xff]
  %v1400 = vld [vmem:[%s4 + $0xe0] sm:$0xff]
  %v1401 = vld [vmem:[%s4 + $0xe8] sm:$0xff]
  %v1402 = vld [vmem:[%s4 + $0xf0] sm:$0xff]
  %v1403 = vld [vmem:[%s4 + $0xf8] sm:$0xff]
  %v1406 = vunpack.c.l.b16 %v1370
  %v1407 = vunpack.c.h.b16 %v1370
  %v1408 = vunpack.c.l.b16 %v1371
  %v1409 = vunpack.c.h.b16 %v1371
  %v1410 = vpack.c.b16 %v1408, %v1406
  %v1411 = vpack.c.b16 %v1409, %v1407
  %v1446 = vunpack.c.l.b16 %v1372
  %v1447 = vunpack.c.h.b16 %v1372
  %v1448 = vunpack.c.l.b16 %v1373
  %v1449 = vunpack.c.h.b16 %v1373
  %v1450 = vunpack.c.l.b16 %v1374
  %v1451 = vunpack.c.h.b16 %v1374
  %v1452 = vunpack.c.l.b16 %v1375
  %v1453 = vunpack.c.h.b16 %v1375
  %v1454 = vunpack.c.l.b16 %v1376
  %v1455 = vunpack.c.h.b16 %v1376
  %v1456 = vunpack.c.l.b16 %v1377
  %v1457 = vunpack.c.h.b16 %v1377
  %v1458 = vunpack.c.l.b16 %v1378
  %v1459 = vunpack.c.h.b16 %v1378
  %v1460 = vunpack.c.l.b16 %v1379
  %v1461 = vunpack.c.h.b16 %v1379
  %v1462 = vunpack.c.l.b16 %v1380
  %v1463 = vunpack.c.h.b16 %v1380
  %v1464 = vunpack.c.l.b16 %v1381
  %v1465 = vunpack.c.h.b16 %v1381
  %v1466 = vunpack.c.l.b16 %v1382
  %v1467 = vunpack.c.h.b16 %v1382
  %v1468 = vunpack.c.l.b16 %v1383
  %v1469 = vunpack.c.h.b16 %v1383
  %v1470 = vunpack.c.l.b16 %v1384
  %v1471 = vunpack.c.h.b16 %v1384
  %v1472 = vunpack.c.l.b16 %v1385
  %v1473 = vunpack.c.h.b16 %v1385
  %v1474 = vunpack.c.l.b16 %v1386
  %v1475 = vunpack.c.h.b16 %v1386
  %v1476 = vunpack.c.l.b16 %v1387
  %v1477 = vunpack.c.h.b16 %v1387
  %v1478 = vunpack.c.l.b16 %v1388
  %v1479 = vunpack.c.h.b16 %v1388
  %v1480 = vunpack.c.l.b16 %v1389
  %v1481 = vunpack.c.h.b16 %v1389
  %v1482 = vunpack.c.l.b16 %v1390
  %v1483 = vunpack.c.h.b16 %v1390
  %v1484 = vunpack.c.l.b16 %v1391
  %v1485 = vunpack.c.h.b16 %v1391
  %v1486 = vunpack.c.l.b16 %v1392
  %v1487 = vunpack.c.h.b16 %v1392
  %v1488 = vunpack.c.l.b16 %v1393
  %v1489 = vunpack.c.h.b16 %v1393
  %v1490 = vunpack.c.l.b16 %v1394
  %v1491 = vunpack.c.h.b16 %v1394
  %v1492 = vunpack.c.l.b16 %v1395
  %v1493 = vunpack.c.h.b16 %v1395
  %v1494 = vunpack.c.l.b16 %v1396
  %v1495 = vunpack.c.h.b16 %v1396
  %v1496 = vunpack.c.l.b16 %v1397
  %v1497 = vunpack.c.h.b16 %v1397
  %v1498 = vunpack.c.l.b16 %v1398
  %v1499 = vunpack.c.h.b16 %v1398
  %v1500 = vunpack.c.l.b16 %v1399
  %v1501 = vunpack.c.h.b16 %v1399
  %v1502 = vunpack.c.l.b16 %v1400
  %v1503 = vunpack.c.h.b16 %v1400
  %v1504 = vunpack.c.l.b16 %v1401
  %v1505 = vunpack.c.h.b16 %v1401
  %v1506 = vunpack.c.l.b16 %v1402
  %v1507 = vunpack.c.h.b16 %v1402
  %v1508 = vunpack.c.l.b16 %v1403
  %v1509 = vunpack.c.h.b16 %v1403
  %v1510 = vpack.c.b16 %v1448, %v1446
  %v1511 = vpack.c.b16 %v1449, %v1447
  %v1512 = vpack.c.b16 %v1452, %v1450
  %v1513 = vpack.c.b16 %v1453, %v1451
  %v1514 = vpack.c.b16 %v1456, %v1454
  %v1515 = vpack.c.b16 %v1457, %v1455
  %v1516 = vpack.c.b16 %v1460, %v1458
  %v1517 = vpack.c.b16 %v1461, %v1459
  %v1518 = vpack.c.b16 %v1464, %v1462
  %v1519 = vpack.c.b16 %v1465, %v1463
  %v1520 = vpack.c.b16 %v1468, %v1466
  %v1521 = vpack.c.b16 %v1469, %v1467
  %v1522 = vpack.c.b16 %v1472, %v1470
  %v1523 = vpack.c.b16 %v1473, %v1471
  %v1524 = vpack.c.b16 %v1476, %v1474
  %v1525 = vpack.c.b16 %v1477, %v1475
  %v1526 = vpack.c.b16 %v1480, %v1478
  %v1527 = vpack.c.b16 %v1481, %v1479
  %v1528 = vpack.c.b16 %v1484, %v1482
  %v1529 = vpack.c.b16 %v1485, %v1483
  %v1530 = vpack.c.b16 %v1488, %v1486
  %v1531 = vpack.c.b16 %v1489, %v1487
  %v1532 = vpack.c.b16 %v1492, %v1490
  %v1533 = vpack.c.b16 %v1493, %v1491
  %v1534 = vpack.c.b16 %v1496, %v1494
  %v1535 = vpack.c.b16 %v1497, %v1495
  %v1536 = vpack.c.b16 %v1500, %v1498
  %v1537 = vpack.c.b16 %v1501, %v1499
  %v1538 = vpack.c.b16 %v1504, %v1502
  %v1539 = vpack.c.b16 %v1505, %v1503
  %v1540 = vpack.c.b16 %v1508, %v1506
  %v1541 = vpack.c.b16 %v1509, %v1507
  %1574 = vmatpush.bf16.msra.mxu0 %v1524
  %1575 = vmatpush.bf16.msra.mxu0 %v1522
  %1576 = vmatpush.bf16.msra.mxu0 %v1520
  %1577 = vmatpush.bf16.msra.mxu0 %v1518
  %1578 = vmatpush.bf16.msra.mxu0 %v1516
  %1579 = vmatpush.bf16.msra.mxu0 %v1514
  %1580 = vmatpush.bf16.msra.mxu0 %v1512
  %1581 = vmatpush.bf16.msra.mxu0 %v1510
  %1582 = vmatmul.bf16.gmra.mxu0 %v1410
  %v1583 = vpop.f32.mrf.mxu0
  %v1584 = vadd.f32 0.0, %v1583
  %v1585 = vpop.f32.mrf.mxu0
  %v1586 = vadd.f32 0.0, %v1585
  %1587 = vdwg.mxu0
  %1588 = vmatpush.bf16.msra.mxu0 %v1540
  %1589 = vmatpush.bf16.msra.mxu0 %v1538
  %1590 = vmatpush.bf16.msra.mxu0 %v1536
  %1591 = vmatpush.bf16.msra.mxu0 %v1534
  %1592 = vmatpush.bf16.msra.mxu0 %v1532
  %1593 = vmatpush.bf16.msra.mxu0 %v1530
  %1594 = vmatpush.bf16.msra.mxu0 %v1528
  %1595 = vmatpush.bf16.msra.mxu0 %v1526
  %1596 = vmatmul.bf16.gmra.mxu0 %v1411
  %v1597 = vpop.f32.mrf.mxu0
  %v1598 = vadd.f32 %v1584, %v1597
  %v1599 = vpop.f32.mrf.mxu0
  %v1600 = vadd.f32 %v1586, %v1599
  %1601 = vdwg.mxu0
  %1602 = vmatpush.bf16.msra.mxu0 %v1525
  %1603 = vmatpush.bf16.msra.mxu0 %v1523
  %1604 = vmatpush.bf16.msra.mxu0 %v1521
  %1605 = vmatpush.bf16.msra.mxu0 %v1519
  %1606 = vmatpush.bf16.msra.mxu0 %v1517
  %1607 = vmatpush.bf16.msra.mxu0 %v1515
  %1608 = vmatpush.bf16.msra.mxu0 %v1513
  %1609 = vmatpush.bf16.msra.mxu0 %v1511
  %1610 = vmatmul.bf16.gmra.mxu0 %v1410
  %v1611 = vpop.f32.mrf.mxu0
  %v1612 = vadd.f32 0.0, %v1611
  %v1613 = vpop.f32.mrf.mxu0
  %v1614 = vadd.f32 0.0, %v1613
  %1615 = vdwg.mxu0
  %1616 = vmatpush.bf16.msra.mxu0 %v1541
  %1617 = vmatpush.bf16.msra.mxu0 %v1539
  %1618 = vmatpush.bf16.msra.mxu0 %v1537
  %1619 = vmatpush.bf16.msra.mxu0 %v1535
  %1620 = vmatpush.bf16.msra.mxu0 %v1533
  %1621 = vmatpush.bf16.msra.mxu0 %v1531
  %1622 = vmatpush.bf16.msra.mxu0 %v1529
  %1623 = vmatpush.bf16.msra.mxu0 %v1527
  %1624 = vmatmul.bf16.gmra.mxu0 %v1411
  %v1625 = vpop.f32.mrf.mxu0
  %v1626 = vadd.f32 %v1612, %v1625
  %v1627 = vpop.f32.mrf.mxu0
  %v1628 = vadd.f32 %v1614, %v1627
  %1629 = vdwg.mxu0
  %s1630 = scalar_lea.vmem %s4, 256
  %v1631 = vld [vmem:[%s1630] sm:$0xff]
  %v1632 = vld [vmem:[%s1630 + $0x8] sm:$0xff]
  %v1633 = vld [vmem:[%s1630 + $0x10] sm:$0xff]
  %v1634 = vld [vmem:[%s1630 + $0x18] sm:$0xff]
  %v1635 = vld [vmem:[%s1630 + $0x20] sm:$0xff]
  %v1636 = vld [vmem:[%s1630 + $0x28] sm:$0xff]
  %v1637 = vld [vmem:[%s1630 + $0x30] sm:$0xff]
  %v1638 = vld [vmem:[%s1630 + $0x38] sm:$0xff]
  %v1639 = vld [vmem:[%s1630 + $0x40] sm:$0xff]
  %v1640 = vld [vmem:[%s1630 + $0x48] sm:$0xff]
  %v1641 = vld [vmem:[%s1630 + $0x50] sm:$0xff]
  %v1642 = vld [vmem:[%s1630 + $0x58] sm:$0xff]
  %v1643 = vld [vmem:[%s1630 + $0x60] sm:$0xff]
  %v1644 = vld [vmem:[%s1630 + $0x68] sm:$0xff]
  %v1645 = vld [vmem:[%s1630 + $0x70] sm:$0xff]
  %v1646 = vld [vmem:[%s1630 + $0x78] sm:$0xff]
  %v1647 = vld [vmem:[%s1630 + $0x80] sm:$0xff]
  %v1648 = vld [vmem:[%s1630 + $0x88] sm:$0xff]
  %v1649 = vld [vmem:[%s1630 + $0x90] sm:$0xff]
  %v1650 = vld [vmem:[%s1630 + $0x98] sm:$0xff]
  %v1651 = vld [vmem:[%s1630 + $0xa0] sm:$0xff]
  %v1652 = vld [vmem:[%s1630 + $0xa8] sm:$0xff]
  %v1653 = vld [vmem:[%s1630 + $0xb0] sm:$0xff]
  %v1654 = vld [vmem:[%s1630 + $0xb8] sm:$0xff]
  %v1655 = vld [vmem:[%s1630 + $0xc0] sm:$0xff]
  %v1656 = vld [vmem:[%s1630 + $0xc8] sm:$0xff]
  %v1657 = vld [vmem:[%s1630 + $0xd0] sm:$0xff]
  %v1658 = vld [vmem:[%s1630 + $0xd8] sm:$0xff]
  %v1659 = vld [vmem:[%s1630 + $0xe0] sm:$0xff]
  %v1660 = vld [vmem:[%s1630 + $0xe8] sm:$0xff]
  %v1661 = vld [vmem:[%s1630 + $0xf0] sm:$0xff]
  %v1662 = vld [vmem:[%s1630 + $0xf8] sm:$0xff]
  %v1695 = vunpack.c.l.b16 %v1631
  %v1696 = vunpack.c.h.b16 %v1631
  %v1697 = vunpack.c.l.b16 %v1632
  %v1698 = vunpack.c.h.b16 %v1632
  %v1699 = vunpack.c.l.b16 %v1633
  %v1700 = vunpack.c.h.b16 %v1633
  %v1701 = vunpack.c.l.b16 %v1634
  %v1702 = vunpack.c.h.b16 %v1634
  %v1703 = vunpack.c.l.b16 %v1635
  %v1704 = vunpack.c.h.b16 %v1635
  %v1705 = vunpack.c.l.b16 %v1636
  %v1706 = vunpack.c.h.b16 %v1636
  %v1707 = vunpack.c.l.b16 %v1637
  %v1708 = vunpack.c.h.b16 %v1637
  %v1709 = vunpack.c.l.b16 %v1638
  %v1710 = vunpack.c.h.b16 %v1638
  %v1711 = vunpack.c.l.b16 %v1639
  %v1712 = vunpack.c.h.b16 %v1639
  %v1713 = vunpack.c.l.b16 %v1640
  %v1714 = vunpack.c.h.b16 %v1640
  %v1715 = vunpack.c.l.b16 %v1641
  %v1716 = vunpack.c.h.b16 %v1641
  %v1717 = vunpack.c.l.b16 %v1642
  %v1718 = vunpack.c.h.b16 %v1642
  %v1719 = vunpack.c.l.b16 %v1643
  %v1720 = vunpack.c.h.b16 %v1643
  %v1721 = vunpack.c.l.b16 %v1644
  %v1722 = vunpack.c.h.b16 %v1644
  %v1723 = vunpack.c.l.b16 %v1645
  %v1724 = vunpack.c.h.b16 %v1645
  %v1725 = vunpack.c.l.b16 %v1646
  %v1726 = vunpack.c.h.b16 %v1646
  %v1727 = vunpack.c.l.b16 %v1647
  %v1728 = vunpack.c.h.b16 %v1647
  %v1729 = vunpack.c.l.b16 %v1648
  %v1730 = vunpack.c.h.b16 %v1648
  %v1731 = vunpack.c.l.b16 %v1649
  %v1732 = vunpack.c.h.b16 %v1649
  %v1733 = vunpack.c.l.b16 %v1650
  %v1734 = vunpack.c.h.b16 %v1650
  %v1735 = vunpack.c.l.b16 %v1651
  %v1736 = vunpack.c.h.b16 %v1651
  %v1737 = vunpack.c.l.b16 %v1652
  %v1738 = vunpack.c.h.b16 %v1652
  %v1739 = vunpack.c.l.b16 %v1653
  %v1740 = vunpack.c.h.b16 %v1653
  %v1741 = vunpack.c.l.b16 %v1654
  %v1742 = vunpack.c.h.b16 %v1654
  %v1743 = vunpack.c.l.b16 %v1655
  %v1744 = vunpack.c.h.b16 %v1655
  %v1745 = vunpack.c.l.b16 %v1656
  %v1746 = vunpack.c.h.b16 %v1656
  %v1747 = vunpack.c.l.b16 %v1657
  %v1748 = vunpack.c.h.b16 %v1657
  %v1749 = vunpack.c.l.b16 %v1658
  %v1750 = vunpack.c.h.b16 %v1658
  %v1751 = vunpack.c.l.b16 %v1659
  %v1752 = vunpack.c.h.b16 %v1659
  %v1753 = vunpack.c.l.b16 %v1660
  %v1754 = vunpack.c.h.b16 %v1660
  %v1755 = vunpack.c.l.b16 %v1661
  %v1756 = vunpack.c.h.b16 %v1661
  %v1757 = vunpack.c.l.b16 %v1662
  %v1758 = vunpack.c.h.b16 %v1662
  %v1759 = vpack.c.b16 %v1697, %v1695
  %v1760 = vpack.c.b16 %v1698, %v1696
  %v1761 = vpack.c.b16 %v1701, %v1699
  %v1762 = vpack.c.b16 %v1702, %v1700
  %v1763 = vpack.c.b16 %v1705, %v1703
  %v1764 = vpack.c.b16 %v1706, %v1704
  %v1765 = vpack.c.b16 %v1709, %v1707
  %v1766 = vpack.c.b16 %v1710, %v1708
  %v1767 = vpack.c.b16 %v1713, %v1711
  %v1768 = vpack.c.b16 %v1714, %v1712
  %v1769 = vpack.c.b16 %v1717, %v1715
  %v1770 = vpack.c.b16 %v1718, %v1716
  %v1771 = vpack.c.b16 %v1721, %v1719
  %v1772 = vpack.c.b16 %v1722, %v1720
  %v1773 = vpack.c.b16 %v1725, %v1723
  %v1774 = vpack.c.b16 %v1726, %v1724
  %v1775 = vpack.c.b16 %v1729, %v1727
  %v1776 = vpack.c.b16 %v1730, %v1728
  %v1777 = vpack.c.b16 %v1733, %v1731
  %v1778 = vpack.c.b16 %v1734, %v1732
  %v1779 = vpack.c.b16 %v1737, %v1735
  %v1780 = vpack.c.b16 %v1738, %v1736
  %v1781 = vpack.c.b16 %v1741, %v1739
  %v1782 = vpack.c.b16 %v1742, %v1740
  %v1783 = vpack.c.b16 %v1745, %v1743
  %v1784 = vpack.c.b16 %v1746, %v1744
  %v1785 = vpack.c.b16 %v1749, %v1747
  %v1786 = vpack.c.b16 %v1750, %v1748
  %v1787 = vpack.c.b16 %v1753, %v1751
  %v1788 = vpack.c.b16 %v1754, %v1752
  %v1789 = vpack.c.b16 %v1757, %v1755
  %v1790 = vpack.c.b16 %v1758, %v1756
  %1823 = vmatpush.bf16.msra.mxu0 %v1773
  %1824 = vmatpush.bf16.msra.mxu0 %v1771
  %1825 = vmatpush.bf16.msra.mxu0 %v1769
  %1826 = vmatpush.bf16.msra.mxu0 %v1767
  %1827 = vmatpush.bf16.msra.mxu0 %v1765
  %1828 = vmatpush.bf16.msra.mxu0 %v1763
  %1829 = vmatpush.bf16.msra.mxu0 %v1761
  %1830 = vmatpush.bf16.msra.mxu0 %v1759
  %1831 = vmatmul.bf16.gmra.mxu0 %v1410
  %v1832 = vpop.f32.mrf.mxu0
  %v1833 = vadd.f32 0.0, %v1832
  %v1834 = vpop.f32.mrf.mxu0
  %v1835 = vadd.f32 0.0, %v1834
  %1836 = vdwg.mxu0
  %1837 = vmatpush.bf16.msra.mxu0 %v1789
  %1838 = vmatpush.bf16.msra.mxu0 %v1787
  %1839 = vmatpush.bf16.msra.mxu0 %v1785
  %1840 = vmatpush.bf16.msra.mxu0 %v1783
  %1841 = vmatpush.bf16.msra.mxu0 %v1781
  %1842 = vmatpush.bf16.msra.mxu0 %v1779
  %1843 = vmatpush.bf16.msra.mxu0 %v1777
  %1844 = vmatpush.bf16.msra.mxu0 %v1775
  %1845 = vmatmul.bf16.gmra.mxu0 %v1411
  %v1846 = vpop.f32.mrf.mxu0
  %v1847 = vadd.f32 %v1833, %v1846
  %v1848 = vpop.f32.mrf.mxu0
  %v1849 = vadd.f32 %v1835, %v1848
  %1850 = vdwg.mxu0
  %1851 = vmatpush.bf16.msra.mxu0 %v1774
  %1852 = vmatpush.bf16.msra.mxu0 %v1772
  %1853 = vmatpush.bf16.msra.mxu0 %v1770
  %1854 = vmatpush.bf16.msra.mxu0 %v1768
  %1855 = vmatpush.bf16.msra.mxu0 %v1766
  %1856 = vmatpush.bf16.msra.mxu0 %v1764
  %1857 = vmatpush.bf16.msra.mxu0 %v1762
  %1858 = vmatpush.bf16.msra.mxu0 %v1760
  %1859 = vmatmul.bf16.gmra.mxu0 %v1410
  %v1860 = vpop.f32.mrf.mxu0
  %v1861 = vadd.f32 0.0, %v1860
  %v1862 = vpop.f32.mrf.mxu0
  %v1863 = vadd.f32 0.0, %v1862
  %1864 = vdwg.mxu0
  %1865 = vmatpush.bf16.msra.mxu0 %v1790
  %1866 = vmatpush.bf16.msra.mxu0 %v1788
  %1867 = vmatpush.bf16.msra.mxu0 %v1786
  %1868 = vmatpush.bf16.msra.mxu0 %v1784
  %1869 = vmatpush.bf16.msra.mxu0 %v1782
  %1870 = vmatpush.bf16.msra.mxu0 %v1780
  %1871 = vmatpush.bf16.msra.mxu0 %v1778
  %1872 = vmatpush.bf16.msra.mxu0 %v1776
  %1873 = vmatmul.bf16.gmra.mxu0 %v1411
  %v1874 = vpop.f32.mrf.mxu0
  %v1875 = vadd.f32 %v1861, %v1874
  %v1876 = vpop.f32.mrf.mxu0
  %v1877 = vadd.f32 %v1863, %v1876
  %1878 = vdwg.mxu0
  %s1879 = scalar_lea.vmem %s4, 512
  %v1880 = vld [vmem:[%s1879] sm:$0xff]
  %v1881 = vld [vmem:[%s1879 + $0x8] sm:$0xff]
  %v1882 = vld [vmem:[%s1879 + $0x10] sm:$0xff]
  %v1883 = vld [vmem:[%s1879 + $0x18] sm:$0xff]
  %v1884 = vld [vmem:[%s1879 + $0x20] sm:$0xff]
  %v1885 = vld [vmem:[%s1879 + $0x28] sm:$0xff]
  %v1886 = vld [vmem:[%s1879 + $0x30] sm:$0xff]
  %v1887 = vld [vmem:[%s1879 + $0x38] sm:$0xff]
  %v1888 = vld [vmem:[%s1879 + $0x40] sm:$0xff]
  %v1889 = vld [vmem:[%s1879 + $0x48] sm:$0xff]
  %v1890 = vld [vmem:[%s1879 + $0x50] sm:$0xff]
  %v1891 = vld [vmem:[%s1879 + $0x58] sm:$0xff]
  %v1892 = vld [vmem:[%s1879 + $0x60] sm:$0xff]
  %v1893 = vld [vmem:[%s1879 + $0x68] sm:$0xff]
  %v1894 = vld [vmem:[%s1879 + $0x70] sm:$0xff]
  %v1895 = vld [vmem:[%s1879 + $0x78] sm:$0xff]
  %v1896 = vld [vmem:[%s1879 + $0x80] sm:$0xff]
  %v1897 = vld [vmem:[%s1879 + $0x88] sm:$0xff]
  %v1898 = vld [vmem:[%s1879 + $0x90] sm:$0xff]
  %v1899 = vld [vmem:[%s1879 + $0x98] sm:$0xff]
  %v1900 = vld [vmem:[%s1879 + $0xa0] sm:$0xff]
  %v1901 = vld [vmem:[%s1879 + $0xa8] sm:$0xff]
  %v1902 = vld [vmem:[%s1879 + $0xb0] sm:$0xff]
  %v1903 = vld [vmem:[%s1879 + $0xb8] sm:$0xff]
  %v1904 = vld [vmem:[%s1879 + $0xc0] sm:$0xff]
  %v1905 = vld [vmem:[%s1879 + $0xc8] sm:$0xff]
  %v1906 = vld [vmem:[%s1879 + $0xd0] sm:$0xff]
  %v1907 = vld [vmem:[%s1879 + $0xd8] sm:$0xff]
  %v1908 = vld [vmem:[%s1879 + $0xe0] sm:$0xff]
  %v1909 = vld [vmem:[%s1879 + $0xe8] sm:$0xff]
  %v1910 = vld [vmem:[%s1879 + $0xf0] sm:$0xff]
  %v1911 = vld [vmem:[%s1879 + $0xf8] sm:$0xff]
  %v1944 = vunpack.c.l.b16 %v1880
  %v1945 = vunpack.c.h.b16 %v1880
  %v1946 = vunpack.c.l.b16 %v1881
  %v1947 = vunpack.c.h.b16 %v1881
  %v1948 = vunpack.c.l.b16 %v1882
  %v1949 = vunpack.c.h.b16 %v1882
  %v1950 = vunpack.c.l.b16 %v1883
  %v1951 = vunpack.c.h.b16 %v1883
  %v1952 = vunpack.c.l.b16 %v1884
  %v1953 = vunpack.c.h.b16 %v1884
  %v1954 = vunpack.c.l.b16 %v1885
  %v1955 = vunpack.c.h.b16 %v1885
  %v1956 = vunpack.c.l.b16 %v1886
  %v1957 = vunpack.c.h.b16 %v1886
  %v1958 = vunpack.c.l.b16 %v1887
  %v1959 = vunpack.c.h.b16 %v1887
  %v1960 = vunpack.c.l.b16 %v1888
  %v1961 = vunpack.c.h.b16 %v1888
  %v1962 = vunpack.c.l.b16 %v1889
  %v1963 = vunpack.c.h.b16 %v1889
  %v1964 = vunpack.c.l.b16 %v1890
  %v1965 = vunpack.c.h.b16 %v1890
  %v1966 = vunpack.c.l.b16 %v1891
  %v1967 = vunpack.c.h.b16 %v1891
  %v1968 = vunpack.c.l.b16 %v1892
  %v1969 = vunpack.c.h.b16 %v1892
  %v1970 = vunpack.c.l.b16 %v1893
  %v1971 = vunpack.c.h.b16 %v1893
  %v1972 = vunpack.c.l.b16 %v1894
  %v1973 = vunpack.c.h.b16 %v1894
  %v1974 = vunpack.c.l.b16 %v1895
  %v1975 = vunpack.c.h.b16 %v1895
  %v1976 = vunpack.c.l.b16 %v1896
  %v1977 = vunpack.c.h.b16 %v1896
  %v1978 = vunpack.c.l.b16 %v1897
  %v1979 = vunpack.c.h.b16 %v1897
  %v1980 = vunpack.c.l.b16 %v1898
  %v1981 = vunpack.c.h.b16 %v1898
  %v1982 = vunpack.c.l.b16 %v1899
  %v1983 = vunpack.c.h.b16 %v1899
  %v1984 = vunpack.c.l.b16 %v1900
  %v1985 = vunpack.c.h.b16 %v1900
  %v1986 = vunpack.c.l.b16 %v1901
  %v1987 = vunpack.c.h.b16 %v1901
  %v1988 = vunpack.c.l.b16 %v1902
  %v1989 = vunpack.c.h.b16 %v1902
  %v1990 = vunpack.c.l.b16 %v1903
  %v1991 = vunpack.c.h.b16 %v1903
  %v1992 = vunpack.c.l.b16 %v1904
  %v1993 = vunpack.c.h.b16 %v1904
  %v1994 = vunpack.c.l.b16 %v1905
  %v1995 = vunpack.c.h.b16 %v1905
  %v1996 = vunpack.c.l.b16 %v1906
  %v1997 = vunpack.c.h.b16 %v1906
  %v1998 = vunpack.c.l.b16 %v1907
  %v1999 = vunpack.c.h.b16 %v1907
  %v2000 = vunpack.c.l.b16 %v1908
  %v2001 = vunpack.c.h.b16 %v1908
  %v2002 = vunpack.c.l.b16 %v1909
  %v2003 = vunpack.c.h.b16 %v1909
  %v2004 = vunpack.c.l.b16 %v1910
  %v2005 = vunpack.c.h.b16 %v1910
  %v2006 = vunpack.c.l.b16 %v1911
  %v2007 = vunpack.c.h.b16 %v1911
  %v2008 = vpack.c.b16 %v1946, %v1944
  %v2009 = vpack.c.b16 %v1947, %v1945
  %v2010 = vpack.c.b16 %v1950, %v1948
  %v2011 = vpack.c.b16 %v1951, %v1949
  %v2012 = vpack.c.b16 %v1954, %v1952
  %v2013 = vpack.c.b16 %v1955, %v1953
  %v2014 = vpack.c.b16 %v1958, %v1956
  %v2015 = vpack.c.b16 %v1959, %v1957
  %v2016 = vpack.c.b16 %v1962, %v1960
  %v2017 = vpack.c.b16 %v1963, %v1961
  %v2018 = vpack.c.b16 %v1966, %v1964
  %v2019 = vpack.c.b16 %v1967, %v1965
  %v2020 = vpack.c.b16 %v1970, %v1968
  %v2021 = vpack.c.b16 %v1971, %v1969
  %v2022 = vpack.c.b16 %v1974, %v1972
  %v2023 = vpack.c.b16 %v1975, %v1973
  %v2024 = vpack.c.b16 %v1978, %v1976
  %v2025 = vpack.c.b16 %v1979, %v1977
  %v2026 = vpack.c.b16 %v1982, %v1980
  %v2027 = vpack.c.b16 %v1983, %v1981
  %v2028 = vpack.c.b16 %v1986, %v1984
  %v2029 = vpack.c.b16 %v1987, %v1985
  %v2030 = vpack.c.b16 %v1990, %v1988
  %v2031 = vpack.c.b16 %v1991, %v1989
  %v2032 = vpack.c.b16 %v1994, %v1992
  %v2033 = vpack.c.b16 %v1995, %v1993
  %v2034 = vpack.c.b16 %v1998, %v1996
  %v2035 = vpack.c.b16 %v1999, %v1997
  %v2036 = vpack.c.b16 %v2002, %v2000
  %v2037 = vpack.c.b16 %v2003, %v2001
  %v2038 = vpack.c.b16 %v2006, %v2004
  %v2039 = vpack.c.b16 %v2007, %v2005
  %2072 = vmatpush.bf16.msra.mxu0 %v2022
  %2073 = vmatpush.bf16.msra.mxu0 %v2020
  %2074 = vmatpush.bf16.msra.mxu0 %v2018
  %2075 = vmatpush.bf16.msra.mxu0 %v2016
  %2076 = vmatpush.bf16.msra.mxu0 %v2014
  %2077 = vmatpush.bf16.msra.mxu0 %v2012
  %2078 = vmatpush.bf16.msra.mxu0 %v2010
  %2079 = vmatpush.bf16.msra.mxu0 %v2008
  %2080 = vmatmul.bf16.gmra.mxu0 %v1410
  %v2081 = vpop.f32.mrf.mxu0
  %v2082 = vadd.f32 0.0, %v2081
  %v2083 = vpop.f32.mrf.mxu0
  %v2084 = vadd.f32 0.0, %v2083
  %2085 = vdwg.mxu0
  %2086 = vmatpush.bf16.msra.mxu0 %v2038
  %2087 = vmatpush.bf16.msra.mxu0 %v2036
  %2088 = vmatpush.bf16.msra.mxu0 %v2034
  %2089 = vmatpush.bf16.msra.mxu0 %v2032
  %2090 = vmatpush.bf16.msra.mxu0 %v2030
  %2091 = vmatpush.bf16.msra.mxu0 %v2028
  %2092 = vmatpush.bf16.msra.mxu0 %v2026
  %2093 = vmatpush.bf16.msra.mxu0 %v2024
  %2094 = vmatmul.bf16.gmra.mxu0 %v1411
  %v2095 = vpop.f32.mrf.mxu0
  %v2096 = vadd.f32 %v2082, %v2095
  %v2097 = vpop.f32.mrf.mxu0
  %v2098 = vadd.f32 %v2084, %v2097
  %2099 = vdwg.mxu0
  %2100 = vmatpush.bf16.msra.mxu0 %v2023
  %2101 = vmatpush.bf16.msra.mxu0 %v2021
  %2102 = vmatpush.bf16.msra.mxu0 %v2019
  %2103 = vmatpush.bf16.msra.mxu0 %v2017
  %2104 = vmatpush.bf16.msra.mxu0 %v2015
  %2105 = vmatpush.bf16.msra.mxu0 %v2013
  %2106 = vmatpush.bf16.msra.mxu0 %v2011
  %2107 = vmatpush.bf16.msra.mxu0 %v2009
  %2108 = vmatmul.bf16.gmra.mxu0 %v1410
  %v2109 = vpop.f32.mrf.mxu0
  %v2110 = vadd.f32 0.0, %v2109
  %v2111 = vpop.f32.mrf.mxu0
  %v2112 = vadd.f32 0.0, %v2111
  %2113 = vdwg.mxu0
  %2114 = vmatpush.bf16.msra.mxu0 %v2039
  %2115 = vmatpush.bf16.msra.mxu0 %v2037
  %2116 = vmatpush.bf16.msra.mxu0 %v2035
  %2117 = vmatpush.bf16.msra.mxu0 %v2033
  %2118 = vmatpush.bf16.msra.mxu0 %v2031
  %2119 = vmatpush.bf16.msra.mxu0 %v2029
  %2120 = vmatpush.bf16.msra.mxu0 %v2027
  %2121 = vmatpush.bf16.msra.mxu0 %v2025
  %2122 = vmatmul.bf16.gmra.mxu0 %v1411
  %v2123 = vpop.f32.mrf.mxu0
  %v2124 = vadd.f32 %v2110, %v2123
  %v2125 = vpop.f32.mrf.mxu0
  %v2126 = vadd.f32 %v2112, %v2125
  %2127 = vdwg.mxu0
  %v2132 = vrot.slane %v1847, 1
  %v2133 = vrot.slane %v1875, 1
  %v2134 = vrot.slane %v1849, 1
  %v2135 = vrot.slane %v1877, 1
  %v2140 = vadd.f32 %v1598, %v2132
  %v2141 = vadd.f32 %v1626, %v2133
  %v2142 = vadd.f32 %v1600, %v2134
  %v2143 = vadd.f32 %v1628, %v2135
  %v2148 = vrot.slane %v2096, 2
  %v2149 = vrot.slane %v2124, 2
  %v2150 = vrot.slane %v2098, 2
  %v2151 = vrot.slane %v2126, 2
  %v2156 = vadd.f32 %v2140, %v2148
  %v2157 = vadd.f32 %v2141, %v2149
  %v2158 = vadd.f32 %v2142, %v2150
  %v2159 = vadd.f32 %v2143, %v2151
  %v2164 = vrot.slane %v2157, 6
  %v2165 = vrot.slane %v2159, 6
  %v2166 = vsel %vm130, %v2156, %v2164
  %v2167 = vsel %vm132, %v2156, %v2164
  %v2168 = vrot.slane %v2167, 2
  %v2169 = vsel %vm135, %v2156, %v2164
  %v2170 = vrot.slane %v2169, 4
  %v2171 = vsel %vm130, %v2158, %v2165
  %v2172 = vsel %vm132, %v2158, %v2165
  %v2173 = vrot.slane %v2172, 2
  %v2174 = vsel %vm135, %v2158, %v2165
  %v2175 = vrot.slane %v2174, 4
  %2182 = vst [vmem:[#allocation1] ss:$4 sm:$0xff] %v2166
  %s2183 = scalar_lea.vmem [#allocation1], 1
  %2184 = vst [vmem:[%s2183] ss:$4 sm:$0xff] %v2168
  %s2185 = scalar_lea.vmem [#allocation1], 2
  %2186 = vst [vmem:[%s2185] ss:$4 sm:$0xff] %v2170
  %s2187 = scalar_lea.vmem [#allocation1], 3
  %2188 = vst [vmem:[%s2187] ss:$4 sm:$0xff] %v2171
  %s2189 = scalar_lea.vmem [#allocation1], 32
  %2190 = vst [vmem:[%s2189] ss:$4 sm:$0xff] %v2173
  %s2191 = scalar_lea.vmem [#allocation1], 33
  %2192 = vst [vmem:[%s2191] ss:$4 sm:$0xff] %v2175
  %v2193 = vld.sshfl [vmem:[#allocation1] sm:$0xff pattern:$0x73625140]
  %v2194 = vld.sshfl [vmem:[#allocation1 + $0x8] sm:$0xff pattern:$0x73625140]
  %v2195 = vld.sshfl [vmem:[#allocation1 + $0x20] sm:$0xff pattern:$0x73625140]
  %v2196 = vld.sshfl [vmem:[#allocation1 + $0x28] sm:$0xff pattern:$0x73625140]
  %v2201 = vsel %vm984, %v2195, 0.0
  %v2202 = vadd.f32 %v2193, %v2201
  %v2203 = vrot.slane %v2202, 4
  %v2204 = vadd.f32 %v2202, %v2203
  %v2205 = vrot.slane %v2204, 2
  %v2206 = vadd.f32 %v2204, %v2205
  %v2207 = vrot.slane %v2206, 1
  %v2208 = vadd.f32 %v2206, %v2207
  %v2209 = vsel %vm984, %v2196, 0.0
  %v2210 = vadd.f32 %v2194, %v2209
  %v2211 = vrot.slane %v2210, 4
  %v2212 = vadd.f32 %v2210, %v2211
  %v2213 = vrot.slane %v2212, 2
  %v2214 = vadd.f32 %v2212, %v2213
  %v2215 = vrot.slane %v2214, 1
  %v2216 = vadd.f32 %v2214, %v2215
  %v2217 = vmul.f32 %v2166, %v2166
  %v2218 = vmul.f32 %v2168, %v2168
  %v2219 = vmul.f32 %v2170, %v2170
  %v2220 = vmul.f32 %v2171, %v2171
  %v2221 = vmul.f32 %v2173, %v2173
  %v2222 = vmul.f32 %v2175, %v2175
  %2229 = vst [vmem:[#allocation1] ss:$4 sm:$0xff] %v2217
  %s2230 = scalar_lea.vmem [#allocation1], 1
  %2231 = vst [vmem:[%s2230] ss:$4 sm:$0xff] %v2218
  %s2232 = scalar_lea.vmem [#allocation1], 2
  %2233 = vst [vmem:[%s2232] ss:$4 sm:$0xff] %v2219
  %s2234 = scalar_lea.vmem [#allocation1], 3
  %2235 = vst [vmem:[%s2234] ss:$4 sm:$0xff] %v2220
  %s2236 = scalar_lea.vmem [#allocation1], 32
  %2237 = vst [vmem:[%s2236] ss:$4 sm:$0xff] %v2221
  %s2238 = scalar_lea.vmem [#allocation1], 33
  %2239 = vst [vmem:[%s2238] ss:$4 sm:$0xff] %v2222
  %v2240 = vld.sshfl [vmem:[#allocation1] sm:$0xff pattern:$0x73625140]
  %v2241 = vld.sshfl [vmem:[#allocation1 + $0x8] sm:$0xff pattern:$0x73625140]
  %v2242 = vld.sshfl [vmem:[#allocation1 + $0x20] sm:$0xff pattern:$0x73625140]
  %v2243 = vld.sshfl [vmem:[#allocation1 + $0x28] sm:$0xff pattern:$0x73625140]
  %v2248 = vsel %vm984, %v2242, 0.0
  %v2249 = vadd.f32 %v2240, %v2248
  %v2250 = vrot.slane %v2249, 4
  %v2251 = vadd.f32 %v2249, %v2250
  %v2252 = vrot.slane %v2251, 2
  %v2253 = vadd.f32 %v2251, %v2252
  %v2254 = vrot.slane %v2253, 1
  %v2255 = vadd.f32 %v2253, %v2254
  %v2256 = vsel %vm984, %v2243, 0.0
  %v2257 = vadd.f32 %v2241, %v2256
  %v2258 = vrot.slane %v2257, 4
  %v2259 = vadd.f32 %v2257, %v2258
  %v2260 = vrot.slane %v2259, 2
  %v2261 = vadd.f32 %v2259, %v2260
  %v2262 = vrot.slane %v2261, 1
  %v2263 = vadd.f32 %v2261, %v2262
  %v2264 = vld [vmem:[%s7] sm:$0xff]
  %v2265 = vld [vmem:[%s7 + $0x8] sm:$0xff]
  %v2266 = vld [vmem:[%s7 + $0x10] sm:$0xff]
  %v2267 = vld [vmem:[%s7 + $0x18] sm:$0xff]
  %v2268 = vld [vmem:[%s7 + $0x20] sm:$0xff]
  %v2269 = vld [vmem:[%s7 + $0x28] sm:$0xff]
  %v2270 = vld [vmem:[%s7 + $0x30] sm:$0xff]
  %v2271 = vld [vmem:[%s7 + $0x38] sm:$0xff]
  %v2272 = vld [vmem:[%s7 + $0x40] sm:$0xff]
  %v2273 = vld [vmem:[%s7 + $0x48] sm:$0xff]
  %v2274 = vld [vmem:[%s7 + $0x50] sm:$0xff]
  %v2275 = vld [vmem:[%s7 + $0x58] sm:$0xff]
  %v2276 = vld [vmem:[%s7 + $0x60] sm:$0xff]
  %v2277 = vld [vmem:[%s7 + $0x68] sm:$0xff]
  %v2278 = vld [vmem:[%s7 + $0x70] sm:$0xff]
  %v2279 = vld [vmem:[%s7 + $0x78] sm:$0xff]
  %v2280 = vld [vmem:[%s7 + $0x80] sm:$0xff]
  %v2281 = vld [vmem:[%s7 + $0x88] sm:$0xff]
  %v2282 = vld [vmem:[%s7 + $0x90] sm:$0xff]
  %v2283 = vld [vmem:[%s7 + $0x98] sm:$0xff]
  %v2284 = vld [vmem:[%s7 + $0xa0] sm:$0xff]
  %v2285 = vld [vmem:[%s7 + $0xa8] sm:$0xff]
  %v2286 = vld [vmem:[%s7 + $0xb0] sm:$0xff]
  %v2287 = vld [vmem:[%s7 + $0xb8] sm:$0xff]
  %v2288 = vld [vmem:[%s7 + $0xc0] sm:$0xff]
  %v2289 = vld [vmem:[%s7 + $0xc8] sm:$0xff]
  %v2290 = vld [vmem:[%s7 + $0xd0] sm:$0xff]
  %v2291 = vld [vmem:[%s7 + $0xd8] sm:$0xff]
  %v2292 = vld [vmem:[%s7 + $0xe0] sm:$0xff]
  %v2293 = vld [vmem:[%s7 + $0xe8] sm:$0xff]
  %v2294 = vld [vmem:[%s7 + $0xf0] sm:$0xff]
  %v2295 = vld [vmem:[%s7 + $0xf8] sm:$0xff]
  %2296 = vmatpush.msra.mxu0 %v2279
  %2297 = vmatpush.msra.mxu0 %v2278
  %2298 = vmatpush.msra.mxu0 %v2277
  %2299 = vmatpush.msra.mxu0 %v2276
  %2300 = vmatpush.msra.mxu0 %v2275
  %2301 = vmatpush.msra.mxu0 %v2274
  %2302 = vmatpush.msra.mxu0 %v2273
  %2303 = vmatpush.msra.mxu0 %v2272
  %2304 = vmatpush.msra.mxu0 %v2271
  %2305 = vmatpush.msra.mxu0 %v2270
  %2306 = vmatpush.msra.mxu0 %v2269
  %2307 = vmatpush.msra.mxu0 %v2268
  %2308 = vmatpush.msra.mxu0 %v2267
  %2309 = vmatpush.msra.mxu0 %v2266
  %2310 = vmatpush.msra.mxu0 %v2265
  %2311 = vmatpush.msra.mxu0 %v2264
  %2312 = vmatmul.f32.gmra.mxu0 %v2208
  %v2313 = vpop.f32.mrf.mxu0
  %v2314 = vadd.f32 0.0, %v2313
  %2315 = vdwg.mxu0
  %2316 = vmatpush.msra.mxu0 %v2295
  %2317 = vmatpush.msra.mxu0 %v2294
  %2318 = vmatpush.msra.mxu0 %v2293
  %2319 = vmatpush.msra.mxu0 %v2292
  %2320 = vmatpush.msra.mxu0 %v2291
  %2321 = vmatpush.msra.mxu0 %v2290
  %2322 = vmatpush.msra.mxu0 %v2289
  %2323 = vmatpush.msra.mxu0 %v2288
  %2324 = vmatpush.msra.mxu0 %v2287
  %2325 = vmatpush.msra.mxu0 %v2286
  %2326 = vmatpush.msra.mxu0 %v2285
  %2327 = vmatpush.msra.mxu0 %v2284
  %2328 = vmatpush.msra.mxu0 %v2283
  %2329 = vmatpush.msra.mxu0 %v2282
  %2330 = vmatpush.msra.mxu0 %v2281
  %2331 = vmatpush.msra.mxu0 %v2280
  %2332 = vmatmul.f32.gmra.mxu0 %v2216
  %v2333 = vpop.f32.mrf.mxu0
  %v2334 = vadd.f32 %v2314, %v2333
  %2335 = vdwg.mxu0
  %v2336 = vmul.f32 %v2334, %v1126
  %2337 = vmatpush.msra.mxu0 %v2279
  %2338 = vmatpush.msra.mxu0 %v2278
  %2339 = vmatpush.msra.mxu0 %v2277
  %2340 = vmatpush.msra.mxu0 %v2276
  %2341 = vmatpush.msra.mxu0 %v2275
  %2342 = vmatpush.msra.mxu0 %v2274
  %2343 = vmatpush.msra.mxu0 %v2273
  %2344 = vmatpush.msra.mxu0 %v2272
  %2345 = vmatpush.msra.mxu0 %v2271
  %2346 = vmatpush.msra.mxu0 %v2270
  %2347 = vmatpush.msra.mxu0 %v2269
  %2348 = vmatpush.msra.mxu0 %v2268
  %2349 = vmatpush.msra.mxu0 %v2267
  %2350 = vmatpush.msra.mxu0 %v2266
  %2351 = vmatpush.msra.mxu0 %v2265
  %2352 = vmatpush.msra.mxu0 %v2264
  %2353 = vmatmul.f32.gmra.mxu0 %v2255
  %v2354 = vpop.f32.mrf.mxu0
  %v2355 = vadd.f32 0.0, %v2354
  %2356 = vdwg.mxu0
  %2357 = vmatpush.msra.mxu0 %v2295
  %2358 = vmatpush.msra.mxu0 %v2294
  %2359 = vmatpush.msra.mxu0 %v2293
  %2360 = vmatpush.msra.mxu0 %v2292
  %2361 = vmatpush.msra.mxu0 %v2291
  %2362 = vmatpush.msra.mxu0 %v2290
  %2363 = vmatpush.msra.mxu0 %v2289
  %2364 = vmatpush.msra.mxu0 %v2288
  %2365 = vmatpush.msra.mxu0 %v2287
  %2366 = vmatpush.msra.mxu0 %v2286
  %2367 = vmatpush.msra.mxu0 %v2285
  %2368 = vmatpush.msra.mxu0 %v2284
  %2369 = vmatpush.msra.mxu0 %v2283
  %2370 = vmatpush.msra.mxu0 %v2282
  %2371 = vmatpush.msra.mxu0 %v2281
  %2372 = vmatpush.msra.mxu0 %v2280
  %2373 = vmatmul.f32.gmra.mxu0 %v2263
  %v2374 = vpop.f32.mrf.mxu0
  %v2375 = vadd.f32 %v2355, %v2374
  %2376 = vdwg.mxu0
  %v2377 = vmul.f32 %v2375, %v1126
  %v2378 = vmul.f32 %v2336, %v2336
  %v2379 = vsub.f32 %v2377, %v2378
  %v2380 = vld [vmem:[%s5] sm:$0x1]
  %v2381 = vadd.f32 %v2379, 1e-05
  %v2382 = vrsqrt.pop %v2381
  %v2383 = vmul.f32 %v2382, %v2381
  %v2384 = vmul.f32 %v2383, %v2382
  %v2385 = vmul.f32 0.5, %v2384
  %v2386 = vsub.f32 1.5, %v2385
  %v2387 = vmul.f32 %v2382, %v2386
  %vm2388 = vweird.f32 %v2381
  %vm2389 = vweird.f32 %v2382
  %vm2390 = vmor %vm2388, %vm2389
  %v2391 = vsel %vm2390, %v2382, %v2387
  %v2392 = vmul.f32 %v2380, %v2391
  %v2393 = vld [vmem:[%s6] sm:$0x1]
  %v2394 = vmul.f32 %v2336, %v2392
  %v2395 = vsub.f32 %v2393, %v2394
  %v2396 = vld [vmem:[%s8] sm:$0xff]
  %v2397 = vld [vmem:[%s8 + $0x8] sm:$0xff]
  %v2398 = vld [vmem:[%s8 + $0x10] sm:$0xff]
  %v2399 = vld [vmem:[%s8 + $0x18] sm:$0xff]
  %v2400 = vld [vmem:[%s8 + $0x20] sm:$0xff]
  %v2401 = vld [vmem:[%s8 + $0x28] sm:$0xff]
  %v2402 = vld [vmem:[%s8 + $0x30] sm:$0xff]
  %v2403 = vld [vmem:[%s8 + $0x38] sm:$0xff]
  %v2405 = vsel %vm1195, %v2392, 0
  %2407 = vmatpush.msra.mxu0 0.0
  %2408 = vmatpush.msra.mxu0 0.0
  %2409 = vmatpush.msra.mxu0 0.0
  %2410 = vmatpush.msra.mxu0 0.0
  %2411 = vmatpush.msra.mxu0 0.0
  %2412 = vmatpush.msra.mxu0 0.0
  %2413 = vmatpush.msra.mxu0 0.0
  %2414 = vmatpush.msra.mxu0 0.0
  %2415 = vmatpush.msra.mxu0 0.0
  %2416 = vmatpush.msra.mxu0 0.0
  %2417 = vmatpush.msra.mxu0 0.0
  %2418 = vmatpush.msra.mxu0 0.0
  %2419 = vmatpush.msra.mxu0 %v2402
  %2420 = vmatpush.msra.mxu0 %v2400
  %2421 = vmatpush.msra.mxu0 %v2398
  %2422 = vmatpush.msra.mxu0 %v2396
  %2423 = vmatmul.f32.gmra.mxu0 %v2405
  %v2424 = vpop.f32.mrf.mxu0
  %v2425 = vadd.f32 0.0, %v2424
  %2426 = vdwg.mxu0
  %2427 = vmatpush.msra.mxu0 0.0
  %2428 = vmatpush.msra.mxu0 0.0
  %2429 = vmatpush.msra.mxu0 0.0
  %2430 = vmatpush.msra.mxu0 0.0
  %2431 = vmatpush.msra.mxu0 0.0
  %2432 = vmatpush.msra.mxu0 0.0
  %2433 = vmatpush.msra.mxu0 0.0
  %2434 = vmatpush.msra.mxu0 0.0
  %2435 = vmatpush.msra.mxu0 0.0
  %2436 = vmatpush.msra.mxu0 0.0
  %2437 = vmatpush.msra.mxu0 0.0
  %2438 = vmatpush.msra.mxu0 0.0
  %2439 = vmatpush.msra.mxu0 %v2403
  %2440 = vmatpush.msra.mxu0 %v2401
  %2441 = vmatpush.msra.mxu0 %v2399
  %2442 = vmatpush.msra.mxu0 %v2397
  %2443 = vmatmul.f32.gmra.mxu0 %v2405
  %v2444 = vpop.f32.mrf.mxu0
  %v2445 = vadd.f32 0.0, %v2444
  %2446 = vdwg.mxu0
  %v2448 = vsel %vm1195, %v2395, 0
  %2450 = vmatpush.msra.mxu0 0.0
  %2451 = vmatpush.msra.mxu0 0.0
  %2452 = vmatpush.msra.mxu0 0.0
  %2453 = vmatpush.msra.mxu0 0.0
  %2454 = vmatpush.msra.mxu0 0.0
  %2455 = vmatpush.msra.mxu0 0.0
  %2456 = vmatpush.msra.mxu0 0.0
  %2457 = vmatpush.msra.mxu0 0.0
  %2458 = vmatpush.msra.mxu0 0.0
  %2459 = vmatpush.msra.mxu0 0.0
  %2460 = vmatpush.msra.mxu0 0.0
  %2461 = vmatpush.msra.mxu0 0.0
  %2462 = vmatpush.msra.mxu0 %v2402
  %2463 = vmatpush.msra.mxu0 %v2400
  %2464 = vmatpush.msra.mxu0 %v2398
  %2465 = vmatpush.msra.mxu0 %v2396
  %2466 = vmatmul.f32.gmra.mxu0 %v2448
  %v2467 = vpop.f32.mrf.mxu0
  %v2468 = vadd.f32 0.0, %v2467
  %2469 = vdwg.mxu0
  %2470 = vmatpush.msra.mxu0 0.0
  %2471 = vmatpush.msra.mxu0 0.0
  %2472 = vmatpush.msra.mxu0 0.0
  %2473 = vmatpush.msra.mxu0 0.0
  %2474 = vmatpush.msra.mxu0 0.0
  %2475 = vmatpush.msra.mxu0 0.0
  %2476 = vmatpush.msra.mxu0 0.0
  %2477 = vmatpush.msra.mxu0 0.0
  %2478 = vmatpush.msra.mxu0 0.0
  %2479 = vmatpush.msra.mxu0 0.0
  %2480 = vmatpush.msra.mxu0 0.0
  %2481 = vmatpush.msra.mxu0 0.0
  %2482 = vmatpush.msra.mxu0 %v2403
  %2483 = vmatpush.msra.mxu0 %v2401
  %2484 = vmatpush.msra.mxu0 %v2399
  %2485 = vmatpush.msra.mxu0 %v2397
  %2486 = vmatmul.f32.gmra.mxu0 %v2448
  %v2487 = vpop.f32.mrf.mxu0
  %v2488 = vadd.f32 0.0, %v2487
  %2489 = vdwg.mxu0
  %v2490 = vperm.slane %v2425, 0
  %v2491 = vperm.slane %v2445, 0
  %v2494 = vrot.slane %v2491, 6
  %v2495 = vsel %vm130, %v2490, %v2494
  %v2496 = vsel %vm132, %v2490, %v2494
  %v2497 = vrot.slane %v2496, 2
  %v2498 = vsel %vm135, %v2490, %v2494
  %v2499 = vrot.slane %v2498, 4
  %v2500 = vsel %vm1292, %v2494, %v2490
  %v2501 = vrot.slane %v2500, 6
  %v2506 = vmul.f32 %v2166, %v2495
  %v2507 = vmul.f32 %v2168, %v2497
  %v2508 = vmul.f32 %v2170, %v2499
  %v2509 = vmul.f32 %v2171, %v2501
  %v2510 = vmul.f32 %v2173, %v2495
  %v2511 = vmul.f32 %v2175, %v2497
  %v2512 = vperm.slane %v2468, 0
  %v2513 = vperm.slane %v2488, 0
  %v2516 = vrot.slane %v2513, 6
  %v2517 = vsel %vm130, %v2512, %v2516
  %v2518 = vsel %vm132, %v2512, %v2516
  %v2519 = vrot.slane %v2518, 2
  %v2520 = vsel %vm135, %v2512, %v2516
  %v2521 = vrot.slane %v2520, 4
  %v2522 = vsel %vm1292, %v2516, %v2512
  %v2523 = vrot.slane %v2522, 6
  %v2528 = vadd.f32 %v2506, %v2517
  %v2529 = vadd.f32 %v2507, %v2519
  %v2530 = vadd.f32 %v2508, %v2521
  %v2531 = vadd.f32 %v2509, %v2523
  %v2532 = vadd.f32 %v2510, %v2517
  %v2533 = vadd.f32 %v2511, %v2519
  %v2534 = vmax.f32 %v2528, 0.0
  %v2535 = vmax.f32 %v2529, 0.0
  %v2536 = vmax.f32 %v2530, 0.0
  %v2537 = vmax.f32 %v2531, 0.0
  %v2538 = vmax.f32 %v2532, 0.0
  %v2539 = vmax.f32 %v2533, 0.0
  %v2540 = vadd.f32 %v131, %v2534
  %v2541 = vadd.f32 %v134, %v2535
  %v2542 = vadd.f32 %v137, %v2536
  %v2543 = vadd.f32 %v138, %v2537
  %v2544 = vadd.f32 %v140, %v2538
  %v2545 = vadd.f32 %v142, %v2539
  %v2546 = vmax.f32 %v2540, 0.0
  %v2547 = vmax.f32 %v2541, 0.0
  %v2548 = vmax.f32 %v2542, 0.0
  %v2549 = vmax.f32 %v2543, 0.0
  %v2550 = vmax.f32 %v2544, 0.0
  %v2551 = vmax.f32 %v2545, 0.0
  %2558 = vst [vmem:[#allocation1] ss:$4 sm:$0xff] %v2546
  %s2559 = scalar_lea.vmem [#allocation1], 1
  %2560 = vst [vmem:[%s2559] ss:$4 sm:$0xff] %v2547
  %s2561 = scalar_lea.vmem [#allocation1], 2
  %2562 = vst [vmem:[%s2561] ss:$4 sm:$0xff] %v2548
  %v2563 = vld.sshfl [vmem:[#allocation1] sm:$0xff pattern:$0x73625140]
  %v2564 = vld.sshfl [vmem:[#allocation1 + $0x8] sm:$0xff pattern:$0x73625140]
  %s2565 = scalar_lea.vmem [#allocation1], 32
  %2566 = vst [vmem:[%s2565] ss:$4 sm:$0xff] %v2549
  %s2567 = scalar_lea.vmem [#allocation1], 33
  %2568 = vst [vmem:[%s2567] ss:$4 sm:$0xff] %v2550
  %s2569 = scalar_lea.vmem [#allocation1], 34
  %2570 = vst [vmem:[%s2569] ss:$4 sm:$0xff] %v2551
  %v2571 = vld.sshfl [vmem:[#allocation1 + $0x20] sm:$0xff pattern:$0x73625140]
  %v2572 = vld.sshfl [vmem:[#allocation1 + $0x28] sm:$0xff pattern:$0x73625140]
  %2577 = vst [vmem:[%s9] sm:$0x3f] %v2563
  %2578 = vst [vmem:[%s9 + $0x8] sm:$0x3f] %v2564
  %2579 = vst [vmem:[%s9 + $0x10] sm:$0x3f] %v2571
  %2580 = vst [vmem:[%s9 + $0x18] sm:$0x3f] %v2572
  // Predicated region
  $region38: #{resnet_forward.4} parent=0 // pred_check
    _
  $region39: #{resnet_forward.4} parent=0 // pred_check_branch
    %2582 = sbr.rel (0) target = $region41
  $region40: #{resnet_forward.4} parent=0 // pred_region
    _
  $region41: #{resnet_forward.4} parent=0 // pred_fallthru
    _
  // Predicated region
  $region42: #{resnet_forward.4} parent=0 // pred_check
    _
  $region43: #{resnet_forward.4} parent=0 // pred_check_branch
    %2584 = sbr.rel (0) target = $region45
  $region44: #{resnet_forward.4} parent=0 // pred_region
    _
  $region45: #{resnet_forward.4} parent=0 // pred_fallthru
    _

// kernel: resnet_forward.5
$region0: #{resnet_forward.5}
  #allocation0 [shape = 'u32[]', space=smem, size = 0x4, offset = 0x4, fixed_abs, tag = 'smem constant byte address 0x4 - core index']
  #allocation1 [shape = 'u32[72,128]{1,0:T(1,128)}', space=vmem, size = 0x9000, scoped, tag = 'internal scratch']
  #allocation2 [shape = 'f32[2,8,256]{2,1,0:T(8,128)}', space=vmem, size = 0x4000, scoped, tag = 'scratch operand']
  %s0 = inlined_call_operand.vmem [shape: f32[2,6,256], index: 0, kind: input, shape index: {}]
  %s1 = inlined_call_operand.vmem [shape: bf16[3,256,256], index: 1, kind: input, shape index: {}]
  %s2 = inlined_call_operand.vmem [shape: f32[1,32], index: 2, kind: input, shape index: {}]
  %s3 = inlined_call_operand.vmem [shape: f32[1,32], index: 3, kind: input, shape index: {}]
  %s4 = inlined_call_operand.vmem [shape: bf16[3,256,256], index: 4, kind: input, shape index: {}]
  %s5 = inlined_call_operand.vmem [shape: f32[1,32], index: 5, kind: input, shape index: {}]
  %s6 = inlined_call_operand.vmem [shape: f32[1,32], index: 6, kind: input, shape index: {}]
  %s7 = inlined_call_operand.vmem [shape: f32[256,32], index: 7, kind: input, shape index: {}]
  %s8 = inlined_call_operand.vmem [shape: f32[32,256], index: 8, kind: input, shape index: {}]
  %s9 = inlined_call_operand.vmem [shape: bf16[256,64], index: 9, kind: input, shape index: {}]
  %s10 = inlined_call_operand.vmem [shape: bf16[256,64], index: 10, kind: input, shape index: {}]
  %s11 = inlined_call_operand.vmem [shape: f32[1,64], index: 11, kind: input, shape index: {}]
  %s12 = inlined_call_operand.vmem [shape: bf16[64,16], index: 12, kind: input, shape index: {}]
  %s13 = inlined_call_operand.vmem [shape: f32[1,16], index: 13, kind: input, shape index: {}]
  %s14 = inlined_call_operand.vmem [shape: bf16[16,2], index: 14, kind: input, shape index: {}]
  %s15 = inlined_call_operand.vmem [shape: f32[1,2], index: 15, kind: input, shape index: {}]
  %s16 = inlined_call_operand.vmem [shape: bf16[2,2], index: 16, kind: input, shape index: {}]
  %s17 = inlined_call_operand.vmem [shape: f32[1,2], index: 17, kind: input, shape index: {}]
  %s18 = inlined_call_operand.hbm [shape: f32[2,2], index: 18, kind: output, shape index: {0}]
  %s19 = inlined_call_operand.hbm [shape: f32[2,2], index: 19, kind: output, shape index: {1}]
  %20 = xla_tuple %s18, %s19
  %s21 = sld [smem:[#allocation0]]
  $region90: #{resnet_forward.5} parent=0
    _
  %s23 = ssub.s32 1, %s21
  %s24 = scalar_select 0, %s23, %s21
  $region1: #{resnet_forward.5} parent=0
    #allocation3 [shape = 'u8[1024]{0}', space=vmem, size = 0x400, scoped, tag = 'output window, operand 0, single buffered']
    #allocation4 [shape = 's32[1]{0}', space=sflag, size = 0x4, scoped, tag = 'scoped memory for resnet_forward.5']
    #allocation5 [shape = 'u8[1024]{0}', space=vmem, size = 0x400, scoped, tag = 'output window, operand 1, single buffered']
    #allocation6 [shape = 's32[1]{0}', space=sflag, size = 0x4, scoped, tag = 'scoped memory for resnet_forward.5']
    %25 = vsyncpa [#allocation4], 0
    %26 = vsyncpa [#allocation6], 0
    // Predicated region
    $region2: #{resnet_forward.5} parent=1 // pred_check
      _
    $region3: #{resnet_forward.5} parent=1 // pred_check_branch
      %28 = sbr.rel (0) target = $region5
    $region4: #{resnet_forward.5} parent=1 // pred_region
      _
    $region5: #{resnet_forward.5} parent=1 // pred_fallthru
      _
    // Predicated region
    $region6: #{resnet_forward.5} parent=1 // pred_check
      _
    $region7: #{resnet_forward.5} parent=1 // pred_check_branch
      %30 = sbr.rel (0) target = $region9
    $region8: #{resnet_forward.5} parent=1 // pred_region
      _
    $region9: #{resnet_forward.5} parent=1 // pred_fallthru
      _
    // Predicated region
    $region10: #{resnet_forward.5} parent=1 // pred_check
      _
    $region11: #{resnet_forward.5} parent=1 // pred_check_branch
      %32 = sbr.rel (0) target = $region13
    $region12: #{resnet_forward.5} parent=1 // pred_region
      _
    $region13: #{resnet_forward.5} parent=1 // pred_fallthru
      _
    // Predicated region
    $region14: #{resnet_forward.5} parent=1 // pred_check
      _
    $region15: #{resnet_forward.5} parent=1 // pred_check_branch
      %34 = sbr.rel (0) target = $region17
    $region16: #{resnet_forward.5} parent=1 // pred_region
      _
    $region17: #{resnet_forward.5} parent=1 // pred_fallthru
      _
    // Predicated region
    $region18: #{resnet_forward.5} parent=1 // pred_check
      _
    $region19: #{resnet_forward.5} parent=1 // pred_check_branch
      %36 = sbr.rel (0) target = $region21
    $region20: #{resnet_forward.5} parent=1 // pred_region
      _
    $region21: #{resnet_forward.5} parent=1 // pred_fallthru
      _
    // Predicated region
    $region22: #{resnet_forward.5} parent=1 // pred_check
      _
    $region23: #{resnet_forward.5} parent=1 // pred_check_branch
      %38 = sbr.rel (0) target = $region25
    $region24: #{resnet_forward.5} parent=1 // pred_region
      _
    $region25: #{resnet_forward.5} parent=1 // pred_fallthru
      _
    // Predicated region
    $region26: #{resnet_forward.5} parent=1 // pred_check
      _
    $region27: #{resnet_forward.5} parent=1 // pred_check_branch
      %40 = sbr.rel (0) target = $region29
    $region28: #{resnet_forward.5} parent=1 // pred_region
      _
    $region29: #{resnet_forward.5} parent=1 // pred_fallthru
      _
    // Predicated region
    $region30: #{resnet_forward.5} parent=1 // pred_check
      _
    $region31: #{resnet_forward.5} parent=1 // pred_check_branch
      %42 = sbr.rel (0) target = $region33
    $region32: #{resnet_forward.5} parent=1 // pred_region
      _
    $region33: #{resnet_forward.5} parent=1 // pred_fallthru
      _
    // Predicated region
    $region34: #{resnet_forward.5} parent=1 // pred_check
      _
    $region35: #{resnet_forward.5} parent=1 // pred_check_branch
      %44 = sbr.rel (0) target = $region37
    $region36: #{resnet_forward.5} parent=1 // pred_region
      _
    $region37: #{resnet_forward.5} parent=1 // pred_fallthru
      _
    // Predicated region
    $region38: #{resnet_forward.5} parent=1 // pred_check
      _
    $region39: #{resnet_forward.5} parent=1 // pred_check_branch
      %46 = sbr.rel (0) target = $region41
    $region40: #{resnet_forward.5} parent=1 // pred_region
      _
    $region41: #{resnet_forward.5} parent=1 // pred_fallthru
      _
    // Predicated region
    $region42: #{resnet_forward.5} parent=1 // pred_check
      _
    $region43: #{resnet_forward.5} parent=1 // pred_check_branch
      %48 = sbr.rel (0) target = $region45
    $region44: #{resnet_forward.5} parent=1 // pred_region
      _
    $region45: #{resnet_forward.5} parent=1 // pred_fallthru
      _
    // Predicated region
    $region46: #{resnet_forward.5} parent=1 // pred_check
      _
    $region47: #{resnet_forward.5} parent=1 // pred_check_branch
      %50 = sbr.rel (0) target = $region49
    $region48: #{resnet_forward.5} parent=1 // pred_region
      _
    $region49: #{resnet_forward.5} parent=1 // pred_fallthru
      _
    // Predicated region
    $region50: #{resnet_forward.5} parent=1 // pred_check
      _
    $region51: #{resnet_forward.5} parent=1 // pred_check_branch
      %52 = sbr.rel (0) target = $region53
    $region52: #{resnet_forward.5} parent=1 // pred_region
      _
    $region53: #{resnet_forward.5} parent=1 // pred_fallthru
      _
    // Predicated region
    $region54: #{resnet_forward.5} parent=1 // pred_check
      _
    $region55: #{resnet_forward.5} parent=1 // pred_check_branch
      %54 = sbr.rel (0) target = $region57
    $region56: #{resnet_forward.5} parent=1 // pred_region
      _
    $region57: #{resnet_forward.5} parent=1 // pred_fallthru
      _
    // Predicated region
    $region58: #{resnet_forward.5} parent=1 // pred_check
      _
    $region59: #{resnet_forward.5} parent=1 // pred_check_branch
      %56 = sbr.rel (0) target = $region61
    $region60: #{resnet_forward.5} parent=1 // pred_region
      _
    $region61: #{resnet_forward.5} parent=1 // pred_fallthru
      _
    // Predicated region
    $region62: #{resnet_forward.5} parent=1 // pred_check
      _
    $region63: #{resnet_forward.5} parent=1 // pred_check_branch
      %58 = sbr.rel (0) target = $region65
    $region64: #{resnet_forward.5} parent=1 // pred_region
      _
    $region65: #{resnet_forward.5} parent=1 // pred_fallthru
      _
    // Predicated region
    $region66: #{resnet_forward.5} parent=1 // pred_check
      _
    $region67: #{resnet_forward.5} parent=1 // pred_check_branch
      %60 = sbr.rel (0) target = $region69
    $region68: #{resnet_forward.5} parent=1 // pred_region
      _
    $region69: #{resnet_forward.5} parent=1 // pred_fallthru
      _
    // Predicated region
    $region70: #{resnet_forward.5} parent=1 // pred_check
      _
    $region71: #{resnet_forward.5} parent=1 // pred_check_branch
      %62 = sbr.rel (0) target = $region73
    $region72: #{resnet_forward.5} parent=1 // pred_region
      _
    $region73: #{resnet_forward.5} parent=1 // pred_fallthru
      _
    %64 = vst [vmem:[#allocation2] sm:$0xff] 0.0
    %65 = vst [vmem:[#allocation2 + $0x8] sm:$0xff] 0.0
    %66 = vst [vmem:[#allocation2 + $0x10] sm:$0xff] 0.0
    %67 = vst [vmem:[#allocation2 + $0x18] sm:$0xff] 0.0
    %v68 = vld [vmem:[%s0] sm:$0x3f]
    %v69 = vld [vmem:[%s0 + $0x8] sm:$0x3f]
    %v70 = vld [vmem:[%s0 + $0x10] sm:$0x3f]
    %v71 = vld [vmem:[%s0 + $0x18] sm:$0x3f]
    %v76 = vrot.slane %v68, 7
    %v77 = vrot.slane %v69, 7
    %v78 = vrot.slane %v70, 7
    %v79 = vrot.slane %v71, 7
    %84 = vst [vmem:[#allocation2] sm:$0x7e] %v76
    %85 = vst [vmem:[#allocation2 + $0x8] sm:$0x7e] %v77
    %86 = vst [vmem:[#allocation2 + $0x10] sm:$0x7e] %v78
    %87 = vst [vmem:[#allocation2 + $0x18] sm:$0x7e] %v79
    %v88 = vrot.slane %v69, 6
    %v89 = vrot.slane %v71, 6
    %vm90 = vcmask 1041408
    %v91 = vsel %vm90, %v68, %v88
    %vm92 = vcmask 1043458
    %v93 = vsel %vm92, %v68, %v88
    %v94 = vrot.slane %v93, 2
    %vm95 = vcmask 1045508
    %v96 = vsel %vm95, %v68, %v88
    %v97 = vrot.slane %v96, 4
    %v98 = vsel %vm90, %v70, %v89
    %v99 = vsel %vm92, %v70, %v89
    %v100 = vrot.slane %v99, 2
    %v101 = vsel %vm95, %v70, %v89
    %v102 = vrot.slane %v101, 4
    %v109 = vld [vmem:[#allocation2] sm:$0xff]
    %v110 = vld [vmem:[#allocation2 + $0x8] sm:$0xff]
    %v111 = vld [vmem:[#allocation2 + $0x10] sm:$0xff]
    %v112 = vld [vmem:[#allocation2 + $0x18] sm:$0xff]
    %v113 = vpack.c.bf16 %v110, %v109
    %v114 = vpack.c.bf16 %v112, %v111
    %v115 = vld [vmem:[%s1] sm:$0xff]
    %v116 = vld [vmem:[%s1 + $0x8] sm:$0xff]
    %v117 = vld [vmem:[%s1 + $0x10] sm:$0xff]
    %v118 = vld [vmem:[%s1 + $0x18] sm:$0xff]
    %v119 = vld [vmem:[%s1 + $0x20] sm:$0xff]
    %v120 = vld [vmem:[%s1 + $0x28] sm:$0xff]
    %v121 = vld [vmem:[%s1 + $0x30] sm:$0xff]
    %v122 = vld [vmem:[%s1 + $0x38] sm:$0xff]
    %v123 = vld [vmem:[%s1 + $0x40] sm:$0xff]
    %v124 = vld [vmem:[%s1 + $0x48] sm:$0xff]
    %v125 = vld [vmem:[%s1 + $0x50] sm:$0xff]
    %v126 = vld [vmem:[%s1 + $0x58] sm:$0xff]
    %v127 = vld [vmem:[%s1 + $0x60] sm:$0xff]
    %v128 = vld [vmem:[%s1 + $0x68] sm:$0xff]
    %v129 = vld [vmem:[%s1 + $0x70] sm:$0xff]
    %v130 = vld [vmem:[%s1 + $0x78] sm:$0xff]
    %v131 = vld [vmem:[%s1 + $0x80] sm:$0xff]
    %v132 = vld [vmem:[%s1 + $0x88] sm:$0xff]
    %v133 = vld [vmem:[%s1 + $0x90] sm:$0xff]
    %v134 = vld [vmem:[%s1 + $0x98] sm:$0xff]
    %v135 = vld [vmem:[%s1 + $0xa0] sm:$0xff]
    %v136 = vld [vmem:[%s1 + $0xa8] sm:$0xff]
    %v137 = vld [vmem:[%s1 + $0xb0] sm:$0xff]
    %v138 = vld [vmem:[%s1 + $0xb8] sm:$0xff]
    %v139 = vld [vmem:[%s1 + $0xc0] sm:$0xff]
    %v140 = vld [vmem:[%s1 + $0xc8] sm:$0xff]
    %v141 = vld [vmem:[%s1 + $0xd0] sm:$0xff]
    %v142 = vld [vmem:[%s1 + $0xd8] sm:$0xff]
    %v143 = vld [vmem:[%s1 + $0xe0] sm:$0xff]
    %v144 = vld [vmem:[%s1 + $0xe8] sm:$0xff]
    %v145 = vld [vmem:[%s1 + $0xf0] sm:$0xff]
    %v146 = vld [vmem:[%s1 + $0xf8] sm:$0xff]
    %v149 = vunpack.c.l.b16 %v113
    %v150 = vunpack.c.h.b16 %v113
    %v151 = vunpack.c.l.b16 %v114
    %v152 = vunpack.c.h.b16 %v114
    %v153 = vpack.c.b16 %v151, %v149
    %v154 = vpack.c.b16 %v152, %v150
    %v189 = vunpack.c.l.b16 %v115
    %v190 = vunpack.c.h.b16 %v115
    %v191 = vunpack.c.l.b16 %v116
    %v192 = vunpack.c.h.b16 %v116
    %v193 = vunpack.c.l.b16 %v117
    %v194 = vunpack.c.h.b16 %v117
    %v195 = vunpack.c.l.b16 %v118
    %v196 = vunpack.c.h.b16 %v118
    %v197 = vunpack.c.l.b16 %v119
    %v198 = vunpack.c.h.b16 %v119
    %v199 = vunpack.c.l.b16 %v120
    %v200 = vunpack.c.h.b16 %v120
    %v201 = vunpack.c.l.b16 %v121
    %v202 = vunpack.c.h.b16 %v121
    %v203 = vunpack.c.l.b16 %v122
    %v204 = vunpack.c.h.b16 %v122
    %v205 = vunpack.c.l.b16 %v123
    %v206 = vunpack.c.h.b16 %v123
    %v207 = vunpack.c.l.b16 %v124
    %v208 = vunpack.c.h.b16 %v124
    %v209 = vunpack.c.l.b16 %v125
    %v210 = vunpack.c.h.b16 %v125
    %v211 = vunpack.c.l.b16 %v126
    %v212 = vunpack.c.h.b16 %v126
    %v213 = vunpack.c.l.b16 %v127
    %v214 = vunpack.c.h.b16 %v127
    %v215 = vunpack.c.l.b16 %v128
    %v216 = vunpack.c.h.b16 %v128
    %v217 = vunpack.c.l.b16 %v129
    %v218 = vunpack.c.h.b16 %v129
    %v219 = vunpack.c.l.b16 %v130
    %v220 = vunpack.c.h.b16 %v130
    %v221 = vunpack.c.l.b16 %v131
    %v222 = vunpack.c.h.b16 %v131
    %v223 = vunpack.c.l.b16 %v132
    %v224 = vunpack.c.h.b16 %v132
    %v225 = vunpack.c.l.b16 %v133
    %v226 = vunpack.c.h.b16 %v133
    %v227 = vunpack.c.l.b16 %v134
    %v228 = vunpack.c.h.b16 %v134
    %v229 = vunpack.c.l.b16 %v135
    %v230 = vunpack.c.h.b16 %v135
    %v231 = vunpack.c.l.b16 %v136
    %v232 = vunpack.c.h.b16 %v136
    %v233 = vunpack.c.l.b16 %v137
    %v234 = vunpack.c.h.b16 %v137
    %v235 = vunpack.c.l.b16 %v138
    %v236 = vunpack.c.h.b16 %v138
    %v237 = vunpack.c.l.b16 %v139
    %v238 = vunpack.c.h.b16 %v139
    %v239 = vunpack.c.l.b16 %v140
    %v240 = vunpack.c.h.b16 %v140
    %v241 = vunpack.c.l.b16 %v141
    %v242 = vunpack.c.h.b16 %v141
    %v243 = vunpack.c.l.b16 %v142
    %v244 = vunpack.c.h.b16 %v142
    %v245 = vunpack.c.l.b16 %v143
    %v246 = vunpack.c.h.b16 %v143
    %v247 = vunpack.c.l.b16 %v144
    %v248 = vunpack.c.h.b16 %v144
    %v249 = vunpack.c.l.b16 %v145
    %v250 = vunpack.c.h.b16 %v145
    %v251 = vunpack.c.l.b16 %v146
    %v252 = vunpack.c.h.b16 %v146
    %v253 = vpack.c.b16 %v191, %v189
    %v254 = vpack.c.b16 %v192, %v190
    %v255 = vpack.c.b16 %v195, %v193
    %v256 = vpack.c.b16 %v196, %v194
    %v257 = vpack.c.b16 %v199, %v197
    %v258 = vpack.c.b16 %v200, %v198
    %v259 = vpack.c.b16 %v203, %v201
    %v260 = vpack.c.b16 %v204, %v202
    %v261 = vpack.c.b16 %v207, %v205
    %v262 = vpack.c.b16 %v208, %v206
    %v263 = vpack.c.b16 %v211, %v209
    %v264 = vpack.c.b16 %v212, %v210
    %v265 = vpack.c.b16 %v215, %v213
    %v266 = vpack.c.b16 %v216, %v214
    %v267 = vpack.c.b16 %v219, %v217
    %v268 = vpack.c.b16 %v220, %v218
    %v269 = vpack.c.b16 %v223, %v221
    %v270 = vpack.c.b16 %v224, %v222
    %v271 = vpack.c.b16 %v227, %v225
    %v272 = vpack.c.b16 %v228, %v226
    %v273 = vpack.c.b16 %v231, %v229
    %v274 = vpack.c.b16 %v232, %v230
    %v275 = vpack.c.b16 %v235, %v233
    %v276 = vpack.c.b16 %v236, %v234
    %v277 = vpack.c.b16 %v239, %v237
    %v278 = vpack.c.b16 %v240, %v238
    %v279 = vpack.c.b16 %v243, %v241
    %v280 = vpack.c.b16 %v244, %v242
    %v281 = vpack.c.b16 %v247, %v245
    %v282 = vpack.c.b16 %v248, %v246
    %v283 = vpack.c.b16 %v251, %v249
    %v284 = vpack.c.b16 %v252, %v250
    %317 = vmatpush.bf16.msra.mxu0 %v267
    %318 = vmatpush.bf16.msra.mxu0 %v265
    %319 = vmatpush.bf16.msra.mxu0 %v263
    %320 = vmatpush.bf16.msra.mxu0 %v261
    %321 = vmatpush.bf16.msra.mxu0 %v259
    %322 = vmatpush.bf16.msra.mxu0 %v257
    %323 = vmatpush.bf16.msra.mxu0 %v255
    %324 = vmatpush.bf16.msra.mxu0 %v253
    %325 = vmatmul.bf16.gmra.mxu0 %v153
    %v326 = vpop.f32.mrf.mxu0
    %v327 = vadd.f32 0.0, %v326
    %v328 = vpop.f32.mrf.mxu0
    %v329 = vadd.f32 0.0, %v328
    %330 = vdwg.mxu0
    %331 = vmatpush.bf16.msra.mxu0 %v283
    %332 = vmatpush.bf16.msra.mxu0 %v281
    %333 = vmatpush.bf16.msra.mxu0 %v279
    %334 = vmatpush.bf16.msra.mxu0 %v277
    %335 = vmatpush.bf16.msra.mxu0 %v275
    %336 = vmatpush.bf16.msra.mxu0 %v273
    %337 = vmatpush.bf16.msra.mxu0 %v271
    %338 = vmatpush.bf16.msra.mxu0 %v269
    %339 = vmatmul.bf16.gmra.mxu0 %v154
    %v340 = vpop.f32.mrf.mxu0
    %v341 = vadd.f32 %v327, %v340
    %v342 = vpop.f32.mrf.mxu0
    %v343 = vadd.f32 %v329, %v342
    %344 = vdwg.mxu0
    %345 = vmatpush.bf16.msra.mxu0 %v268
    %346 = vmatpush.bf16.msra.mxu0 %v266
    %347 = vmatpush.bf16.msra.mxu0 %v264
    %348 = vmatpush.bf16.msra.mxu0 %v262
    %349 = vmatpush.bf16.msra.mxu0 %v260
    %350 = vmatpush.bf16.msra.mxu0 %v258
    %351 = vmatpush.bf16.msra.mxu0 %v256
    %352 = vmatpush.bf16.msra.mxu0 %v254
    %353 = vmatmul.bf16.gmra.mxu0 %v153
    %v354 = vpop.f32.mrf.mxu0
    %v355 = vadd.f32 0.0, %v354
    %v356 = vpop.f32.mrf.mxu0
    %v357 = vadd.f32 0.0, %v356
    %358 = vdwg.mxu0
    %359 = vmatpush.bf16.msra.mxu0 %v284
    %360 = vmatpush.bf16.msra.mxu0 %v282
    %361 = vmatpush.bf16.msra.mxu0 %v280
    %362 = vmatpush.bf16.msra.mxu0 %v278
    %363 = vmatpush.bf16.msra.mxu0 %v276
    %364 = vmatpush.bf16.msra.mxu0 %v274
    %365 = vmatpush.bf16.msra.mxu0 %v272
    %366 = vmatpush.bf16.msra.mxu0 %v270
    %367 = vmatmul.bf16.gmra.mxu0 %v154
    %v368 = vpop.f32.mrf.mxu0
    %v369 = vadd.f32 %v355, %v368
    %v370 = vpop.f32.mrf.mxu0
    %v371 = vadd.f32 %v357, %v370
    %372 = vdwg.mxu0
    %s373 = scalar_lea.vmem %s1, 256
    %v374 = vld [vmem:[%s373] sm:$0xff]
    %v375 = vld [vmem:[%s373 + $0x8] sm:$0xff]
    %v376 = vld [vmem:[%s373 + $0x10] sm:$0xff]
    %v377 = vld [vmem:[%s373 + $0x18] sm:$0xff]
    %v378 = vld [vmem:[%s373 + $0x20] sm:$0xff]
    %v379 = vld [vmem:[%s373 + $0x28] sm:$0xff]
    %v380 = vld [vmem:[%s373 + $0x30] sm:$0xff]
    %v381 = vld [vmem:[%s373 + $0x38] sm:$0xff]
    %v382 = vld [vmem:[%s373 + $0x40] sm:$0xff]
    %v383 = vld [vmem:[%s373 + $0x48] sm:$0xff]
    %v384 = vld [vmem:[%s373 + $0x50] sm:$0xff]
    %v385 = vld [vmem:[%s373 + $0x58] sm:$0xff]
    %v386 = vld [vmem:[%s373 + $0x60] sm:$0xff]
    %v387 = vld [vmem:[%s373 + $0x68] sm:$0xff]
    %v388 = vld [vmem:[%s373 + $0x70] sm:$0xff]
    %v389 = vld [vmem:[%s373 + $0x78] sm:$0xff]
    %v390 = vld [vmem:[%s373 + $0x80] sm:$0xff]
    %v391 = vld [vmem:[%s373 + $0x88] sm:$0xff]
    %v392 = vld [vmem:[%s373 + $0x90] sm:$0xff]
    %v393 = vld [vmem:[%s373 + $0x98] sm:$0xff]
    %v394 = vld [vmem:[%s373 + $0xa0] sm:$0xff]
    %v395 = vld [vmem:[%s373 + $0xa8] sm:$0xff]
    %v396 = vld [vmem:[%s373 + $0xb0] sm:$0xff]
    %v397 = vld [vmem:[%s373 + $0xb8] sm:$0xff]
    %v398 = vld [vmem:[%s373 + $0xc0] sm:$0xff]
    %v399 = vld [vmem:[%s373 + $0xc8] sm:$0xff]
    %v400 = vld [vmem:[%s373 + $0xd0] sm:$0xff]
    %v401 = vld [vmem:[%s373 + $0xd8] sm:$0xff]
    %v402 = vld [vmem:[%s373 + $0xe0] sm:$0xff]
    %v403 = vld [vmem:[%s373 + $0xe8] sm:$0xff]
    %v404 = vld [vmem:[%s373 + $0xf0] sm:$0xff]
    %v405 = vld [vmem:[%s373 + $0xf8] sm:$0xff]
    %v438 = vunpack.c.l.b16 %v374
    %v439 = vunpack.c.h.b16 %v374
    %v440 = vunpack.c.l.b16 %v375
    %v441 = vunpack.c.h.b16 %v375
    %v442 = vunpack.c.l.b16 %v376
    %v443 = vunpack.c.h.b16 %v376
    %v444 = vunpack.c.l.b16 %v377
    %v445 = vunpack.c.h.b16 %v377
    %v446 = vunpack.c.l.b16 %v378
    %v447 = vunpack.c.h.b16 %v378
    %v448 = vunpack.c.l.b16 %v379
    %v449 = vunpack.c.h.b16 %v379
    %v450 = vunpack.c.l.b16 %v380
    %v451 = vunpack.c.h.b16 %v380
    %v452 = vunpack.c.l.b16 %v381
    %v453 = vunpack.c.h.b16 %v381
    %v454 = vunpack.c.l.b16 %v382
    %v455 = vunpack.c.h.b16 %v382
    %v456 = vunpack.c.l.b16 %v383
    %v457 = vunpack.c.h.b16 %v383
    %v458 = vunpack.c.l.b16 %v384
    %v459 = vunpack.c.h.b16 %v384
    %v460 = vunpack.c.l.b16 %v385
    %v461 = vunpack.c.h.b16 %v385
    %v462 = vunpack.c.l.b16 %v386
    %v463 = vunpack.c.h.b16 %v386
    %v464 = vunpack.c.l.b16 %v387
    %v465 = vunpack.c.h.b16 %v387
    %v466 = vunpack.c.l.b16 %v388
    %v467 = vunpack.c.h.b16 %v388
    %v468 = vunpack.c.l.b16 %v389
    %v469 = vunpack.c.h.b16 %v389
    %v470 = vunpack.c.l.b16 %v390
    %v471 = vunpack.c.h.b16 %v390
    %v472 = vunpack.c.l.b16 %v391
    %v473 = vunpack.c.h.b16 %v391
    %v474 = vunpack.c.l.b16 %v392
    %v475 = vunpack.c.h.b16 %v392
    %v476 = vunpack.c.l.b16 %v393
    %v477 = vunpack.c.h.b16 %v393
    %v478 = vunpack.c.l.b16 %v394
    %v479 = vunpack.c.h.b16 %v394
    %v480 = vunpack.c.l.b16 %v395
    %v481 = vunpack.c.h.b16 %v395
    %v482 = vunpack.c.l.b16 %v396
    %v483 = vunpack.c.h.b16 %v396
    %v484 = vunpack.c.l.b16 %v397
    %v485 = vunpack.c.h.b16 %v397
    %v486 = vunpack.c.l.b16 %v398
    %v487 = vunpack.c.h.b16 %v398
    %v488 = vunpack.c.l.b16 %v399
    %v489 = vunpack.c.h.b16 %v399
    %v490 = vunpack.c.l.b16 %v400
    %v491 = vunpack.c.h.b16 %v400
    %v492 = vunpack.c.l.b16 %v401
    %v493 = vunpack.c.h.b16 %v401
    %v494 = vunpack.c.l.b16 %v402
    %v495 = vunpack.c.h.b16 %v402
    %v496 = vunpack.c.l.b16 %v403
    %v497 = vunpack.c.h.b16 %v403
    %v498 = vunpack.c.l.b16 %v404
    %v499 = vunpack.c.h.b16 %v404
    %v500 = vunpack.c.l.b16 %v405
    %v501 = vunpack.c.h.b16 %v405
    %v502 = vpack.c.b16 %v440, %v438
    %v503 = vpack.c.b16 %v441, %v439
    %v504 = vpack.c.b16 %v444, %v442
    %v505 = vpack.c.b16 %v445, %v443
    %v506 = vpack.c.b16 %v448, %v446
    %v507 = vpack.c.b16 %v449, %v447
    %v508 = vpack.c.b16 %v452, %v450
    %v509 = vpack.c.b16 %v453, %v451
    %v510 = vpack.c.b16 %v456, %v454
    %v511 = vpack.c.b16 %v457, %v455
    %v512 = vpack.c.b16 %v460, %v458
    %v513 = vpack.c.b16 %v461, %v459
    %v514 = vpack.c.b16 %v464, %v462
    %v515 = vpack.c.b16 %v465, %v463
    %v516 = vpack.c.b16 %v468, %v466
    %v517 = vpack.c.b16 %v469, %v467
    %v518 = vpack.c.b16 %v472, %v470
    %v519 = vpack.c.b16 %v473, %v471
    %v520 = vpack.c.b16 %v476, %v474
    %v521 = vpack.c.b16 %v477, %v475
    %v522 = vpack.c.b16 %v480, %v478
    %v523 = vpack.c.b16 %v481, %v479
    %v524 = vpack.c.b16 %v484, %v482
    %v525 = vpack.c.b16 %v485, %v483
    %v526 = vpack.c.b16 %v488, %v486
    %v527 = vpack.c.b16 %v489, %v487
    %v528 = vpack.c.b16 %v492, %v490
    %v529 = vpack.c.b16 %v493, %v491
    %v530 = vpack.c.b16 %v496, %v494
    %v531 = vpack.c.b16 %v497, %v495
    %v532 = vpack.c.b16 %v500, %v498
    %v533 = vpack.c.b16 %v501, %v499
    %566 = vmatpush.bf16.msra.mxu0 %v516
    %567 = vmatpush.bf16.msra.mxu0 %v514
    %568 = vmatpush.bf16.msra.mxu0 %v512
    %569 = vmatpush.bf16.msra.mxu0 %v510
    %570 = vmatpush.bf16.msra.mxu0 %v508
    %571 = vmatpush.bf16.msra.mxu0 %v506
    %572 = vmatpush.bf16.msra.mxu0 %v504
    %573 = vmatpush.bf16.msra.mxu0 %v502
    %574 = vmatmul.bf16.gmra.mxu0 %v153
    %v575 = vpop.f32.mrf.mxu0
    %v576 = vadd.f32 0.0, %v575
    %v577 = vpop.f32.mrf.mxu0
    %v578 = vadd.f32 0.0, %v577
    %579 = vdwg.mxu0
    %580 = vmatpush.bf16.msra.mxu0 %v532
    %581 = vmatpush.bf16.msra.mxu0 %v530
    %582 = vmatpush.bf16.msra.mxu0 %v528
    %583 = vmatpush.bf16.msra.mxu0 %v526
    %584 = vmatpush.bf16.msra.mxu0 %v524
    %585 = vmatpush.bf16.msra.mxu0 %v522
    %586 = vmatpush.bf16.msra.mxu0 %v520
    %587 = vmatpush.bf16.msra.mxu0 %v518
    %588 = vmatmul.bf16.gmra.mxu0 %v154
    %v589 = vpop.f32.mrf.mxu0
    %v590 = vadd.f32 %v576, %v589
    %v591 = vpop.f32.mrf.mxu0
    %v592 = vadd.f32 %v578, %v591
    %593 = vdwg.mxu0
    %594 = vmatpush.bf16.msra.mxu0 %v517
    %595 = vmatpush.bf16.msra.mxu0 %v515
    %596 = vmatpush.bf16.msra.mxu0 %v513
    %597 = vmatpush.bf16.msra.mxu0 %v511
    %598 = vmatpush.bf16.msra.mxu0 %v509
    %599 = vmatpush.bf16.msra.mxu0 %v507
    %600 = vmatpush.bf16.msra.mxu0 %v505
    %601 = vmatpush.bf16.msra.mxu0 %v503
    %602 = vmatmul.bf16.gmra.mxu0 %v153
    %v603 = vpop.f32.mrf.mxu0
    %v604 = vadd.f32 0.0, %v603
    %v605 = vpop.f32.mrf.mxu0
    %v606 = vadd.f32 0.0, %v605
    %607 = vdwg.mxu0
    %608 = vmatpush.bf16.msra.mxu0 %v533
    %609 = vmatpush.bf16.msra.mxu0 %v531
    %610 = vmatpush.bf16.msra.mxu0 %v529
    %611 = vmatpush.bf16.msra.mxu0 %v527
    %612 = vmatpush.bf16.msra.mxu0 %v525
    %613 = vmatpush.bf16.msra.mxu0 %v523
    %614 = vmatpush.bf16.msra.mxu0 %v521
    %615 = vmatpush.bf16.msra.mxu0 %v519
    %616 = vmatmul.bf16.gmra.mxu0 %v154
    %v617 = vpop.f32.mrf.mxu0
    %v618 = vadd.f32 %v604, %v617
    %v619 = vpop.f32.mrf.mxu0
    %v620 = vadd.f32 %v606, %v619
    %621 = vdwg.mxu0
    %s622 = scalar_lea.vmem %s1, 512
    %v623 = vld [vmem:[%s622] sm:$0xff]
    %v624 = vld [vmem:[%s622 + $0x8] sm:$0xff]
    %v625 = vld [vmem:[%s622 + $0x10] sm:$0xff]
    %v626 = vld [vmem:[%s622 + $0x18] sm:$0xff]
    %v627 = vld [vmem:[%s622 + $0x20] sm:$0xff]
    %v628 = vld [vmem:[%s622 + $0x28] sm:$0xff]
    %v629 = vld [vmem:[%s622 + $0x30] sm:$0xff]
    %v630 = vld [vmem:[%s622 + $0x38] sm:$0xff]
    %v631 = vld [vmem:[%s622 + $0x40] sm:$0xff]
    %v632 = vld [vmem:[%s622 + $0x48] sm:$0xff]
    %v633 = vld [vmem:[%s622 + $0x50] sm:$0xff]
    %v634 = vld [vmem:[%s622 + $0x58] sm:$0xff]
    %v635 = vld [vmem:[%s622 + $0x60] sm:$0xff]
    %v636 = vld [vmem:[%s622 + $0x68] sm:$0xff]
    %v637 = vld [vmem:[%s622 + $0x70] sm:$0xff]
    %v638 = vld [vmem:[%s622 + $0x78] sm:$0xff]
    %v639 = vld [vmem:[%s622 + $0x80] sm:$0xff]
    %v640 = vld [vmem:[%s622 + $0x88] sm:$0xff]
    %v641 = vld [vmem:[%s622 + $0x90] sm:$0xff]
    %v642 = vld [vmem:[%s622 + $0x98] sm:$0xff]
    %v643 = vld [vmem:[%s622 + $0xa0] sm:$0xff]
    %v644 = vld [vmem:[%s622 + $0xa8] sm:$0xff]
    %v645 = vld [vmem:[%s622 + $0xb0] sm:$0xff]
    %v646 = vld [vmem:[%s622 + $0xb8] sm:$0xff]
    %v647 = vld [vmem:[%s622 + $0xc0] sm:$0xff]
    %v648 = vld [vmem:[%s622 + $0xc8] sm:$0xff]
    %v649 = vld [vmem:[%s622 + $0xd0] sm:$0xff]
    %v650 = vld [vmem:[%s622 + $0xd8] sm:$0xff]
    %v651 = vld [vmem:[%s622 + $0xe0] sm:$0xff]
    %v652 = vld [vmem:[%s622 + $0xe8] sm:$0xff]
    %v653 = vld [vmem:[%s622 + $0xf0] sm:$0xff]
    %v654 = vld [vmem:[%s622 + $0xf8] sm:$0xff]
    %v687 = vunpack.c.l.b16 %v623
    %v688 = vunpack.c.h.b16 %v623
    %v689 = vunpack.c.l.b16 %v624
    %v690 = vunpack.c.h.b16 %v624
    %v691 = vunpack.c.l.b16 %v625
    %v692 = vunpack.c.h.b16 %v625
    %v693 = vunpack.c.l.b16 %v626
    %v694 = vunpack.c.h.b16 %v626
    %v695 = vunpack.c.l.b16 %v627
    %v696 = vunpack.c.h.b16 %v627
    %v697 = vunpack.c.l.b16 %v628
    %v698 = vunpack.c.h.b16 %v628
    %v699 = vunpack.c.l.b16 %v629
    %v700 = vunpack.c.h.b16 %v629
    %v701 = vunpack.c.l.b16 %v630
    %v702 = vunpack.c.h.b16 %v630
    %v703 = vunpack.c.l.b16 %v631
    %v704 = vunpack.c.h.b16 %v631
    %v705 = vunpack.c.l.b16 %v632
    %v706 = vunpack.c.h.b16 %v632
    %v707 = vunpack.c.l.b16 %v633
    %v708 = vunpack.c.h.b16 %v633
    %v709 = vunpack.c.l.b16 %v634
    %v710 = vunpack.c.h.b16 %v634
    %v711 = vunpack.c.l.b16 %v635
    %v712 = vunpack.c.h.b16 %v635
    %v713 = vunpack.c.l.b16 %v636
    %v714 = vunpack.c.h.b16 %v636
    %v715 = vunpack.c.l.b16 %v637
    %v716 = vunpack.c.h.b16 %v637
    %v717 = vunpack.c.l.b16 %v638
    %v718 = vunpack.c.h.b16 %v638
    %v719 = vunpack.c.l.b16 %v639
    %v720 = vunpack.c.h.b16 %v639
    %v721 = vunpack.c.l.b16 %v640
    %v722 = vunpack.c.h.b16 %v640
    %v723 = vunpack.c.l.b16 %v641
    %v724 = vunpack.c.h.b16 %v641
    %v725 = vunpack.c.l.b16 %v642
    %v726 = vunpack.c.h.b16 %v642
    %v727 = vunpack.c.l.b16 %v643
    %v728 = vunpack.c.h.b16 %v643
    %v729 = vunpack.c.l.b16 %v644
    %v730 = vunpack.c.h.b16 %v644
    %v731 = vunpack.c.l.b16 %v645
    %v732 = vunpack.c.h.b16 %v645
    %v733 = vunpack.c.l.b16 %v646
    %v734 = vunpack.c.h.b16 %v646
    %v735 = vunpack.c.l.b16 %v647
    %v736 = vunpack.c.h.b16 %v647
    %v737 = vunpack.c.l.b16 %v648
    %v738 = vunpack.c.h.b16 %v648
    %v739 = vunpack.c.l.b16 %v649
    %v740 = vunpack.c.h.b16 %v649
    %v741 = vunpack.c.l.b16 %v650
    %v742 = vunpack.c.h.b16 %v650
    %v743 = vunpack.c.l.b16 %v651
    %v744 = vunpack.c.h.b16 %v651
    %v745 = vunpack.c.l.b16 %v652
    %v746 = vunpack.c.h.b16 %v652
    %v747 = vunpack.c.l.b16 %v653
    %v748 = vunpack.c.h.b16 %v653
    %v749 = vunpack.c.l.b16 %v654
    %v750 = vunpack.c.h.b16 %v654
    %v751 = vpack.c.b16 %v689, %v687
    %v752 = vpack.c.b16 %v690, %v688
    %v753 = vpack.c.b16 %v693, %v691
    %v754 = vpack.c.b16 %v694, %v692
    %v755 = vpack.c.b16 %v697, %v695
    %v756 = vpack.c.b16 %v698, %v696
    %v757 = vpack.c.b16 %v701, %v699
    %v758 = vpack.c.b16 %v702, %v700
    %v759 = vpack.c.b16 %v705, %v703
    %v760 = vpack.c.b16 %v706, %v704
    %v761 = vpack.c.b16 %v709, %v707
    %v762 = vpack.c.b16 %v710, %v708
    %v763 = vpack.c.b16 %v713, %v711
    %v764 = vpack.c.b16 %v714, %v712
    %v765 = vpack.c.b16 %v717, %v715
    %v766 = vpack.c.b16 %v718, %v716
    %v767 = vpack.c.b16 %v721, %v719
    %v768 = vpack.c.b16 %v722, %v720
    %v769 = vpack.c.b16 %v725, %v723
    %v770 = vpack.c.b16 %v726, %v724
    %v771 = vpack.c.b16 %v729, %v727
    %v772 = vpack.c.b16 %v730, %v728
    %v773 = vpack.c.b16 %v733, %v731
    %v774 = vpack.c.b16 %v734, %v732
    %v775 = vpack.c.b16 %v737, %v735
    %v776 = vpack.c.b16 %v738, %v736
    %v777 = vpack.c.b16 %v741, %v739
    %v778 = vpack.c.b16 %v742, %v740
    %v779 = vpack.c.b16 %v745, %v743
    %v780 = vpack.c.b16 %v746, %v744
    %v781 = vpack.c.b16 %v749, %v747
    %v782 = vpack.c.b16 %v750, %v748
    %815 = vmatpush.bf16.msra.mxu0 %v765
    %816 = vmatpush.bf16.msra.mxu0 %v763
    %817 = vmatpush.bf16.msra.mxu0 %v761
    %818 = vmatpush.bf16.msra.mxu0 %v759
    %819 = vmatpush.bf16.msra.mxu0 %v757
    %820 = vmatpush.bf16.msra.mxu0 %v755
    %821 = vmatpush.bf16.msra.mxu0 %v753
    %822 = vmatpush.bf16.msra.mxu0 %v751
    %823 = vmatmul.bf16.gmra.mxu0 %v153
    %v824 = vpop.f32.mrf.mxu0
    %v825 = vadd.f32 0.0, %v824
    %v826 = vpop.f32.mrf.mxu0
    %v827 = vadd.f32 0.0, %v826
    %828 = vdwg.mxu0
    %829 = vmatpush.bf16.msra.mxu0 %v781
    %830 = vmatpush.bf16.msra.mxu0 %v779
    %831 = vmatpush.bf16.msra.mxu0 %v777
    %832 = vmatpush.bf16.msra.mxu0 %v775
    %833 = vmatpush.bf16.msra.mxu0 %v773
    %834 = vmatpush.bf16.msra.mxu0 %v771
    %835 = vmatpush.bf16.msra.mxu0 %v769
    %836 = vmatpush.bf16.msra.mxu0 %v767
    %837 = vmatmul.bf16.gmra.mxu0 %v154
    %v838 = vpop.f32.mrf.mxu0
    %v839 = vadd.f32 %v825, %v838
    %v840 = vpop.f32.mrf.mxu0
    %v841 = vadd.f32 %v827, %v840
    %842 = vdwg.mxu0
    %843 = vmatpush.bf16.msra.mxu0 %v766
    %844 = vmatpush.bf16.msra.mxu0 %v764
    %845 = vmatpush.bf16.msra.mxu0 %v762
    %846 = vmatpush.bf16.msra.mxu0 %v760
    %847 = vmatpush.bf16.msra.mxu0 %v758
    %848 = vmatpush.bf16.msra.mxu0 %v756
    %849 = vmatpush.bf16.msra.mxu0 %v754
    %850 = vmatpush.bf16.msra.mxu0 %v752
    %851 = vmatmul.bf16.gmra.mxu0 %v153
    %v852 = vpop.f32.mrf.mxu0
    %v853 = vadd.f32 0.0, %v852
    %v854 = vpop.f32.mrf.mxu0
    %v855 = vadd.f32 0.0, %v854
    %856 = vdwg.mxu0
    %857 = vmatpush.bf16.msra.mxu0 %v782
    %858 = vmatpush.bf16.msra.mxu0 %v780
    %859 = vmatpush.bf16.msra.mxu0 %v778
    %860 = vmatpush.bf16.msra.mxu0 %v776
    %861 = vmatpush.bf16.msra.mxu0 %v774
    %862 = vmatpush.bf16.msra.mxu0 %v772
    %863 = vmatpush.bf16.msra.mxu0 %v770
    %864 = vmatpush.bf16.msra.mxu0 %v768
    %865 = vmatmul.bf16.gmra.mxu0 %v154
    %v866 = vpop.f32.mrf.mxu0
    %v867 = vadd.f32 %v853, %v866
    %v868 = vpop.f32.mrf.mxu0
    %v869 = vadd.f32 %v855, %v868
    %870 = vdwg.mxu0
    %v875 = vrot.slane %v590, 1
    %v876 = vrot.slane %v618, 1
    %v877 = vrot.slane %v592, 1
    %v878 = vrot.slane %v620, 1
    %v883 = vadd.f32 %v341, %v875
    %v884 = vadd.f32 %v369, %v876
    %v885 = vadd.f32 %v343, %v877
    %v886 = vadd.f32 %v371, %v878
    %v891 = vrot.slane %v839, 2
    %v892 = vrot.slane %v867, 2
    %v893 = vrot.slane %v841, 2
    %v894 = vrot.slane %v869, 2
    %v899 = vadd.f32 %v883, %v891
    %v900 = vadd.f32 %v884, %v892
    %v901 = vadd.f32 %v885, %v893
    %v902 = vadd.f32 %v886, %v894
    %v907 = vrot.slane %v900, 6
    %v908 = vrot.slane %v902, 6
    %v909 = vsel %vm90, %v899, %v907
    %v910 = vsel %vm92, %v899, %v907
    %v911 = vrot.slane %v910, 2
    %v912 = vsel %vm95, %v899, %v907
    %v913 = vrot.slane %v912, 4
    %v914 = vsel %vm90, %v901, %v908
    %v915 = vsel %vm92, %v901, %v908
    %v916 = vrot.slane %v915, 2
    %v917 = vsel %vm95, %v901, %v908
    %v918 = vrot.slane %v917, 4
    %925 = vst [vmem:[#allocation1] ss:$4 sm:$0xff] %v909
    %s926 = scalar_lea.vmem [#allocation1], 1
    %927 = vst [vmem:[%s926] ss:$4 sm:$0xff] %v911
    %s928 = scalar_lea.vmem [#allocation1], 2
    %929 = vst [vmem:[%s928] ss:$4 sm:$0xff] %v913
    %s930 = scalar_lea.vmem [#allocation1], 3
    %931 = vst [vmem:[%s930] ss:$4 sm:$0xff] %v914
    %s932 = scalar_lea.vmem [#allocation1], 32
    %933 = vst [vmem:[%s932] ss:$4 sm:$0xff] %v916
    %s934 = scalar_lea.vmem [#allocation1], 33
    %935 = vst [vmem:[%s934] ss:$4 sm:$0xff] %v918
    %v936 = vld.sshfl [vmem:[#allocation1] sm:$0xff pattern:$0x73625140]
    %v937 = vld.sshfl [vmem:[#allocation1 + $0x8] sm:$0xff pattern:$0x73625140]
    %v938 = vld.sshfl [vmem:[#allocation1 + $0x20] sm:$0xff pattern:$0x73625140]
    %v939 = vld.sshfl [vmem:[#allocation1 + $0x28] sm:$0xff pattern:$0x73625140]
    %vm944 = vcmask 1043456
    %v945 = vsel %vm944, %v938, 0.0
    %v946 = vadd.f32 %v936, %v945
    %v947 = vrot.slane %v946, 4
    %v948 = vadd.f32 %v946, %v947
    %v949 = vrot.slane %v948, 2
    %v950 = vadd.f32 %v948, %v949
    %v951 = vrot.slane %v950, 1
    %v952 = vadd.f32 %v950, %v951
    %v953 = vsel %vm944, %v939, 0.0
    %v954 = vadd.f32 %v937, %v953
    %v955 = vrot.slane %v954, 4
    %v956 = vadd.f32 %v954, %v955
    %v957 = vrot.slane %v956, 2
    %v958 = vadd.f32 %v956, %v957
    %v959 = vrot.slane %v958, 1
    %v960 = vadd.f32 %v958, %v959
    %v961 = vmul.f32 %v909, %v909
    %v962 = vmul.f32 %v911, %v911
    %v963 = vmul.f32 %v913, %v913
    %v964 = vmul.f32 %v914, %v914
    %v965 = vmul.f32 %v916, %v916
    %v966 = vmul.f32 %v918, %v918
    %973 = vst [vmem:[#allocation1] ss:$4 sm:$0xff] %v961
    %s974 = scalar_lea.vmem [#allocation1], 1
    %975 = vst [vmem:[%s974] ss:$4 sm:$0xff] %v962
    %s976 = scalar_lea.vmem [#allocation1], 2
    %977 = vst [vmem:[%s976] ss:$4 sm:$0xff] %v963
    %s978 = scalar_lea.vmem [#allocation1], 3
    %979 = vst [vmem:[%s978] ss:$4 sm:$0xff] %v964
    %s980 = scalar_lea.vmem [#allocation1], 32
    %981 = vst [vmem:[%s980] ss:$4 sm:$0xff] %v965
    %s982 = scalar_lea.vmem [#allocation1], 33
    %983 = vst [vmem:[%s982] ss:$4 sm:$0xff] %v966
    %v984 = vld.sshfl [vmem:[#allocation1] sm:$0xff pattern:$0x73625140]
    %v985 = vld.sshfl [vmem:[#allocation1 + $0x8] sm:$0xff pattern:$0x73625140]
    %v986 = vld.sshfl [vmem:[#allocation1 + $0x20] sm:$0xff pattern:$0x73625140]
    %v987 = vld.sshfl [vmem:[#allocation1 + $0x28] sm:$0xff pattern:$0x73625140]
    %v992 = vsel %vm944, %v986, 0.0
    %v993 = vadd.f32 %v984, %v992
    %v994 = vrot.slane %v993, 4
    %v995 = vadd.f32 %v993, %v994
    %v996 = vrot.slane %v995, 2
    %v997 = vadd.f32 %v995, %v996
    %v998 = vrot.slane %v997, 1
    %v999 = vadd.f32 %v997, %v998
    %v1000 = vsel %vm944, %v987, 0.0
    %v1001 = vadd.f32 %v985, %v1000
    %v1002 = vrot.slane %v1001, 4
    %v1003 = vadd.f32 %v1001, %v1002
    %v1004 = vrot.slane %v1003, 2
    %v1005 = vadd.f32 %v1003, %v1004
    %v1006 = vrot.slane %v1005, 1
    %v1007 = vadd.f32 %v1005, %v1006
    %v1008 = vld [vmem:[%s7] sm:$0xff]
    %v1009 = vld [vmem:[%s7 + $0x8] sm:$0xff]
    %v1010 = vld [vmem:[%s7 + $0x10] sm:$0xff]
    %v1011 = vld [vmem:[%s7 + $0x18] sm:$0xff]
    %v1012 = vld [vmem:[%s7 + $0x20] sm:$0xff]
    %v1013 = vld [vmem:[%s7 + $0x28] sm:$0xff]
    %v1014 = vld [vmem:[%s7 + $0x30] sm:$0xff]
    %v1015 = vld [vmem:[%s7 + $0x38] sm:$0xff]
    %v1016 = vld [vmem:[%s7 + $0x40] sm:$0xff]
    %v1017 = vld [vmem:[%s7 + $0x48] sm:$0xff]
    %v1018 = vld [vmem:[%s7 + $0x50] sm:$0xff]
    %v1019 = vld [vmem:[%s7 + $0x58] sm:$0xff]
    %v1020 = vld [vmem:[%s7 + $0x60] sm:$0xff]
    %v1021 = vld [vmem:[%s7 + $0x68] sm:$0xff]
    %v1022 = vld [vmem:[%s7 + $0x70] sm:$0xff]
    %v1023 = vld [vmem:[%s7 + $0x78] sm:$0xff]
    %v1024 = vld [vmem:[%s7 + $0x80] sm:$0xff]
    %v1025 = vld [vmem:[%s7 + $0x88] sm:$0xff]
    %v1026 = vld [vmem:[%s7 + $0x90] sm:$0xff]
    %v1027 = vld [vmem:[%s7 + $0x98] sm:$0xff]
    %v1028 = vld [vmem:[%s7 + $0xa0] sm:$0xff]
    %v1029 = vld [vmem:[%s7 + $0xa8] sm:$0xff]
    %v1030 = vld [vmem:[%s7 + $0xb0] sm:$0xff]
    %v1031 = vld [vmem:[%s7 + $0xb8] sm:$0xff]
    %v1032 = vld [vmem:[%s7 + $0xc0] sm:$0xff]
    %v1033 = vld [vmem:[%s7 + $0xc8] sm:$0xff]
    %v1034 = vld [vmem:[%s7 + $0xd0] sm:$0xff]
    %v1035 = vld [vmem:[%s7 + $0xd8] sm:$0xff]
    %v1036 = vld [vmem:[%s7 + $0xe0] sm:$0xff]
    %v1037 = vld [vmem:[%s7 + $0xe8] sm:$0xff]
    %v1038 = vld [vmem:[%s7 + $0xf0] sm:$0xff]
    %v1039 = vld [vmem:[%s7 + $0xf8] sm:$0xff]
    %1040 = vmatpush.msra.mxu0 %v1023
    %1041 = vmatpush.msra.mxu0 %v1022
    %1042 = vmatpush.msra.mxu0 %v1021
    %1043 = vmatpush.msra.mxu0 %v1020
    %1044 = vmatpush.msra.mxu0 %v1019
    %1045 = vmatpush.msra.mxu0 %v1018
    %1046 = vmatpush.msra.mxu0 %v1017
    %1047 = vmatpush.msra.mxu0 %v1016
    %1048 = vmatpush.msra.mxu0 %v1015
    %1049 = vmatpush.msra.mxu0 %v1014
    %1050 = vmatpush.msra.mxu0 %v1013
    %1051 = vmatpush.msra.mxu0 %v1012
    %1052 = vmatpush.msra.mxu0 %v1011
    %1053 = vmatpush.msra.mxu0 %v1010
    %1054 = vmatpush.msra.mxu0 %v1009
    %1055 = vmatpush.msra.mxu0 %v1008
    %1056 = vmatmul.f32.gmra.mxu0 %v952
    %v1057 = vpop.f32.mrf.mxu0
    %v1058 = vadd.f32 0.0, %v1057
    %1059 = vdwg.mxu0
    %1060 = vmatpush.msra.mxu0 %v1039
    %1061 = vmatpush.msra.mxu0 %v1038
    %1062 = vmatpush.msra.mxu0 %v1037
    %1063 = vmatpush.msra.mxu0 %v1036
    %1064 = vmatpush.msra.mxu0 %v1035
    %1065 = vmatpush.msra.mxu0 %v1034
    %1066 = vmatpush.msra.mxu0 %v1033
    %1067 = vmatpush.msra.mxu0 %v1032
    %1068 = vmatpush.msra.mxu0 %v1031
    %1069 = vmatpush.msra.mxu0 %v1030
    %1070 = vmatpush.msra.mxu0 %v1029
    %1071 = vmatpush.msra.mxu0 %v1028
    %1072 = vmatpush.msra.mxu0 %v1027
    %1073 = vmatpush.msra.mxu0 %v1026
    %1074 = vmatpush.msra.mxu0 %v1025
    %1075 = vmatpush.msra.mxu0 %v1024
    %1076 = vmatmul.f32.gmra.mxu0 %v960
    %v1077 = vpop.f32.mrf.mxu0
    %v1078 = vadd.f32 %v1058, %v1077
    %1079 = vdwg.mxu0
    %v1080 = vrcp.pop 72.0
    %v1081 = vmul.f32 72.0, %v1080
    %v1082 = vsub.f32 1.0, %v1081
    %v1083 = vmul.f32 %v1080, %v1082
    %v1084 = vadd.f32 %v1080, %v1083
    %vm1085 = vweird.f32 %v1080
    %v1086 = vsel %vm1085, %v1080, %v1084
    %v1087 = vmul.f32 %v1078, %v1086
    %1088 = vmatpush.msra.mxu0 %v1023
    %1089 = vmatpush.msra.mxu0 %v1022
    %1090 = vmatpush.msra.mxu0 %v1021
    %1091 = vmatpush.msra.mxu0 %v1020
    %1092 = vmatpush.msra.mxu0 %v1019
    %1093 = vmatpush.msra.mxu0 %v1018
    %1094 = vmatpush.msra.mxu0 %v1017
    %1095 = vmatpush.msra.mxu0 %v1016
    %1096 = vmatpush.msra.mxu0 %v1015
    %1097 = vmatpush.msra.mxu0 %v1014
    %1098 = vmatpush.msra.mxu0 %v1013
    %1099 = vmatpush.msra.mxu0 %v1012
    %1100 = vmatpush.msra.mxu0 %v1011
    %1101 = vmatpush.msra.mxu0 %v1010
    %1102 = vmatpush.msra.mxu0 %v1009
    %1103 = vmatpush.msra.mxu0 %v1008
    %1104 = vmatmul.f32.gmra.mxu0 %v999
    %v1105 = vpop.f32.mrf.mxu0
    %v1106 = vadd.f32 0.0, %v1105
    %1107 = vdwg.mxu0
    %1108 = vmatpush.msra.mxu0 %v1039
    %1109 = vmatpush.msra.mxu0 %v1038
    %1110 = vmatpush.msra.mxu0 %v1037
    %1111 = vmatpush.msra.mxu0 %v1036
    %1112 = vmatpush.msra.mxu0 %v1035
    %1113 = vmatpush.msra.mxu0 %v1034
    %1114 = vmatpush.msra.mxu0 %v1033
    %1115 = vmatpush.msra.mxu0 %v1032
    %1116 = vmatpush.msra.mxu0 %v1031
    %1117 = vmatpush.msra.mxu0 %v1030
    %1118 = vmatpush.msra.mxu0 %v1029
    %1119 = vmatpush.msra.mxu0 %v1028
    %1120 = vmatpush.msra.mxu0 %v1027
    %1121 = vmatpush.msra.mxu0 %v1026
    %1122 = vmatpush.msra.mxu0 %v1025
    %1123 = vmatpush.msra.mxu0 %v1024
    %1124 = vmatmul.f32.gmra.mxu0 %v1007
    %v1125 = vpop.f32.mrf.mxu0
    %v1126 = vadd.f32 %v1106, %v1125
    %1127 = vdwg.mxu0
    %v1128 = vmul.f32 %v1126, %v1086
    %v1129 = vmul.f32 %v1087, %v1087
    %v1130 = vsub.f32 %v1128, %v1129
    %v1131 = vld [vmem:[%s2] sm:$0x1]
    %v1132 = vadd.f32 %v1130, 1e-05
    %v1133 = vrsqrt.pop %v1132
    %v1134 = vmul.f32 %v1133, %v1132
    %v1135 = vmul.f32 %v1134, %v1133
    %v1136 = vmul.f32 0.5, %v1135
    %v1137 = vsub.f32 1.5, %v1136
    %v1138 = vmul.f32 %v1133, %v1137
    %vm1139 = vweird.f32 %v1132
    %vm1140 = vweird.f32 %v1133
    %vm1141 = vmor %vm1139, %vm1140
    %v1142 = vsel %vm1141, %v1133, %v1138
    %v1143 = vmul.f32 %v1131, %v1142
    %v1144 = vld [vmem:[%s3] sm:$0x1]
    %v1145 = vmul.f32 %v1087, %v1143
    %v1146 = vsub.f32 %v1144, %v1145
    %v1147 = vld [vmem:[%s8] sm:$0xff]
    %v1148 = vld [vmem:[%s8 + $0x8] sm:$0xff]
    %v1149 = vld [vmem:[%s8 + $0x10] sm:$0xff]
    %v1150 = vld [vmem:[%s8 + $0x18] sm:$0xff]
    %v1151 = vld [vmem:[%s8 + $0x20] sm:$0xff]
    %v1152 = vld [vmem:[%s8 + $0x28] sm:$0xff]
    %v1153 = vld [vmem:[%s8 + $0x30] sm:$0xff]
    %v1154 = vld [vmem:[%s8 + $0x38] sm:$0xff]
    %vm1155 = vcmask 261120
    %v1157 = vsel %vm1155, %v1143, 0
    %1159 = vmatpush.msra.mxu0 0.0
    %1160 = vmatpush.msra.mxu0 0.0
    %1161 = vmatpush.msra.mxu0 0.0
    %1162 = vmatpush.msra.mxu0 0.0
    %1163 = vmatpush.msra.mxu0 0.0
    %1164 = vmatpush.msra.mxu0 0.0
    %1165 = vmatpush.msra.mxu0 0.0
    %1166 = vmatpush.msra.mxu0 0.0
    %1167 = vmatpush.msra.mxu0 0.0
    %1168 = vmatpush.msra.mxu0 0.0
    %1169 = vmatpush.msra.mxu0 0.0
    %1170 = vmatpush.msra.mxu0 0.0
    %1171 = vmatpush.msra.mxu0 %v1153
    %1172 = vmatpush.msra.mxu0 %v1151
    %1173 = vmatpush.msra.mxu0 %v1149
    %1174 = vmatpush.msra.mxu0 %v1147
    %1175 = vmatmul.f32.gmra.mxu0 %v1157
    %v1176 = vpop.f32.mrf.mxu0
    %v1177 = vadd.f32 0.0, %v1176
    %1178 = vdwg.mxu0
    %1179 = vmatpush.msra.mxu0 0.0
    %1180 = vmatpush.msra.mxu0 0.0
    %1181 = vmatpush.msra.mxu0 0.0
    %1182 = vmatpush.msra.mxu0 0.0
    %1183 = vmatpush.msra.mxu0 0.0
    %1184 = vmatpush.msra.mxu0 0.0
    %1185 = vmatpush.msra.mxu0 0.0
    %1186 = vmatpush.msra.mxu0 0.0
    %1187 = vmatpush.msra.mxu0 0.0
    %1188 = vmatpush.msra.mxu0 0.0
    %1189 = vmatpush.msra.mxu0 0.0
    %1190 = vmatpush.msra.mxu0 0.0
    %1191 = vmatpush.msra.mxu0 %v1154
    %1192 = vmatpush.msra.mxu0 %v1152
    %1193 = vmatpush.msra.mxu0 %v1150
    %1194 = vmatpush.msra.mxu0 %v1148
    %1195 = vmatmul.f32.gmra.mxu0 %v1157
    %v1196 = vpop.f32.mrf.mxu0
    %v1197 = vadd.f32 0.0, %v1196
    %1198 = vdwg.mxu0
    %v1200 = vsel %vm1155, %v1146, 0
    %1202 = vmatpush.msra.mxu0 0.0
    %1203 = vmatpush.msra.mxu0 0.0
    %1204 = vmatpush.msra.mxu0 0.0
    %1205 = vmatpush.msra.mxu0 0.0
    %1206 = vmatpush.msra.mxu0 0.0
    %1207 = vmatpush.msra.mxu0 0.0
    %1208 = vmatpush.msra.mxu0 0.0
    %1209 = vmatpush.msra.mxu0 0.0
    %1210 = vmatpush.msra.mxu0 0.0
    %1211 = vmatpush.msra.mxu0 0.0
    %1212 = vmatpush.msra.mxu0 0.0
    %1213 = vmatpush.msra.mxu0 0.0
    %1214 = vmatpush.msra.mxu0 %v1153
    %1215 = vmatpush.msra.mxu0 %v1151
    %1216 = vmatpush.msra.mxu0 %v1149
    %1217 = vmatpush.msra.mxu0 %v1147
    %1218 = vmatmul.f32.gmra.mxu0 %v1200
    %v1219 = vpop.f32.mrf.mxu0
    %v1220 = vadd.f32 0.0, %v1219
    %1221 = vdwg.mxu0
    %1222 = vmatpush.msra.mxu0 0.0
    %1223 = vmatpush.msra.mxu0 0.0
    %1224 = vmatpush.msra.mxu0 0.0
    %1225 = vmatpush.msra.mxu0 0.0
    %1226 = vmatpush.msra.mxu0 0.0
    %1227 = vmatpush.msra.mxu0 0.0
    %1228 = vmatpush.msra.mxu0 0.0
    %1229 = vmatpush.msra.mxu0 0.0
    %1230 = vmatpush.msra.mxu0 0.0
    %1231 = vmatpush.msra.mxu0 0.0
    %1232 = vmatpush.msra.mxu0 0.0
    %1233 = vmatpush.msra.mxu0 0.0
    %1234 = vmatpush.msra.mxu0 %v1154
    %1235 = vmatpush.msra.mxu0 %v1152
    %1236 = vmatpush.msra.mxu0 %v1150
    %1237 = vmatpush.msra.mxu0 %v1148
    %1238 = vmatmul.f32.gmra.mxu0 %v1200
    %v1239 = vpop.f32.mrf.mxu0
    %v1240 = vadd.f32 0.0, %v1239
    %1241 = vdwg.mxu0
    %v1242 = vperm.slane %v1177, 0
    %v1243 = vperm.slane %v1197, 0
    %v1246 = vrot.slane %v1243, 6
    %v1247 = vsel %vm90, %v1242, %v1246
    %v1248 = vsel %vm92, %v1242, %v1246
    %v1249 = vrot.slane %v1248, 2
    %v1250 = vsel %vm95, %v1242, %v1246
    %v1251 = vrot.slane %v1250, 4
    %vm1252 = vcmask 1045504
    %v1253 = vsel %vm1252, %v1246, %v1242
    %v1254 = vrot.slane %v1253, 6
    %v1259 = vmul.f32 %v909, %v1247
    %v1260 = vmul.f32 %v911, %v1249
    %v1261 = vmul.f32 %v913, %v1251
    %v1262 = vmul.f32 %v914, %v1254
    %v1263 = vmul.f32 %v916, %v1247
    %v1264 = vmul.f32 %v918, %v1249
    %v1265 = vperm.slane %v1220, 0
    %v1266 = vperm.slane %v1240, 0
    %v1269 = vrot.slane %v1266, 6
    %v1270 = vsel %vm90, %v1265, %v1269
    %v1271 = vsel %vm92, %v1265, %v1269
    %v1272 = vrot.slane %v1271, 2
    %v1273 = vsel %vm95, %v1265, %v1269
    %v1274 = vrot.slane %v1273, 4
    %v1275 = vsel %vm1252, %v1269, %v1265
    %v1276 = vrot.slane %v1275, 6
    %v1281 = vadd.f32 %v1259, %v1270
    %v1282 = vadd.f32 %v1260, %v1272
    %v1283 = vadd.f32 %v1261, %v1274
    %v1284 = vadd.f32 %v1262, %v1276
    %v1285 = vadd.f32 %v1263, %v1270
    %v1286 = vadd.f32 %v1264, %v1272
    %v1287 = vmax.f32 %v1281, 0.0
    %v1288 = vmax.f32 %v1282, 0.0
    %v1289 = vmax.f32 %v1283, 0.0
    %v1290 = vmax.f32 %v1284, 0.0
    %v1291 = vmax.f32 %v1285, 0.0
    %v1292 = vmax.f32 %v1286, 0.0
    %1299 = vst [vmem:[#allocation1] ss:$4 sm:$0xff] %v1287
    %s1300 = scalar_lea.vmem [#allocation1], 1
    %1301 = vst [vmem:[%s1300] ss:$4 sm:$0xff] %v1288
    %s1302 = scalar_lea.vmem [#allocation1], 2
    %1303 = vst [vmem:[%s1302] ss:$4 sm:$0xff] %v1289
    %v1304 = vld.sshfl [vmem:[#allocation1] sm:$0xff pattern:$0x73625140]
    %v1305 = vld.sshfl [vmem:[#allocation1 + $0x8] sm:$0xff pattern:$0x73625140]
    %s1306 = scalar_lea.vmem [#allocation1], 32
    %1307 = vst [vmem:[%s1306] ss:$4 sm:$0xff] %v1290
    %s1308 = scalar_lea.vmem [#allocation1], 33
    %1309 = vst [vmem:[%s1308] ss:$4 sm:$0xff] %v1291
    %s1310 = scalar_lea.vmem [#allocation1], 34
    %1311 = vst [vmem:[%s1310] ss:$4 sm:$0xff] %v1292
    %v1312 = vld.sshfl [vmem:[#allocation1 + $0x20] sm:$0xff pattern:$0x73625140]
    %v1313 = vld.sshfl [vmem:[#allocation1 + $0x28] sm:$0xff pattern:$0x73625140]
    %v1314 = vrot.slane %v1304, 7
    %v1315 = vrot.slane %v1305, 7
    %v1316 = vrot.slane %v1312, 7
    %v1317 = vrot.slane %v1313, 7
    %1322 = vst [vmem:[#allocation2] sm:$0x7e] %v1314
    %1323 = vst [vmem:[#allocation2 + $0x8] sm:$0x7e] %v1315
    %1324 = vst [vmem:[#allocation2 + $0x10] sm:$0x7e] %v1316
    %1325 = vst [vmem:[#allocation2 + $0x18] sm:$0x7e] %v1317
    %v1326 = vld [vmem:[#allocation2] sm:$0xff]
    %v1327 = vld [vmem:[#allocation2 + $0x8] sm:$0xff]
    %v1328 = vld [vmem:[#allocation2 + $0x10] sm:$0xff]
    %v1329 = vld [vmem:[#allocation2 + $0x18] sm:$0xff]
    %v1330 = vpack.c.bf16 %v1327, %v1326
    %v1331 = vpack.c.bf16 %v1329, %v1328
    %v1332 = vld [vmem:[%s4] sm:$0xff]
    %v1333 = vld [vmem:[%s4 + $0x8] sm:$0xff]
    %v1334 = vld [vmem:[%s4 + $0x10] sm:$0xff]
    %v1335 = vld [vmem:[%s4 + $0x18] sm:$0xff]
    %v1336 = vld [vmem:[%s4 + $0x20] sm:$0xff]
    %v1337 = vld [vmem:[%s4 + $0x28] sm:$0xff]
    %v1338 = vld [vmem:[%s4 + $0x30] sm:$0xff]
    %v1339 = vld [vmem:[%s4 + $0x38] sm:$0xff]
    %v1340 = vld [vmem:[%s4 + $0x40] sm:$0xff]
    %v1341 = vld [vmem:[%s4 + $0x48] sm:$0xff]
    %v1342 = vld [vmem:[%s4 + $0x50] sm:$0xff]
    %v1343 = vld [vmem:[%s4 + $0x58] sm:$0xff]
    %v1344 = vld [vmem:[%s4 + $0x60] sm:$0xff]
    %v1345 = vld [vmem:[%s4 + $0x68] sm:$0xff]
    %v1346 = vld [vmem:[%s4 + $0x70] sm:$0xff]
    %v1347 = vld [vmem:[%s4 + $0x78] sm:$0xff]
    %v1348 = vld [vmem:[%s4 + $0x80] sm:$0xff]
    %v1349 = vld [vmem:[%s4 + $0x88] sm:$0xff]
    %v1350 = vld [vmem:[%s4 + $0x90] sm:$0xff]
    %v1351 = vld [vmem:[%s4 + $0x98] sm:$0xff]
    %v1352 = vld [vmem:[%s4 + $0xa0] sm:$0xff]
    %v1353 = vld [vmem:[%s4 + $0xa8] sm:$0xff]
    %v1354 = vld [vmem:[%s4 + $0xb0] sm:$0xff]
    %v1355 = vld [vmem:[%s4 + $0xb8] sm:$0xff]
    %v1356 = vld [vmem:[%s4 + $0xc0] sm:$0xff]
    %v1357 = vld [vmem:[%s4 + $0xc8] sm:$0xff]
    %v1358 = vld [vmem:[%s4 + $0xd0] sm:$0xff]
    %v1359 = vld [vmem:[%s4 + $0xd8] sm:$0xff]
    %v1360 = vld [vmem:[%s4 + $0xe0] sm:$0xff]
    %v1361 = vld [vmem:[%s4 + $0xe8] sm:$0xff]
    %v1362 = vld [vmem:[%s4 + $0xf0] sm:$0xff]
    %v1363 = vld [vmem:[%s4 + $0xf8] sm:$0xff]
    %v1366 = vunpack.c.l.b16 %v1330
    %v1367 = vunpack.c.h.b16 %v1330
    %v1368 = vunpack.c.l.b16 %v1331
    %v1369 = vunpack.c.h.b16 %v1331
    %v1370 = vpack.c.b16 %v1368, %v1366
    %v1371 = vpack.c.b16 %v1369, %v1367
    %v1406 = vunpack.c.l.b16 %v1332
    %v1407 = vunpack.c.h.b16 %v1332
    %v1408 = vunpack.c.l.b16 %v1333
    %v1409 = vunpack.c.h.b16 %v1333
    %v1410 = vunpack.c.l.b16 %v1334
    %v1411 = vunpack.c.h.b16 %v1334
    %v1412 = vunpack.c.l.b16 %v1335
    %v1413 = vunpack.c.h.b16 %v1335
    %v1414 = vunpack.c.l.b16 %v1336
    %v1415 = vunpack.c.h.b16 %v1336
    %v1416 = vunpack.c.l.b16 %v1337
    %v1417 = vunpack.c.h.b16 %v1337
    %v1418 = vunpack.c.l.b16 %v1338
    %v1419 = vunpack.c.h.b16 %v1338
    %v1420 = vunpack.c.l.b16 %v1339
    %v1421 = vunpack.c.h.b16 %v1339
    %v1422 = vunpack.c.l.b16 %v1340
    %v1423 = vunpack.c.h.b16 %v1340
    %v1424 = vunpack.c.l.b16 %v1341
    %v1425 = vunpack.c.h.b16 %v1341
    %v1426 = vunpack.c.l.b16 %v1342
    %v1427 = vunpack.c.h.b16 %v1342
    %v1428 = vunpack.c.l.b16 %v1343
    %v1429 = vunpack.c.h.b16 %v1343
    %v1430 = vunpack.c.l.b16 %v1344
    %v1431 = vunpack.c.h.b16 %v1344
    %v1432 = vunpack.c.l.b16 %v1345
    %v1433 = vunpack.c.h.b16 %v1345
    %v1434 = vunpack.c.l.b16 %v1346
    %v1435 = vunpack.c.h.b16 %v1346
    %v1436 = vunpack.c.l.b16 %v1347
    %v1437 = vunpack.c.h.b16 %v1347
    %v1438 = vunpack.c.l.b16 %v1348
    %v1439 = vunpack.c.h.b16 %v1348
    %v1440 = vunpack.c.l.b16 %v1349
    %v1441 = vunpack.c.h.b16 %v1349
    %v1442 = vunpack.c.l.b16 %v1350
    %v1443 = vunpack.c.h.b16 %v1350
    %v1444 = vunpack.c.l.b16 %v1351
    %v1445 = vunpack.c.h.b16 %v1351
    %v1446 = vunpack.c.l.b16 %v1352
    %v1447 = vunpack.c.h.b16 %v1352
    %v1448 = vunpack.c.l.b16 %v1353
    %v1449 = vunpack.c.h.b16 %v1353
    %v1450 = vunpack.c.l.b16 %v1354
    %v1451 = vunpack.c.h.b16 %v1354
    %v1452 = vunpack.c.l.b16 %v1355
    %v1453 = vunpack.c.h.b16 %v1355
    %v1454 = vunpack.c.l.b16 %v1356
    %v1455 = vunpack.c.h.b16 %v1356
    %v1456 = vunpack.c.l.b16 %v1357
    %v1457 = vunpack.c.h.b16 %v1357
    %v1458 = vunpack.c.l.b16 %v1358
    %v1459 = vunpack.c.h.b16 %v1358
    %v1460 = vunpack.c.l.b16 %v1359
    %v1461 = vunpack.c.h.b16 %v1359
    %v1462 = vunpack.c.l.b16 %v1360
    %v1463 = vunpack.c.h.b16 %v1360
    %v1464 = vunpack.c.l.b16 %v1361
    %v1465 = vunpack.c.h.b16 %v1361
    %v1466 = vunpack.c.l.b16 %v1362
    %v1467 = vunpack.c.h.b16 %v1362
    %v1468 = vunpack.c.l.b16 %v1363
    %v1469 = vunpack.c.h.b16 %v1363
    %v1470 = vpack.c.b16 %v1408, %v1406
    %v1471 = vpack.c.b16 %v1409, %v1407
    %v1472 = vpack.c.b16 %v1412, %v1410
    %v1473 = vpack.c.b16 %v1413, %v1411
    %v1474 = vpack.c.b16 %v1416, %v1414
    %v1475 = vpack.c.b16 %v1417, %v1415
    %v1476 = vpack.c.b16 %v1420, %v1418
    %v1477 = vpack.c.b16 %v1421, %v1419
    %v1478 = vpack.c.b16 %v1424, %v1422
    %v1479 = vpack.c.b16 %v1425, %v1423
    %v1480 = vpack.c.b16 %v1428, %v1426
    %v1481 = vpack.c.b16 %v1429, %v1427
    %v1482 = vpack.c.b16 %v1432, %v1430
    %v1483 = vpack.c.b16 %v1433, %v1431
    %v1484 = vpack.c.b16 %v1436, %v1434
    %v1485 = vpack.c.b16 %v1437, %v1435
    %v1486 = vpack.c.b16 %v1440, %v1438
    %v1487 = vpack.c.b16 %v1441, %v1439
    %v1488 = vpack.c.b16 %v1444, %v1442
    %v1489 = vpack.c.b16 %v1445, %v1443
    %v1490 = vpack.c.b16 %v1448, %v1446
    %v1491 = vpack.c.b16 %v1449, %v1447
    %v1492 = vpack.c.b16 %v1452, %v1450
    %v1493 = vpack.c.b16 %v1453, %v1451
    %v1494 = vpack.c.b16 %v1456, %v1454
    %v1495 = vpack.c.b16 %v1457, %v1455
    %v1496 = vpack.c.b16 %v1460, %v1458
    %v1497 = vpack.c.b16 %v1461, %v1459
    %v1498 = vpack.c.b16 %v1464, %v1462
    %v1499 = vpack.c.b16 %v1465, %v1463
    %v1500 = vpack.c.b16 %v1468, %v1466
    %v1501 = vpack.c.b16 %v1469, %v1467
    %1534 = vmatpush.bf16.msra.mxu0 %v1484
    %1535 = vmatpush.bf16.msra.mxu0 %v1482
    %1536 = vmatpush.bf16.msra.mxu0 %v1480
    %1537 = vmatpush.bf16.msra.mxu0 %v1478
    %1538 = vmatpush.bf16.msra.mxu0 %v1476
    %1539 = vmatpush.bf16.msra.mxu0 %v1474
    %1540 = vmatpush.bf16.msra.mxu0 %v1472
    %1541 = vmatpush.bf16.msra.mxu0 %v1470
    %1542 = vmatmul.bf16.gmra.mxu0 %v1370
    %v1543 = vpop.f32.mrf.mxu0
    %v1544 = vadd.f32 0.0, %v1543
    %v1545 = vpop.f32.mrf.mxu0
    %v1546 = vadd.f32 0.0, %v1545
    %1547 = vdwg.mxu0
    %1548 = vmatpush.bf16.msra.mxu0 %v1500
    %1549 = vmatpush.bf16.msra.mxu0 %v1498
    %1550 = vmatpush.bf16.msra.mxu0 %v1496
    %1551 = vmatpush.bf16.msra.mxu0 %v1494
    %1552 = vmatpush.bf16.msra.mxu0 %v1492
    %1553 = vmatpush.bf16.msra.mxu0 %v1490
    %1554 = vmatpush.bf16.msra.mxu0 %v1488
    %1555 = vmatpush.bf16.msra.mxu0 %v1486
    %1556 = vmatmul.bf16.gmra.mxu0 %v1371
    %v1557 = vpop.f32.mrf.mxu0
    %v1558 = vadd.f32 %v1544, %v1557
    %v1559 = vpop.f32.mrf.mxu0
    %v1560 = vadd.f32 %v1546, %v1559
    %1561 = vdwg.mxu0
    %1562 = vmatpush.bf16.msra.mxu0 %v1485
    %1563 = vmatpush.bf16.msra.mxu0 %v1483
    %1564 = vmatpush.bf16.msra.mxu0 %v1481
    %1565 = vmatpush.bf16.msra.mxu0 %v1479
    %1566 = vmatpush.bf16.msra.mxu0 %v1477
    %1567 = vmatpush.bf16.msra.mxu0 %v1475
    %1568 = vmatpush.bf16.msra.mxu0 %v1473
    %1569 = vmatpush.bf16.msra.mxu0 %v1471
    %1570 = vmatmul.bf16.gmra.mxu0 %v1370
    %v1571 = vpop.f32.mrf.mxu0
    %v1572 = vadd.f32 0.0, %v1571
    %v1573 = vpop.f32.mrf.mxu0
    %v1574 = vadd.f32 0.0, %v1573
    %1575 = vdwg.mxu0
    %1576 = vmatpush.bf16.msra.mxu0 %v1501
    %1577 = vmatpush.bf16.msra.mxu0 %v1499
    %1578 = vmatpush.bf16.msra.mxu0 %v1497
    %1579 = vmatpush.bf16.msra.mxu0 %v1495
    %1580 = vmatpush.bf16.msra.mxu0 %v1493
    %1581 = vmatpush.bf16.msra.mxu0 %v1491
    %1582 = vmatpush.bf16.msra.mxu0 %v1489
    %1583 = vmatpush.bf16.msra.mxu0 %v1487
    %1584 = vmatmul.bf16.gmra.mxu0 %v1371
    %v1585 = vpop.f32.mrf.mxu0
    %v1586 = vadd.f32 %v1572, %v1585
    %v1587 = vpop.f32.mrf.mxu0
    %v1588 = vadd.f32 %v1574, %v1587
    %1589 = vdwg.mxu0
    %s1590 = scalar_lea.vmem %s4, 256
    %v1591 = vld [vmem:[%s1590] sm:$0xff]
    %v1592 = vld [vmem:[%s1590 + $0x8] sm:$0xff]
    %v1593 = vld [vmem:[%s1590 + $0x10] sm:$0xff]
    %v1594 = vld [vmem:[%s1590 + $0x18] sm:$0xff]
    %v1595 = vld [vmem:[%s1590 + $0x20] sm:$0xff]
    %v1596 = vld [vmem:[%s1590 + $0x28] sm:$0xff]
    %v1597 = vld [vmem:[%s1590 + $0x30] sm:$0xff]
    %v1598 = vld [vmem:[%s1590 + $0x38] sm:$0xff]
    %v1599 = vld [vmem:[%s1590 + $0x40] sm:$0xff]
    %v1600 = vld [vmem:[%s1590 + $0x48] sm:$0xff]
    %v1601 = vld [vmem:[%s1590 + $0x50] sm:$0xff]
    %v1602 = vld [vmem:[%s1590 + $0x58] sm:$0xff]
    %v1603 = vld [vmem:[%s1590 + $0x60] sm:$0xff]
    %v1604 = vld [vmem:[%s1590 + $0x68] sm:$0xff]
    %v1605 = vld [vmem:[%s1590 + $0x70] sm:$0xff]
    %v1606 = vld [vmem:[%s1590 + $0x78] sm:$0xff]
    %v1607 = vld [vmem:[%s1590 + $0x80] sm:$0xff]
    %v1608 = vld [vmem:[%s1590 + $0x88] sm:$0xff]
    %v1609 = vld [vmem:[%s1590 + $0x90] sm:$0xff]
    %v1610 = vld [vmem:[%s1590 + $0x98] sm:$0xff]
    %v1611 = vld [vmem:[%s1590 + $0xa0] sm:$0xff]
    %v1612 = vld [vmem:[%s1590 + $0xa8] sm:$0xff]
    %v1613 = vld [vmem:[%s1590 + $0xb0] sm:$0xff]
    %v1614 = vld [vmem:[%s1590 + $0xb8] sm:$0xff]
    %v1615 = vld [vmem:[%s1590 + $0xc0] sm:$0xff]
    %v1616 = vld [vmem:[%s1590 + $0xc8] sm:$0xff]
    %v1617 = vld [vmem:[%s1590 + $0xd0] sm:$0xff]
    %v1618 = vld [vmem:[%s1590 + $0xd8] sm:$0xff]
    %v1619 = vld [vmem:[%s1590 + $0xe0] sm:$0xff]
    %v1620 = vld [vmem:[%s1590 + $0xe8] sm:$0xff]
    %v1621 = vld [vmem:[%s1590 + $0xf0] sm:$0xff]
    %v1622 = vld [vmem:[%s1590 + $0xf8] sm:$0xff]
    %v1655 = vunpack.c.l.b16 %v1591
    %v1656 = vunpack.c.h.b16 %v1591
    %v1657 = vunpack.c.l.b16 %v1592
    %v1658 = vunpack.c.h.b16 %v1592
    %v1659 = vunpack.c.l.b16 %v1593
    %v1660 = vunpack.c.h.b16 %v1593
    %v1661 = vunpack.c.l.b16 %v1594
    %v1662 = vunpack.c.h.b16 %v1594
    %v1663 = vunpack.c.l.b16 %v1595
    %v1664 = vunpack.c.h.b16 %v1595
    %v1665 = vunpack.c.l.b16 %v1596
    %v1666 = vunpack.c.h.b16 %v1596
    %v1667 = vunpack.c.l.b16 %v1597
    %v1668 = vunpack.c.h.b16 %v1597
    %v1669 = vunpack.c.l.b16 %v1598
    %v1670 = vunpack.c.h.b16 %v1598
    %v1671 = vunpack.c.l.b16 %v1599
    %v1672 = vunpack.c.h.b16 %v1599
    %v1673 = vunpack.c.l.b16 %v1600
    %v1674 = vunpack.c.h.b16 %v1600
    %v1675 = vunpack.c.l.b16 %v1601
    %v1676 = vunpack.c.h.b16 %v1601
    %v1677 = vunpack.c.l.b16 %v1602
    %v1678 = vunpack.c.h.b16 %v1602
    %v1679 = vunpack.c.l.b16 %v1603
    %v1680 = vunpack.c.h.b16 %v1603
    %v1681 = vunpack.c.l.b16 %v1604
    %v1682 = vunpack.c.h.b16 %v1604
    %v1683 = vunpack.c.l.b16 %v1605
    %v1684 = vunpack.c.h.b16 %v1605
    %v1685 = vunpack.c.l.b16 %v1606
    %v1686 = vunpack.c.h.b16 %v1606
    %v1687 = vunpack.c.l.b16 %v1607
    %v1688 = vunpack.c.h.b16 %v1607
    %v1689 = vunpack.c.l.b16 %v1608
    %v1690 = vunpack.c.h.b16 %v1608
    %v1691 = vunpack.c.l.b16 %v1609
    %v1692 = vunpack.c.h.b16 %v1609
    %v1693 = vunpack.c.l.b16 %v1610
    %v1694 = vunpack.c.h.b16 %v1610
    %v1695 = vunpack.c.l.b16 %v1611
    %v1696 = vunpack.c.h.b16 %v1611
    %v1697 = vunpack.c.l.b16 %v1612
    %v1698 = vunpack.c.h.b16 %v1612
    %v1699 = vunpack.c.l.b16 %v1613
    %v1700 = vunpack.c.h.b16 %v1613
    %v1701 = vunpack.c.l.b16 %v1614
    %v1702 = vunpack.c.h.b16 %v1614
    %v1703 = vunpack.c.l.b16 %v1615
    %v1704 = vunpack.c.h.b16 %v1615
    %v1705 = vunpack.c.l.b16 %v1616
    %v1706 = vunpack.c.h.b16 %v1616
    %v1707 = vunpack.c.l.b16 %v1617
    %v1708 = vunpack.c.h.b16 %v1617
    %v1709 = vunpack.c.l.b16 %v1618
    %v1710 = vunpack.c.h.b16 %v1618
    %v1711 = vunpack.c.l.b16 %v1619
    %v1712 = vunpack.c.h.b16 %v1619
    %v1713 = vunpack.c.l.b16 %v1620
    %v1714 = vunpack.c.h.b16 %v1620
    %v1715 = vunpack.c.l.b16 %v1621
    %v1716 = vunpack.c.h.b16 %v1621
    %v1717 = vunpack.c.l.b16 %v1622
    %v1718 = vunpack.c.h.b16 %v1622
    %v1719 = vpack.c.b16 %v1657, %v1655
    %v1720 = vpack.c.b16 %v1658, %v1656
    %v1721 = vpack.c.b16 %v1661, %v1659
    %v1722 = vpack.c.b16 %v1662, %v1660
    %v1723 = vpack.c.b16 %v1665, %v1663
    %v1724 = vpack.c.b16 %v1666, %v1664
    %v1725 = vpack.c.b16 %v1669, %v1667
    %v1726 = vpack.c.b16 %v1670, %v1668
    %v1727 = vpack.c.b16 %v1673, %v1671
    %v1728 = vpack.c.b16 %v1674, %v1672
    %v1729 = vpack.c.b16 %v1677, %v1675
    %v1730 = vpack.c.b16 %v1678, %v1676
    %v1731 = vpack.c.b16 %v1681, %v1679
    %v1732 = vpack.c.b16 %v1682, %v1680
    %v1733 = vpack.c.b16 %v1685, %v1683
    %v1734 = vpack.c.b16 %v1686, %v1684
    %v1735 = vpack.c.b16 %v1689, %v1687
    %v1736 = vpack.c.b16 %v1690, %v1688
    %v1737 = vpack.c.b16 %v1693, %v1691
    %v1738 = vpack.c.b16 %v1694, %v1692
    %v1739 = vpack.c.b16 %v1697, %v1695
    %v1740 = vpack.c.b16 %v1698, %v1696
    %v1741 = vpack.c.b16 %v1701, %v1699
    %v1742 = vpack.c.b16 %v1702, %v1700
    %v1743 = vpack.c.b16 %v1705, %v1703
    %v1744 = vpack.c.b16 %v1706, %v1704
    %v1745 = vpack.c.b16 %v1709, %v1707
    %v1746 = vpack.c.b16 %v1710, %v1708
    %v1747 = vpack.c.b16 %v1713, %v1711
    %v1748 = vpack.c.b16 %v1714, %v1712
    %v1749 = vpack.c.b16 %v1717, %v1715
    %v1750 = vpack.c.b16 %v1718, %v1716
    %1783 = vmatpush.bf16.msra.mxu0 %v1733
    %1784 = vmatpush.bf16.msra.mxu0 %v1731
    %1785 = vmatpush.bf16.msra.mxu0 %v1729
    %1786 = vmatpush.bf16.msra.mxu0 %v1727
    %1787 = vmatpush.bf16.msra.mxu0 %v1725
    %1788 = vmatpush.bf16.msra.mxu0 %v1723
    %1789 = vmatpush.bf16.msra.mxu0 %v1721
    %1790 = vmatpush.bf16.msra.mxu0 %v1719
    %1791 = vmatmul.bf16.gmra.mxu0 %v1370
    %v1792 = vpop.f32.mrf.mxu0
    %v1793 = vadd.f32 0.0, %v1792
    %v1794 = vpop.f32.mrf.mxu0
    %v1795 = vadd.f32 0.0, %v1794
    %1796 = vdwg.mxu0
    %1797 = vmatpush.bf16.msra.mxu0 %v1749
    %1798 = vmatpush.bf16.msra.mxu0 %v1747
    %1799 = vmatpush.bf16.msra.mxu0 %v1745
    %1800 = vmatpush.bf16.msra.mxu0 %v1743
    %1801 = vmatpush.bf16.msra.mxu0 %v1741
    %1802 = vmatpush.bf16.msra.mxu0 %v1739
    %1803 = vmatpush.bf16.msra.mxu0 %v1737
    %1804 = vmatpush.bf16.msra.mxu0 %v1735
    %1805 = vmatmul.bf16.gmra.mxu0 %v1371
    %v1806 = vpop.f32.mrf.mxu0
    %v1807 = vadd.f32 %v1793, %v1806
    %v1808 = vpop.f32.mrf.mxu0
    %v1809 = vadd.f32 %v1795, %v1808
    %1810 = vdwg.mxu0
    %1811 = vmatpush.bf16.msra.mxu0 %v1734
    %1812 = vmatpush.bf16.msra.mxu0 %v1732
    %1813 = vmatpush.bf16.msra.mxu0 %v1730
    %1814 = vmatpush.bf16.msra.mxu0 %v1728
    %1815 = vmatpush.bf16.msra.mxu0 %v1726
    %1816 = vmatpush.bf16.msra.mxu0 %v1724
    %1817 = vmatpush.bf16.msra.mxu0 %v1722
    %1818 = vmatpush.bf16.msra.mxu0 %v1720
    %1819 = vmatmul.bf16.gmra.mxu0 %v1370
    %v1820 = vpop.f32.mrf.mxu0
    %v1821 = vadd.f32 0.0, %v1820
    %v1822 = vpop.f32.mrf.mxu0
    %v1823 = vadd.f32 0.0, %v1822
    %1824 = vdwg.mxu0
    %1825 = vmatpush.bf16.msra.mxu0 %v1750
    %1826 = vmatpush.bf16.msra.mxu0 %v1748
    %1827 = vmatpush.bf16.msra.mxu0 %v1746
    %1828 = vmatpush.bf16.msra.mxu0 %v1744
    %1829 = vmatpush.bf16.msra.mxu0 %v1742
    %1830 = vmatpush.bf16.msra.mxu0 %v1740
    %1831 = vmatpush.bf16.msra.mxu0 %v1738
    %1832 = vmatpush.bf16.msra.mxu0 %v1736
    %1833 = vmatmul.bf16.gmra.mxu0 %v1371
    %v1834 = vpop.f32.mrf.mxu0
    %v1835 = vadd.f32 %v1821, %v1834
    %v1836 = vpop.f32.mrf.mxu0
    %v1837 = vadd.f32 %v1823, %v1836
    %1838 = vdwg.mxu0
    %s1839 = scalar_lea.vmem %s4, 512
    %v1840 = vld [vmem:[%s1839] sm:$0xff]
    %v1841 = vld [vmem:[%s1839 + $0x8] sm:$0xff]
    %v1842 = vld [vmem:[%s1839 + $0x10] sm:$0xff]
    %v1843 = vld [vmem:[%s1839 + $0x18] sm:$0xff]
    %v1844 = vld [vmem:[%s1839 + $0x20] sm:$0xff]
    %v1845 = vld [vmem:[%s1839 + $0x28] sm:$0xff]
    %v1846 = vld [vmem:[%s1839 + $0x30] sm:$0xff]
    %v1847 = vld [vmem:[%s1839 + $0x38] sm:$0xff]
    %v1848 = vld [vmem:[%s1839 + $0x40] sm:$0xff]
    %v1849 = vld [vmem:[%s1839 + $0x48] sm:$0xff]
    %v1850 = vld [vmem:[%s1839 + $0x50] sm:$0xff]
    %v1851 = vld [vmem:[%s1839 + $0x58] sm:$0xff]
    %v1852 = vld [vmem:[%s1839 + $0x60] sm:$0xff]
    %v1853 = vld [vmem:[%s1839 + $0x68] sm:$0xff]
    %v1854 = vld [vmem:[%s1839 + $0x70] sm:$0xff]
    %v1855 = vld [vmem:[%s1839 + $0x78] sm:$0xff]
    %v1856 = vld [vmem:[%s1839 + $0x80] sm:$0xff]
    %v1857 = vld [vmem:[%s1839 + $0x88] sm:$0xff]
    %v1858 = vld [vmem:[%s1839 + $0x90] sm:$0xff]
    %v1859 = vld [vmem:[%s1839 + $0x98] sm:$0xff]
    %v1860 = vld [vmem:[%s1839 + $0xa0] sm:$0xff]
    %v1861 = vld [vmem:[%s1839 + $0xa8] sm:$0xff]
    %v1862 = vld [vmem:[%s1839 + $0xb0] sm:$0xff]
    %v1863 = vld [vmem:[%s1839 + $0xb8] sm:$0xff]
    %v1864 = vld [vmem:[%s1839 + $0xc0] sm:$0xff]
    %v1865 = vld [vmem:[%s1839 + $0xc8] sm:$0xff]
    %v1866 = vld [vmem:[%s1839 + $0xd0] sm:$0xff]
    %v1867 = vld [vmem:[%s1839 + $0xd8] sm:$0xff]
    %v1868 = vld [vmem:[%s1839 + $0xe0] sm:$0xff]
    %v1869 = vld [vmem:[%s1839 + $0xe8] sm:$0xff]
    %v1870 = vld [vmem:[%s1839 + $0xf0] sm:$0xff]
    %v1871 = vld [vmem:[%s1839 + $0xf8] sm:$0xff]
    %v1904 = vunpack.c.l.b16 %v1840
    %v1905 = vunpack.c.h.b16 %v1840
    %v1906 = vunpack.c.l.b16 %v1841
    %v1907 = vunpack.c.h.b16 %v1841
    %v1908 = vunpack.c.l.b16 %v1842
    %v1909 = vunpack.c.h.b16 %v1842
    %v1910 = vunpack.c.l.b16 %v1843
    %v1911 = vunpack.c.h.b16 %v1843
    %v1912 = vunpack.c.l.b16 %v1844
    %v1913 = vunpack.c.h.b16 %v1844
    %v1914 = vunpack.c.l.b16 %v1845
    %v1915 = vunpack.c.h.b16 %v1845
    %v1916 = vunpack.c.l.b16 %v1846
    %v1917 = vunpack.c.h.b16 %v1846
    %v1918 = vunpack.c.l.b16 %v1847
    %v1919 = vunpack.c.h.b16 %v1847
    %v1920 = vunpack.c.l.b16 %v1848
    %v1921 = vunpack.c.h.b16 %v1848
    %v1922 = vunpack.c.l.b16 %v1849
    %v1923 = vunpack.c.h.b16 %v1849
    %v1924 = vunpack.c.l.b16 %v1850
    %v1925 = vunpack.c.h.b16 %v1850
    %v1926 = vunpack.c.l.b16 %v1851
    %v1927 = vunpack.c.h.b16 %v1851
    %v1928 = vunpack.c.l.b16 %v1852
    %v1929 = vunpack.c.h.b16 %v1852
    %v1930 = vunpack.c.l.b16 %v1853
    %v1931 = vunpack.c.h.b16 %v1853
    %v1932 = vunpack.c.l.b16 %v1854
    %v1933 = vunpack.c.h.b16 %v1854
    %v1934 = vunpack.c.l.b16 %v1855
    %v1935 = vunpack.c.h.b16 %v1855
    %v1936 = vunpack.c.l.b16 %v1856
    %v1937 = vunpack.c.h.b16 %v1856
    %v1938 = vunpack.c.l.b16 %v1857
    %v1939 = vunpack.c.h.b16 %v1857
    %v1940 = vunpack.c.l.b16 %v1858
    %v1941 = vunpack.c.h.b16 %v1858
    %v1942 = vunpack.c.l.b16 %v1859
    %v1943 = vunpack.c.h.b16 %v1859
    %v1944 = vunpack.c.l.b16 %v1860
    %v1945 = vunpack.c.h.b16 %v1860
    %v1946 = vunpack.c.l.b16 %v1861
    %v1947 = vunpack.c.h.b16 %v1861
    %v1948 = vunpack.c.l.b16 %v1862
    %v1949 = vunpack.c.h.b16 %v1862
    %v1950 = vunpack.c.l.b16 %v1863
    %v1951 = vunpack.c.h.b16 %v1863
    %v1952 = vunpack.c.l.b16 %v1864
    %v1953 = vunpack.c.h.b16 %v1864
    %v1954 = vunpack.c.l.b16 %v1865
    %v1955 = vunpack.c.h.b16 %v1865
    %v1956 = vunpack.c.l.b16 %v1866
    %v1957 = vunpack.c.h.b16 %v1866
    %v1958 = vunpack.c.l.b16 %v1867
    %v1959 = vunpack.c.h.b16 %v1867
    %v1960 = vunpack.c.l.b16 %v1868
    %v1961 = vunpack.c.h.b16 %v1868
    %v1962 = vunpack.c.l.b16 %v1869
    %v1963 = vunpack.c.h.b16 %v1869
    %v1964 = vunpack.c.l.b16 %v1870
    %v1965 = vunpack.c.h.b16 %v1870
    %v1966 = vunpack.c.l.b16 %v1871
    %v1967 = vunpack.c.h.b16 %v1871
    %v1968 = vpack.c.b16 %v1906, %v1904
    %v1969 = vpack.c.b16 %v1907, %v1905
    %v1970 = vpack.c.b16 %v1910, %v1908
    %v1971 = vpack.c.b16 %v1911, %v1909
    %v1972 = vpack.c.b16 %v1914, %v1912
    %v1973 = vpack.c.b16 %v1915, %v1913
    %v1974 = vpack.c.b16 %v1918, %v1916
    %v1975 = vpack.c.b16 %v1919, %v1917
    %v1976 = vpack.c.b16 %v1922, %v1920
    %v1977 = vpack.c.b16 %v1923, %v1921
    %v1978 = vpack.c.b16 %v1926, %v1924
    %v1979 = vpack.c.b16 %v1927, %v1925
    %v1980 = vpack.c.b16 %v1930, %v1928
    %v1981 = vpack.c.b16 %v1931, %v1929
    %v1982 = vpack.c.b16 %v1934, %v1932
    %v1983 = vpack.c.b16 %v1935, %v1933
    %v1984 = vpack.c.b16 %v1938, %v1936
    %v1985 = vpack.c.b16 %v1939, %v1937
    %v1986 = vpack.c.b16 %v1942, %v1940
    %v1987 = vpack.c.b16 %v1943, %v1941
    %v1988 = vpack.c.b16 %v1946, %v1944
    %v1989 = vpack.c.b16 %v1947, %v1945
    %v1990 = vpack.c.b16 %v1950, %v1948
    %v1991 = vpack.c.b16 %v1951, %v1949
    %v1992 = vpack.c.b16 %v1954, %v1952
    %v1993 = vpack.c.b16 %v1955, %v1953
    %v1994 = vpack.c.b16 %v1958, %v1956
    %v1995 = vpack.c.b16 %v1959, %v1957
    %v1996 = vpack.c.b16 %v1962, %v1960
    %v1997 = vpack.c.b16 %v1963, %v1961
    %v1998 = vpack.c.b16 %v1966, %v1964
    %v1999 = vpack.c.b16 %v1967, %v1965
    %2032 = vmatpush.bf16.msra.mxu0 %v1982
    %2033 = vmatpush.bf16.msra.mxu0 %v1980
    %2034 = vmatpush.bf16.msra.mxu0 %v1978
    %2035 = vmatpush.bf16.msra.mxu0 %v1976
    %2036 = vmatpush.bf16.msra.mxu0 %v1974
    %2037 = vmatpush.bf16.msra.mxu0 %v1972
    %2038 = vmatpush.bf16.msra.mxu0 %v1970
    %2039 = vmatpush.bf16.msra.mxu0 %v1968
    %2040 = vmatmul.bf16.gmra.mxu0 %v1370
    %v2041 = vpop.f32.mrf.mxu0
    %v2042 = vadd.f32 0.0, %v2041
    %v2043 = vpop.f32.mrf.mxu0
    %v2044 = vadd.f32 0.0, %v2043
    %2045 = vdwg.mxu0
    %2046 = vmatpush.bf16.msra.mxu0 %v1998
    %2047 = vmatpush.bf16.msra.mxu0 %v1996
    %2048 = vmatpush.bf16.msra.mxu0 %v1994
    %2049 = vmatpush.bf16.msra.mxu0 %v1992
    %2050 = vmatpush.bf16.msra.mxu0 %v1990
    %2051 = vmatpush.bf16.msra.mxu0 %v1988
    %2052 = vmatpush.bf16.msra.mxu0 %v1986
    %2053 = vmatpush.bf16.msra.mxu0 %v1984
    %2054 = vmatmul.bf16.gmra.mxu0 %v1371
    %v2055 = vpop.f32.mrf.mxu0
    %v2056 = vadd.f32 %v2042, %v2055
    %v2057 = vpop.f32.mrf.mxu0
    %v2058 = vadd.f32 %v2044, %v2057
    %2059 = vdwg.mxu0
    %2060 = vmatpush.bf16.msra.mxu0 %v1983
    %2061 = vmatpush.bf16.msra.mxu0 %v1981
    %2062 = vmatpush.bf16.msra.mxu0 %v1979
    %2063 = vmatpush.bf16.msra.mxu0 %v1977
    %2064 = vmatpush.bf16.msra.mxu0 %v1975
    %2065 = vmatpush.bf16.msra.mxu0 %v1973
    %2066 = vmatpush.bf16.msra.mxu0 %v1971
    %2067 = vmatpush.bf16.msra.mxu0 %v1969
    %2068 = vmatmul.bf16.gmra.mxu0 %v1370
    %v2069 = vpop.f32.mrf.mxu0
    %v2070 = vadd.f32 0.0, %v2069
    %v2071 = vpop.f32.mrf.mxu0
    %v2072 = vadd.f32 0.0, %v2071
    %2073 = vdwg.mxu0
    %2074 = vmatpush.bf16.msra.mxu0 %v1999
    %2075 = vmatpush.bf16.msra.mxu0 %v1997
    %2076 = vmatpush.bf16.msra.mxu0 %v1995
    %2077 = vmatpush.bf16.msra.mxu0 %v1993
    %2078 = vmatpush.bf16.msra.mxu0 %v1991
    %2079 = vmatpush.bf16.msra.mxu0 %v1989
    %2080 = vmatpush.bf16.msra.mxu0 %v1987
    %2081 = vmatpush.bf16.msra.mxu0 %v1985
    %2082 = vmatmul.bf16.gmra.mxu0 %v1371
    %v2083 = vpop.f32.mrf.mxu0
    %v2084 = vadd.f32 %v2070, %v2083
    %v2085 = vpop.f32.mrf.mxu0
    %v2086 = vadd.f32 %v2072, %v2085
    %2087 = vdwg.mxu0
    %v2092 = vrot.slane %v1807, 1
    %v2093 = vrot.slane %v1835, 1
    %v2094 = vrot.slane %v1809, 1
    %v2095 = vrot.slane %v1837, 1
    %v2100 = vadd.f32 %v1558, %v2092
    %v2101 = vadd.f32 %v1586, %v2093
    %v2102 = vadd.f32 %v1560, %v2094
    %v2103 = vadd.f32 %v1588, %v2095
    %v2108 = vrot.slane %v2056, 2
    %v2109 = vrot.slane %v2084, 2
    %v2110 = vrot.slane %v2058, 2
    %v2111 = vrot.slane %v2086, 2
    %v2116 = vadd.f32 %v2100, %v2108
    %v2117 = vadd.f32 %v2101, %v2109
    %v2118 = vadd.f32 %v2102, %v2110
    %v2119 = vadd.f32 %v2103, %v2111
    %v2124 = vrot.slane %v2117, 6
    %v2125 = vrot.slane %v2119, 6
    %v2126 = vsel %vm90, %v2116, %v2124
    %v2127 = vsel %vm92, %v2116, %v2124
    %v2128 = vrot.slane %v2127, 2
    %v2129 = vsel %vm95, %v2116, %v2124
    %v2130 = vrot.slane %v2129, 4
    %v2131 = vsel %vm90, %v2118, %v2125
    %v2132 = vsel %vm92, %v2118, %v2125
    %v2133 = vrot.slane %v2132, 2
    %v2134 = vsel %vm95, %v2118, %v2125
    %v2135 = vrot.slane %v2134, 4
    %2142 = vst [vmem:[#allocation1] ss:$4 sm:$0xff] %v2126
    %s2143 = scalar_lea.vmem [#allocation1], 1
    %2144 = vst [vmem:[%s2143] ss:$4 sm:$0xff] %v2128
    %s2145 = scalar_lea.vmem [#allocation1], 2
    %2146 = vst [vmem:[%s2145] ss:$4 sm:$0xff] %v2130
    %s2147 = scalar_lea.vmem [#allocation1], 3
    %2148 = vst [vmem:[%s2147] ss:$4 sm:$0xff] %v2131
    %s2149 = scalar_lea.vmem [#allocation1], 32
    %2150 = vst [vmem:[%s2149] ss:$4 sm:$0xff] %v2133
    %s2151 = scalar_lea.vmem [#allocation1], 33
    %2152 = vst [vmem:[%s2151] ss:$4 sm:$0xff] %v2135
    %v2153 = vld.sshfl [vmem:[#allocation1] sm:$0xff pattern:$0x73625140]
    %v2154 = vld.sshfl [vmem:[#allocation1 + $0x8] sm:$0xff pattern:$0x73625140]
    %v2155 = vld.sshfl [vmem:[#allocation1 + $0x20] sm:$0xff pattern:$0x73625140]
    %v2156 = vld.sshfl [vmem:[#allocation1 + $0x28] sm:$0xff pattern:$0x73625140]
    %v2161 = vsel %vm944, %v2155, 0.0
    %v2162 = vadd.f32 %v2153, %v2161
    %v2163 = vrot.slane %v2162, 4
    %v2164 = vadd.f32 %v2162, %v2163
    %v2165 = vrot.slane %v2164, 2
    %v2166 = vadd.f32 %v2164, %v2165
    %v2167 = vrot.slane %v2166, 1
    %v2168 = vadd.f32 %v2166, %v2167
    %v2169 = vsel %vm944, %v2156, 0.0
    %v2170 = vadd.f32 %v2154, %v2169
    %v2171 = vrot.slane %v2170, 4
    %v2172 = vadd.f32 %v2170, %v2171
    %v2173 = vrot.slane %v2172, 2
    %v2174 = vadd.f32 %v2172, %v2173
    %v2175 = vrot.slane %v2174, 1
    %v2176 = vadd.f32 %v2174, %v2175
    %v2177 = vmul.f32 %v2126, %v2126
    %v2178 = vmul.f32 %v2128, %v2128
    %v2179 = vmul.f32 %v2130, %v2130
    %v2180 = vmul.f32 %v2131, %v2131
    %v2181 = vmul.f32 %v2133, %v2133
    %v2182 = vmul.f32 %v2135, %v2135
    %2189 = vst [vmem:[#allocation1] ss:$4 sm:$0xff] %v2177
    %s2190 = scalar_lea.vmem [#allocation1], 1
    %2191 = vst [vmem:[%s2190] ss:$4 sm:$0xff] %v2178
    %s2192 = scalar_lea.vmem [#allocation1], 2
    %2193 = vst [vmem:[%s2192] ss:$4 sm:$0xff] %v2179
    %s2194 = scalar_lea.vmem [#allocation1], 3
    %2195 = vst [vmem:[%s2194] ss:$4 sm:$0xff] %v2180
    %s2196 = scalar_lea.vmem [#allocation1], 32
    %2197 = vst [vmem:[%s2196] ss:$4 sm:$0xff] %v2181
    %s2198 = scalar_lea.vmem [#allocation1], 33
    %2199 = vst [vmem:[%s2198] ss:$4 sm:$0xff] %v2182
    %v2200 = vld.sshfl [vmem:[#allocation1] sm:$0xff pattern:$0x73625140]
    %v2201 = vld.sshfl [vmem:[#allocation1 + $0x8] sm:$0xff pattern:$0x73625140]
    %v2202 = vld.sshfl [vmem:[#allocation1 + $0x20] sm:$0xff pattern:$0x73625140]
    %v2203 = vld.sshfl [vmem:[#allocation1 + $0x28] sm:$0xff pattern:$0x73625140]
    %v2208 = vsel %vm944, %v2202, 0.0
    %v2209 = vadd.f32 %v2200, %v2208
    %v2210 = vrot.slane %v2209, 4
    %v2211 = vadd.f32 %v2209, %v2210
    %v2212 = vrot.slane %v2211, 2
    %v2213 = vadd.f32 %v2211, %v2212
    %v2214 = vrot.slane %v2213, 1
    %v2215 = vadd.f32 %v2213, %v2214
    %v2216 = vsel %vm944, %v2203, 0.0
    %v2217 = vadd.f32 %v2201, %v2216
    %v2218 = vrot.slane %v2217, 4
    %v2219 = vadd.f32 %v2217, %v2218
    %v2220 = vrot.slane %v2219, 2
    %v2221 = vadd.f32 %v2219, %v2220
    %v2222 = vrot.slane %v2221, 1
    %v2223 = vadd.f32 %v2221, %v2222
    %v2224 = vld [vmem:[%s7] sm:$0xff]
    %v2225 = vld [vmem:[%s7 + $0x8] sm:$0xff]
    %v2226 = vld [vmem:[%s7 + $0x10] sm:$0xff]
    %v2227 = vld [vmem:[%s7 + $0x18] sm:$0xff]
    %v2228 = vld [vmem:[%s7 + $0x20] sm:$0xff]
    %v2229 = vld [vmem:[%s7 + $0x28] sm:$0xff]
    %v2230 = vld [vmem:[%s7 + $0x30] sm:$0xff]
    %v2231 = vld [vmem:[%s7 + $0x38] sm:$0xff]
    %v2232 = vld [vmem:[%s7 + $0x40] sm:$0xff]
    %v2233 = vld [vmem:[%s7 + $0x48] sm:$0xff]
    %v2234 = vld [vmem:[%s7 + $0x50] sm:$0xff]
    %v2235 = vld [vmem:[%s7 + $0x58] sm:$0xff]
    %v2236 = vld [vmem:[%s7 + $0x60] sm:$0xff]
    %v2237 = vld [vmem:[%s7 + $0x68] sm:$0xff]
    %v2238 = vld [vmem:[%s7 + $0x70] sm:$0xff]
    %v2239 = vld [vmem:[%s7 + $0x78] sm:$0xff]
    %v2240 = vld [vmem:[%s7 + $0x80] sm:$0xff]
    %v2241 = vld [vmem:[%s7 + $0x88] sm:$0xff]
    %v2242 = vld [vmem:[%s7 + $0x90] sm:$0xff]
    %v2243 = vld [vmem:[%s7 + $0x98] sm:$0xff]
    %v2244 = vld [vmem:[%s7 + $0xa0] sm:$0xff]
    %v2245 = vld [vmem:[%s7 + $0xa8] sm:$0xff]
    %v2246 = vld [vmem:[%s7 + $0xb0] sm:$0xff]
    %v2247 = vld [vmem:[%s7 + $0xb8] sm:$0xff]
    %v2248 = vld [vmem:[%s7 + $0xc0] sm:$0xff]
    %v2249 = vld [vmem:[%s7 + $0xc8] sm:$0xff]
    %v2250 = vld [vmem:[%s7 + $0xd0] sm:$0xff]
    %v2251 = vld [vmem:[%s7 + $0xd8] sm:$0xff]
    %v2252 = vld [vmem:[%s7 + $0xe0] sm:$0xff]
    %v2253 = vld [vmem:[%s7 + $0xe8] sm:$0xff]
    %v2254 = vld [vmem:[%s7 + $0xf0] sm:$0xff]
    %v2255 = vld [vmem:[%s7 + $0xf8] sm:$0xff]
    %2256 = vmatpush.msra.mxu0 %v2239
    %2257 = vmatpush.msra.mxu0 %v2238
    %2258 = vmatpush.msra.mxu0 %v2237
    %2259 = vmatpush.msra.mxu0 %v2236
    %2260 = vmatpush.msra.mxu0 %v2235
    %2261 = vmatpush.msra.mxu0 %v2234
    %2262 = vmatpush.msra.mxu0 %v2233
    %2263 = vmatpush.msra.mxu0 %v2232
    %2264 = vmatpush.msra.mxu0 %v2231
    %2265 = vmatpush.msra.mxu0 %v2230
    %2266 = vmatpush.msra.mxu0 %v2229
    %2267 = vmatpush.msra.mxu0 %v2228
    %2268 = vmatpush.msra.mxu0 %v2227
    %2269 = vmatpush.msra.mxu0 %v2226
    %2270 = vmatpush.msra.mxu0 %v2225
    %2271 = vmatpush.msra.mxu0 %v2224
    %2272 = vmatmul.f32.gmra.mxu0 %v2168
    %v2273 = vpop.f32.mrf.mxu0
    %v2274 = vadd.f32 0.0, %v2273
    %2275 = vdwg.mxu0
    %2276 = vmatpush.msra.mxu0 %v2255
    %2277 = vmatpush.msra.mxu0 %v2254
    %2278 = vmatpush.msra.mxu0 %v2253
    %2279 = vmatpush.msra.mxu0 %v2252
    %2280 = vmatpush.msra.mxu0 %v2251
    %2281 = vmatpush.msra.mxu0 %v2250
    %2282 = vmatpush.msra.mxu0 %v2249
    %2283 = vmatpush.msra.mxu0 %v2248
    %2284 = vmatpush.msra.mxu0 %v2247
    %2285 = vmatpush.msra.mxu0 %v2246
    %2286 = vmatpush.msra.mxu0 %v2245
    %2287 = vmatpush.msra.mxu0 %v2244
    %2288 = vmatpush.msra.mxu0 %v2243
    %2289 = vmatpush.msra.mxu0 %v2242
    %2290 = vmatpush.msra.mxu0 %v2241
    %2291 = vmatpush.msra.mxu0 %v2240
    %2292 = vmatmul.f32.gmra.mxu0 %v2176
    %v2293 = vpop.f32.mrf.mxu0
    %v2294 = vadd.f32 %v2274, %v2293
    %2295 = vdwg.mxu0
    %v2296 = vmul.f32 %v2294, %v1086
    %2297 = vmatpush.msra.mxu0 %v2239
    %2298 = vmatpush.msra.mxu0 %v2238
    %2299 = vmatpush.msra.mxu0 %v2237
    %2300 = vmatpush.msra.mxu0 %v2236
    %2301 = vmatpush.msra.mxu0 %v2235
    %2302 = vmatpush.msra.mxu0 %v2234
    %2303 = vmatpush.msra.mxu0 %v2233
    %2304 = vmatpush.msra.mxu0 %v2232
    %2305 = vmatpush.msra.mxu0 %v2231
    %2306 = vmatpush.msra.mxu0 %v2230
    %2307 = vmatpush.msra.mxu0 %v2229
    %2308 = vmatpush.msra.mxu0 %v2228
    %2309 = vmatpush.msra.mxu0 %v2227
    %2310 = vmatpush.msra.mxu0 %v2226
    %2311 = vmatpush.msra.mxu0 %v2225
    %2312 = vmatpush.msra.mxu0 %v2224
    %2313 = vmatmul.f32.gmra.mxu0 %v2215
    %v2314 = vpop.f32.mrf.mxu0
    %v2315 = vadd.f32 0.0, %v2314
    %2316 = vdwg.mxu0
    %2317 = vmatpush.msra.mxu0 %v2255
    %2318 = vmatpush.msra.mxu0 %v2254
    %2319 = vmatpush.msra.mxu0 %v2253
    %2320 = vmatpush.msra.mxu0 %v2252
    %2321 = vmatpush.msra.mxu0 %v2251
    %2322 = vmatpush.msra.mxu0 %v2250
    %2323 = vmatpush.msra.mxu0 %v2249
    %2324 = vmatpush.msra.mxu0 %v2248
    %2325 = vmatpush.msra.mxu0 %v2247
    %2326 = vmatpush.msra.mxu0 %v2246
    %2327 = vmatpush.msra.mxu0 %v2245
    %2328 = vmatpush.msra.mxu0 %v2244
    %2329 = vmatpush.msra.mxu0 %v2243
    %2330 = vmatpush.msra.mxu0 %v2242
    %2331 = vmatpush.msra.mxu0 %v2241
    %2332 = vmatpush.msra.mxu0 %v2240
    %2333 = vmatmul.f32.gmra.mxu0 %v2223
    %v2334 = vpop.f32.mrf.mxu0
    %v2335 = vadd.f32 %v2315, %v2334
    %2336 = vdwg.mxu0
    %v2337 = vmul.f32 %v2335, %v1086
    %v2338 = vmul.f32 %v2296, %v2296
    %v2339 = vsub.f32 %v2337, %v2338
    %v2340 = vld [vmem:[%s5] sm:$0x1]
    %v2341 = vadd.f32 %v2339, 1e-05
    %v2342 = vrsqrt.pop %v2341
    %v2343 = vmul.f32 %v2342, %v2341
    %v2344 = vmul.f32 %v2343, %v2342
    %v2345 = vmul.f32 0.5, %v2344
    %v2346 = vsub.f32 1.5, %v2345
    %v2347 = vmul.f32 %v2342, %v2346
    %vm2348 = vweird.f32 %v2341
    %vm2349 = vweird.f32 %v2342
    %vm2350 = vmor %vm2348, %vm2349
    %v2351 = vsel %vm2350, %v2342, %v2347
    %v2352 = vmul.f32 %v2340, %v2351
    %v2353 = vld [vmem:[%s6] sm:$0x1]
    %v2354 = vmul.f32 %v2296, %v2352
    %v2355 = vsub.f32 %v2353, %v2354
    %v2356 = vld [vmem:[%s8] sm:$0xff]
    %v2357 = vld [vmem:[%s8 + $0x8] sm:$0xff]
    %v2358 = vld [vmem:[%s8 + $0x10] sm:$0xff]
    %v2359 = vld [vmem:[%s8 + $0x18] sm:$0xff]
    %v2360 = vld [vmem:[%s8 + $0x20] sm:$0xff]
    %v2361 = vld [vmem:[%s8 + $0x28] sm:$0xff]
    %v2362 = vld [vmem:[%s8 + $0x30] sm:$0xff]
    %v2363 = vld [vmem:[%s8 + $0x38] sm:$0xff]
    %v2365 = vsel %vm1155, %v2352, 0
    %2367 = vmatpush.msra.mxu0 0.0
    %2368 = vmatpush.msra.mxu0 0.0
    %2369 = vmatpush.msra.mxu0 0.0
    %2370 = vmatpush.msra.mxu0 0.0
    %2371 = vmatpush.msra.mxu0 0.0
    %2372 = vmatpush.msra.mxu0 0.0
    %2373 = vmatpush.msra.mxu0 0.0
    %2374 = vmatpush.msra.mxu0 0.0
    %2375 = vmatpush.msra.mxu0 0.0
    %2376 = vmatpush.msra.mxu0 0.0
    %2377 = vmatpush.msra.mxu0 0.0
    %2378 = vmatpush.msra.mxu0 0.0
    %2379 = vmatpush.msra.mxu0 %v2362
    %2380 = vmatpush.msra.mxu0 %v2360
    %2381 = vmatpush.msra.mxu0 %v2358
    %2382 = vmatpush.msra.mxu0 %v2356
    %2383 = vmatmul.f32.gmra.mxu0 %v2365
    %v2384 = vpop.f32.mrf.mxu0
    %v2385 = vadd.f32 0.0, %v2384
    %2386 = vdwg.mxu0
    %2387 = vmatpush.msra.mxu0 0.0
    %2388 = vmatpush.msra.mxu0 0.0
    %2389 = vmatpush.msra.mxu0 0.0
    %2390 = vmatpush.msra.mxu0 0.0
    %2391 = vmatpush.msra.mxu0 0.0
    %2392 = vmatpush.msra.mxu0 0.0
    %2393 = vmatpush.msra.mxu0 0.0
    %2394 = vmatpush.msra.mxu0 0.0
    %2395 = vmatpush.msra.mxu0 0.0
    %2396 = vmatpush.msra.mxu0 0.0
    %2397 = vmatpush.msra.mxu0 0.0
    %2398 = vmatpush.msra.mxu0 0.0
    %2399 = vmatpush.msra.mxu0 %v2363
    %2400 = vmatpush.msra.mxu0 %v2361
    %2401 = vmatpush.msra.mxu0 %v2359
    %2402 = vmatpush.msra.mxu0 %v2357
    %2403 = vmatmul.f32.gmra.mxu0 %v2365
    %v2404 = vpop.f32.mrf.mxu0
    %v2405 = vadd.f32 0.0, %v2404
    %2406 = vdwg.mxu0
    %v2408 = vsel %vm1155, %v2355, 0
    %2410 = vmatpush.msra.mxu0 0.0
    %2411 = vmatpush.msra.mxu0 0.0
    %2412 = vmatpush.msra.mxu0 0.0
    %2413 = vmatpush.msra.mxu0 0.0
    %2414 = vmatpush.msra.mxu0 0.0
    %2415 = vmatpush.msra.mxu0 0.0
    %2416 = vmatpush.msra.mxu0 0.0
    %2417 = vmatpush.msra.mxu0 0.0
    %2418 = vmatpush.msra.mxu0 0.0
    %2419 = vmatpush.msra.mxu0 0.0
    %2420 = vmatpush.msra.mxu0 0.0
    %2421 = vmatpush.msra.mxu0 0.0
    %2422 = vmatpush.msra.mxu0 %v2362
    %2423 = vmatpush.msra.mxu0 %v2360
    %2424 = vmatpush.msra.mxu0 %v2358
    %2425 = vmatpush.msra.mxu0 %v2356
    %2426 = vmatmul.f32.gmra.mxu0 %v2408
    %v2427 = vpop.f32.mrf.mxu0
    %v2428 = vadd.f32 0.0, %v2427
    %2429 = vdwg.mxu0
    %2430 = vmatpush.msra.mxu0 0.0
    %2431 = vmatpush.msra.mxu0 0.0
    %2432 = vmatpush.msra.mxu0 0.0
    %2433 = vmatpush.msra.mxu0 0.0
    %2434 = vmatpush.msra.mxu0 0.0
    %2435 = vmatpush.msra.mxu0 0.0
    %2436 = vmatpush.msra.mxu0 0.0
    %2437 = vmatpush.msra.mxu0 0.0
    %2438 = vmatpush.msra.mxu0 0.0
    %2439 = vmatpush.msra.mxu0 0.0
    %2440 = vmatpush.msra.mxu0 0.0
    %2441 = vmatpush.msra.mxu0 0.0
    %2442 = vmatpush.msra.mxu0 %v2363
    %2443 = vmatpush.msra.mxu0 %v2361
    %2444 = vmatpush.msra.mxu0 %v2359
    %2445 = vmatpush.msra.mxu0 %v2357
    %2446 = vmatmul.f32.gmra.mxu0 %v2408
    %v2447 = vpop.f32.mrf.mxu0
    %v2448 = vadd.f32 0.0, %v2447
    %2449 = vdwg.mxu0
    %v2450 = vperm.slane %v2385, 0
    %v2451 = vperm.slane %v2405, 0
    %v2454 = vrot.slane %v2451, 6
    %v2455 = vsel %vm90, %v2450, %v2454
    %v2456 = vsel %vm92, %v2450, %v2454
    %v2457 = vrot.slane %v2456, 2
    %v2458 = vsel %vm95, %v2450, %v2454
    %v2459 = vrot.slane %v2458, 4
    %v2460 = vsel %vm1252, %v2454, %v2450
    %v2461 = vrot.slane %v2460, 6
    %v2466 = vmul.f32 %v2126, %v2455
    %v2467 = vmul.f32 %v2128, %v2457
    %v2468 = vmul.f32 %v2130, %v2459
    %v2469 = vmul.f32 %v2131, %v2461
    %v2470 = vmul.f32 %v2133, %v2455
    %v2471 = vmul.f32 %v2135, %v2457
    %v2472 = vperm.slane %v2428, 0
    %v2473 = vperm.slane %v2448, 0
    %v2476 = vrot.slane %v2473, 6
    %v2477 = vsel %vm90, %v2472, %v2476
    %v2478 = vsel %vm92, %v2472, %v2476
    %v2479 = vrot.slane %v2478, 2
    %v2480 = vsel %vm95, %v2472, %v2476
    %v2481 = vrot.slane %v2480, 4
    %v2482 = vsel %vm1252, %v2476, %v2472
    %v2483 = vrot.slane %v2482, 6
    %v2488 = vadd.f32 %v2466, %v2477
    %v2489 = vadd.f32 %v2467, %v2479
    %v2490 = vadd.f32 %v2468, %v2481
    %v2491 = vadd.f32 %v2469, %v2483
    %v2492 = vadd.f32 %v2470, %v2477
    %v2493 = vadd.f32 %v2471, %v2479
    %v2494 = vmax.f32 %v2488, 0.0
    %v2495 = vmax.f32 %v2489, 0.0
    %v2496 = vmax.f32 %v2490, 0.0
    %v2497 = vmax.f32 %v2491, 0.0
    %v2498 = vmax.f32 %v2492, 0.0
    %v2499 = vmax.f32 %v2493, 0.0
    %v2500 = vadd.f32 %v91, %v2494
    %v2501 = vadd.f32 %v94, %v2495
    %v2502 = vadd.f32 %v97, %v2496
    %v2503 = vadd.f32 %v98, %v2497
    %v2504 = vadd.f32 %v100, %v2498
    %v2505 = vadd.f32 %v102, %v2499
    %v2506 = vmax.f32 %v2500, 0.0
    %v2507 = vmax.f32 %v2501, 0.0
    %v2508 = vmax.f32 %v2502, 0.0
    %v2509 = vmax.f32 %v2503, 0.0
    %v2510 = vmax.f32 %v2504, 0.0
    %v2511 = vmax.f32 %v2505, 0.0
    %2516 = vst [vmem:[#allocation1] ss:$4 sm:$0xff] %v2506
    %s2517 = scalar_lea.vmem [#allocation1], 1
    %2518 = vst [vmem:[%s2517] ss:$4 sm:$0xff] %v2507
    %v2519 = vld.sshfl [vmem:[#allocation1] sm:$0xff pattern:$0x73625140]
    %v2520 = vld.sshfl [vmem:[#allocation1 + $0x8] sm:$0xff pattern:$0x73625140]
    %s2521 = scalar_lea.vmem [#allocation1], 32
    %2522 = vst [vmem:[%s2521] ss:$4 sm:$0xff] %v2509
    %s2523 = scalar_lea.vmem [#allocation1], 33
    %2524 = vst [vmem:[%s2523] ss:$4 sm:$0xff] %v2510
    %v2525 = vld.sshfl [vmem:[#allocation1 + $0x20] sm:$0xff pattern:$0x73625140]
    %v2526 = vld.sshfl [vmem:[#allocation1 + $0x28] sm:$0xff pattern:$0x73625140]
    %vm2531 = vcmask 1042432
    %v2532 = vsel %vm2531, %v2519, 0.0
    %v2533 = vrot.slane %v2532, 4
    %v2534 = vadd.f32 %v2532, %v2533
    %v2535 = vrot.slane %v2534, 2
    %v2536 = vadd.f32 %v2534, %v2535
    %v2537 = vrot.slane %v2536, 1
    %v2538 = vadd.f32 %v2536, %v2537
    %v2539 = vsel %vm2531, %v2520, 0.0
    %v2540 = vrot.slane %v2539, 4
    %v2541 = vadd.f32 %v2539, %v2540
    %v2542 = vrot.slane %v2541, 2
    %v2543 = vadd.f32 %v2541, %v2542
    %v2544 = vrot.slane %v2543, 1
    %v2545 = vadd.f32 %v2543, %v2544
    %v2546 = vsel %vm2531, %v2525, 0.0
    %v2547 = vrot.slane %v2546, 4
    %v2548 = vadd.f32 %v2546, %v2547
    %v2549 = vrot.slane %v2548, 2
    %v2550 = vadd.f32 %v2548, %v2549
    %v2551 = vrot.slane %v2550, 1
    %v2552 = vadd.f32 %v2550, %v2551
    %v2553 = vsel %vm2531, %v2526, 0.0
    %v2554 = vrot.slane %v2553, 4
    %v2555 = vadd.f32 %v2553, %v2554
    %v2556 = vrot.slane %v2555, 2
    %v2557 = vadd.f32 %v2555, %v2556
    %v2558 = vrot.slane %v2557, 1
    %v2559 = vadd.f32 %v2557, %v2558
    %2562 = vst [vmem:[#allocation1] ss:$4 sm:$0xff] %v2507
    %s2563 = scalar_lea.vmem [#allocation1], 1
    %2564 = vst [vmem:[%s2563] ss:$4 sm:$0xff] %v2508
    %v2565 = vld.sshfl [vmem:[#allocation1] sm:$0xff pattern:$0x73625140]
    %v2566 = vld.sshfl [vmem:[#allocation1 + $0x8] sm:$0xff pattern:$0x73625140]
    %s2567 = scalar_lea.vmem [#allocation1], 32
    %2568 = vst [vmem:[%s2567] ss:$4 sm:$0xff] %v2510
    %s2569 = scalar_lea.vmem [#allocation1], 33
    %2570 = vst [vmem:[%s2569] ss:$4 sm:$0xff] %v2511
    %v2571 = vld.sshfl [vmem:[#allocation1 + $0x20] sm:$0xff pattern:$0x73625140]
    %v2572 = vld.sshfl [vmem:[#allocation1 + $0x28] sm:$0xff pattern:$0x73625140]
    %v2573 = vrot.slane %v2565, 1
    %v2574 = vrot.slane %v2566, 1
    %v2575 = vrot.slane %v2571, 1
    %v2576 = vrot.slane %v2572, 1
    %v2581 = vsel %vm2531, %v2573, 0.0
    %v2582 = vrot.slane %v2581, 4
    %v2583 = vadd.f32 %v2581, %v2582
    %v2584 = vrot.slane %v2583, 2
    %v2585 = vadd.f32 %v2583, %v2584
    %v2586 = vrot.slane %v2585, 1
    %v2587 = vadd.f32 %v2585, %v2586
    %v2588 = vsel %vm2531, %v2574, 0.0
    %v2589 = vrot.slane %v2588, 4
    %v2590 = vadd.f32 %v2588, %v2589
    %v2591 = vrot.slane %v2590, 2
    %v2592 = vadd.f32 %v2590, %v2591
    %v2593 = vrot.slane %v2592, 1
    %v2594 = vadd.f32 %v2592, %v2593
    %v2595 = vsel %vm2531, %v2575, 0.0
    %v2596 = vrot.slane %v2595, 4
    %v2597 = vadd.f32 %v2595, %v2596
    %v2598 = vrot.slane %v2597, 2
    %v2599 = vadd.f32 %v2597, %v2598
    %v2600 = vrot.slane %v2599, 1
    %v2601 = vadd.f32 %v2599, %v2600
    %v2602 = vsel %vm2531, %v2576, 0.0
    %v2603 = vrot.slane %v2602, 4
    %v2604 = vadd.f32 %v2602, %v2603
    %v2605 = vrot.slane %v2604, 2
    %v2606 = vadd.f32 %v2604, %v2605
    %v2607 = vrot.slane %v2606, 1
    %v2608 = vadd.f32 %v2606, %v2607
    %v2609 = vpack.c.bf16 %v2538, %v2538
    %v2610 = vpack.c.bf16 %v2545, %v2545
    %v2611 = vpack.c.bf16 %v2552, %v2552
    %v2612 = vpack.c.bf16 %v2559, %v2559
    %v2613 = vld [vmem:[%s9] sm:$0xf]
    %v2614 = vld [vmem:[%s9 + $0x4] sm:$0xf]
    %v2615 = vld [vmem:[%s9 + $0x8] sm:$0xf]
    %v2616 = vld [vmem:[%s9 + $0xc] sm:$0xf]
    %v2617 = vld [vmem:[%s9 + $0x10] sm:$0xf]
    %v2618 = vld [vmem:[%s9 + $0x14] sm:$0xf]
    %v2619 = vld [vmem:[%s9 + $0x18] sm:$0xf]
    %v2620 = vld [vmem:[%s9 + $0x1c] sm:$0xf]
    %v2621 = vld [vmem:[%s9 + $0x20] sm:$0xf]
    %v2622 = vld [vmem:[%s9 + $0x24] sm:$0xf]
    %v2623 = vld [vmem:[%s9 + $0x28] sm:$0xf]
    %v2624 = vld [vmem:[%s9 + $0x2c] sm:$0xf]
    %v2625 = vld [vmem:[%s9 + $0x30] sm:$0xf]
    %v2626 = vld [vmem:[%s9 + $0x34] sm:$0xf]
    %v2627 = vld [vmem:[%s9 + $0x38] sm:$0xf]
    %v2628 = vld [vmem:[%s9 + $0x3c] sm:$0xf]
    %v2629 = vld [vmem:[%s9 + $0x40] sm:$0xf]
    %v2630 = vld [vmem:[%s9 + $0x44] sm:$0xf]
    %v2631 = vld [vmem:[%s9 + $0x48] sm:$0xf]
    %v2632 = vld [vmem:[%s9 + $0x4c] sm:$0xf]
    %v2633 = vld [vmem:[%s9 + $0x50] sm:$0xf]
    %v2634 = vld [vmem:[%s9 + $0x54] sm:$0xf]
    %v2635 = vld [vmem:[%s9 + $0x58] sm:$0xf]
    %v2636 = vld [vmem:[%s9 + $0x5c] sm:$0xf]
    %v2637 = vld [vmem:[%s9 + $0x60] sm:$0xf]
    %v2638 = vld [vmem:[%s9 + $0x64] sm:$0xf]
    %v2639 = vld [vmem:[%s9 + $0x68] sm:$0xf]
    %v2640 = vld [vmem:[%s9 + $0x6c] sm:$0xf]
    %v2641 = vld [vmem:[%s9 + $0x70] sm:$0xf]
    %v2642 = vld [vmem:[%s9 + $0x74] sm:$0xf]
    %v2643 = vld [vmem:[%s9 + $0x78] sm:$0xf]
    %v2644 = vld [vmem:[%s9 + $0x7c] sm:$0xf]
    %v2645 = vpack.c.bf16 %v2587, %v2587
    %v2646 = vpack.c.bf16 %v2594, %v2594
    %v2647 = vpack.c.bf16 %v2601, %v2601
    %v2648 = vpack.c.bf16 %v2608, %v2608
    %v2649 = vld [vmem:[%s10] sm:$0xf]
    %v2650 = vld [vmem:[%s10 + $0x4] sm:$0xf]
    %v2651 = vld [vmem:[%s10 + $0x8] sm:$0xf]
    %v2652 = vld [vmem:[%s10 + $0xc] sm:$0xf]
    %v2653 = vld [vmem:[%s10 + $0x10] sm:$0xf]
    %v2654 = vld [vmem:[%s10 + $0x14] sm:$0xf]
    %v2655 = vld [vmem:[%s10 + $0x18] sm:$0xf]
    %v2656 = vld [vmem:[%s10 + $0x1c] sm:$0xf]
    %v2657 = vld [vmem:[%s10 + $0x20] sm:$0xf]
    %v2658 = vld [vmem:[%s10 + $0x24] sm:$0xf]
    %v2659 = vld [vmem:[%s10 + $0x28] sm:$0xf]
    %v2660 = vld [vmem:[%s10 + $0x2c] sm:$0xf]
    %v2661 = vld [vmem:[%s10 + $0x30] sm:$0xf]
    %v2662 = vld [vmem:[%s10 + $0x34] sm:$0xf]
    %v2663 = vld [vmem:[%s10 + $0x38] sm:$0xf]
    %v2664 = vld [vmem:[%s10 + $0x3c] sm:$0xf]
    %v2665 = vld [vmem:[%s10 + $0x40] sm:$0xf]
    %v2666 = vld [vmem:[%s10 + $0x44] sm:$0xf]
    %v2667 = vld [vmem:[%s10 + $0x48] sm:$0xf]
    %v2668 = vld [vmem:[%s10 + $0x4c] sm:$0xf]
    %v2669 = vld [vmem:[%s10 + $0x50] sm:$0xf]
    %v2670 = vld [vmem:[%s10 + $0x54] sm:$0xf]
    %v2671 = vld [vmem:[%s10 + $0x58] sm:$0xf]
    %v2672 = vld [vmem:[%s10 + $0x5c] sm:$0xf]
    %v2673 = vld [vmem:[%s10 + $0x60] sm:$0xf]
    %v2674 = vld [vmem:[%s10 + $0x64] sm:$0xf]
    %v2675 = vld [vmem:[%s10 + $0x68] sm:$0xf]
    %v2676 = vld [vmem:[%s10 + $0x6c] sm:$0xf]
    %v2677 = vld [vmem:[%s10 + $0x70] sm:$0xf]
    %v2678 = vld [vmem:[%s10 + $0x74] sm:$0xf]
    %v2679 = vld [vmem:[%s10 + $0x78] sm:$0xf]
    %v2680 = vld [vmem:[%s10 + $0x7c] sm:$0xf]
    %v2685 = vunpack.c.l.b16 %v2645
    %v2686 = vunpack.c.l.b16 %v2646
    %v2687 = vunpack.c.l.b16 %v2647
    %v2688 = vunpack.c.l.b16 %v2648
    %vm2689 = vcmask 1041409
    %v2690 = vsel %vm2689, %v2687, %v2685
    %v2691 = vsel %vm2689, %v2688, %v2686
    %v2692 = vpack.c.b16 %v2690, %v2690
    %v2693 = vpack.c.b16 %v2691, %v2691
    %v2728 = vunpack.c.l.b16 %v2649
    %v2729 = vunpack.c.l.b16 %v2650
    %v2730 = vunpack.c.l.b16 %v2651
    %v2731 = vunpack.c.l.b16 %v2652
    %v2732 = vunpack.c.l.b16 %v2653
    %v2733 = vunpack.c.l.b16 %v2654
    %v2734 = vunpack.c.l.b16 %v2655
    %v2735 = vunpack.c.l.b16 %v2656
    %v2736 = vunpack.c.l.b16 %v2657
    %v2737 = vunpack.c.l.b16 %v2658
    %v2738 = vunpack.c.l.b16 %v2659
    %v2739 = vunpack.c.l.b16 %v2660
    %v2740 = vunpack.c.l.b16 %v2661
    %v2741 = vunpack.c.l.b16 %v2662
    %v2742 = vunpack.c.l.b16 %v2663
    %v2743 = vunpack.c.l.b16 %v2664
    %v2744 = vunpack.c.l.b16 %v2665
    %v2745 = vunpack.c.l.b16 %v2666
    %v2746 = vunpack.c.l.b16 %v2667
    %v2747 = vunpack.c.l.b16 %v2668
    %v2748 = vunpack.c.l.b16 %v2669
    %v2749 = vunpack.c.l.b16 %v2670
    %v2750 = vunpack.c.l.b16 %v2671
    %v2751 = vunpack.c.l.b16 %v2672
    %v2752 = vunpack.c.l.b16 %v2673
    %v2753 = vunpack.c.l.b16 %v2674
    %v2754 = vunpack.c.l.b16 %v2675
    %v2755 = vunpack.c.l.b16 %v2676
    %v2756 = vunpack.c.l.b16 %v2677
    %v2757 = vunpack.c.l.b16 %v2678
    %v2758 = vunpack.c.l.b16 %v2679
    %v2759 = vunpack.c.l.b16 %v2680
    %v2760 = vpack.c.b16 %v2729, %v2728
    %v2761 = vpack.c.b16 %v2731, %v2730
    %v2762 = vpack.c.b16 %v2733, %v2732
    %v2763 = vpack.c.b16 %v2735, %v2734
    %v2764 = vpack.c.b16 %v2737, %v2736
    %v2765 = vpack.c.b16 %v2739, %v2738
    %v2766 = vpack.c.b16 %v2741, %v2740
    %v2767 = vpack.c.b16 %v2743, %v2742
    %v2768 = vpack.c.b16 %v2745, %v2744
    %v2769 = vpack.c.b16 %v2747, %v2746
    %v2770 = vpack.c.b16 %v2749, %v2748
    %v2771 = vpack.c.b16 %v2751, %v2750
    %v2772 = vpack.c.b16 %v2753, %v2752
    %v2773 = vpack.c.b16 %v2755, %v2754
    %v2774 = vpack.c.b16 %v2757, %v2756
    %v2775 = vpack.c.b16 %v2759, %v2758
    %2792 = vmatpush.bf16.msra.mxu0 %v2767
    %2793 = vmatpush.bf16.msra.mxu0 %v2766
    %2794 = vmatpush.bf16.msra.mxu0 %v2765
    %2795 = vmatpush.bf16.msra.mxu0 %v2764
    %2796 = vmatpush.bf16.msra.mxu0 %v2763
    %2797 = vmatpush.bf16.msra.mxu0 %v2762
    %2798 = vmatpush.bf16.msra.mxu0 %v2761
    %2799 = vmatpush.bf16.msra.mxu0 %v2760
    %2800 = vmatmul.bf16.gmra.mxu0 %v2692
    %v2801 = vpop.f32.mrf.mxu0
    %v2802 = vadd.f32 0.0, %v2801
    %v2803 = vpop.f32.mrf.mxu0
    %2804 = vdwg.mxu0
    %2805 = vmatpush.bf16.msra.mxu0 %v2775
    %2806 = vmatpush.bf16.msra.mxu0 %v2774
    %2807 = vmatpush.bf16.msra.mxu0 %v2773
    %2808 = vmatpush.bf16.msra.mxu0 %v2772
    %2809 = vmatpush.bf16.msra.mxu0 %v2771
    %2810 = vmatpush.bf16.msra.mxu0 %v2770
    %2811 = vmatpush.bf16.msra.mxu0 %v2769
    %2812 = vmatpush.bf16.msra.mxu0 %v2768
    %2813 = vmatmul.bf16.gmra.mxu0 %v2693
    %v2814 = vpop.f32.mrf.mxu0
    %v2815 = vadd.f32 %v2802, %v2814
    %v2816 = vpop.f32.mrf.mxu0
    %2817 = vdwg.mxu0
    %v2822 = vunpack.c.l.b16 %v2609
    %v2823 = vunpack.c.l.b16 %v2610
    %v2824 = vunpack.c.l.b16 %v2611
    %v2825 = vunpack.c.l.b16 %v2612
    %v2826 = vsel %vm2689, %v2824, %v2822
    %v2827 = vsel %vm2689, %v2825, %v2823
    %v2828 = vpack.c.b16 %v2826, %v2826
    %v2829 = vpack.c.b16 %v2827, %v2827
    %v2864 = vunpack.c.l.b16 %v2613
    %v2865 = vunpack.c.l.b16 %v2614
    %v2866 = vunpack.c.l.b16 %v2615
    %v2867 = vunpack.c.l.b16 %v2616
    %v2868 = vunpack.c.l.b16 %v2617
    %v2869 = vunpack.c.l.b16 %v2618
    %v2870 = vunpack.c.l.b16 %v2619
    %v2871 = vunpack.c.l.b16 %v2620
    %v2872 = vunpack.c.l.b16 %v2621
    %v2873 = vunpack.c.l.b16 %v2622
    %v2874 = vunpack.c.l.b16 %v2623
    %v2875 = vunpack.c.l.b16 %v2624
    %v2876 = vunpack.c.l.b16 %v2625
    %v2877 = vunpack.c.l.b16 %v2626
    %v2878 = vunpack.c.l.b16 %v2627
    %v2879 = vunpack.c.l.b16 %v2628
    %v2880 = vunpack.c.l.b16 %v2629
    %v2881 = vunpack.c.l.b16 %v2630
    %v2882 = vunpack.c.l.b16 %v2631
    %v2883 = vunpack.c.l.b16 %v2632
    %v2884 = vunpack.c.l.b16 %v2633
    %v2885 = vunpack.c.l.b16 %v2634
    %v2886 = vunpack.c.l.b16 %v2635
    %v2887 = vunpack.c.l.b16 %v2636
    %v2888 = vunpack.c.l.b16 %v2637
    %v2889 = vunpack.c.l.b16 %v2638
    %v2890 = vunpack.c.l.b16 %v2639
    %v2891 = vunpack.c.l.b16 %v2640
    %v2892 = vunpack.c.l.b16 %v2641
    %v2893 = vunpack.c.l.b16 %v2642
    %v2894 = vunpack.c.l.b16 %v2643
    %v2895 = vunpack.c.l.b16 %v2644
    %v2896 = vpack.c.b16 %v2865, %v2864
    %v2897 = vpack.c.b16 %v2867, %v2866
    %v2898 = vpack.c.b16 %v2869, %v2868
    %v2899 = vpack.c.b16 %v2871, %v2870
    %v2900 = vpack.c.b16 %v2873, %v2872
    %v2901 = vpack.c.b16 %v2875, %v2874
    %v2902 = vpack.c.b16 %v2877, %v2876
    %v2903 = vpack.c.b16 %v2879, %v2878
    %v2904 = vpack.c.b16 %v2881, %v2880
    %v2905 = vpack.c.b16 %v2883, %v2882
    %v2906 = vpack.c.b16 %v2885, %v2884
    %v2907 = vpack.c.b16 %v2887, %v2886
    %v2908 = vpack.c.b16 %v2889, %v2888
    %v2909 = vpack.c.b16 %v2891, %v2890
    %v2910 = vpack.c.b16 %v2893, %v2892
    %v2911 = vpack.c.b16 %v2895, %v2894
    %2928 = vmatpush.bf16.msra.mxu0 %v2903
    %2929 = vmatpush.bf16.msra.mxu0 %v2902
    %2930 = vmatpush.bf16.msra.mxu0 %v2901
    %2931 = vmatpush.bf16.msra.mxu0 %v2900
    %2932 = vmatpush.bf16.msra.mxu0 %v2899
    %2933 = vmatpush.bf16.msra.mxu0 %v2898
    %2934 = vmatpush.bf16.msra.mxu0 %v2897
    %2935 = vmatpush.bf16.msra.mxu0 %v2896
    %2936 = vmatmul.bf16.gmra.mxu0 %v2828
    %v2937 = vpop.f32.mrf.mxu0
    %v2938 = vadd.f32 %v2815, %v2937
    %v2939 = vpop.f32.mrf.mxu0
    %2940 = vdwg.mxu0
    %2941 = vmatpush.bf16.msra.mxu0 %v2911
    %2942 = vmatpush.bf16.msra.mxu0 %v2910
    %2943 = vmatpush.bf16.msra.mxu0 %v2909
    %2944 = vmatpush.bf16.msra.mxu0 %v2908
    %2945 = vmatpush.bf16.msra.mxu0 %v2907
    %2946 = vmatpush.bf16.msra.mxu0 %v2906
    %2947 = vmatpush.bf16.msra.mxu0 %v2905
    %2948 = vmatpush.bf16.msra.mxu0 %v2904
    %2949 = vmatmul.bf16.gmra.mxu0 %v2829
    %v2950 = vpop.f32.mrf.mxu0
    %v2951 = vadd.f32 %v2938, %v2950
    %v2952 = vpop.f32.mrf.mxu0
    %2953 = vdwg.mxu0
    %v2954 = vld [vmem:[%s11] sm:$0x1]
    %v2956 = vperm.slane %v2954, 0
    %v2958 = vadd.f32 %v2951, %v2956
    %v2959 = vpack.c.bf16 %v2958, %v2958
    %v2960 = vld [vmem:[%s12] sm:$0xf]
    %v2961 = vld [vmem:[%s12 + $0x4] sm:$0xf]
    %v2962 = vld [vmem:[%s12 + $0x8] sm:$0xf]
    %v2963 = vld [vmem:[%s12 + $0xc] sm:$0xf]
    %v2964 = vld [vmem:[%s12 + $0x10] sm:$0xf]
    %v2965 = vld [vmem:[%s12 + $0x14] sm:$0xf]
    %v2966 = vld [vmem:[%s12 + $0x18] sm:$0xf]
    %v2967 = vld [vmem:[%s12 + $0x1c] sm:$0xf]
    %v2968 = vld [vmem:[%s13] sm:$0x1]
    %v2970 = vperm.slane %v2968, 0
    %v2980 = vunpack.c.l.b16 %v2960
    %v2981 = vunpack.c.l.b16 %v2961
    %v2982 = vunpack.c.l.b16 %v2962
    %v2983 = vunpack.c.l.b16 %v2963
    %v2984 = vunpack.c.l.b16 %v2964
    %v2985 = vunpack.c.l.b16 %v2965
    %v2986 = vunpack.c.l.b16 %v2966
    %v2987 = vunpack.c.l.b16 %v2967
    %v2988 = vpack.c.b16 %v2981, %v2980
    %v2989 = vpack.c.b16 %v2983, %v2982
    %v2990 = vpack.c.b16 %v2985, %v2984
    %v2991 = vpack.c.b16 %v2987, %v2986
    %vm2996 = vcmask 523264
    %v2998 = vsel %vm2996, %v2959, 0
    %3000 = vmatpush.bf16.msra.mxu0 0
    %3001 = vmatpush.bf16.msra.mxu0 0
    %3002 = vmatpush.bf16.msra.mxu0 0
    %3003 = vmatpush.bf16.msra.mxu0 0
    %3004 = vmatpush.bf16.msra.mxu0 %v2991
    %3005 = vmatpush.bf16.msra.mxu0 %v2990
    %3006 = vmatpush.bf16.msra.mxu0 %v2989
    %3007 = vmatpush.bf16.msra.mxu0 %v2988
    %3008 = vmatmul.bf16.gmra.mxu0 %v2998
    %v3009 = vpop.f32.mrf.mxu0
    %v3010 = vadd.f32 %v2970, %v3009
    %v3011 = vpop.f32.mrf.mxu0
    %3012 = vdwg.mxu0
    %v3013 = vpack.c.bf16 %v3010, %v3010
    %v3014 = vld [vmem:[%s14] sm:$0xf]
    %v3015 = vld [vmem:[%s14 + $0x4] sm:$0xf]
    %v3016 = vld [vmem:[%s15] sm:$0x1]
    %v3018 = vperm.slane %v3016, 0
    %v3022 = vunpack.c.l.b16 %v3014
    %v3023 = vunpack.c.l.b16 %v3015
    %v3024 = vpack.c.b16 %v3023, %v3022
    %vm3026 = vcmask 130048
    %v3028 = vsel %vm3026, %v3013, 0
    %3030 = vmatpush.bf16.msra.mxu0 0
    %3031 = vmatpush.bf16.msra.mxu0 0
    %3032 = vmatpush.bf16.msra.mxu0 0
    %3033 = vmatpush.bf16.msra.mxu0 0
    %3034 = vmatpush.bf16.msra.mxu0 0
    %3035 = vmatpush.bf16.msra.mxu0 0
    %3036 = vmatpush.bf16.msra.mxu0 0
    %3037 = vmatpush.bf16.msra.mxu0 %v3024
    %3038 = vmatmul.bf16.gmra.mxu0 %v3028
    %v3039 = vpop.f32.mrf.mxu0
    %v3040 = vadd.f32 %v3018, %v3039
    %v3041 = vpop.f32.mrf.mxu0
    %3042 = vdwg.mxu0
    %v3043 = vpack.c.bf16 %v3040, %v3040
    %v3044 = vld [vmem:[%s16] sm:$0x1]
    %v3045 = vld [vmem:[%s17] sm:$0x1]
    %v3047 = vperm.slane %v3045, 0
    %vm3049 = vcmask 15360
    %v3051 = vsel %vm3049, %v3043, 0
    %vm3053 = vcmask 1040384
    %v3055 = vsel %vm3053, %v3044, 0
    %3057 = vmatpush.bf16.msra.mxu0 0
    %3058 = vmatpush.bf16.msra.mxu0 0
    %3059 = vmatpush.bf16.msra.mxu0 0
    %3060 = vmatpush.bf16.msra.mxu0 0
    %3061 = vmatpush.bf16.msra.mxu0 0
    %3062 = vmatpush.bf16.msra.mxu0 0
    %3063 = vmatpush.bf16.msra.mxu0 0
    %3064 = vmatpush.bf16.msra.mxu0 %v3055
    %3065 = vmatmul.bf16.gmra.mxu0 %v3051
    %v3066 = vpop.f32.mrf.mxu0
    %v3067 = vadd.f32 %v3047, %v3066
    %v3068 = vpop.f32.mrf.mxu0
    %3069 = vdwg.mxu0
    %vm3070 = vcmask 9216
    %v3071 = vsel %vm3070, %v3067, -inf
    %3072 = vmax.xlane.f32.xlu0 %v3071
    %v3073 = vpop.xlane.xlu0 %3072
    %v3074 = vsub.f32 %v3067, %v3073
    %v3075 = vmul.f32 %v3074, 1.442695
    %v3076 = vpow.pop %v3075
    %v3077 = vsel %vm3070, %v3076, 0.0
    %3078 = vadd.xlane.f32.xlu0 %v3077
    %v3079 = vpop.xlane.xlu0 %3078
    %v3080 = vrcp.pop %v3079
    %v3081 = vmul.f32 %v3079, %v3080
    %v3082 = vsub.f32 1.0, %v3081
    %v3083 = vmul.f32 %v3080, %v3082
    %v3084 = vadd.f32 %v3080, %v3083
    %vm3085 = vweird.f32 %v3079
    %vm3086 = vweird.f32 %v3080
    %vm3087 = vmor %vm3085, %vm3086
    %v3088 = vsel %vm3087, %v3080, %v3084
    %v3089 = vand.u32 2147483647, %v3079
    %vm3090 = vcmp.eq.f32.partialorder %v3089, 8.507059e+37
    %v3091 = vand.u32 %v3079, 2147483648
    %v3092 = vor.u32 1.1754944e-38, %v3091
    %v3093 = vsel %vm3090, %v3092, %v3088
    %v3094 = vmul.f32 %v3076, %v3093
    %3095 = vst.msk [vmem:[#allocation3] sm:$0x3] %vm3070, %v3094
    %3096 = vst.msk [vmem:[#allocation5] sm:$0x3] %vm3070, %v3067
    // Predicated region
    $region74: #{resnet_forward.5} parent=1 // pred_check
      _
    $region75: #{resnet_forward.5} parent=1 // pred_check_branch
      %3098 = sbr.rel (0) target = $region77
    $region76: #{resnet_forward.5} parent=1 // pred_region
      %3100 = vsyncadd [#allocation4], 0
      %s3102 = sshll.u32 [#allocation3], 4
      %s3103 = int_to_ptr.vmem [resolvable:$true] %s3102
      %s3104 = sshll.u32 %s18, 4
      %s3105 = int_to_ptr.hbm [resolvable:$true] %s3104
      %3107 = dma.vmem_to_hbm [thread:$0]  %s3103, 32, %s3105, [#allocation4]
    $region77: #{resnet_forward.5} parent=1 // pred_fallthru
      _
    // Predicated region
    $region78: #{resnet_forward.5} parent=1 // pred_check
      _
    $region79: #{resnet_forward.5} parent=1 // pred_check_branch
      %3109 = sbr.rel (0) target = $region81
    $region80: #{resnet_forward.5} parent=1 // pred_region
      %3111 = vsyncadd [#allocation6], 0
      %s3113 = sshll.u32 [#allocation5], 4
      %s3114 = int_to_ptr.vmem [resolvable:$true] %s3113
      %s3115 = sshll.u32 %s19, 4
      %s3116 = int_to_ptr.hbm [resolvable:$true] %s3115
      %3118 = dma.vmem_to_hbm [thread:$0]  %s3114, 32, %s3116, [#allocation6]
    $region81: #{resnet_forward.5} parent=1 // pred_fallthru
      _
    // Predicated region
    $region82: #{resnet_forward.5} parent=1 // pred_check
      _
    $region83: #{resnet_forward.5} parent=1 // pred_check_branch
      %3120 = sbr.rel (0) target = $region85
    $region84: #{resnet_forward.5} parent=1 // pred_region
      %3122 = dma.done [#allocation4], 32
    $region85: #{resnet_forward.5} parent=1 // pred_fallthru
      _
    // Predicated region
    $region86: #{resnet_forward.5} parent=1 // pred_check
      _
    $region87: #{resnet_forward.5} parent=1 // pred_check_branch
      %3124 = sbr.rel (0) target = $region89
    $region88: #{resnet_forward.5} parent=1 // pred_region
      %3126 = dma.done [#allocation6], 32
    $region89: #{resnet_forward.5} parent=1 // pred_fallthru
      _
    %3127 = vsyncpa [#allocation4], 1
    %3128 = vsyncpa [#allocation6], 1

</llo_original>
